<compile_context>
chip_gen: v7x
topology: tpu7x:2x2x1
jax: 0.10.0
libtpu: 0.0.40
codegen_flags: <defaults>
</compile_context>

<pallas_src>
import jax
import jax.numpy as jnp
from jax.experimental import pallas as pl
from jax.experimental.pallas import tpu as pltpu

HIDDEN = 1024          # fixed by the module architecture
MINIBATCH = 256        # InstanceLabelResizeLayer.minibatch
TM_MAX = 512           # row-tile cap (amortizes weight streaming, fits VMEM)
TK_MAX = 2048          # reduction (C_in) tile cap for layer-1 streaming


def _round_up(x, m):
    return (x + m - 1) // m * m


def _choose_tiles(n, c_in):
    """Adaptive tile sizes: (TM, TK, n_pad, c_pad)."""
    tm = min(TM_MAX, _round_up(max(n, 1), 128))
    n_pad = _round_up(n, tm)
    c_pad = _round_up(c_in, 256)
    if c_pad <= TK_MAX:
        tk = c_pad                       # single K step (small in_channel)
    else:
        tk = TK_MAX                      # >= 2 K steps: W1 DMA overlaps MXU
        c_pad = _round_up(c_in, tk)
    return tm, tk, n_pad, c_pad


def _instance_da_kernel(x_ref, w1_ref, b1_ref, w2_ref, b2_ref, w3_ref, b3_ref,
                        out_ref, acc_ref):
    k = pl.program_id(1)

    @pl.when(k == 0)
    def _():
        acc_ref[...] = jnp.zeros_like(acc_ref)

    # Layer-1 partial product: x arrives as f32 (no wrapper-side cast pass),
    # cast to bf16 on the VPU right before the MXU; f32 accumulation.
    acc_ref[...] += jnp.dot(x_ref[...].astype(jnp.bfloat16), w1_ref[...],
                            preferred_element_type=jnp.float32)

    @pl.when(k == pl.num_programs(1) - 1)
    def _():
        # Linear(in_channel, 1024) epilogue: bias + ReLU (dropout = identity).
        h1 = jnp.maximum(acc_ref[...] + b1_ref[...], 0.0)

        # Linear(1024, 1024) + ReLU (dropout = identity).
        h2 = jnp.dot(h1.astype(jnp.bfloat16), w2_ref[...],
                     preferred_element_type=jnp.float32)
        h2 = jnp.maximum(h2 + b2_ref[...], 0.0)

        # Linear(1024, 1) as VPU multiply + XLU lane reduction (avoids a
        # 1-wide MXU matmul and a padded (1024, 1) weight tile).
        logit = jnp.sum(h2 * w3_ref[...].astype(jnp.float32),
                        axis=-1, keepdims=True) + b3_ref[...]
        out_ref[...] = jax.nn.sigmoid(logit).astype(out_ref.dtype)


def instance_da_forward(x, params, need_backprop):
    """x: [N, C_in] f32, need_backprop: [B] f32 -> (scores [N,1], label [N,1])."""
    w1, b1, w2, b2, w3_row, b3 = params
    n, c_in = x.shape

    tm, tk, n_pad, c_pad = _choose_tiles(n, c_in)

    # x stays f32 (bf16 cast happens inside the kernel).  Zero-pad only when
    # shapes are not already tile-aligned (no-op copy otherwise).
    x_p = x
    if (n_pad != n) or (c_pad != c_in):
        x_p = jnp.pad(x_p, ((0, n_pad - n), (0, c_pad - c_in)))

    # W1 is normally pre-padded/pre-cast in init_params; pad here only as a
    # fallback if the caller supplied an unpadded weight.
    w1p = w1
    if w1p.shape[0] != c_pad:
        w1p = jnp.pad(w1p, ((0, c_pad - w1p.shape[0]), (0, 0)))

    grid = (n_pad // tm, c_pad // tk)
    num_row_tiles = grid[0]

    cost = pl.CostEstimate(
        flops=2 * n_pad * (c_pad * HIDDEN + HIDDEN * HIDDEN + HIDDEN),
        transcendentals=n_pad,
        bytes_accessed=(x_p.size * 4
                        + num_row_tiles * (w1p.size * 2 + w2.size * 2
                                           + w3_row.size * 2)
                        + (b1.size + b2.size + b3.size) * 4
                        + n_pad * 4),
    )

    scores_padded = pl.pallas_call(
        _instance_da_kernel,
        out_shape=jax.ShapeDtypeStruct((n_pad, 1), jnp.float32),
        grid_spec=pltpu.PrefetchScalarGridSpec(
            num_scalar_prefetch=0,
            grid=grid,
            in_specs=[
                pl.BlockSpec((tm, tk), lambda i, k: (i, k)),          # x (f32)
                pl.BlockSpec((tk, HIDDEN), lambda i, k: (k, 0)),      # W1 (bf16)
                pl.BlockSpec((1, HIDDEN), lambda i, k: (0, 0)),       # b1
                pl.BlockSpec((HIDDEN, HIDDEN), lambda i, k: (0, 0)),  # W2 (resident)
                pl.BlockSpec((1, HIDDEN), lambda i, k: (0, 0)),       # b2
                pl.BlockSpec((1, HIDDEN), lambda i, k: (0, 0)),       # w3 row
                pl.BlockSpec((1, 1), lambda i, k: (0, 0)),            # b3
            ],
            out_specs=pl.BlockSpec((tm, 1), lambda i, k: (i, 0)),
            scratch_shapes=[pltpu.VMEM((tm, HIDDEN), jnp.float32)],
        ),
        compiler_params=pltpu.CompilerParams(
            dimension_semantics=("parallel", "arbitrary")),
        cost_estimate=cost,
    )(x_p, w1p, b1, w2, b2, w3_row, b3)

    scores = scores_padded[:n]

    # InstanceLabelResizeLayer (plain-JAX glue outside the kernel): rows of
    # block i get need_backprop[i]; rows beyond len(need_backprop)*256 keep the
    # layer's init value 1.0 (matches the original numpy implementation).
    b = need_backprop.shape[0]
    row_idx = jnp.arange(n) // MINIBATCH
    safe_idx = jnp.minimum(row_idx, b - 1)
    label = jnp.where(row_idx < b, need_backprop[safe_idx], 1.0)
    label = label.reshape(n, 1).astype(jnp.float32)

    return scores, label


def init_params(key, in_channel):
    """Deterministic synthetic parameters.

    Weights are stored pre-transposed [in, out], pre-cast to bf16 (halves
    weight HBM traffic) and W1 is pre-padded to the kernel's C_in tiling, so
    the per-call wrapper does no weight-side work.  Biases stay f32.  The
    final layer's weight is stored as a (1, 1024) row for the VPU/XLU path.
    """
    _, _, _, c_pad = _choose_tiles(1, in_channel)
    k1, k2, k3 = jax.random.split(key, 3)
    scale1 = 1.0 / jnp.sqrt(in_channel)
    scale2 = 1.0 / jnp.sqrt(HIDDEN)
    w1 = jax.random.uniform(k1, (in_channel, HIDDEN), jnp.float32,
                            -scale1, scale1).astype(jnp.bfloat16)
    if c_pad != in_channel:
        w1 = jnp.pad(w1, ((0, c_pad - in_channel), (0, 0)))
    b1 = jnp.zeros((1, HIDDEN), jnp.float32)
    w2 = jax.random.uniform(k2, (HIDDEN, HIDDEN), jnp.float32,
                            -scale2, scale2).astype(jnp.bfloat16)
    b2 = jnp.zeros((1, HIDDEN), jnp.float32)
    w3_row = jax.random.uniform(k3, (1, HIDDEN), jnp.float32,
                                -scale2, scale2).astype(jnp.bfloat16)
    b3 = jnp.zeros((1, 1), jnp.float32)
    return (w1, b1, w2, b2, w3_row, b3)


if __name__ == "__main__":
    # Small shapes: N=8 ROI feature rows, in_channel=512 (module default is
    # 4096, parameterized via __init__; hidden width 1024 is architectural).
    IN_CHANNEL = 512
    N = 8

    key = jax.random.PRNGKey(0)
    kx, kp = jax.random.split(key)
    x = jax.random.normal(kx, (N, IN_CHANNEL), jnp.float32)
    need_backprop = jnp.ones((1,), jnp.float32)   # one image's domain label

    params = init_params(kp, IN_CHANNEL)

    scores, label = instance_da_forward(x, params, need_backprop)
    jax.block_until_ready((scores, label))

    assert scores.shape == (N, 1) and label.shape == (N, 1)
    assert bool(jnp.all((scores >= 0.0) & (scores <= 1.0)))
    assert bool(jnp.all(label == 1.0))

    print("KERNEL_OK")
</pallas_src>

<mosaic_0001>
module attributes {stable_mosaic.version = 11 : i64} {
  func.func @_instance_da_kernel(%arg0: i32, %arg1: i32, %arg2: memref<128x512xf32, #tpu.memory_space<vmem>>, %arg3: memref<512x1024xbf16, #tpu.memory_space<vmem>>, %arg4: memref<1x1024xf32, #tpu.memory_space<vmem>>, %arg5: memref<1024x1024xbf16, #tpu.memory_space<vmem>>, %arg6: memref<1x1024xf32, #tpu.memory_space<vmem>>, %arg7: memref<1x1024xbf16, #tpu.memory_space<vmem>>, %arg8: memref<1x1xf32, #tpu.memory_space<vmem>>, %arg9: memref<128x1xf32, #tpu.memory_space<vmem>>, %arg10: memref<128x1024xf32, #tpu.memory_space<vmem>>) attributes {dimension_semantics = [#tpu.dimension_semantics<parallel>, #tpu.dimension_semantics<arbitrary>], iteration_bounds = array<i64: 1, 1>, scalar_prefetch = 0 : i64, scratch_operands = 1 : i64, tpu.core_type = #tpu.core_type<tc>, window_params = [{transform_indices = @transform_0, window_bounds = array<i64: 128, 512>}, {transform_indices = @transform_1, window_bounds = array<i64: 512, 1024>}, {pipeline_mode = #tpu.pipeline_mode<synchronous>, transform_indices = @transform_2, window_bounds = array<i64: 1, 1024>}, {pipeline_mode = #tpu.pipeline_mode<synchronous>, transform_indices = @transform_3, window_bounds = array<i64: 1024, 1024>}, {pipeline_mode = #tpu.pipeline_mode<synchronous>, transform_indices = @transform_4, window_bounds = array<i64: 1, 1024>}, {pipeline_mode = #tpu.pipeline_mode<synchronous>, transform_indices = @transform_5, window_bounds = array<i64: 1, 1024>}, {pipeline_mode = #tpu.pipeline_mode<synchronous>, transform_indices = @transform_6, window_bounds = array<i64: 1, 1>}, {transform_indices = @transform_7, window_bounds = array<i64: 128, 1>}]} {
    %c0_i32 = arith.constant 0 : i32
    %0 = arith.cmpi eq, %arg1, %c0_i32 : i32
    %1 = arith.extui %0 : i1 to i32
    %c0_i32_0 = arith.constant 0 : i32
    %2 = arith.cmpi ne, %1, %c0_i32_0 : i32
    scf.if %2 {
      %cst_10 = arith.constant 0.000000e+00 : f32
      %13 = vector.broadcast %cst_10 : f32 to vector<128x1024xf32>
      %c0_11 = arith.constant 0 : index
      %c0_12 = arith.constant 0 : index
      %14 = vector.load %arg10[%c0_11, %c0_12] : memref<128x1024xf32, #tpu.memory_space<vmem>>, vector<128x1024xf32>
      tpu.vector_store %arg10[%c0_11, %c0_12], %13 {strides = array<i32>} : memref<128x1024xf32, #tpu.memory_space<vmem>>, vector<128x1024xf32>,
    } else {
    }
    %c0 = arith.constant 0 : index
    %c0_1 = arith.constant 0 : index
    %3 = vector.load %arg10[%c0, %c0_1] : memref<128x1024xf32, #tpu.memory_space<vmem>>, vector<128x1024xf32>
    %c0_2 = arith.constant 0 : index
    %c0_3 = arith.constant 0 : index
    %4 = vector.load %arg2[%c0_2, %c0_3] : memref<128x512xf32, #tpu.memory_space<vmem>>, vector<128x512xf32>
    %5 = arith.truncf %4 : vector<128x512xf32> to vector<128x512xbf16>
    %c0_4 = arith.constant 0 : index
    %c0_5 = arith.constant 0 : index
    %6 = vector.load %arg3[%c0_4, %c0_5] : memref<512x1024xbf16, #tpu.memory_space<vmem>>, vector<512x1024xbf16>
    %cst = arith.constant dense<0.000000e+00> : vector<128x1024xf32>
    %7 = tpu.matmul %5, %6, %cst {dimension_numbers = #tpu.dot_dimension_numbers<[1], [0], [0], [1], [0, 0, 1, 1], [], []>} : vector<128x512xbf16>, vector<512x1024xbf16>, vector<128x1024xf32> -> vector<128x1024xf32>
    %8 = arith.addf %3, %7 : vector<128x1024xf32>
    %c0_6 = arith.constant 0 : index
    %c0_7 = arith.constant 0 : index
    %9 = vector.load %arg10[%c0_6, %c0_7] : memref<128x1024xf32, #tpu.memory_space<vmem>>, vector<128x1024xf32>
    tpu.vector_store %arg10[%c0_6, %c0_7], %8 {strides = array<i32>} : memref<128x1024xf32, #tpu.memory_space<vmem>>, vector<128x1024xf32>,
    %c0_i32_8 = arith.constant 0 : i32
    %10 = arith.cmpi eq, %arg1, %c0_i32_8 : i32
    %11 = arith.extui %10 : i1 to i32
    %c0_i32_9 = arith.constant 0 : i32
    %12 = arith.cmpi ne, %11, %c0_i32_9 : i32
    scf.if %12 {
      %c0_10 = arith.constant 0 : index
      %c0_11 = arith.constant 0 : index
      %13 = vector.load %arg10[%c0_10, %c0_11] : memref<128x1024xf32, #tpu.memory_space<vmem>>, vector<128x1024xf32>
      %c0_12 = arith.constant 0 : index
      %c0_13 = arith.constant 0 : index
      %14 = vector.load %arg4[%c0_12, %c0_13] : memref<1x1024xf32, #tpu.memory_space<vmem>>, vector<1x1024xf32>
      %15 = vector.broadcast %14 : vector<1x1024xf32> to vector<128x1024xf32>
      %16 = arith.addf %13, %15 : vector<128x1024xf32>
      %cst_14 = arith.constant 0.000000e+00 : f32
      %17 = vector.broadcast %cst_14 : f32 to vector<128x1024xf32>
      %18 = arith.maximumf %16, %17 : vector<128x1024xf32>
      %19 = arith.truncf %18 : vector<128x1024xf32> to vector<128x1024xbf16>
      %c0_15 = arith.constant 0 : index
      %c0_16 = arith.constant 0 : index
      %20 = vector.load %arg5[%c0_15, %c0_16] : memref<1024x1024xbf16, #tpu.memory_space<vmem>>, vector<1024x1024xbf16>
      %cst_17 = arith.constant dense<0.000000e+00> : vector<128x1024xf32>
      %21 = tpu.matmul %19, %20, %cst_17 {dimension_numbers = #tpu.dot_dimension_numbers<[1], [0], [0], [1], [0, 0, 1, 1], [], []>} : vector<128x1024xbf16>, vector<1024x1024xbf16>, vector<128x1024xf32> -> vector<128x1024xf32>
      %c0_18 = arith.constant 0 : index
      %c0_19 = arith.constant 0 : index
      %22 = vector.load %arg6[%c0_18, %c0_19] : memref<1x1024xf32, #tpu.memory_space<vmem>>, vector<1x1024xf32>
      %23 = vector.broadcast %22 : vector<1x1024xf32> to vector<128x1024xf32>
      %24 = arith.addf %21, %23 : vector<128x1024xf32>
      %cst_20 = arith.constant 0.000000e+00 : f32
      %25 = vector.broadcast %cst_20 : f32 to vector<128x1024xf32>
      %26 = arith.maximumf %24, %25 : vector<128x1024xf32>
      %c0_21 = arith.constant 0 : index
      %c0_22 = arith.constant 0 : index
      %27 = vector.load %arg7[%c0_21, %c0_22] : memref<1x1024xbf16, #tpu.memory_space<vmem>>, vector<1x1024xbf16>
      %28 = arith.extf %27 : vector<1x1024xbf16> to vector<1x1024xf32>
      %29 = vector.broadcast %28 : vector<1x1024xf32> to vector<128x1024xf32>
      %30 = arith.mulf %26, %29 : vector<128x1024xf32>
      %cst_23 = arith.constant dense<0.000000e+00> : vector<128xf32>
      %31 = vector.multi_reduction <add>, %30, %cst_23 [1] : vector<128x1024xf32> to vector<128xf32>
      %32 = vector.shape_cast %31 : vector<128xf32> to vector<128x1xf32>
      %c0_24 = arith.constant 0 : index
      %c0_25 = arith.constant 0 : index
      %33 = vector.load %arg8[%c0_24, %c0_25] : memref<1x1xf32, #tpu.memory_space<vmem>>, vector<1x1xf32>
      %34 = vector.broadcast %33 : vector<1x1xf32> to vector<128x1xf32>
      %35 = arith.addf %32, %34 : vector<128x1xf32>
      %36 = arith.negf %35 : vector<128x1xf32>
      %37 = math.exp %36 : vector<128x1xf32>
      %cst_26 = arith.constant 1.000000e+00 : f32
      %38 = vector.broadcast %cst_26 : f32 to vector<128x1xf32>
      %39 = arith.addf %38, %37 : vector<128x1xf32>
      %40 = arith.divf %38, %39 : vector<128x1xf32>
      %c0_27 = arith.constant 0 : index
      %c0_28 = arith.constant 0 : index
      %41 = vector.load %arg9[%c0_27, %c0_28] : memref<128x1xf32, #tpu.memory_space<vmem>>, vector<128x1xf32>
      tpu.vector_store %arg9[%c0_27, %c0_28], %40 {strides = array<i32>} : memref<128x1xf32, #tpu.memory_space<vmem>>, vector<128x1xf32>,
    } else {
    }
    return
  }
  func.func @transform_0(%arg0: i32, %arg1: i32) -> (i32, i32) {
    %c0_i32 = arith.constant 0 : i32
    return %arg0, %arg1 : i32, i32
  }
  func.func @transform_1(%arg0: i32, %arg1: i32) -> (i32, i32) {
    %c0_i32 = arith.constant 0 : i32
    %c0_i32_0 = arith.constant 0 : i32
    return %arg1, %c0_i32 : i32, i32
  }
  func.func @transform_2(%arg0: i32, %arg1: i32) -> (i32, i32) {
    %c0_i32 = arith.constant 0 : i32
    %c0_i32_0 = arith.constant 0 : i32
    %c0_i32_1 = arith.constant 0 : i32
    return %c0_i32, %c0_i32_0 : i32, i32
  }
  func.func @transform_3(%arg0: i32, %arg1: i32) -> (i32, i32) {
    %c0_i32 = arith.constant 0 : i32
    %c0_i32_0 = arith.constant 0 : i32
    %c0_i32_1 = arith.constant 0 : i32
    return %c0_i32, %c0_i32_0 : i32, i32
  }
  func.func @transform_4(%arg0: i32, %arg1: i32) -> (i32, i32) {
    %c0_i32 = arith.constant 0 : i32
    %c0_i32_0 = arith.constant 0 : i32
    %c0_i32_1 = arith.constant 0 : i32
    return %c0_i32, %c0_i32_0 : i32, i32
  }
  func.func @transform_5(%arg0: i32, %arg1: i32) -> (i32, i32) {
    %c0_i32 = arith.constant 0 : i32
    %c0_i32_0 = arith.constant 0 : i32
    %c0_i32_1 = arith.constant 0 : i32
    return %c0_i32, %c0_i32_0 : i32, i32
  }
  func.func @transform_6(%arg0: i32, %arg1: i32) -> (i32, i32) {
    %c0_i32 = arith.constant 0 : i32
    %c0_i32_0 = arith.constant 0 : i32
    %c0_i32_1 = arith.constant 0 : i32
    return %c0_i32, %c0_i32_0 : i32, i32
  }
  func.func @transform_7(%arg0: i32, %arg1: i32) -> (i32, i32) {
    %c0_i32 = arith.constant 0 : i32
    %c0_i32_0 = arith.constant 0 : i32
    return %arg0, %c0_i32 : i32, i32
  }
}

</mosaic_0001>

<llo_original>
// kernel: tpu_custom_call.1
$region0: #{tpu_custom_call.1}
  #allocation0 [shape = 'u32[]', space=smem, size = 0x4, offset = 0x4, fixed_abs, tag = 'smem constant byte address 0x4 - core index']
  #allocation1 [shape = 'u32[144,128]{1,0:T(1,128)}', space=vmem, size = 0x12000, scoped, tag = 'internal scratch']
  #allocation2 [shape = 'f32[128,1024]{1,0:T(8,128)}', space=vmem, size = 0x80000, scoped, tag = 'scratch operand']
  #allocation3 [shape = 'f32[1,1]{1,0:T(1,128)S(1)}', space=vmem, size = 0x200, scoped, tag = 'scoped memory for tpu_custom_call.1']
  %s0 = inlined_call_operand.hbm [shape: f32[128,512], index: 0, kind: input, shape index: {}]
  %s1 = inlined_call_operand.hbm [shape: bf16[512,1024], index: 1, kind: input, shape index: {}]
  %s2 = inlined_call_operand.hbm [shape: f32[1,1024], index: 2, kind: input, shape index: {}]
  %s3 = inlined_call_operand.hbm [shape: bf16[1024,1024], index: 3, kind: input, shape index: {}]
  %s4 = inlined_call_operand.hbm [shape: f32[1,1024], index: 4, kind: input, shape index: {}]
  %s5 = inlined_call_operand.hbm [shape: bf16[1,1024], index: 5, kind: input, shape index: {}]
  %s6 = inlined_call_operand.<no memory space> [shape: f32[1,1], index: 6, kind: input, shape index: {}]
  %s7 = inlined_call_operand.vmem [shape: f32[128,1], index: 7, kind: output, shape index: {}]
  %s8 = sld [smem:[#allocation0]]
  $region70: #{tpu_custom_call.1} parent=0
    _
  %s10 = ssub.s32 1, %s8
  %s11 = scalar_select 0, %s10, %s8
  %v12 = vstv %s6
  %13 = vst [vmem:[#allocation3] sm:$0x1] %v12
  $region1: #{tpu_custom_call.1} parent=0
    #allocation4 [shape = 'u8[262144]{0}', space=vmem, size = 0x40000, scoped, tag = 'input window, operand 0, single buffered']
    #allocation5 [shape = 's32[1]{0}', space=sflag, size = 0x4, scoped, tag = 'scoped memory for tpu_custom_call.1']
    #allocation6 [shape = 'u8[1048576]{0}', space=vmem, size = 0x100000, scoped, tag = 'input window, operand 1, single buffered']
    #allocation7 [shape = 's32[1]{0}', space=sflag, size = 0x4, scoped, tag = 'scoped memory for tpu_custom_call.1']
    #allocation8 [shape = 'u8[4096]{0}', space=vmem, size = 0x1000, scoped, tag = 'input window, operand 2, single buffered']
    #allocation9 [shape = 'u8[2097152]{0}', space=vmem, size = 0x200000, scoped, tag = 'input window, operand 3, single buffered']
    #allocation10 [shape = 's32[1]{0}', space=sflag, size = 0x4, scoped, tag = 'scoped memory for tpu_custom_call.1']
    #allocation11 [shape = 'u8[4096]{0}', space=vmem, size = 0x1000, scoped, tag = 'input window, operand 4, single buffered']
    #allocation12 [shape = 'u8[4096]{0}', space=vmem, size = 0x1000, scoped, tag = 'input window, operand 5, single buffered']
    #allocation13 [shape = 's32[1]{0}', space=sflag, size = 0x4, scoped, tag = 'scoped memory for tpu_custom_call.1']
    %14 = vsyncpa [#allocation5], 0
    %15 = vsyncpa [#allocation7], 0
    %16 = vsyncpa [#allocation10], 0
    %17 = vsyncpa [#allocation13], 0
    // Predicated region
    $region2: #{tpu_custom_call.1} parent=1 // pred_check
      _
    $region3: #{tpu_custom_call.1} parent=1 // pred_check_branch
      %19 = sbr.rel (0) target = $region5
    $region4: #{tpu_custom_call.1} parent=1 // pred_region
      %s21 = ssub.s32 8192, 8192
      %22 = vsyncadd [#allocation5], %s21
      %s23 = sshll.u32 [#allocation4], 4
      %s24 = int_to_ptr.vmem [resolvable:$true] %s23
      %29 = dma.hbm_to_vmem [thread:$0]  %s0, 8192, %s24, [#allocation5], 512, 512, 32
    $region5: #{tpu_custom_call.1} parent=1 // pred_fallthru
      _
    // Predicated region
    $region6: #{tpu_custom_call.1} parent=1 // pred_check
      _
    $region7: #{tpu_custom_call.1} parent=1 // pred_check_branch
      %31 = sbr.rel (0) target = $region9
    $region8: #{tpu_custom_call.1} parent=1 // pred_region
      %s33 = ssub.s32 32768, 32768
      %34 = vsyncadd [#allocation7], %s33
      %s35 = sshll.u32 [#allocation6], 4
      %s36 = int_to_ptr.vmem [resolvable:$true] %s35
      %41 = dma.hbm_to_vmem [thread:$0]  %s1, 32768, %s36, [#allocation7], 512, 512, 32
    $region9: #{tpu_custom_call.1} parent=1 // pred_fallthru
      _
    // Predicated region
    $region10: #{tpu_custom_call.1} parent=1 // pred_check
      _
    $region11: #{tpu_custom_call.1} parent=1 // pred_check_branch
      %43 = sbr.rel (0) target = $region13
    $region12: #{tpu_custom_call.1} parent=1 // pred_region
      %s45 = ssub.s32 128, 128
      %46 = vsyncadd [#allocation7], %s45
      %s48 = sshll.u32 [#allocation8], 4
      %s49 = int_to_ptr.vmem [resolvable:$true] %s48
      %51 = dma.hbm_to_vmem [thread:$0]  %s2, 128, %s49, [#allocation7]
    $region13: #{tpu_custom_call.1} parent=1 // pred_fallthru
      _
    // Predicated region
    $region14: #{tpu_custom_call.1} parent=1 // pred_check
      _
    $region15: #{tpu_custom_call.1} parent=1 // pred_check_branch
      %53 = sbr.rel (0) target = $region17
    $region16: #{tpu_custom_call.1} parent=1 // pred_region
      %s55 = ssub.s32 65536, 65536
      %56 = vsyncadd [#allocation10], %s55
      %s57 = sshll.u32 [#allocation9], 4
      %s58 = int_to_ptr.vmem [resolvable:$true] %s57
      %63 = dma.hbm_to_vmem [thread:$0]  %s3, 65536, %s58, [#allocation10], 512, 512, 32
    $region17: #{tpu_custom_call.1} parent=1 // pred_fallthru
      _
    // Predicated region
    $region18: #{tpu_custom_call.1} parent=1 // pred_check
      _
    $region19: #{tpu_custom_call.1} parent=1 // pred_check_branch
      %65 = sbr.rel (0) target = $region21
    $region20: #{tpu_custom_call.1} parent=1 // pred_region
      %s67 = ssub.s32 128, 128
      %68 = vsyncadd [#allocation10], %s67
      %s70 = sshll.u32 [#allocation11], 4
      %s71 = int_to_ptr.vmem [resolvable:$true] %s70
      %73 = dma.hbm_to_vmem [thread:$0]  %s4, 128, %s71, [#allocation10]
    $region21: #{tpu_custom_call.1} parent=1 // pred_fallthru
      _
    // Predicated region
    $region22: #{tpu_custom_call.1} parent=1 // pred_check
      _
    $region23: #{tpu_custom_call.1} parent=1 // pred_check_branch
      %75 = sbr.rel (0) target = $region25
    $region24: #{tpu_custom_call.1} parent=1 // pred_region
      %s77 = ssub.s32 128, 128
      %78 = vsyncadd [#allocation13], %s77
      %s80 = sshll.u32 [#allocation12], 4
      %s81 = int_to_ptr.vmem [resolvable:$true] %s80
      %83 = dma.hbm_to_vmem [thread:$0]  %s5, 128, %s81, [#allocation13]
    $region25: #{tpu_custom_call.1} parent=1 // pred_fallthru
      _
    // Predicated region
    $region26: #{tpu_custom_call.1} parent=1 // pred_check
      _
    $region27: #{tpu_custom_call.1} parent=1 // pred_check_branch
      %85 = sbr.rel (0) target = $region29
    $region28: #{tpu_custom_call.1} parent=1 // pred_region
      _
    $region29: #{tpu_custom_call.1} parent=1 // pred_fallthru
      _
    // Predicated region
    $region30: #{tpu_custom_call.1} parent=1 // pred_check
      _
    $region31: #{tpu_custom_call.1} parent=1 // pred_check_branch
      %87 = sbr.rel (0) target = $region33
    $region32: #{tpu_custom_call.1} parent=1 // pred_region
      %88 = dma.done [#allocation5], 8192
    $region33: #{tpu_custom_call.1} parent=1 // pred_fallthru
      _
    // Predicated region
    $region34: #{tpu_custom_call.1} parent=1 // pred_check
      _
    $region35: #{tpu_custom_call.1} parent=1 // pred_check_branch
      %90 = sbr.rel (0) target = $region37
    $region36: #{tpu_custom_call.1} parent=1 // pred_region
      %91 = dma.done [#allocation7], 32768
    $region37: #{tpu_custom_call.1} parent=1 // pred_fallthru
      _
    // Predicated region
    $region38: #{tpu_custom_call.1} parent=1 // pred_check
      _
    $region39: #{tpu_custom_call.1} parent=1 // pred_check_branch
      %93 = sbr.rel (0) target = $region41
    $region40: #{tpu_custom_call.1} parent=1 // pred_region
      %94 = dma.done [#allocation7], 128
    $region41: #{tpu_custom_call.1} parent=1 // pred_fallthru
      _
    // Predicated region
    $region42: #{tpu_custom_call.1} parent=1 // pred_check
      _
    $region43: #{tpu_custom_call.1} parent=1 // pred_check_branch
      %96 = sbr.rel (0) target = $region45
    $region44: #{tpu_custom_call.1} parent=1 // pred_region
      %97 = dma.done [#allocation10], 65536
    $region45: #{tpu_custom_call.1} parent=1 // pred_fallthru
      _
    // Predicated region
    $region46: #{tpu_custom_call.1} parent=1 // pred_check
      _
    $region47: #{tpu_custom_call.1} parent=1 // pred_check_branch
      %99 = sbr.rel (0) target = $region49
    $region48: #{tpu_custom_call.1} parent=1 // pred_region
      %100 = dma.done [#allocation10], 128
    $region49: #{tpu_custom_call.1} parent=1 // pred_fallthru
      _
    // Predicated region
    $region50: #{tpu_custom_call.1} parent=1 // pred_check
      _
    $region51: #{tpu_custom_call.1} parent=1 // pred_check_branch
      %102 = sbr.rel (0) target = $region53
    $region52: #{tpu_custom_call.1} parent=1 // pred_region
      %103 = dma.done [#allocation13], 128
    $region53: #{tpu_custom_call.1} parent=1 // pred_fallthru
      _
    %p104 = scmp.eq.s32.totalorder 0, 0
    // Predicated region
    $region54: #{tpu_custom_call.1} parent=1 // pred_check
      %p105 = pneg %p104
    $region55: #{tpu_custom_call.1} parent=1 // pred_check_branch
      %107 = sbr.rel (%p105) target = $region57
    $region56: #{tpu_custom_call.1} parent=1 // pred_region
      %108 = vst [vmem:[#allocation2] sm:$0xff] 0.0
      %109 = vst [vmem:[#allocation2 + $0x8] sm:$0xff] 0.0
      %110 = vst [vmem:[#allocation2 + $0x10] sm:$0xff] 0.0
      %111 = vst [vmem:[#allocation2 + $0x18] sm:$0xff] 0.0
      %112 = vst [vmem:[#allocation2 + $0x20] sm:$0xff] 0.0
      %113 = vst [vmem:[#allocation2 + $0x28] sm:$0xff] 0.0
      %114 = vst [vmem:[#allocation2 + $0x30] sm:$0xff] 0.0
      %115 = vst [vmem:[#allocation2 + $0x38] sm:$0xff] 0.0
      %116 = vst [vmem:[#allocation2 + $0x40] sm:$0xff] 0.0
      %117 = vst [vmem:[#allocation2 + $0x48] sm:$0xff] 0.0
      %118 = vst [vmem:[#allocation2 + $0x50] sm:$0xff] 0.0
      %119 = vst [vmem:[#allocation2 + $0x58] sm:$0xff] 0.0
      %120 = vst [vmem:[#allocation2 + $0x60] sm:$0xff] 0.0
      %121 = vst [vmem:[#allocation2 + $0x68] sm:$0xff] 0.0
      %122 = vst [vmem:[#allocation2 + $0x70] sm:$0xff] 0.0
      %123 = vst [vmem:[#allocation2 + $0x78] sm:$0xff] 0.0
      %124 = vst [vmem:[#allocation2 + $0x80] sm:$0xff] 0.0
      %125 = vst [vmem:[#allocation2 + $0x88] sm:$0xff] 0.0
      %126 = vst [vmem:[#allocation2 + $0x90] sm:$0xff] 0.0
      %127 = vst [vmem:[#allocation2 + $0x98] sm:$0xff] 0.0
      %128 = vst [vmem:[#allocation2 + $0xa0] sm:$0xff] 0.0
      %129 = vst [vmem:[#allocation2 + $0xa8] sm:$0xff] 0.0
      %130 = vst [vmem:[#allocation2 + $0xb0] sm:$0xff] 0.0
      %131 = vst [vmem:[#allocation2 + $0xb8] sm:$0xff] 0.0
      %132 = vst [vmem:[#allocation2 + $0xc0] sm:$0xff] 0.0
      %133 = vst [vmem:[#allocation2 + $0xc8] sm:$0xff] 0.0
      %134 = vst [vmem:[#allocation2 + $0xd0] sm:$0xff] 0.0
      %135 = vst [vmem:[#allocation2 + $0xd8] sm:$0xff] 0.0
      %136 = vst [vmem:[#allocation2 + $0xe0] sm:$0xff] 0.0
      %137 = vst [vmem:[#allocation2 + $0xe8] sm:$0xff] 0.0
      %138 = vst [vmem:[#allocation2 + $0xf0] sm:$0xff] 0.0
      %139 = vst [vmem:[#allocation2 + $0xf8] sm:$0xff] 0.0
      %140 = vst [vmem:[#allocation2 + $0x100] sm:$0xff] 0.0
      %141 = vst [vmem:[#allocation2 + $0x108] sm:$0xff] 0.0
      %142 = vst [vmem:[#allocation2 + $0x110] sm:$0xff] 0.0
      %143 = vst [vmem:[#allocation2 + $0x118] sm:$0xff] 0.0
      %144 = vst [vmem:[#allocation2 + $0x120] sm:$0xff] 0.0
      %145 = vst [vmem:[#allocation2 + $0x128] sm:$0xff] 0.0
      %146 = vst [vmem:[#allocation2 + $0x130] sm:$0xff] 0.0
      %147 = vst [vmem:[#allocation2 + $0x138] sm:$0xff] 0.0
      %148 = vst [vmem:[#allocation2 + $0x140] sm:$0xff] 0.0
      %149 = vst [vmem:[#allocation2 + $0x148] sm:$0xff] 0.0
      %150 = vst [vmem:[#allocation2 + $0x150] sm:$0xff] 0.0
      %151 = vst [vmem:[#allocation2 + $0x158] sm:$0xff] 0.0
      %152 = vst [vmem:[#allocation2 + $0x160] sm:$0xff] 0.0
      %153 = vst [vmem:[#allocation2 + $0x168] sm:$0xff] 0.0
      %154 = vst [vmem:[#allocation2 + $0x170] sm:$0xff] 0.0
      %155 = vst [vmem:[#allocation2 + $0x178] sm:$0xff] 0.0
      %156 = vst [vmem:[#allocation2 + $0x180] sm:$0xff] 0.0
      %157 = vst [vmem:[#allocation2 + $0x188] sm:$0xff] 0.0
      %158 = vst [vmem:[#allocation2 + $0x190] sm:$0xff] 0.0
      %159 = vst [vmem:[#allocation2 + $0x198] sm:$0xff] 0.0
      %160 = vst [vmem:[#allocation2 + $0x1a0] sm:$0xff] 0.0
      %161 = vst [vmem:[#allocation2 + $0x1a8] sm:$0xff] 0.0
      %162 = vst [vmem:[#allocation2 + $0x1b0] sm:$0xff] 0.0
      %163 = vst [vmem:[#allocation2 + $0x1b8] sm:$0xff] 0.0
      %164 = vst [vmem:[#allocation2 + $0x1c0] sm:$0xff] 0.0
      %165 = vst [vmem:[#allocation2 + $0x1c8] sm:$0xff] 0.0
      %166 = vst [vmem:[#allocation2 + $0x1d0] sm:$0xff] 0.0
      %167 = vst [vmem:[#allocation2 + $0x1d8] sm:$0xff] 0.0
      %168 = vst [vmem:[#allocation2 + $0x1e0] sm:$0xff] 0.0
      %169 = vst [vmem:[#allocation2 + $0x1e8] sm:$0xff] 0.0
      %170 = vst [vmem:[#allocation2 + $0x1f0] sm:$0xff] 0.0
      %171 = vst [vmem:[#allocation2 + $0x1f8] sm:$0xff] 0.0
      %172 = vst [vmem:[#allocation2 + $0x200] sm:$0xff] 0.0
      %173 = vst [vmem:[#allocation2 + $0x208] sm:$0xff] 0.0
      %174 = vst [vmem:[#allocation2 + $0x210] sm:$0xff] 0.0
      %175 = vst [vmem:[#allocation2 + $0x218] sm:$0xff] 0.0
      %176 = vst [vmem:[#allocation2 + $0x220] sm:$0xff] 0.0
      %177 = vst [vmem:[#allocation2 + $0x228] sm:$0xff] 0.0
      %178 = vst [vmem:[#allocation2 + $0x230] sm:$0xff] 0.0
      %179 = vst [vmem:[#allocation2 + $0x238] sm:$0xff] 0.0
      %180 = vst [vmem:[#allocation2 + $0x240] sm:$0xff] 0.0
      %181 = vst [vmem:[#allocation2 + $0x248] sm:$0xff] 0.0
      %182 = vst [vmem:[#allocation2 + $0x250] sm:$0xff] 0.0
      %183 = vst [vmem:[#allocation2 + $0x258] sm:$0xff] 0.0
      %184 = vst [vmem:[#allocation2 + $0x260] sm:$0xff] 0.0
      %185 = vst [vmem:[#allocation2 + $0x268] sm:$0xff] 0.0
      %186 = vst [vmem:[#allocation2 + $0x270] sm:$0xff] 0.0
      %187 = vst [vmem:[#allocation2 + $0x278] sm:$0xff] 0.0
      %188 = vst [vmem:[#allocation2 + $0x280] sm:$0xff] 0.0
      %189 = vst [vmem:[#allocation2 + $0x288] sm:$0xff] 0.0
      %190 = vst [vmem:[#allocation2 + $0x290] sm:$0xff] 0.0
      %191 = vst [vmem:[#allocation2 + $0x298] sm:$0xff] 0.0
      %192 = vst [vmem:[#allocation2 + $0x2a0] sm:$0xff] 0.0
      %193 = vst [vmem:[#allocation2 + $0x2a8] sm:$0xff] 0.0
      %194 = vst [vmem:[#allocation2 + $0x2b0] sm:$0xff] 0.0
      %195 = vst [vmem:[#allocation2 + $0x2b8] sm:$0xff] 0.0
      %196 = vst [vmem:[#allocation2 + $0x2c0] sm:$0xff] 0.0
      %197 = vst [vmem:[#allocation2 + $0x2c8] sm:$0xff] 0.0
      %198 = vst [vmem:[#allocation2 + $0x2d0] sm:$0xff] 0.0
      %199 = vst [vmem:[#allocation2 + $0x2d8] sm:$0xff] 0.0
      %200 = vst [vmem:[#allocation2 + $0x2e0] sm:$0xff] 0.0
      %201 = vst [vmem:[#allocation2 + $0x2e8] sm:$0xff] 0.0
      %202 = vst [vmem:[#allocation2 + $0x2f0] sm:$0xff] 0.0
      %203 = vst [vmem:[#allocation2 + $0x2f8] sm:$0xff] 0.0
      %204 = vst [vmem:[#allocation2 + $0x300] sm:$0xff] 0.0
      %205 = vst [vmem:[#allocation2 + $0x308] sm:$0xff] 0.0
      %206 = vst [vmem:[#allocation2 + $0x310] sm:$0xff] 0.0
      %207 = vst [vmem:[#allocation2 + $0x318] sm:$0xff] 0.0
      %208 = vst [vmem:[#allocation2 + $0x320] sm:$0xff] 0.0
      %209 = vst [vmem:[#allocation2 + $0x328] sm:$0xff] 0.0
      %210 = vst [vmem:[#allocation2 + $0x330] sm:$0xff] 0.0
      %211 = vst [vmem:[#allocation2 + $0x338] sm:$0xff] 0.0
      %212 = vst [vmem:[#allocation2 + $0x340] sm:$0xff] 0.0
      %213 = vst [vmem:[#allocation2 + $0x348] sm:$0xff] 0.0
      %214 = vst [vmem:[#allocation2 + $0x350] sm:$0xff] 0.0
      %215 = vst [vmem:[#allocation2 + $0x358] sm:$0xff] 0.0
      %216 = vst [vmem:[#allocation2 + $0x360] sm:$0xff] 0.0
      %217 = vst [vmem:[#allocation2 + $0x368] sm:$0xff] 0.0
      %218 = vst [vmem:[#allocation2 + $0x370] sm:$0xff] 0.0
      %219 = vst [vmem:[#allocation2 + $0x378] sm:$0xff] 0.0
      %220 = vst [vmem:[#allocation2 + $0x380] sm:$0xff] 0.0
      %221 = vst [vmem:[#allocation2 + $0x388] sm:$0xff] 0.0
      %222 = vst [vmem:[#allocation2 + $0x390] sm:$0xff] 0.0
      %223 = vst [vmem:[#allocation2 + $0x398] sm:$0xff] 0.0
      %224 = vst [vmem:[#allocation2 + $0x3a0] sm:$0xff] 0.0
      %225 = vst [vmem:[#allocation2 + $0x3a8] sm:$0xff] 0.0
      %226 = vst [vmem:[#allocation2 + $0x3b0] sm:$0xff] 0.0
      %227 = vst [vmem:[#allocation2 + $0x3b8] sm:$0xff] 0.0
      %228 = vst [vmem:[#allocation2 + $0x3c0] sm:$0xff] 0.0
      %229 = vst [vmem:[#allocation2 + $0x3c8] sm:$0xff] 0.0
      %230 = vst [vmem:[#allocation2 + $0x3d0] sm:$0xff] 0.0
      %231 = vst [vmem:[#allocation2 + $0x3d8] sm:$0xff] 0.0
      %232 = vst [vmem:[#allocation2 + $0x3e0] sm:$0xff] 0.0
      %233 = vst [vmem:[#allocation2 + $0x3e8] sm:$0xff] 0.0
      %234 = vst [vmem:[#allocation2 + $0x3f0] sm:$0xff] 0.0
      %235 = vst [vmem:[#allocation2 + $0x3f8] sm:$0xff] 0.0
    $region57: #{tpu_custom_call.1} parent=1 // pred_fallthru
      _
    %v236 = vld [vmem:[#allocation2] sm:$0xff]
    %v237 = vld [vmem:[#allocation2 + $0x8] sm:$0xff]
    %v238 = vld [vmem:[#allocation2 + $0x10] sm:$0xff]
    %v239 = vld [vmem:[#allocation2 + $0x18] sm:$0xff]
    %v240 = vld [vmem:[#allocation2 + $0x20] sm:$0xff]
    %v241 = vld [vmem:[#allocation2 + $0x28] sm:$0xff]
    %v242 = vld [vmem:[#allocation2 + $0x30] sm:$0xff]
    %v243 = vld [vmem:[#allocation2 + $0x38] sm:$0xff]
    %v244 = vld [vmem:[#allocation2 + $0x40] sm:$0xff]
    %v245 = vld [vmem:[#allocation2 + $0x48] sm:$0xff]
    %v246 = vld [vmem:[#allocation2 + $0x50] sm:$0xff]
    %v247 = vld [vmem:[#allocation2 + $0x58] sm:$0xff]
    %v248 = vld [vmem:[#allocation2 + $0x60] sm:$0xff]
    %v249 = vld [vmem:[#allocation2 + $0x68] sm:$0xff]
    %v250 = vld [vmem:[#allocation2 + $0x70] sm:$0xff]
    %v251 = vld [vmem:[#allocation2 + $0x78] sm:$0xff]
    %v252 = vld [vmem:[#allocation2 + $0x80] sm:$0xff]
    %v253 = vld [vmem:[#allocation2 + $0x88] sm:$0xff]
    %v254 = vld [vmem:[#allocation2 + $0x90] sm:$0xff]
    %v255 = vld [vmem:[#allocation2 + $0x98] sm:$0xff]
    %v256 = vld [vmem:[#allocation2 + $0xa0] sm:$0xff]
    %v257 = vld [vmem:[#allocation2 + $0xa8] sm:$0xff]
    %v258 = vld [vmem:[#allocation2 + $0xb0] sm:$0xff]
    %v259 = vld [vmem:[#allocation2 + $0xb8] sm:$0xff]
    %v260 = vld [vmem:[#allocation2 + $0xc0] sm:$0xff]
    %v261 = vld [vmem:[#allocation2 + $0xc8] sm:$0xff]
    %v262 = vld [vmem:[#allocation2 + $0xd0] sm:$0xff]
    %v263 = vld [vmem:[#allocation2 + $0xd8] sm:$0xff]
    %v264 = vld [vmem:[#allocation2 + $0xe0] sm:$0xff]
    %v265 = vld [vmem:[#allocation2 + $0xe8] sm:$0xff]
    %v266 = vld [vmem:[#allocation2 + $0xf0] sm:$0xff]
    %v267 = vld [vmem:[#allocation2 + $0xf8] sm:$0xff]
    %v268 = vld [vmem:[#allocation2 + $0x100] sm:$0xff]
    %v269 = vld [vmem:[#allocation2 + $0x108] sm:$0xff]
    %v270 = vld [vmem:[#allocation2 + $0x110] sm:$0xff]
    %v271 = vld [vmem:[#allocation2 + $0x118] sm:$0xff]
    %v272 = vld [vmem:[#allocation2 + $0x120] sm:$0xff]
    %v273 = vld [vmem:[#allocation2 + $0x128] sm:$0xff]
    %v274 = vld [vmem:[#allocation2 + $0x130] sm:$0xff]
    %v275 = vld [vmem:[#allocation2 + $0x138] sm:$0xff]
    %v276 = vld [vmem:[#allocation2 + $0x140] sm:$0xff]
    %v277 = vld [vmem:[#allocation2 + $0x148] sm:$0xff]
    %v278 = vld [vmem:[#allocation2 + $0x150] sm:$0xff]
    %v279 = vld [vmem:[#allocation2 + $0x158] sm:$0xff]
    %v280 = vld [vmem:[#allocation2 + $0x160] sm:$0xff]
    %v281 = vld [vmem:[#allocation2 + $0x168] sm:$0xff]
    %v282 = vld [vmem:[#allocation2 + $0x170] sm:$0xff]
    %v283 = vld [vmem:[#allocation2 + $0x178] sm:$0xff]
    %v284 = vld [vmem:[#allocation2 + $0x180] sm:$0xff]
    %v285 = vld [vmem:[#allocation2 + $0x188] sm:$0xff]
    %v286 = vld [vmem:[#allocation2 + $0x190] sm:$0xff]
    %v287 = vld [vmem:[#allocation2 + $0x198] sm:$0xff]
    %v288 = vld [vmem:[#allocation2 + $0x1a0] sm:$0xff]
    %v289 = vld [vmem:[#allocation2 + $0x1a8] sm:$0xff]
    %v290 = vld [vmem:[#allocation2 + $0x1b0] sm:$0xff]
    %v291 = vld [vmem:[#allocation2 + $0x1b8] sm:$0xff]
    %v292 = vld [vmem:[#allocation2 + $0x1c0] sm:$0xff]
    %v293 = vld [vmem:[#allocation2 + $0x1c8] sm:$0xff]
    %v294 = vld [vmem:[#allocation2 + $0x1d0] sm:$0xff]
    %v295 = vld [vmem:[#allocation2 + $0x1d8] sm:$0xff]
    %v296 = vld [vmem:[#allocation2 + $0x1e0] sm:$0xff]
    %v297 = vld [vmem:[#allocation2 + $0x1e8] sm:$0xff]
    %v298 = vld [vmem:[#allocation2 + $0x1f0] sm:$0xff]
    %v299 = vld [vmem:[#allocation2 + $0x1f8] sm:$0xff]
    %v300 = vld [vmem:[#allocation2 + $0x200] sm:$0xff]
    %v301 = vld [vmem:[#allocation2 + $0x208] sm:$0xff]
    %v302 = vld [vmem:[#allocation2 + $0x210] sm:$0xff]
    %v303 = vld [vmem:[#allocation2 + $0x218] sm:$0xff]
    %v304 = vld [vmem:[#allocation2 + $0x220] sm:$0xff]
    %v305 = vld [vmem:[#allocation2 + $0x228] sm:$0xff]
    %v306 = vld [vmem:[#allocation2 + $0x230] sm:$0xff]
    %v307 = vld [vmem:[#allocation2 + $0x238] sm:$0xff]
    %v308 = vld [vmem:[#allocation2 + $0x240] sm:$0xff]
    %v309 = vld [vmem:[#allocation2 + $0x248] sm:$0xff]
    %v310 = vld [vmem:[#allocation2 + $0x250] sm:$0xff]
    %v311 = vld [vmem:[#allocation2 + $0x258] sm:$0xff]
    %v312 = vld [vmem:[#allocation2 + $0x260] sm:$0xff]
    %v313 = vld [vmem:[#allocation2 + $0x268] sm:$0xff]
    %v314 = vld [vmem:[#allocation2 + $0x270] sm:$0xff]
    %v315 = vld [vmem:[#allocation2 + $0x278] sm:$0xff]
    %v316 = vld [vmem:[#allocation2 + $0x280] sm:$0xff]
    %v317 = vld [vmem:[#allocation2 + $0x288] sm:$0xff]
    %v318 = vld [vmem:[#allocation2 + $0x290] sm:$0xff]
    %v319 = vld [vmem:[#allocation2 + $0x298] sm:$0xff]
    %v320 = vld [vmem:[#allocation2 + $0x2a0] sm:$0xff]
    %v321 = vld [vmem:[#allocation2 + $0x2a8] sm:$0xff]
    %v322 = vld [vmem:[#allocation2 + $0x2b0] sm:$0xff]
    %v323 = vld [vmem:[#allocation2 + $0x2b8] sm:$0xff]
    %v324 = vld [vmem:[#allocation2 + $0x2c0] sm:$0xff]
    %v325 = vld [vmem:[#allocation2 + $0x2c8] sm:$0xff]
    %v326 = vld [vmem:[#allocation2 + $0x2d0] sm:$0xff]
    %v327 = vld [vmem:[#allocation2 + $0x2d8] sm:$0xff]
    %v328 = vld [vmem:[#allocation2 + $0x2e0] sm:$0xff]
    %v329 = vld [vmem:[#allocation2 + $0x2e8] sm:$0xff]
    %v330 = vld [vmem:[#allocation2 + $0x2f0] sm:$0xff]
    %v331 = vld [vmem:[#allocation2 + $0x2f8] sm:$0xff]
    %v332 = vld [vmem:[#allocation2 + $0x300] sm:$0xff]
    %v333 = vld [vmem:[#allocation2 + $0x308] sm:$0xff]
    %v334 = vld [vmem:[#allocation2 + $0x310] sm:$0xff]
    %v335 = vld [vmem:[#allocation2 + $0x318] sm:$0xff]
    %v336 = vld [vmem:[#allocation2 + $0x320] sm:$0xff]
    %v337 = vld [vmem:[#allocation2 + $0x328] sm:$0xff]
    %v338 = vld [vmem:[#allocation2 + $0x330] sm:$0xff]
    %v339 = vld [vmem:[#allocation2 + $0x338] sm:$0xff]
    %v340 = vld [vmem:[#allocation2 + $0x340] sm:$0xff]
    %v341 = vld [vmem:[#allocation2 + $0x348] sm:$0xff]
    %v342 = vld [vmem:[#allocation2 + $0x350] sm:$0xff]
    %v343 = vld [vmem:[#allocation2 + $0x358] sm:$0xff]
    %v344 = vld [vmem:[#allocation2 + $0x360] sm:$0xff]
    %v345 = vld [vmem:[#allocation2 + $0x368] sm:$0xff]
    %v346 = vld [vmem:[#allocation2 + $0x370] sm:$0xff]
    %v347 = vld [vmem:[#allocation2 + $0x378] sm:$0xff]
    %v348 = vld [vmem:[#allocation2 + $0x380] sm:$0xff]
    %v349 = vld [vmem:[#allocation2 + $0x388] sm:$0xff]
    %v350 = vld [vmem:[#allocation2 + $0x390] sm:$0xff]
    %v351 = vld [vmem:[#allocation2 + $0x398] sm:$0xff]
    %v352 = vld [vmem:[#allocation2 + $0x3a0] sm:$0xff]
    %v353 = vld [vmem:[#allocation2 + $0x3a8] sm:$0xff]
    %v354 = vld [vmem:[#allocation2 + $0x3b0] sm:$0xff]
    %v355 = vld [vmem:[#allocation2 + $0x3b8] sm:$0xff]
    %v356 = vld [vmem:[#allocation2 + $0x3c0] sm:$0xff]
    %v357 = vld [vmem:[#allocation2 + $0x3c8] sm:$0xff]
    %v358 = vld [vmem:[#allocation2 + $0x3d0] sm:$0xff]
    %v359 = vld [vmem:[#allocation2 + $0x3d8] sm:$0xff]
    %v360 = vld [vmem:[#allocation2 + $0x3e0] sm:$0xff]
    %v361 = vld [vmem:[#allocation2 + $0x3e8] sm:$0xff]
    %v362 = vld [vmem:[#allocation2 + $0x3f0] sm:$0xff]
    %v363 = vld [vmem:[#allocation2 + $0x3f8] sm:$0xff]
    %v364 = vld [vmem:[#allocation4] sm:$0xff]
    %v365 = vld [vmem:[#allocation4 + $0x8] sm:$0xff]
    %v366 = vld [vmem:[#allocation4 + $0x10] sm:$0xff]
    %v367 = vld [vmem:[#allocation4 + $0x18] sm:$0xff]
    %v368 = vld [vmem:[#allocation4 + $0x20] sm:$0xff]
    %v369 = vld [vmem:[#allocation4 + $0x28] sm:$0xff]
    %v370 = vld [vmem:[#allocation4 + $0x30] sm:$0xff]
    %v371 = vld [vmem:[#allocation4 + $0x38] sm:$0xff]
    %v372 = vld [vmem:[#allocation4 + $0x40] sm:$0xff]
    %v373 = vld [vmem:[#allocation4 + $0x48] sm:$0xff]
    %v374 = vld [vmem:[#allocation4 + $0x50] sm:$0xff]
    %v375 = vld [vmem:[#allocation4 + $0x58] sm:$0xff]
    %v376 = vld [vmem:[#allocation4 + $0x60] sm:$0xff]
    %v377 = vld [vmem:[#allocation4 + $0x68] sm:$0xff]
    %v378 = vld [vmem:[#allocation4 + $0x70] sm:$0xff]
    %v379 = vld [vmem:[#allocation4 + $0x78] sm:$0xff]
    %v380 = vld [vmem:[#allocation4 + $0x80] sm:$0xff]
    %v381 = vld [vmem:[#allocation4 + $0x88] sm:$0xff]
    %v382 = vld [vmem:[#allocation4 + $0x90] sm:$0xff]
    %v383 = vld [vmem:[#allocation4 + $0x98] sm:$0xff]
    %v384 = vld [vmem:[#allocation4 + $0xa0] sm:$0xff]
    %v385 = vld [vmem:[#allocation4 + $0xa8] sm:$0xff]
    %v386 = vld [vmem:[#allocation4 + $0xb0] sm:$0xff]
    %v387 = vld [vmem:[#allocation4 + $0xb8] sm:$0xff]
    %v388 = vld [vmem:[#allocation4 + $0xc0] sm:$0xff]
    %v389 = vld [vmem:[#allocation4 + $0xc8] sm:$0xff]
    %v390 = vld [vmem:[#allocation4 + $0xd0] sm:$0xff]
    %v391 = vld [vmem:[#allocation4 + $0xd8] sm:$0xff]
    %v392 = vld [vmem:[#allocation4 + $0xe0] sm:$0xff]
    %v393 = vld [vmem:[#allocation4 + $0xe8] sm:$0xff]
    %v394 = vld [vmem:[#allocation4 + $0xf0] sm:$0xff]
    %v395 = vld [vmem:[#allocation4 + $0xf8] sm:$0xff]
    %v396 = vld [vmem:[#allocation4 + $0x100] sm:$0xff]
    %v397 = vld [vmem:[#allocation4 + $0x108] sm:$0xff]
    %v398 = vld [vmem:[#allocation4 + $0x110] sm:$0xff]
    %v399 = vld [vmem:[#allocation4 + $0x118] sm:$0xff]
    %v400 = vld [vmem:[#allocation4 + $0x120] sm:$0xff]
    %v401 = vld [vmem:[#allocation4 + $0x128] sm:$0xff]
    %v402 = vld [vmem:[#allocation4 + $0x130] sm:$0xff]
    %v403 = vld [vmem:[#allocation4 + $0x138] sm:$0xff]
    %v404 = vld [vmem:[#allocation4 + $0x140] sm:$0xff]
    %v405 = vld [vmem:[#allocation4 + $0x148] sm:$0xff]
    %v406 = vld [vmem:[#allocation4 + $0x150] sm:$0xff]
    %v407 = vld [vmem:[#allocation4 + $0x158] sm:$0xff]
    %v408 = vld [vmem:[#allocation4 + $0x160] sm:$0xff]
    %v409 = vld [vmem:[#allocation4 + $0x168] sm:$0xff]
    %v410 = vld [vmem:[#allocation4 + $0x170] sm:$0xff]
    %v411 = vld [vmem:[#allocation4 + $0x178] sm:$0xff]
    %v412 = vld [vmem:[#allocation4 + $0x180] sm:$0xff]
    %v413 = vld [vmem:[#allocation4 + $0x188] sm:$0xff]
    %v414 = vld [vmem:[#allocation4 + $0x190] sm:$0xff]
    %v415 = vld [vmem:[#allocation4 + $0x198] sm:$0xff]
    %v416 = vld [vmem:[#allocation4 + $0x1a0] sm:$0xff]
    %v417 = vld [vmem:[#allocation4 + $0x1a8] sm:$0xff]
    %v418 = vld [vmem:[#allocation4 + $0x1b0] sm:$0xff]
    %v419 = vld [vmem:[#allocation4 + $0x1b8] sm:$0xff]
    %v420 = vld [vmem:[#allocation4 + $0x1c0] sm:$0xff]
    %v421 = vld [vmem:[#allocation4 + $0x1c8] sm:$0xff]
    %v422 = vld [vmem:[#allocation4 + $0x1d0] sm:$0xff]
    %v423 = vld [vmem:[#allocation4 + $0x1d8] sm:$0xff]
    %v424 = vld [vmem:[#allocation4 + $0x1e0] sm:$0xff]
    %v425 = vld [vmem:[#allocation4 + $0x1e8] sm:$0xff]
    %v426 = vld [vmem:[#allocation4 + $0x1f0] sm:$0xff]
    %v427 = vld [vmem:[#allocation4 + $0x1f8] sm:$0xff]
    %v428 = vpack.c.bf16 %v368, %v364
    %v429 = vpack.c.bf16 %v369, %v365
    %v430 = vpack.c.bf16 %v370, %v366
    %v431 = vpack.c.bf16 %v371, %v367
    %v432 = vpack.c.bf16 %v376, %v372
    %v433 = vpack.c.bf16 %v377, %v373
    %v434 = vpack.c.bf16 %v378, %v374
    %v435 = vpack.c.bf16 %v379, %v375
    %v436 = vpack.c.bf16 %v384, %v380
    %v437 = vpack.c.bf16 %v385, %v381
    %v438 = vpack.c.bf16 %v386, %v382
    %v439 = vpack.c.bf16 %v387, %v383
    %v440 = vpack.c.bf16 %v392, %v388
    %v441 = vpack.c.bf16 %v393, %v389
    %v442 = vpack.c.bf16 %v394, %v390
    %v443 = vpack.c.bf16 %v395, %v391
    %v444 = vpack.c.bf16 %v400, %v396
    %v445 = vpack.c.bf16 %v401, %v397
    %v446 = vpack.c.bf16 %v402, %v398
    %v447 = vpack.c.bf16 %v403, %v399
    %v448 = vpack.c.bf16 %v408, %v404
    %v449 = vpack.c.bf16 %v409, %v405
    %v450 = vpack.c.bf16 %v410, %v406
    %v451 = vpack.c.bf16 %v411, %v407
    %v452 = vpack.c.bf16 %v416, %v412
    %v453 = vpack.c.bf16 %v417, %v413
    %v454 = vpack.c.bf16 %v418, %v414
    %v455 = vpack.c.bf16 %v419, %v415
    %v456 = vpack.c.bf16 %v424, %v420
    %v457 = vpack.c.bf16 %v425, %v421
    %v458 = vpack.c.bf16 %v426, %v422
    %v459 = vpack.c.bf16 %v427, %v423
    %v460 = vld [vmem:[#allocation6] sm:$0xff]
    %v461 = vld [vmem:[#allocation6 + $0x8] sm:$0xff]
    %v462 = vld [vmem:[#allocation6 + $0x10] sm:$0xff]
    %v463 = vld [vmem:[#allocation6 + $0x18] sm:$0xff]
    %v464 = vld [vmem:[#allocation6 + $0x20] sm:$0xff]
    %v465 = vld [vmem:[#allocation6 + $0x28] sm:$0xff]
    %v466 = vld [vmem:[#allocation6 + $0x30] sm:$0xff]
    %v467 = vld [vmem:[#allocation6 + $0x38] sm:$0xff]
    %v468 = vld [vmem:[#allocation6 + $0x40] sm:$0xff]
    %v469 = vld [vmem:[#allocation6 + $0x48] sm:$0xff]
    %v470 = vld [vmem:[#allocation6 + $0x50] sm:$0xff]
    %v471 = vld [vmem:[#allocation6 + $0x58] sm:$0xff]
    %v472 = vld [vmem:[#allocation6 + $0x60] sm:$0xff]
    %v473 = vld [vmem:[#allocation6 + $0x68] sm:$0xff]
    %v474 = vld [vmem:[#allocation6 + $0x70] sm:$0xff]
    %v475 = vld [vmem:[#allocation6 + $0x78] sm:$0xff]
    %v476 = vld [vmem:[#allocation6 + $0x80] sm:$0xff]
    %v477 = vld [vmem:[#allocation6 + $0x88] sm:$0xff]
    %v478 = vld [vmem:[#allocation6 + $0x90] sm:$0xff]
    %v479 = vld [vmem:[#allocation6 + $0x98] sm:$0xff]
    %v480 = vld [vmem:[#allocation6 + $0xa0] sm:$0xff]
    %v481 = vld [vmem:[#allocation6 + $0xa8] sm:$0xff]
    %v482 = vld [vmem:[#allocation6 + $0xb0] sm:$0xff]
    %v483 = vld [vmem:[#allocation6 + $0xb8] sm:$0xff]
    %v484 = vld [vmem:[#allocation6 + $0xc0] sm:$0xff]
    %v485 = vld [vmem:[#allocation6 + $0xc8] sm:$0xff]
    %v486 = vld [vmem:[#allocation6 + $0xd0] sm:$0xff]
    %v487 = vld [vmem:[#allocation6 + $0xd8] sm:$0xff]
    %v488 = vld [vmem:[#allocation6 + $0xe0] sm:$0xff]
    %v489 = vld [vmem:[#allocation6 + $0xe8] sm:$0xff]
    %v490 = vld [vmem:[#allocation6 + $0xf0] sm:$0xff]
    %v491 = vld [vmem:[#allocation6 + $0xf8] sm:$0xff]
    %v492 = vld [vmem:[#allocation6 + $0x100] sm:$0xff]
    %v493 = vld [vmem:[#allocation6 + $0x108] sm:$0xff]
    %v494 = vld [vmem:[#allocation6 + $0x110] sm:$0xff]
    %v495 = vld [vmem:[#allocation6 + $0x118] sm:$0xff]
    %v496 = vld [vmem:[#allocation6 + $0x120] sm:$0xff]
    %v497 = vld [vmem:[#allocation6 + $0x128] sm:$0xff]
    %v498 = vld [vmem:[#allocation6 + $0x130] sm:$0xff]
    %v499 = vld [vmem:[#allocation6 + $0x138] sm:$0xff]
    %v500 = vld [vmem:[#allocation6 + $0x140] sm:$0xff]
    %v501 = vld [vmem:[#allocation6 + $0x148] sm:$0xff]
    %v502 = vld [vmem:[#allocation6 + $0x150] sm:$0xff]
    %v503 = vld [vmem:[#allocation6 + $0x158] sm:$0xff]
    %v504 = vld [vmem:[#allocation6 + $0x160] sm:$0xff]
    %v505 = vld [vmem:[#allocation6 + $0x168] sm:$0xff]
    %v506 = vld [vmem:[#allocation6 + $0x170] sm:$0xff]
    %v507 = vld [vmem:[#allocation6 + $0x178] sm:$0xff]
    %v508 = vld [vmem:[#allocation6 + $0x180] sm:$0xff]
    %v509 = vld [vmem:[#allocation6 + $0x188] sm:$0xff]
    %v510 = vld [vmem:[#allocation6 + $0x190] sm:$0xff]
    %v511 = vld [vmem:[#allocation6 + $0x198] sm:$0xff]
    %v512 = vld [vmem:[#allocation6 + $0x1a0] sm:$0xff]
    %v513 = vld [vmem:[#allocation6 + $0x1a8] sm:$0xff]
    %v514 = vld [vmem:[#allocation6 + $0x1b0] sm:$0xff]
    %v515 = vld [vmem:[#allocation6 + $0x1b8] sm:$0xff]
    %v516 = vld [vmem:[#allocation6 + $0x1c0] sm:$0xff]
    %v517 = vld [vmem:[#allocation6 + $0x1c8] sm:$0xff]
    %v518 = vld [vmem:[#allocation6 + $0x1d0] sm:$0xff]
    %v519 = vld [vmem:[#allocation6 + $0x1d8] sm:$0xff]
    %v520 = vld [vmem:[#allocation6 + $0x1e0] sm:$0xff]
    %v521 = vld [vmem:[#allocation6 + $0x1e8] sm:$0xff]
    %v522 = vld [vmem:[#allocation6 + $0x1f0] sm:$0xff]
    %v523 = vld [vmem:[#allocation6 + $0x1f8] sm:$0xff]
    %v524 = vld [vmem:[#allocation6 + $0x200] sm:$0xff]
    %v525 = vld [vmem:[#allocation6 + $0x208] sm:$0xff]
    %v526 = vld [vmem:[#allocation6 + $0x210] sm:$0xff]
    %v527 = vld [vmem:[#allocation6 + $0x218] sm:$0xff]
    %v528 = vld [vmem:[#allocation6 + $0x220] sm:$0xff]
    %v529 = vld [vmem:[#allocation6 + $0x228] sm:$0xff]
    %v530 = vld [vmem:[#allocation6 + $0x230] sm:$0xff]
    %v531 = vld [vmem:[#allocation6 + $0x238] sm:$0xff]
    %v532 = vld [vmem:[#allocation6 + $0x240] sm:$0xff]
    %v533 = vld [vmem:[#allocation6 + $0x248] sm:$0xff]
    %v534 = vld [vmem:[#allocation6 + $0x250] sm:$0xff]
    %v535 = vld [vmem:[#allocation6 + $0x258] sm:$0xff]
    %v536 = vld [vmem:[#allocation6 + $0x260] sm:$0xff]
    %v537 = vld [vmem:[#allocation6 + $0x268] sm:$0xff]
    %v538 = vld [vmem:[#allocation6 + $0x270] sm:$0xff]
    %v539 = vld [vmem:[#allocation6 + $0x278] sm:$0xff]
    %v540 = vld [vmem:[#allocation6 + $0x280] sm:$0xff]
    %v541 = vld [vmem:[#allocation6 + $0x288] sm:$0xff]
    %v542 = vld [vmem:[#allocation6 + $0x290] sm:$0xff]
    %v543 = vld [vmem:[#allocation6 + $0x298] sm:$0xff]
    %v544 = vld [vmem:[#allocation6 + $0x2a0] sm:$0xff]
    %v545 = vld [vmem:[#allocation6 + $0x2a8] sm:$0xff]
    %v546 = vld [vmem:[#allocation6 + $0x2b0] sm:$0xff]
    %v547 = vld [vmem:[#allocation6 + $0x2b8] sm:$0xff]
    %v548 = vld [vmem:[#allocation6 + $0x2c0] sm:$0xff]
    %v549 = vld [vmem:[#allocation6 + $0x2c8] sm:$0xff]
    %v550 = vld [vmem:[#allocation6 + $0x2d0] sm:$0xff]
    %v551 = vld [vmem:[#allocation6 + $0x2d8] sm:$0xff]
    %v552 = vld [vmem:[#allocation6 + $0x2e0] sm:$0xff]
    %v553 = vld [vmem:[#allocation6 + $0x2e8] sm:$0xff]
    %v554 = vld [vmem:[#allocation6 + $0x2f0] sm:$0xff]
    %v555 = vld [vmem:[#allocation6 + $0x2f8] sm:$0xff]
    %v556 = vld [vmem:[#allocation6 + $0x300] sm:$0xff]
    %v557 = vld [vmem:[#allocation6 + $0x308] sm:$0xff]
    %v558 = vld [vmem:[#allocation6 + $0x310] sm:$0xff]
    %v559 = vld [vmem:[#allocation6 + $0x318] sm:$0xff]
    %v560 = vld [vmem:[#allocation6 + $0x320] sm:$0xff]
    %v561 = vld [vmem:[#allocation6 + $0x328] sm:$0xff]
    %v562 = vld [vmem:[#allocation6 + $0x330] sm:$0xff]
    %v563 = vld [vmem:[#allocation6 + $0x338] sm:$0xff]
    %v564 = vld [vmem:[#allocation6 + $0x340] sm:$0xff]
    %v565 = vld [vmem:[#allocation6 + $0x348] sm:$0xff]
    %v566 = vld [vmem:[#allocation6 + $0x350] sm:$0xff]
    %v567 = vld [vmem:[#allocation6 + $0x358] sm:$0xff]
    %v568 = vld [vmem:[#allocation6 + $0x360] sm:$0xff]
    %v569 = vld [vmem:[#allocation6 + $0x368] sm:$0xff]
    %v570 = vld [vmem:[#allocation6 + $0x370] sm:$0xff]
    %v571 = vld [vmem:[#allocation6 + $0x378] sm:$0xff]
    %v572 = vld [vmem:[#allocation6 + $0x380] sm:$0xff]
    %v573 = vld [vmem:[#allocation6 + $0x388] sm:$0xff]
    %v574 = vld [vmem:[#allocation6 + $0x390] sm:$0xff]
    %v575 = vld [vmem:[#allocation6 + $0x398] sm:$0xff]
    %v576 = vld [vmem:[#allocation6 + $0x3a0] sm:$0xff]
    %v577 = vld [vmem:[#allocation6 + $0x3a8] sm:$0xff]
    %v578 = vld [vmem:[#allocation6 + $0x3b0] sm:$0xff]
    %v579 = vld [vmem:[#allocation6 + $0x3b8] sm:$0xff]
    %v580 = vld [vmem:[#allocation6 + $0x3c0] sm:$0xff]
    %v581 = vld [vmem:[#allocation6 + $0x3c8] sm:$0xff]
    %v582 = vld [vmem:[#allocation6 + $0x3d0] sm:$0xff]
    %v583 = vld [vmem:[#allocation6 + $0x3d8] sm:$0xff]
    %v584 = vld [vmem:[#allocation6 + $0x3e0] sm:$0xff]
    %v585 = vld [vmem:[#allocation6 + $0x3e8] sm:$0xff]
    %v586 = vld [vmem:[#allocation6 + $0x3f0] sm:$0xff]
    %v587 = vld [vmem:[#allocation6 + $0x3f8] sm:$0xff]
    %v588 = vld [vmem:[#allocation6 + $0x400] sm:$0xff]
    %v589 = vld [vmem:[#allocation6 + $0x408] sm:$0xff]
    %v590 = vld [vmem:[#allocation6 + $0x410] sm:$0xff]
    %v591 = vld [vmem:[#allocation6 + $0x418] sm:$0xff]
    %v592 = vld [vmem:[#allocation6 + $0x420] sm:$0xff]
    %v593 = vld [vmem:[#allocation6 + $0x428] sm:$0xff]
    %v594 = vld [vmem:[#allocation6 + $0x430] sm:$0xff]
    %v595 = vld [vmem:[#allocation6 + $0x438] sm:$0xff]
    %v596 = vld [vmem:[#allocation6 + $0x440] sm:$0xff]
    %v597 = vld [vmem:[#allocation6 + $0x448] sm:$0xff]
    %v598 = vld [vmem:[#allocation6 + $0x450] sm:$0xff]
    %v599 = vld [vmem:[#allocation6 + $0x458] sm:$0xff]
    %v600 = vld [vmem:[#allocation6 + $0x460] sm:$0xff]
    %v601 = vld [vmem:[#allocation6 + $0x468] sm:$0xff]
    %v602 = vld [vmem:[#allocation6 + $0x470] sm:$0xff]
    %v603 = vld [vmem:[#allocation6 + $0x478] sm:$0xff]
    %v604 = vld [vmem:[#allocation6 + $0x480] sm:$0xff]
    %v605 = vld [vmem:[#allocation6 + $0x488] sm:$0xff]
    %v606 = vld [vmem:[#allocation6 + $0x490] sm:$0xff]
    %v607 = vld [vmem:[#allocation6 + $0x498] sm:$0xff]
    %v608 = vld [vmem:[#allocation6 + $0x4a0] sm:$0xff]
    %v609 = vld [vmem:[#allocation6 + $0x4a8] sm:$0xff]
    %v610 = vld [vmem:[#allocation6 + $0x4b0] sm:$0xff]
    %v611 = vld [vmem:[#allocation6 + $0x4b8] sm:$0xff]
    %v612 = vld [vmem:[#allocation6 + $0x4c0] sm:$0xff]
    %v613 = vld [vmem:[#allocation6 + $0x4c8] sm:$0xff]
    %v614 = vld [vmem:[#allocation6 + $0x4d0] sm:$0xff]
    %v615 = vld [vmem:[#allocation6 + $0x4d8] sm:$0xff]
    %v616 = vld [vmem:[#allocation6 + $0x4e0] sm:$0xff]
    %v617 = vld [vmem:[#allocation6 + $0x4e8] sm:$0xff]
    %v618 = vld [vmem:[#allocation6 + $0x4f0] sm:$0xff]
    %v619 = vld [vmem:[#allocation6 + $0x4f8] sm:$0xff]
    %v620 = vld [vmem:[#allocation6 + $0x500] sm:$0xff]
    %v621 = vld [vmem:[#allocation6 + $0x508] sm:$0xff]
    %v622 = vld [vmem:[#allocation6 + $0x510] sm:$0xff]
    %v623 = vld [vmem:[#allocation6 + $0x518] sm:$0xff]
    %v624 = vld [vmem:[#allocation6 + $0x520] sm:$0xff]
    %v625 = vld [vmem:[#allocation6 + $0x528] sm:$0xff]
    %v626 = vld [vmem:[#allocation6 + $0x530] sm:$0xff]
    %v627 = vld [vmem:[#allocation6 + $0x538] sm:$0xff]
    %v628 = vld [vmem:[#allocation6 + $0x540] sm:$0xff]
    %v629 = vld [vmem:[#allocation6 + $0x548] sm:$0xff]
    %v630 = vld [vmem:[#allocation6 + $0x550] sm:$0xff]
    %v631 = vld [vmem:[#allocation6 + $0x558] sm:$0xff]
    %v632 = vld [vmem:[#allocation6 + $0x560] sm:$0xff]
    %v633 = vld [vmem:[#allocation6 + $0x568] sm:$0xff]
    %v634 = vld [vmem:[#allocation6 + $0x570] sm:$0xff]
    %v635 = vld [vmem:[#allocation6 + $0x578] sm:$0xff]
    %v636 = vld [vmem:[#allocation6 + $0x580] sm:$0xff]
    %v637 = vld [vmem:[#allocation6 + $0x588] sm:$0xff]
    %v638 = vld [vmem:[#allocation6 + $0x590] sm:$0xff]
    %v639 = vld [vmem:[#allocation6 + $0x598] sm:$0xff]
    %v640 = vld [vmem:[#allocation6 + $0x5a0] sm:$0xff]
    %v641 = vld [vmem:[#allocation6 + $0x5a8] sm:$0xff]
    %v642 = vld [vmem:[#allocation6 + $0x5b0] sm:$0xff]
    %v643 = vld [vmem:[#allocation6 + $0x5b8] sm:$0xff]
    %v644 = vld [vmem:[#allocation6 + $0x5c0] sm:$0xff]
    %v645 = vld [vmem:[#allocation6 + $0x5c8] sm:$0xff]
    %v646 = vld [vmem:[#allocation6 + $0x5d0] sm:$0xff]
    %v647 = vld [vmem:[#allocation6 + $0x5d8] sm:$0xff]
    %v648 = vld [vmem:[#allocation6 + $0x5e0] sm:$0xff]
    %v649 = vld [vmem:[#allocation6 + $0x5e8] sm:$0xff]
    %v650 = vld [vmem:[#allocation6 + $0x5f0] sm:$0xff]
    %v651 = vld [vmem:[#allocation6 + $0x5f8] sm:$0xff]
    %v652 = vld [vmem:[#allocation6 + $0x600] sm:$0xff]
    %v653 = vld [vmem:[#allocation6 + $0x608] sm:$0xff]
    %v654 = vld [vmem:[#allocation6 + $0x610] sm:$0xff]
    %v655 = vld [vmem:[#allocation6 + $0x618] sm:$0xff]
    %v656 = vld [vmem:[#allocation6 + $0x620] sm:$0xff]
    %v657 = vld [vmem:[#allocation6 + $0x628] sm:$0xff]
    %v658 = vld [vmem:[#allocation6 + $0x630] sm:$0xff]
    %v659 = vld [vmem:[#allocation6 + $0x638] sm:$0xff]
    %v660 = vld [vmem:[#allocation6 + $0x640] sm:$0xff]
    %v661 = vld [vmem:[#allocation6 + $0x648] sm:$0xff]
    %v662 = vld [vmem:[#allocation6 + $0x650] sm:$0xff]
    %v663 = vld [vmem:[#allocation6 + $0x658] sm:$0xff]
    %v664 = vld [vmem:[#allocation6 + $0x660] sm:$0xff]
    %v665 = vld [vmem:[#allocation6 + $0x668] sm:$0xff]
    %v666 = vld [vmem:[#allocation6 + $0x670] sm:$0xff]
    %v667 = vld [vmem:[#allocation6 + $0x678] sm:$0xff]
    %v668 = vld [vmem:[#allocation6 + $0x680] sm:$0xff]
    %v669 = vld [vmem:[#allocation6 + $0x688] sm:$0xff]
    %v670 = vld [vmem:[#allocation6 + $0x690] sm:$0xff]
    %v671 = vld [vmem:[#allocation6 + $0x698] sm:$0xff]
    %v672 = vld [vmem:[#allocation6 + $0x6a0] sm:$0xff]
    %v673 = vld [vmem:[#allocation6 + $0x6a8] sm:$0xff]
    %v674 = vld [vmem:[#allocation6 + $0x6b0] sm:$0xff]
    %v675 = vld [vmem:[#allocation6 + $0x6b8] sm:$0xff]
    %v676 = vld [vmem:[#allocation6 + $0x6c0] sm:$0xff]
    %v677 = vld [vmem:[#allocation6 + $0x6c8] sm:$0xff]
    %v678 = vld [vmem:[#allocation6 + $0x6d0] sm:$0xff]
    %v679 = vld [vmem:[#allocation6 + $0x6d8] sm:$0xff]
    %v680 = vld [vmem:[#allocation6 + $0x6e0] sm:$0xff]
    %v681 = vld [vmem:[#allocation6 + $0x6e8] sm:$0xff]
    %v682 = vld [vmem:[#allocation6 + $0x6f0] sm:$0xff]
    %v683 = vld [vmem:[#allocation6 + $0x6f8] sm:$0xff]
    %v684 = vld [vmem:[#allocation6 + $0x700] sm:$0xff]
    %v685 = vld [vmem:[#allocation6 + $0x708] sm:$0xff]
    %v686 = vld [vmem:[#allocation6 + $0x710] sm:$0xff]
    %v687 = vld [vmem:[#allocation6 + $0x718] sm:$0xff]
    %v688 = vld [vmem:[#allocation6 + $0x720] sm:$0xff]
    %v689 = vld [vmem:[#allocation6 + $0x728] sm:$0xff]
    %v690 = vld [vmem:[#allocation6 + $0x730] sm:$0xff]
    %v691 = vld [vmem:[#allocation6 + $0x738] sm:$0xff]
    %v692 = vld [vmem:[#allocation6 + $0x740] sm:$0xff]
    %v693 = vld [vmem:[#allocation6 + $0x748] sm:$0xff]
    %v694 = vld [vmem:[#allocation6 + $0x750] sm:$0xff]
    %v695 = vld [vmem:[#allocation6 + $0x758] sm:$0xff]
    %v696 = vld [vmem:[#allocation6 + $0x760] sm:$0xff]
    %v697 = vld [vmem:[#allocation6 + $0x768] sm:$0xff]
    %v698 = vld [vmem:[#allocation6 + $0x770] sm:$0xff]
    %v699 = vld [vmem:[#allocation6 + $0x778] sm:$0xff]
    %v700 = vld [vmem:[#allocation6 + $0x780] sm:$0xff]
    %v701 = vld [vmem:[#allocation6 + $0x788] sm:$0xff]
    %v702 = vld [vmem:[#allocation6 + $0x790] sm:$0xff]
    %v703 = vld [vmem:[#allocation6 + $0x798] sm:$0xff]
    %v704 = vld [vmem:[#allocation6 + $0x7a0] sm:$0xff]
    %v705 = vld [vmem:[#allocation6 + $0x7a8] sm:$0xff]
    %v706 = vld [vmem:[#allocation6 + $0x7b0] sm:$0xff]
    %v707 = vld [vmem:[#allocation6 + $0x7b8] sm:$0xff]
    %v708 = vld [vmem:[#allocation6 + $0x7c0] sm:$0xff]
    %v709 = vld [vmem:[#allocation6 + $0x7c8] sm:$0xff]
    %v710 = vld [vmem:[#allocation6 + $0x7d0] sm:$0xff]
    %v711 = vld [vmem:[#allocation6 + $0x7d8] sm:$0xff]
    %v712 = vld [vmem:[#allocation6 + $0x7e0] sm:$0xff]
    %v713 = vld [vmem:[#allocation6 + $0x7e8] sm:$0xff]
    %v714 = vld [vmem:[#allocation6 + $0x7f0] sm:$0xff]
    %v715 = vld [vmem:[#allocation6 + $0x7f8] sm:$0xff]
    %v972 = vunpack.c.l.b16 %v460
    %v973 = vunpack.c.h.b16 %v460
    %v974 = vunpack.c.l.b16 %v461
    %v975 = vunpack.c.h.b16 %v461
    %v976 = vunpack.c.l.b16 %v462
    %v977 = vunpack.c.h.b16 %v462
    %v978 = vunpack.c.l.b16 %v463
    %v979 = vunpack.c.h.b16 %v463
    %v980 = vunpack.c.l.b16 %v464
    %v981 = vunpack.c.h.b16 %v464
    %v982 = vunpack.c.l.b16 %v465
    %v983 = vunpack.c.h.b16 %v465
    %v984 = vunpack.c.l.b16 %v466
    %v985 = vunpack.c.h.b16 %v466
    %v986 = vunpack.c.l.b16 %v467
    %v987 = vunpack.c.h.b16 %v467
    %v988 = vunpack.c.l.b16 %v468
    %v989 = vunpack.c.h.b16 %v468
    %v990 = vunpack.c.l.b16 %v469
    %v991 = vunpack.c.h.b16 %v469
    %v992 = vunpack.c.l.b16 %v470
    %v993 = vunpack.c.h.b16 %v470
    %v994 = vunpack.c.l.b16 %v471
    %v995 = vunpack.c.h.b16 %v471
    %v996 = vunpack.c.l.b16 %v472
    %v997 = vunpack.c.h.b16 %v472
    %v998 = vunpack.c.l.b16 %v473
    %v999 = vunpack.c.h.b16 %v473
    %v1000 = vunpack.c.l.b16 %v474
    %v1001 = vunpack.c.h.b16 %v474
    %v1002 = vunpack.c.l.b16 %v475
    %v1003 = vunpack.c.h.b16 %v475
    %v1004 = vunpack.c.l.b16 %v476
    %v1005 = vunpack.c.h.b16 %v476
    %v1006 = vunpack.c.l.b16 %v477
    %v1007 = vunpack.c.h.b16 %v477
    %v1008 = vunpack.c.l.b16 %v478
    %v1009 = vunpack.c.h.b16 %v478
    %v1010 = vunpack.c.l.b16 %v479
    %v1011 = vunpack.c.h.b16 %v479
    %v1012 = vunpack.c.l.b16 %v480
    %v1013 = vunpack.c.h.b16 %v480
    %v1014 = vunpack.c.l.b16 %v481
    %v1015 = vunpack.c.h.b16 %v481
    %v1016 = vunpack.c.l.b16 %v482
    %v1017 = vunpack.c.h.b16 %v482
    %v1018 = vunpack.c.l.b16 %v483
    %v1019 = vunpack.c.h.b16 %v483
    %v1020 = vunpack.c.l.b16 %v484
    %v1021 = vunpack.c.h.b16 %v484
    %v1022 = vunpack.c.l.b16 %v485
    %v1023 = vunpack.c.h.b16 %v485
    %v1024 = vunpack.c.l.b16 %v486
    %v1025 = vunpack.c.h.b16 %v486
    %v1026 = vunpack.c.l.b16 %v487
    %v1027 = vunpack.c.h.b16 %v487
    %v1028 = vunpack.c.l.b16 %v488
    %v1029 = vunpack.c.h.b16 %v488
    %v1030 = vunpack.c.l.b16 %v489
    %v1031 = vunpack.c.h.b16 %v489
    %v1032 = vunpack.c.l.b16 %v490
    %v1033 = vunpack.c.h.b16 %v490
    %v1034 = vunpack.c.l.b16 %v491
    %v1035 = vunpack.c.h.b16 %v491
    %v1036 = vunpack.c.l.b16 %v492
    %v1037 = vunpack.c.h.b16 %v492
    %v1038 = vunpack.c.l.b16 %v493
    %v1039 = vunpack.c.h.b16 %v493
    %v1040 = vunpack.c.l.b16 %v494
    %v1041 = vunpack.c.h.b16 %v494
    %v1042 = vunpack.c.l.b16 %v495
    %v1043 = vunpack.c.h.b16 %v495
    %v1044 = vunpack.c.l.b16 %v496
    %v1045 = vunpack.c.h.b16 %v496
    %v1046 = vunpack.c.l.b16 %v497
    %v1047 = vunpack.c.h.b16 %v497
    %v1048 = vunpack.c.l.b16 %v498
    %v1049 = vunpack.c.h.b16 %v498
    %v1050 = vunpack.c.l.b16 %v499
    %v1051 = vunpack.c.h.b16 %v499
    %v1052 = vunpack.c.l.b16 %v500
    %v1053 = vunpack.c.h.b16 %v500
    %v1054 = vunpack.c.l.b16 %v501
    %v1055 = vunpack.c.h.b16 %v501
    %v1056 = vunpack.c.l.b16 %v502
    %v1057 = vunpack.c.h.b16 %v502
    %v1058 = vunpack.c.l.b16 %v503
    %v1059 = vunpack.c.h.b16 %v503
    %v1060 = vunpack.c.l.b16 %v504
    %v1061 = vunpack.c.h.b16 %v504
    %v1062 = vunpack.c.l.b16 %v505
    %v1063 = vunpack.c.h.b16 %v505
    %v1064 = vunpack.c.l.b16 %v506
    %v1065 = vunpack.c.h.b16 %v506
    %v1066 = vunpack.c.l.b16 %v507
    %v1067 = vunpack.c.h.b16 %v507
    %v1068 = vunpack.c.l.b16 %v508
    %v1069 = vunpack.c.h.b16 %v508
    %v1070 = vunpack.c.l.b16 %v509
    %v1071 = vunpack.c.h.b16 %v509
    %v1072 = vunpack.c.l.b16 %v510
    %v1073 = vunpack.c.h.b16 %v510
    %v1074 = vunpack.c.l.b16 %v511
    %v1075 = vunpack.c.h.b16 %v511
    %v1076 = vunpack.c.l.b16 %v512
    %v1077 = vunpack.c.h.b16 %v512
    %v1078 = vunpack.c.l.b16 %v513
    %v1079 = vunpack.c.h.b16 %v513
    %v1080 = vunpack.c.l.b16 %v514
    %v1081 = vunpack.c.h.b16 %v514
    %v1082 = vunpack.c.l.b16 %v515
    %v1083 = vunpack.c.h.b16 %v515
    %v1084 = vunpack.c.l.b16 %v516
    %v1085 = vunpack.c.h.b16 %v516
    %v1086 = vunpack.c.l.b16 %v517
    %v1087 = vunpack.c.h.b16 %v517
    %v1088 = vunpack.c.l.b16 %v518
    %v1089 = vunpack.c.h.b16 %v518
    %v1090 = vunpack.c.l.b16 %v519
    %v1091 = vunpack.c.h.b16 %v519
    %v1092 = vunpack.c.l.b16 %v520
    %v1093 = vunpack.c.h.b16 %v520
    %v1094 = vunpack.c.l.b16 %v521
    %v1095 = vunpack.c.h.b16 %v521
    %v1096 = vunpack.c.l.b16 %v522
    %v1097 = vunpack.c.h.b16 %v522
    %v1098 = vunpack.c.l.b16 %v523
    %v1099 = vunpack.c.h.b16 %v523
    %v1100 = vunpack.c.l.b16 %v524
    %v1101 = vunpack.c.h.b16 %v524
    %v1102 = vunpack.c.l.b16 %v525
    %v1103 = vunpack.c.h.b16 %v525
    %v1104 = vunpack.c.l.b16 %v526
    %v1105 = vunpack.c.h.b16 %v526
    %v1106 = vunpack.c.l.b16 %v527
    %v1107 = vunpack.c.h.b16 %v527
    %v1108 = vunpack.c.l.b16 %v528
    %v1109 = vunpack.c.h.b16 %v528
    %v1110 = vunpack.c.l.b16 %v529
    %v1111 = vunpack.c.h.b16 %v529
    %v1112 = vunpack.c.l.b16 %v530
    %v1113 = vunpack.c.h.b16 %v530
    %v1114 = vunpack.c.l.b16 %v531
    %v1115 = vunpack.c.h.b16 %v531
    %v1116 = vunpack.c.l.b16 %v532
    %v1117 = vunpack.c.h.b16 %v532
    %v1118 = vunpack.c.l.b16 %v533
    %v1119 = vunpack.c.h.b16 %v533
    %v1120 = vunpack.c.l.b16 %v534
    %v1121 = vunpack.c.h.b16 %v534
    %v1122 = vunpack.c.l.b16 %v535
    %v1123 = vunpack.c.h.b16 %v535
    %v1124 = vunpack.c.l.b16 %v536
    %v1125 = vunpack.c.h.b16 %v536
    %v1126 = vunpack.c.l.b16 %v537
    %v1127 = vunpack.c.h.b16 %v537
    %v1128 = vunpack.c.l.b16 %v538
    %v1129 = vunpack.c.h.b16 %v538
    %v1130 = vunpack.c.l.b16 %v539
    %v1131 = vunpack.c.h.b16 %v539
    %v1132 = vunpack.c.l.b16 %v540
    %v1133 = vunpack.c.h.b16 %v540
    %v1134 = vunpack.c.l.b16 %v541
    %v1135 = vunpack.c.h.b16 %v541
    %v1136 = vunpack.c.l.b16 %v542
    %v1137 = vunpack.c.h.b16 %v542
    %v1138 = vunpack.c.l.b16 %v543
    %v1139 = vunpack.c.h.b16 %v543
    %v1140 = vunpack.c.l.b16 %v544
    %v1141 = vunpack.c.h.b16 %v544
    %v1142 = vunpack.c.l.b16 %v545
    %v1143 = vunpack.c.h.b16 %v545
    %v1144 = vunpack.c.l.b16 %v546
    %v1145 = vunpack.c.h.b16 %v546
    %v1146 = vunpack.c.l.b16 %v547
    %v1147 = vunpack.c.h.b16 %v547
    %v1148 = vunpack.c.l.b16 %v548
    %v1149 = vunpack.c.h.b16 %v548
    %v1150 = vunpack.c.l.b16 %v549
    %v1151 = vunpack.c.h.b16 %v549
    %v1152 = vunpack.c.l.b16 %v550
    %v1153 = vunpack.c.h.b16 %v550
    %v1154 = vunpack.c.l.b16 %v551
    %v1155 = vunpack.c.h.b16 %v551
    %v1156 = vunpack.c.l.b16 %v552
    %v1157 = vunpack.c.h.b16 %v552
    %v1158 = vunpack.c.l.b16 %v553
    %v1159 = vunpack.c.h.b16 %v553
    %v1160 = vunpack.c.l.b16 %v554
    %v1161 = vunpack.c.h.b16 %v554
    %v1162 = vunpack.c.l.b16 %v555
    %v1163 = vunpack.c.h.b16 %v555
    %v1164 = vunpack.c.l.b16 %v556
    %v1165 = vunpack.c.h.b16 %v556
    %v1166 = vunpack.c.l.b16 %v557
    %v1167 = vunpack.c.h.b16 %v557
    %v1168 = vunpack.c.l.b16 %v558
    %v1169 = vunpack.c.h.b16 %v558
    %v1170 = vunpack.c.l.b16 %v559
    %v1171 = vunpack.c.h.b16 %v559
    %v1172 = vunpack.c.l.b16 %v560
    %v1173 = vunpack.c.h.b16 %v560
    %v1174 = vunpack.c.l.b16 %v561
    %v1175 = vunpack.c.h.b16 %v561
    %v1176 = vunpack.c.l.b16 %v562
    %v1177 = vunpack.c.h.b16 %v562
    %v1178 = vunpack.c.l.b16 %v563
    %v1179 = vunpack.c.h.b16 %v563
    %v1180 = vunpack.c.l.b16 %v564
    %v1181 = vunpack.c.h.b16 %v564
    %v1182 = vunpack.c.l.b16 %v565
    %v1183 = vunpack.c.h.b16 %v565
    %v1184 = vunpack.c.l.b16 %v566
    %v1185 = vunpack.c.h.b16 %v566
    %v1186 = vunpack.c.l.b16 %v567
    %v1187 = vunpack.c.h.b16 %v567
    %v1188 = vunpack.c.l.b16 %v568
    %v1189 = vunpack.c.h.b16 %v568
    %v1190 = vunpack.c.l.b16 %v569
    %v1191 = vunpack.c.h.b16 %v569
    %v1192 = vunpack.c.l.b16 %v570
    %v1193 = vunpack.c.h.b16 %v570
    %v1194 = vunpack.c.l.b16 %v571
    %v1195 = vunpack.c.h.b16 %v571
    %v1196 = vunpack.c.l.b16 %v572
    %v1197 = vunpack.c.h.b16 %v572
    %v1198 = vunpack.c.l.b16 %v573
    %v1199 = vunpack.c.h.b16 %v573
    %v1200 = vunpack.c.l.b16 %v574
    %v1201 = vunpack.c.h.b16 %v574
    %v1202 = vunpack.c.l.b16 %v575
    %v1203 = vunpack.c.h.b16 %v575
    %v1204 = vunpack.c.l.b16 %v576
    %v1205 = vunpack.c.h.b16 %v576
    %v1206 = vunpack.c.l.b16 %v577
    %v1207 = vunpack.c.h.b16 %v577
    %v1208 = vunpack.c.l.b16 %v578
    %v1209 = vunpack.c.h.b16 %v578
    %v1210 = vunpack.c.l.b16 %v579
    %v1211 = vunpack.c.h.b16 %v579
    %v1212 = vunpack.c.l.b16 %v580
    %v1213 = vunpack.c.h.b16 %v580
    %v1214 = vunpack.c.l.b16 %v581
    %v1215 = vunpack.c.h.b16 %v581
    %v1216 = vunpack.c.l.b16 %v582
    %v1217 = vunpack.c.h.b16 %v582
    %v1218 = vunpack.c.l.b16 %v583
    %v1219 = vunpack.c.h.b16 %v583
    %v1220 = vunpack.c.l.b16 %v584
    %v1221 = vunpack.c.h.b16 %v584
    %v1222 = vunpack.c.l.b16 %v585
    %v1223 = vunpack.c.h.b16 %v585
    %v1224 = vunpack.c.l.b16 %v586
    %v1225 = vunpack.c.h.b16 %v586
    %v1226 = vunpack.c.l.b16 %v587
    %v1227 = vunpack.c.h.b16 %v587
    %v1228 = vunpack.c.l.b16 %v588
    %v1229 = vunpack.c.h.b16 %v588
    %v1230 = vunpack.c.l.b16 %v589
    %v1231 = vunpack.c.h.b16 %v589
    %v1232 = vunpack.c.l.b16 %v590
    %v1233 = vunpack.c.h.b16 %v590
    %v1234 = vunpack.c.l.b16 %v591
    %v1235 = vunpack.c.h.b16 %v591
    %v1236 = vunpack.c.l.b16 %v592
    %v1237 = vunpack.c.h.b16 %v592
    %v1238 = vunpack.c.l.b16 %v593
    %v1239 = vunpack.c.h.b16 %v593
    %v1240 = vunpack.c.l.b16 %v594
    %v1241 = vunpack.c.h.b16 %v594
    %v1242 = vunpack.c.l.b16 %v595
    %v1243 = vunpack.c.h.b16 %v595
    %v1244 = vunpack.c.l.b16 %v596
    %v1245 = vunpack.c.h.b16 %v596
    %v1246 = vunpack.c.l.b16 %v597
    %v1247 = vunpack.c.h.b16 %v597
    %v1248 = vunpack.c.l.b16 %v598
    %v1249 = vunpack.c.h.b16 %v598
    %v1250 = vunpack.c.l.b16 %v599
    %v1251 = vunpack.c.h.b16 %v599
    %v1252 = vunpack.c.l.b16 %v600
    %v1253 = vunpack.c.h.b16 %v600
    %v1254 = vunpack.c.l.b16 %v601
    %v1255 = vunpack.c.h.b16 %v601
    %v1256 = vunpack.c.l.b16 %v602
    %v1257 = vunpack.c.h.b16 %v602
    %v1258 = vunpack.c.l.b16 %v603
    %v1259 = vunpack.c.h.b16 %v603
    %v1260 = vunpack.c.l.b16 %v604
    %v1261 = vunpack.c.h.b16 %v604
    %v1262 = vunpack.c.l.b16 %v605
    %v1263 = vunpack.c.h.b16 %v605
    %v1264 = vunpack.c.l.b16 %v606
    %v1265 = vunpack.c.h.b16 %v606
    %v1266 = vunpack.c.l.b16 %v607
    %v1267 = vunpack.c.h.b16 %v607
    %v1268 = vunpack.c.l.b16 %v608
    %v1269 = vunpack.c.h.b16 %v608
    %v1270 = vunpack.c.l.b16 %v609
    %v1271 = vunpack.c.h.b16 %v609
    %v1272 = vunpack.c.l.b16 %v610
    %v1273 = vunpack.c.h.b16 %v610
    %v1274 = vunpack.c.l.b16 %v611
    %v1275 = vunpack.c.h.b16 %v611
    %v1276 = vunpack.c.l.b16 %v612
    %v1277 = vunpack.c.h.b16 %v612
    %v1278 = vunpack.c.l.b16 %v613
    %v1279 = vunpack.c.h.b16 %v613
    %v1280 = vunpack.c.l.b16 %v614
    %v1281 = vunpack.c.h.b16 %v614
    %v1282 = vunpack.c.l.b16 %v615
    %v1283 = vunpack.c.h.b16 %v615
    %v1284 = vunpack.c.l.b16 %v616
    %v1285 = vunpack.c.h.b16 %v616
    %v1286 = vunpack.c.l.b16 %v617
    %v1287 = vunpack.c.h.b16 %v617
    %v1288 = vunpack.c.l.b16 %v618
    %v1289 = vunpack.c.h.b16 %v618
    %v1290 = vunpack.c.l.b16 %v619
    %v1291 = vunpack.c.h.b16 %v619
    %v1292 = vunpack.c.l.b16 %v620
    %v1293 = vunpack.c.h.b16 %v620
    %v1294 = vunpack.c.l.b16 %v621
    %v1295 = vunpack.c.h.b16 %v621
    %v1296 = vunpack.c.l.b16 %v622
    %v1297 = vunpack.c.h.b16 %v622
    %v1298 = vunpack.c.l.b16 %v623
    %v1299 = vunpack.c.h.b16 %v623
    %v1300 = vunpack.c.l.b16 %v624
    %v1301 = vunpack.c.h.b16 %v624
    %v1302 = vunpack.c.l.b16 %v625
    %v1303 = vunpack.c.h.b16 %v625
    %v1304 = vunpack.c.l.b16 %v626
    %v1305 = vunpack.c.h.b16 %v626
    %v1306 = vunpack.c.l.b16 %v627
    %v1307 = vunpack.c.h.b16 %v627
    %v1308 = vunpack.c.l.b16 %v628
    %v1309 = vunpack.c.h.b16 %v628
    %v1310 = vunpack.c.l.b16 %v629
    %v1311 = vunpack.c.h.b16 %v629
    %v1312 = vunpack.c.l.b16 %v630
    %v1313 = vunpack.c.h.b16 %v630
    %v1314 = vunpack.c.l.b16 %v631
    %v1315 = vunpack.c.h.b16 %v631
    %v1316 = vunpack.c.l.b16 %v632
    %v1317 = vunpack.c.h.b16 %v632
    %v1318 = vunpack.c.l.b16 %v633
    %v1319 = vunpack.c.h.b16 %v633
    %v1320 = vunpack.c.l.b16 %v634
    %v1321 = vunpack.c.h.b16 %v634
    %v1322 = vunpack.c.l.b16 %v635
    %v1323 = vunpack.c.h.b16 %v635
    %v1324 = vunpack.c.l.b16 %v636
    %v1325 = vunpack.c.h.b16 %v636
    %v1326 = vunpack.c.l.b16 %v637
    %v1327 = vunpack.c.h.b16 %v637
    %v1328 = vunpack.c.l.b16 %v638
    %v1329 = vunpack.c.h.b16 %v638
    %v1330 = vunpack.c.l.b16 %v639
    %v1331 = vunpack.c.h.b16 %v639
    %v1332 = vunpack.c.l.b16 %v640
    %v1333 = vunpack.c.h.b16 %v640
    %v1334 = vunpack.c.l.b16 %v641
    %v1335 = vunpack.c.h.b16 %v641
    %v1336 = vunpack.c.l.b16 %v642
    %v1337 = vunpack.c.h.b16 %v642
    %v1338 = vunpack.c.l.b16 %v643
    %v1339 = vunpack.c.h.b16 %v643
    %v1340 = vunpack.c.l.b16 %v644
    %v1341 = vunpack.c.h.b16 %v644
    %v1342 = vunpack.c.l.b16 %v645
    %v1343 = vunpack.c.h.b16 %v645
    %v1344 = vunpack.c.l.b16 %v646
    %v1345 = vunpack.c.h.b16 %v646
    %v1346 = vunpack.c.l.b16 %v647
    %v1347 = vunpack.c.h.b16 %v647
    %v1348 = vunpack.c.l.b16 %v648
    %v1349 = vunpack.c.h.b16 %v648
    %v1350 = vunpack.c.l.b16 %v649
    %v1351 = vunpack.c.h.b16 %v649
    %v1352 = vunpack.c.l.b16 %v650
    %v1353 = vunpack.c.h.b16 %v650
    %v1354 = vunpack.c.l.b16 %v651
    %v1355 = vunpack.c.h.b16 %v651
    %v1356 = vunpack.c.l.b16 %v652
    %v1357 = vunpack.c.h.b16 %v652
    %v1358 = vunpack.c.l.b16 %v653
    %v1359 = vunpack.c.h.b16 %v653
    %v1360 = vunpack.c.l.b16 %v654
    %v1361 = vunpack.c.h.b16 %v654
    %v1362 = vunpack.c.l.b16 %v655
    %v1363 = vunpack.c.h.b16 %v655
    %v1364 = vunpack.c.l.b16 %v656
    %v1365 = vunpack.c.h.b16 %v656
    %v1366 = vunpack.c.l.b16 %v657
    %v1367 = vunpack.c.h.b16 %v657
    %v1368 = vunpack.c.l.b16 %v658
    %v1369 = vunpack.c.h.b16 %v658
    %v1370 = vunpack.c.l.b16 %v659
    %v1371 = vunpack.c.h.b16 %v659
    %v1372 = vunpack.c.l.b16 %v660
    %v1373 = vunpack.c.h.b16 %v660
    %v1374 = vunpack.c.l.b16 %v661
    %v1375 = vunpack.c.h.b16 %v661
    %v1376 = vunpack.c.l.b16 %v662
    %v1377 = vunpack.c.h.b16 %v662
    %v1378 = vunpack.c.l.b16 %v663
    %v1379 = vunpack.c.h.b16 %v663
    %v1380 = vunpack.c.l.b16 %v664
    %v1381 = vunpack.c.h.b16 %v664
    %v1382 = vunpack.c.l.b16 %v665
    %v1383 = vunpack.c.h.b16 %v665
    %v1384 = vunpack.c.l.b16 %v666
    %v1385 = vunpack.c.h.b16 %v666
    %v1386 = vunpack.c.l.b16 %v667
    %v1387 = vunpack.c.h.b16 %v667
    %v1388 = vunpack.c.l.b16 %v668
    %v1389 = vunpack.c.h.b16 %v668
    %v1390 = vunpack.c.l.b16 %v669
    %v1391 = vunpack.c.h.b16 %v669
    %v1392 = vunpack.c.l.b16 %v670
    %v1393 = vunpack.c.h.b16 %v670
    %v1394 = vunpack.c.l.b16 %v671
    %v1395 = vunpack.c.h.b16 %v671
    %v1396 = vunpack.c.l.b16 %v672
    %v1397 = vunpack.c.h.b16 %v672
    %v1398 = vunpack.c.l.b16 %v673
    %v1399 = vunpack.c.h.b16 %v673
    %v1400 = vunpack.c.l.b16 %v674
    %v1401 = vunpack.c.h.b16 %v674
    %v1402 = vunpack.c.l.b16 %v675
    %v1403 = vunpack.c.h.b16 %v675
    %v1404 = vunpack.c.l.b16 %v676
    %v1405 = vunpack.c.h.b16 %v676
    %v1406 = vunpack.c.l.b16 %v677
    %v1407 = vunpack.c.h.b16 %v677
    %v1408 = vunpack.c.l.b16 %v678
    %v1409 = vunpack.c.h.b16 %v678
    %v1410 = vunpack.c.l.b16 %v679
    %v1411 = vunpack.c.h.b16 %v679
    %v1412 = vunpack.c.l.b16 %v680
    %v1413 = vunpack.c.h.b16 %v680
    %v1414 = vunpack.c.l.b16 %v681
    %v1415 = vunpack.c.h.b16 %v681
    %v1416 = vunpack.c.l.b16 %v682
    %v1417 = vunpack.c.h.b16 %v682
    %v1418 = vunpack.c.l.b16 %v683
    %v1419 = vunpack.c.h.b16 %v683
    %v1420 = vunpack.c.l.b16 %v684
    %v1421 = vunpack.c.h.b16 %v684
    %v1422 = vunpack.c.l.b16 %v685
    %v1423 = vunpack.c.h.b16 %v685
    %v1424 = vunpack.c.l.b16 %v686
    %v1425 = vunpack.c.h.b16 %v686
    %v1426 = vunpack.c.l.b16 %v687
    %v1427 = vunpack.c.h.b16 %v687
    %v1428 = vunpack.c.l.b16 %v688
    %v1429 = vunpack.c.h.b16 %v688
    %v1430 = vunpack.c.l.b16 %v689
    %v1431 = vunpack.c.h.b16 %v689
    %v1432 = vunpack.c.l.b16 %v690
    %v1433 = vunpack.c.h.b16 %v690
    %v1434 = vunpack.c.l.b16 %v691
    %v1435 = vunpack.c.h.b16 %v691
    %v1436 = vunpack.c.l.b16 %v692
    %v1437 = vunpack.c.h.b16 %v692
    %v1438 = vunpack.c.l.b16 %v693
    %v1439 = vunpack.c.h.b16 %v693
    %v1440 = vunpack.c.l.b16 %v694
    %v1441 = vunpack.c.h.b16 %v694
    %v1442 = vunpack.c.l.b16 %v695
    %v1443 = vunpack.c.h.b16 %v695
    %v1444 = vunpack.c.l.b16 %v696
    %v1445 = vunpack.c.h.b16 %v696
    %v1446 = vunpack.c.l.b16 %v697
    %v1447 = vunpack.c.h.b16 %v697
    %v1448 = vunpack.c.l.b16 %v698
    %v1449 = vunpack.c.h.b16 %v698
    %v1450 = vunpack.c.l.b16 %v699
    %v1451 = vunpack.c.h.b16 %v699
    %v1452 = vunpack.c.l.b16 %v700
    %v1453 = vunpack.c.h.b16 %v700
    %v1454 = vunpack.c.l.b16 %v701
    %v1455 = vunpack.c.h.b16 %v701
    %v1456 = vunpack.c.l.b16 %v702
    %v1457 = vunpack.c.h.b16 %v702
    %v1458 = vunpack.c.l.b16 %v703
    %v1459 = vunpack.c.h.b16 %v703
    %v1460 = vunpack.c.l.b16 %v704
    %v1461 = vunpack.c.h.b16 %v704
    %v1462 = vunpack.c.l.b16 %v705
    %v1463 = vunpack.c.h.b16 %v705
    %v1464 = vunpack.c.l.b16 %v706
    %v1465 = vunpack.c.h.b16 %v706
    %v1466 = vunpack.c.l.b16 %v707
    %v1467 = vunpack.c.h.b16 %v707
    %v1468 = vunpack.c.l.b16 %v708
    %v1469 = vunpack.c.h.b16 %v708
    %v1470 = vunpack.c.l.b16 %v709
    %v1471 = vunpack.c.h.b16 %v709
    %v1472 = vunpack.c.l.b16 %v710
    %v1473 = vunpack.c.h.b16 %v710
    %v1474 = vunpack.c.l.b16 %v711
    %v1475 = vunpack.c.h.b16 %v711
    %v1476 = vunpack.c.l.b16 %v712
    %v1477 = vunpack.c.h.b16 %v712
    %v1478 = vunpack.c.l.b16 %v713
    %v1479 = vunpack.c.h.b16 %v713
    %v1480 = vunpack.c.l.b16 %v714
    %v1481 = vunpack.c.h.b16 %v714
    %v1482 = vunpack.c.l.b16 %v715
    %v1483 = vunpack.c.h.b16 %v715
    %v1484 = vpack.c.b16 %v980, %v972
    %v1485 = vpack.c.b16 %v981, %v973
    %v1486 = vpack.c.b16 %v982, %v974
    %v1487 = vpack.c.b16 %v983, %v975
    %v1488 = vpack.c.b16 %v984, %v976
    %v1489 = vpack.c.b16 %v985, %v977
    %v1490 = vpack.c.b16 %v986, %v978
    %v1491 = vpack.c.b16 %v987, %v979
    %v1492 = vpack.c.b16 %v996, %v988
    %v1493 = vpack.c.b16 %v997, %v989
    %v1494 = vpack.c.b16 %v998, %v990
    %v1495 = vpack.c.b16 %v999, %v991
    %v1496 = vpack.c.b16 %v1000, %v992
    %v1497 = vpack.c.b16 %v1001, %v993
    %v1498 = vpack.c.b16 %v1002, %v994
    %v1499 = vpack.c.b16 %v1003, %v995
    %v1500 = vpack.c.b16 %v1012, %v1004
    %v1501 = vpack.c.b16 %v1013, %v1005
    %v1502 = vpack.c.b16 %v1014, %v1006
    %v1503 = vpack.c.b16 %v1015, %v1007
    %v1504 = vpack.c.b16 %v1016, %v1008
    %v1505 = vpack.c.b16 %v1017, %v1009
    %v1506 = vpack.c.b16 %v1018, %v1010
    %v1507 = vpack.c.b16 %v1019, %v1011
    %v1508 = vpack.c.b16 %v1028, %v1020
    %v1509 = vpack.c.b16 %v1029, %v1021
    %v1510 = vpack.c.b16 %v1030, %v1022
    %v1511 = vpack.c.b16 %v1031, %v1023
    %v1512 = vpack.c.b16 %v1032, %v1024
    %v1513 = vpack.c.b16 %v1033, %v1025
    %v1514 = vpack.c.b16 %v1034, %v1026
    %v1515 = vpack.c.b16 %v1035, %v1027
    %v1516 = vpack.c.b16 %v1044, %v1036
    %v1517 = vpack.c.b16 %v1045, %v1037
    %v1518 = vpack.c.b16 %v1046, %v1038
    %v1519 = vpack.c.b16 %v1047, %v1039
    %v1520 = vpack.c.b16 %v1048, %v1040
    %v1521 = vpack.c.b16 %v1049, %v1041
    %v1522 = vpack.c.b16 %v1050, %v1042
    %v1523 = vpack.c.b16 %v1051, %v1043
    %v1524 = vpack.c.b16 %v1060, %v1052
    %v1525 = vpack.c.b16 %v1061, %v1053
    %v1526 = vpack.c.b16 %v1062, %v1054
    %v1527 = vpack.c.b16 %v1063, %v1055
    %v1528 = vpack.c.b16 %v1064, %v1056
    %v1529 = vpack.c.b16 %v1065, %v1057
    %v1530 = vpack.c.b16 %v1066, %v1058
    %v1531 = vpack.c.b16 %v1067, %v1059
    %v1532 = vpack.c.b16 %v1076, %v1068
    %v1533 = vpack.c.b16 %v1077, %v1069
    %v1534 = vpack.c.b16 %v1078, %v1070
    %v1535 = vpack.c.b16 %v1079, %v1071
    %v1536 = vpack.c.b16 %v1080, %v1072
    %v1537 = vpack.c.b16 %v1081, %v1073
    %v1538 = vpack.c.b16 %v1082, %v1074
    %v1539 = vpack.c.b16 %v1083, %v1075
    %v1540 = vpack.c.b16 %v1092, %v1084
    %v1541 = vpack.c.b16 %v1093, %v1085
    %v1542 = vpack.c.b16 %v1094, %v1086
    %v1543 = vpack.c.b16 %v1095, %v1087
    %v1544 = vpack.c.b16 %v1096, %v1088
    %v1545 = vpack.c.b16 %v1097, %v1089
    %v1546 = vpack.c.b16 %v1098, %v1090
    %v1547 = vpack.c.b16 %v1099, %v1091
    %v1548 = vpack.c.b16 %v1108, %v1100
    %v1549 = vpack.c.b16 %v1109, %v1101
    %v1550 = vpack.c.b16 %v1110, %v1102
    %v1551 = vpack.c.b16 %v1111, %v1103
    %v1552 = vpack.c.b16 %v1112, %v1104
    %v1553 = vpack.c.b16 %v1113, %v1105
    %v1554 = vpack.c.b16 %v1114, %v1106
    %v1555 = vpack.c.b16 %v1115, %v1107
    %v1556 = vpack.c.b16 %v1124, %v1116
    %v1557 = vpack.c.b16 %v1125, %v1117
    %v1558 = vpack.c.b16 %v1126, %v1118
    %v1559 = vpack.c.b16 %v1127, %v1119
    %v1560 = vpack.c.b16 %v1128, %v1120
    %v1561 = vpack.c.b16 %v1129, %v1121
    %v1562 = vpack.c.b16 %v1130, %v1122
    %v1563 = vpack.c.b16 %v1131, %v1123
    %v1564 = vpack.c.b16 %v1140, %v1132
    %v1565 = vpack.c.b16 %v1141, %v1133
    %v1566 = vpack.c.b16 %v1142, %v1134
    %v1567 = vpack.c.b16 %v1143, %v1135
    %v1568 = vpack.c.b16 %v1144, %v1136
    %v1569 = vpack.c.b16 %v1145, %v1137
    %v1570 = vpack.c.b16 %v1146, %v1138
    %v1571 = vpack.c.b16 %v1147, %v1139
    %v1572 = vpack.c.b16 %v1156, %v1148
    %v1573 = vpack.c.b16 %v1157, %v1149
    %v1574 = vpack.c.b16 %v1158, %v1150
    %v1575 = vpack.c.b16 %v1159, %v1151
    %v1576 = vpack.c.b16 %v1160, %v1152
    %v1577 = vpack.c.b16 %v1161, %v1153
    %v1578 = vpack.c.b16 %v1162, %v1154
    %v1579 = vpack.c.b16 %v1163, %v1155
    %v1580 = vpack.c.b16 %v1172, %v1164
    %v1581 = vpack.c.b16 %v1173, %v1165
    %v1582 = vpack.c.b16 %v1174, %v1166
    %v1583 = vpack.c.b16 %v1175, %v1167
    %v1584 = vpack.c.b16 %v1176, %v1168
    %v1585 = vpack.c.b16 %v1177, %v1169
    %v1586 = vpack.c.b16 %v1178, %v1170
    %v1587 = vpack.c.b16 %v1179, %v1171
    %v1588 = vpack.c.b16 %v1188, %v1180
    %v1589 = vpack.c.b16 %v1189, %v1181
    %v1590 = vpack.c.b16 %v1190, %v1182
    %v1591 = vpack.c.b16 %v1191, %v1183
    %v1592 = vpack.c.b16 %v1192, %v1184
    %v1593 = vpack.c.b16 %v1193, %v1185
    %v1594 = vpack.c.b16 %v1194, %v1186
    %v1595 = vpack.c.b16 %v1195, %v1187
    %v1596 = vpack.c.b16 %v1204, %v1196
    %v1597 = vpack.c.b16 %v1205, %v1197
    %v1598 = vpack.c.b16 %v1206, %v1198
    %v1599 = vpack.c.b16 %v1207, %v1199
    %v1600 = vpack.c.b16 %v1208, %v1200
    %v1601 = vpack.c.b16 %v1209, %v1201
    %v1602 = vpack.c.b16 %v1210, %v1202
    %v1603 = vpack.c.b16 %v1211, %v1203
    %v1604 = vpack.c.b16 %v1220, %v1212
    %v1605 = vpack.c.b16 %v1221, %v1213
    %v1606 = vpack.c.b16 %v1222, %v1214
    %v1607 = vpack.c.b16 %v1223, %v1215
    %v1608 = vpack.c.b16 %v1224, %v1216
    %v1609 = vpack.c.b16 %v1225, %v1217
    %v1610 = vpack.c.b16 %v1226, %v1218
    %v1611 = vpack.c.b16 %v1227, %v1219
    %v1612 = vpack.c.b16 %v1236, %v1228
    %v1613 = vpack.c.b16 %v1237, %v1229
    %v1614 = vpack.c.b16 %v1238, %v1230
    %v1615 = vpack.c.b16 %v1239, %v1231
    %v1616 = vpack.c.b16 %v1240, %v1232
    %v1617 = vpack.c.b16 %v1241, %v1233
    %v1618 = vpack.c.b16 %v1242, %v1234
    %v1619 = vpack.c.b16 %v1243, %v1235
    %v1620 = vpack.c.b16 %v1252, %v1244
    %v1621 = vpack.c.b16 %v1253, %v1245
    %v1622 = vpack.c.b16 %v1254, %v1246
    %v1623 = vpack.c.b16 %v1255, %v1247
    %v1624 = vpack.c.b16 %v1256, %v1248
    %v1625 = vpack.c.b16 %v1257, %v1249
    %v1626 = vpack.c.b16 %v1258, %v1250
    %v1627 = vpack.c.b16 %v1259, %v1251
    %v1628 = vpack.c.b16 %v1268, %v1260
    %v1629 = vpack.c.b16 %v1269, %v1261
    %v1630 = vpack.c.b16 %v1270, %v1262
    %v1631 = vpack.c.b16 %v1271, %v1263
    %v1632 = vpack.c.b16 %v1272, %v1264
    %v1633 = vpack.c.b16 %v1273, %v1265
    %v1634 = vpack.c.b16 %v1274, %v1266
    %v1635 = vpack.c.b16 %v1275, %v1267
    %v1636 = vpack.c.b16 %v1284, %v1276
    %v1637 = vpack.c.b16 %v1285, %v1277
    %v1638 = vpack.c.b16 %v1286, %v1278
    %v1639 = vpack.c.b16 %v1287, %v1279
    %v1640 = vpack.c.b16 %v1288, %v1280
    %v1641 = vpack.c.b16 %v1289, %v1281
    %v1642 = vpack.c.b16 %v1290, %v1282
    %v1643 = vpack.c.b16 %v1291, %v1283
    %v1644 = vpack.c.b16 %v1300, %v1292
    %v1645 = vpack.c.b16 %v1301, %v1293
    %v1646 = vpack.c.b16 %v1302, %v1294
    %v1647 = vpack.c.b16 %v1303, %v1295
    %v1648 = vpack.c.b16 %v1304, %v1296
    %v1649 = vpack.c.b16 %v1305, %v1297
    %v1650 = vpack.c.b16 %v1306, %v1298
    %v1651 = vpack.c.b16 %v1307, %v1299
    %v1652 = vpack.c.b16 %v1316, %v1308
    %v1653 = vpack.c.b16 %v1317, %v1309
    %v1654 = vpack.c.b16 %v1318, %v1310
    %v1655 = vpack.c.b16 %v1319, %v1311
    %v1656 = vpack.c.b16 %v1320, %v1312
    %v1657 = vpack.c.b16 %v1321, %v1313
    %v1658 = vpack.c.b16 %v1322, %v1314
    %v1659 = vpack.c.b16 %v1323, %v1315
    %v1660 = vpack.c.b16 %v1332, %v1324
    %v1661 = vpack.c.b16 %v1333, %v1325
    %v1662 = vpack.c.b16 %v1334, %v1326
    %v1663 = vpack.c.b16 %v1335, %v1327
    %v1664 = vpack.c.b16 %v1336, %v1328
    %v1665 = vpack.c.b16 %v1337, %v1329
    %v1666 = vpack.c.b16 %v1338, %v1330
    %v1667 = vpack.c.b16 %v1339, %v1331
    %v1668 = vpack.c.b16 %v1348, %v1340
    %v1669 = vpack.c.b16 %v1349, %v1341
    %v1670 = vpack.c.b16 %v1350, %v1342
    %v1671 = vpack.c.b16 %v1351, %v1343
    %v1672 = vpack.c.b16 %v1352, %v1344
    %v1673 = vpack.c.b16 %v1353, %v1345
    %v1674 = vpack.c.b16 %v1354, %v1346
    %v1675 = vpack.c.b16 %v1355, %v1347
    %v1676 = vpack.c.b16 %v1364, %v1356
    %v1677 = vpack.c.b16 %v1365, %v1357
    %v1678 = vpack.c.b16 %v1366, %v1358
    %v1679 = vpack.c.b16 %v1367, %v1359
    %v1680 = vpack.c.b16 %v1368, %v1360
    %v1681 = vpack.c.b16 %v1369, %v1361
    %v1682 = vpack.c.b16 %v1370, %v1362
    %v1683 = vpack.c.b16 %v1371, %v1363
    %v1684 = vpack.c.b16 %v1380, %v1372
    %v1685 = vpack.c.b16 %v1381, %v1373
    %v1686 = vpack.c.b16 %v1382, %v1374
    %v1687 = vpack.c.b16 %v1383, %v1375
    %v1688 = vpack.c.b16 %v1384, %v1376
    %v1689 = vpack.c.b16 %v1385, %v1377
    %v1690 = vpack.c.b16 %v1386, %v1378
    %v1691 = vpack.c.b16 %v1387, %v1379
    %v1692 = vpack.c.b16 %v1396, %v1388
    %v1693 = vpack.c.b16 %v1397, %v1389
    %v1694 = vpack.c.b16 %v1398, %v1390
    %v1695 = vpack.c.b16 %v1399, %v1391
    %v1696 = vpack.c.b16 %v1400, %v1392
    %v1697 = vpack.c.b16 %v1401, %v1393
    %v1698 = vpack.c.b16 %v1402, %v1394
    %v1699 = vpack.c.b16 %v1403, %v1395
    %v1700 = vpack.c.b16 %v1412, %v1404
    %v1701 = vpack.c.b16 %v1413, %v1405
    %v1702 = vpack.c.b16 %v1414, %v1406
    %v1703 = vpack.c.b16 %v1415, %v1407
    %v1704 = vpack.c.b16 %v1416, %v1408
    %v1705 = vpack.c.b16 %v1417, %v1409
    %v1706 = vpack.c.b16 %v1418, %v1410
    %v1707 = vpack.c.b16 %v1419, %v1411
    %v1708 = vpack.c.b16 %v1428, %v1420
    %v1709 = vpack.c.b16 %v1429, %v1421
    %v1710 = vpack.c.b16 %v1430, %v1422
    %v1711 = vpack.c.b16 %v1431, %v1423
    %v1712 = vpack.c.b16 %v1432, %v1424
    %v1713 = vpack.c.b16 %v1433, %v1425
    %v1714 = vpack.c.b16 %v1434, %v1426
    %v1715 = vpack.c.b16 %v1435, %v1427
    %v1716 = vpack.c.b16 %v1444, %v1436
    %v1717 = vpack.c.b16 %v1445, %v1437
    %v1718 = vpack.c.b16 %v1446, %v1438
    %v1719 = vpack.c.b16 %v1447, %v1439
    %v1720 = vpack.c.b16 %v1448, %v1440
    %v1721 = vpack.c.b16 %v1449, %v1441
    %v1722 = vpack.c.b16 %v1450, %v1442
    %v1723 = vpack.c.b16 %v1451, %v1443
    %v1724 = vpack.c.b16 %v1460, %v1452
    %v1725 = vpack.c.b16 %v1461, %v1453
    %v1726 = vpack.c.b16 %v1462, %v1454
    %v1727 = vpack.c.b16 %v1463, %v1455
    %v1728 = vpack.c.b16 %v1464, %v1456
    %v1729 = vpack.c.b16 %v1465, %v1457
    %v1730 = vpack.c.b16 %v1466, %v1458
    %v1731 = vpack.c.b16 %v1467, %v1459
    %v1732 = vpack.c.b16 %v1476, %v1468
    %v1733 = vpack.c.b16 %v1477, %v1469
    %v1734 = vpack.c.b16 %v1478, %v1470
    %v1735 = vpack.c.b16 %v1479, %v1471
    %v1736 = vpack.c.b16 %v1480, %v1472
    %v1737 = vpack.c.b16 %v1481, %v1473
    %v1738 = vpack.c.b16 %v1482, %v1474
    %v1739 = vpack.c.b16 %v1483, %v1475
    %1996 = vmatprep.subr.bf16.mxu0 %v1485
    %1997 = vmatpush1.bf16.msra.mxu0 %v1484
    %1998 = vmatprep.subr.bf16.mxu0 %v1493
    %1999 = vmatpush1.bf16.msra.mxu0 %v1492
    %2000 = vmatprep.subr.bf16.mxu0 %v1501
    %2001 = vmatpush1.bf16.msra.mxu0 %v1500
    %2002 = vmatprep.subr.bf16.mxu0 %v1509
    %2003 = vmatpush1.bf16.msra.mxu0 %v1508
    %2004 = vmatprep.subr.bf16.mxu0 %v1517
    %2005 = vmatpush1.bf16.msra.mxu0 %v1516
    %2006 = vmatprep.subr.bf16.mxu0 %v1525
    %2007 = vmatpush1.bf16.msra.mxu0 %v1524
    %2008 = vmatprep.subr.bf16.mxu0 %v1533
    %2009 = vmatpush1.bf16.msra.mxu0 %v1532
    %2010 = vmatprep.subr.bf16.mxu0 %v1541
    %2011 = vmatpush1.bf16.msra.mxu0 %v1540
    %2012 = vmatprep.subr.bf16.mxu0 %v1549
    %2013 = vmatpush1.bf16.msra.mxu0 %v1548
    %2014 = vmatprep.subr.bf16.mxu0 %v1557
    %2015 = vmatpush1.bf16.msra.mxu0 %v1556
    %2016 = vmatprep.subr.bf16.mxu0 %v1565
    %2017 = vmatpush1.bf16.msra.mxu0 %v1564
    %2018 = vmatprep.subr.bf16.mxu0 %v1573
    %2019 = vmatpush1.bf16.msra.mxu0 %v1572
    %2020 = vmatprep.subr.bf16.mxu0 %v1581
    %2021 = vmatpush1.bf16.msra.mxu0 %v1580
    %2022 = vmatprep.subr.bf16.mxu0 %v1589
    %2023 = vmatpush1.bf16.msra.mxu0 %v1588
    %2024 = vmatprep.subr.bf16.mxu0 %v1597
    %2025 = vmatpush1.bf16.msra.mxu0 %v1596
    %2026 = vmatprep.subr.bf16.mxu0 %v1605
    %2027 = vmatpush1.bf16.msra.mxu0 %v1604
    %2028 = vmatprep.mubr.bf16.mxu0 %v429
    %2029 = vmatmul.mubr.bf16.gmra.mrb[0].mxu0 %v428
    %v2030 = vpop.f32.mrb[0].mxu0
    %v2031 = vadd.f32 0.0, %v2030
    %v2032 = vpop.f32.mrb[0].mxu0
    %v2033 = vadd.f32 0.0, %v2032
    %v2034 = vpop.f32.mrb[0].mxu0
    %v2035 = vadd.f32 0.0, %v2034
    %v2036 = vpop.f32.mrb[0].mxu0
    %v2037 = vadd.f32 0.0, %v2036
    %2038 = vmatprep.mubr.bf16.mxu0 %v433
    %2039 = vmatmul.mubr.bf16.gmra.mrb[0].mxu0 %v432
    %v2040 = vpop.f32.mrb[0].mxu0
    %v2041 = vadd.f32 0.0, %v2040
    %v2042 = vpop.f32.mrb[0].mxu0
    %v2043 = vadd.f32 0.0, %v2042
    %v2044 = vpop.f32.mrb[0].mxu0
    %v2045 = vadd.f32 0.0, %v2044
    %v2046 = vpop.f32.mrb[0].mxu0
    %v2047 = vadd.f32 0.0, %v2046
    %2048 = vmatprep.mubr.bf16.mxu0 %v437
    %2049 = vmatmul.mubr.bf16.gmra.mrb[0].mxu0 %v436
    %v2050 = vpop.f32.mrb[0].mxu0
    %v2051 = vadd.f32 0.0, %v2050
    %v2052 = vpop.f32.mrb[0].mxu0
    %v2053 = vadd.f32 0.0, %v2052
    %v2054 = vpop.f32.mrb[0].mxu0
    %v2055 = vadd.f32 0.0, %v2054
    %v2056 = vpop.f32.mrb[0].mxu0
    %v2057 = vadd.f32 0.0, %v2056
    %2058 = vmatprep.mubr.bf16.mxu0 %v441
    %2059 = vmatmul.mubr.bf16.gmra.mrb[0].mxu0 %v440
    %v2060 = vpop.f32.mrb[0].mxu0
    %v2061 = vadd.f32 0.0, %v2060
    %v2062 = vpop.f32.mrb[0].mxu0
    %v2063 = vadd.f32 0.0, %v2062
    %v2064 = vpop.f32.mrb[0].mxu0
    %v2065 = vadd.f32 0.0, %v2064
    %v2066 = vpop.f32.mrb[0].mxu0
    %v2067 = vadd.f32 0.0, %v2066
    %2068 = vmatprep.mubr.bf16.mxu0 %v445
    %2069 = vmatmul.mubr.bf16.gmra.mrb[0].mxu0 %v444
    %v2070 = vpop.f32.mrb[0].mxu0
    %v2071 = vadd.f32 0.0, %v2070
    %v2072 = vpop.f32.mrb[0].mxu0
    %v2073 = vadd.f32 0.0, %v2072
    %v2074 = vpop.f32.mrb[0].mxu0
    %v2075 = vadd.f32 0.0, %v2074
    %v2076 = vpop.f32.mrb[0].mxu0
    %v2077 = vadd.f32 0.0, %v2076
    %2078 = vmatprep.mubr.bf16.mxu0 %v449
    %2079 = vmatmul.mubr.bf16.gmra.mrb[0].mxu0 %v448
    %v2080 = vpop.f32.mrb[0].mxu0
    %v2081 = vadd.f32 0.0, %v2080
    %v2082 = vpop.f32.mrb[0].mxu0
    %v2083 = vadd.f32 0.0, %v2082
    %v2084 = vpop.f32.mrb[0].mxu0
    %v2085 = vadd.f32 0.0, %v2084
    %v2086 = vpop.f32.mrb[0].mxu0
    %v2087 = vadd.f32 0.0, %v2086
    %2088 = vmatprep.mubr.bf16.mxu0 %v453
    %2089 = vmatmul.mubr.bf16.gmra.mrb[0].mxu0 %v452
    %v2090 = vpop.f32.mrb[0].mxu0
    %v2091 = vadd.f32 0.0, %v2090
    %v2092 = vpop.f32.mrb[0].mxu0
    %v2093 = vadd.f32 0.0, %v2092
    %v2094 = vpop.f32.mrb[0].mxu0
    %v2095 = vadd.f32 0.0, %v2094
    %v2096 = vpop.f32.mrb[0].mxu0
    %v2097 = vadd.f32 0.0, %v2096
    %2098 = vmatprep.mubr.bf16.mxu0 %v457
    %2099 = vmatmul.mubr.bf16.gmra.mrb[0].mxu0 %v456
    %v2100 = vpop.f32.mrb[0].mxu0
    %v2101 = vadd.f32 0.0, %v2100
    %v2102 = vpop.f32.mrb[0].mxu0
    %v2103 = vadd.f32 0.0, %v2102
    %v2104 = vpop.f32.mrb[0].mxu0
    %v2105 = vadd.f32 0.0, %v2104
    %v2106 = vpop.f32.mrb[0].mxu0
    %v2107 = vadd.f32 0.0, %v2106
    %2108 = vdwg.mxu0
    %2109 = vmatprep.subr.bf16.mxu0 %v1613
    %2110 = vmatpush1.bf16.msra.mxu0 %v1612
    %2111 = vmatprep.subr.bf16.mxu0 %v1621
    %2112 = vmatpush1.bf16.msra.mxu0 %v1620
    %2113 = vmatprep.subr.bf16.mxu0 %v1629
    %2114 = vmatpush1.bf16.msra.mxu0 %v1628
    %2115 = vmatprep.subr.bf16.mxu0 %v1637
    %2116 = vmatpush1.bf16.msra.mxu0 %v1636
    %2117 = vmatprep.subr.bf16.mxu0 %v1645
    %2118 = vmatpush1.bf16.msra.mxu0 %v1644
    %2119 = vmatprep.subr.bf16.mxu0 %v1653
    %2120 = vmatpush1.bf16.msra.mxu0 %v1652
    %2121 = vmatprep.subr.bf16.mxu0 %v1661
    %2122 = vmatpush1.bf16.msra.mxu0 %v1660
    %2123 = vmatprep.subr.bf16.mxu0 %v1669
    %2124 = vmatpush1.bf16.msra.mxu0 %v1668
    %2125 = vmatprep.subr.bf16.mxu0 %v1677
    %2126 = vmatpush1.bf16.msra.mxu0 %v1676
    %2127 = vmatprep.subr.bf16.mxu0 %v1685
    %2128 = vmatpush1.bf16.msra.mxu0 %v1684
    %2129 = vmatprep.subr.bf16.mxu0 %v1693
    %2130 = vmatpush1.bf16.msra.mxu0 %v1692
    %2131 = vmatprep.subr.bf16.mxu0 %v1701
    %2132 = vmatpush1.bf16.msra.mxu0 %v1700
    %2133 = vmatprep.subr.bf16.mxu0 %v1709
    %2134 = vmatpush1.bf16.msra.mxu0 %v1708
    %2135 = vmatprep.subr.bf16.mxu0 %v1717
    %2136 = vmatpush1.bf16.msra.mxu0 %v1716
    %2137 = vmatprep.subr.bf16.mxu0 %v1725
    %2138 = vmatpush1.bf16.msra.mxu0 %v1724
    %2139 = vmatprep.subr.bf16.mxu0 %v1733
    %2140 = vmatpush1.bf16.msra.mxu0 %v1732
    %2141 = vmatprep.mubr.bf16.mxu0 %v431
    %2142 = vmatmul.mubr.bf16.gmra.mrb[0].mxu0 %v430
    %v2143 = vpop.f32.mrb[0].mxu0
    %v2144 = vadd.f32 %v2031, %v2143
    %v2145 = vpop.f32.mrb[0].mxu0
    %v2146 = vadd.f32 %v2033, %v2145
    %v2147 = vpop.f32.mrb[0].mxu0
    %v2148 = vadd.f32 %v2035, %v2147
    %v2149 = vpop.f32.mrb[0].mxu0
    %v2150 = vadd.f32 %v2037, %v2149
    %2151 = vmatprep.mubr.bf16.mxu0 %v435
    %2152 = vmatmul.mubr.bf16.gmra.mrb[0].mxu0 %v434
    %v2153 = vpop.f32.mrb[0].mxu0
    %v2154 = vadd.f32 %v2041, %v2153
    %v2155 = vpop.f32.mrb[0].mxu0
    %v2156 = vadd.f32 %v2043, %v2155
    %v2157 = vpop.f32.mrb[0].mxu0
    %v2158 = vadd.f32 %v2045, %v2157
    %v2159 = vpop.f32.mrb[0].mxu0
    %v2160 = vadd.f32 %v2047, %v2159
    %2161 = vmatprep.mubr.bf16.mxu0 %v439
    %2162 = vmatmul.mubr.bf16.gmra.mrb[0].mxu0 %v438
    %v2163 = vpop.f32.mrb[0].mxu0
    %v2164 = vadd.f32 %v2051, %v2163
    %v2165 = vpop.f32.mrb[0].mxu0
    %v2166 = vadd.f32 %v2053, %v2165
    %v2167 = vpop.f32.mrb[0].mxu0
    %v2168 = vadd.f32 %v2055, %v2167
    %v2169 = vpop.f32.mrb[0].mxu0
    %v2170 = vadd.f32 %v2057, %v2169
    %2171 = vmatprep.mubr.bf16.mxu0 %v443
    %2172 = vmatmul.mubr.bf16.gmra.mrb[0].mxu0 %v442
    %v2173 = vpop.f32.mrb[0].mxu0
    %v2174 = vadd.f32 %v2061, %v2173
    %v2175 = vpop.f32.mrb[0].mxu0
    %v2176 = vadd.f32 %v2063, %v2175
    %v2177 = vpop.f32.mrb[0].mxu0
    %v2178 = vadd.f32 %v2065, %v2177
    %v2179 = vpop.f32.mrb[0].mxu0
    %v2180 = vadd.f32 %v2067, %v2179
    %2181 = vmatprep.mubr.bf16.mxu0 %v447
    %2182 = vmatmul.mubr.bf16.gmra.mrb[0].mxu0 %v446
    %v2183 = vpop.f32.mrb[0].mxu0
    %v2184 = vadd.f32 %v2071, %v2183
    %v2185 = vpop.f32.mrb[0].mxu0
    %v2186 = vadd.f32 %v2073, %v2185
    %v2187 = vpop.f32.mrb[0].mxu0
    %v2188 = vadd.f32 %v2075, %v2187
    %v2189 = vpop.f32.mrb[0].mxu0
    %v2190 = vadd.f32 %v2077, %v2189
    %2191 = vmatprep.mubr.bf16.mxu0 %v451
    %2192 = vmatmul.mubr.bf16.gmra.mrb[0].mxu0 %v450
    %v2193 = vpop.f32.mrb[0].mxu0
    %v2194 = vadd.f32 %v2081, %v2193
    %v2195 = vpop.f32.mrb[0].mxu0
    %v2196 = vadd.f32 %v2083, %v2195
    %v2197 = vpop.f32.mrb[0].mxu0
    %v2198 = vadd.f32 %v2085, %v2197
    %v2199 = vpop.f32.mrb[0].mxu0
    %v2200 = vadd.f32 %v2087, %v2199
    %2201 = vmatprep.mubr.bf16.mxu0 %v455
    %2202 = vmatmul.mubr.bf16.gmra.mrb[0].mxu0 %v454
    %v2203 = vpop.f32.mrb[0].mxu0
    %v2204 = vadd.f32 %v2091, %v2203
    %v2205 = vpop.f32.mrb[0].mxu0
    %v2206 = vadd.f32 %v2093, %v2205
    %v2207 = vpop.f32.mrb[0].mxu0
    %v2208 = vadd.f32 %v2095, %v2207
    %v2209 = vpop.f32.mrb[0].mxu0
    %v2210 = vadd.f32 %v2097, %v2209
    %2211 = vmatprep.mubr.bf16.mxu0 %v459
    %2212 = vmatmul.mubr.bf16.gmra.mrb[0].mxu0 %v458
    %v2213 = vpop.f32.mrb[0].mxu0
    %v2214 = vadd.f32 %v2101, %v2213
    %v2215 = vpop.f32.mrb[0].mxu0
    %v2216 = vadd.f32 %v2103, %v2215
    %v2217 = vpop.f32.mrb[0].mxu0
    %v2218 = vadd.f32 %v2105, %v2217
    %v2219 = vpop.f32.mrb[0].mxu0
    %v2220 = vadd.f32 %v2107, %v2219
    %2221 = vdwg.mxu0
    %2222 = vmatprep.subr.bf16.mxu0 %v1487
    %2223 = vmatpush1.bf16.msra.mxu0 %v1486
    %2224 = vmatprep.subr.bf16.mxu0 %v1495
    %2225 = vmatpush1.bf16.msra.mxu0 %v1494
    %2226 = vmatprep.subr.bf16.mxu0 %v1503
    %2227 = vmatpush1.bf16.msra.mxu0 %v1502
    %2228 = vmatprep.subr.bf16.mxu0 %v1511
    %2229 = vmatpush1.bf16.msra.mxu0 %v1510
    %2230 = vmatprep.subr.bf16.mxu0 %v1519
    %2231 = vmatpush1.bf16.msra.mxu0 %v1518
    %2232 = vmatprep.subr.bf16.mxu0 %v1527
    %2233 = vmatpush1.bf16.msra.mxu0 %v1526
    %2234 = vmatprep.subr.bf16.mxu0 %v1535
    %2235 = vmatpush1.bf16.msra.mxu0 %v1534
    %2236 = vmatprep.subr.bf16.mxu0 %v1543
    %2237 = vmatpush1.bf16.msra.mxu0 %v1542
    %2238 = vmatprep.subr.bf16.mxu0 %v1551
    %2239 = vmatpush1.bf16.msra.mxu0 %v1550
    %2240 = vmatprep.subr.bf16.mxu0 %v1559
    %2241 = vmatpush1.bf16.msra.mxu0 %v1558
    %2242 = vmatprep.subr.bf16.mxu0 %v1567
    %2243 = vmatpush1.bf16.msra.mxu0 %v1566
    %2244 = vmatprep.subr.bf16.mxu0 %v1575
    %2245 = vmatpush1.bf16.msra.mxu0 %v1574
    %2246 = vmatprep.subr.bf16.mxu0 %v1583
    %2247 = vmatpush1.bf16.msra.mxu0 %v1582
    %2248 = vmatprep.subr.bf16.mxu0 %v1591
    %2249 = vmatpush1.bf16.msra.mxu0 %v1590
    %2250 = vmatprep.subr.bf16.mxu0 %v1599
    %2251 = vmatpush1.bf16.msra.mxu0 %v1598
    %2252 = vmatprep.subr.bf16.mxu0 %v1607
    %2253 = vmatpush1.bf16.msra.mxu0 %v1606
    %2254 = vmatprep.mubr.bf16.mxu0 %v429
    %2255 = vmatmul.mubr.bf16.gmra.mrb[0].mxu0 %v428
    %v2256 = vpop.f32.mrb[0].mxu0
    %v2257 = vadd.f32 0.0, %v2256
    %v2258 = vpop.f32.mrb[0].mxu0
    %v2259 = vadd.f32 0.0, %v2258
    %v2260 = vpop.f32.mrb[0].mxu0
    %v2261 = vadd.f32 0.0, %v2260
    %v2262 = vpop.f32.mrb[0].mxu0
    %v2263 = vadd.f32 0.0, %v2262
    %2264 = vmatprep.mubr.bf16.mxu0 %v433
    %2265 = vmatmul.mubr.bf16.gmra.mrb[0].mxu0 %v432
    %v2266 = vpop.f32.mrb[0].mxu0
    %v2267 = vadd.f32 0.0, %v2266
    %v2268 = vpop.f32.mrb[0].mxu0
    %v2269 = vadd.f32 0.0, %v2268
    %v2270 = vpop.f32.mrb[0].mxu0
    %v2271 = vadd.f32 0.0, %v2270
    %v2272 = vpop.f32.mrb[0].mxu0
    %v2273 = vadd.f32 0.0, %v2272
    %2274 = vmatprep.mubr.bf16.mxu0 %v437
    %2275 = vmatmul.mubr.bf16.gmra.mrb[0].mxu0 %v436
    %v2276 = vpop.f32.mrb[0].mxu0
    %v2277 = vadd.f32 0.0, %v2276
    %v2278 = vpop.f32.mrb[0].mxu0
    %v2279 = vadd.f32 0.0, %v2278
    %v2280 = vpop.f32.mrb[0].mxu0
    %v2281 = vadd.f32 0.0, %v2280
    %v2282 = vpop.f32.mrb[0].mxu0
    %v2283 = vadd.f32 0.0, %v2282
    %2284 = vmatprep.mubr.bf16.mxu0 %v441
    %2285 = vmatmul.mubr.bf16.gmra.mrb[0].mxu0 %v440
    %v2286 = vpop.f32.mrb[0].mxu0
    %v2287 = vadd.f32 0.0, %v2286
    %v2288 = vpop.f32.mrb[0].mxu0
    %v2289 = vadd.f32 0.0, %v2288
    %v2290 = vpop.f32.mrb[0].mxu0
    %v2291 = vadd.f32 0.0, %v2290
    %v2292 = vpop.f32.mrb[0].mxu0
    %v2293 = vadd.f32 0.0, %v2292
    %2294 = vmatprep.mubr.bf16.mxu0 %v445
    %2295 = vmatmul.mubr.bf16.gmra.mrb[0].mxu0 %v444
    %v2296 = vpop.f32.mrb[0].mxu0
    %v2297 = vadd.f32 0.0, %v2296
    %v2298 = vpop.f32.mrb[0].mxu0
    %v2299 = vadd.f32 0.0, %v2298
    %v2300 = vpop.f32.mrb[0].mxu0
    %v2301 = vadd.f32 0.0, %v2300
    %v2302 = vpop.f32.mrb[0].mxu0
    %v2303 = vadd.f32 0.0, %v2302
    %2304 = vmatprep.mubr.bf16.mxu0 %v449
    %2305 = vmatmul.mubr.bf16.gmra.mrb[0].mxu0 %v448
    %v2306 = vpop.f32.mrb[0].mxu0
    %v2307 = vadd.f32 0.0, %v2306
    %v2308 = vpop.f32.mrb[0].mxu0
    %v2309 = vadd.f32 0.0, %v2308
    %v2310 = vpop.f32.mrb[0].mxu0
    %v2311 = vadd.f32 0.0, %v2310
    %v2312 = vpop.f32.mrb[0].mxu0
    %v2313 = vadd.f32 0.0, %v2312
    %2314 = vmatprep.mubr.bf16.mxu0 %v453
    %2315 = vmatmul.mubr.bf16.gmra.mrb[0].mxu0 %v452
    %v2316 = vpop.f32.mrb[0].mxu0
    %v2317 = vadd.f32 0.0, %v2316
    %v2318 = vpop.f32.mrb[0].mxu0
    %v2319 = vadd.f32 0.0, %v2318
    %v2320 = vpop.f32.mrb[0].mxu0
    %v2321 = vadd.f32 0.0, %v2320
    %v2322 = vpop.f32.mrb[0].mxu0
    %v2323 = vadd.f32 0.0, %v2322
    %2324 = vmatprep.mubr.bf16.mxu0 %v457
    %2325 = vmatmul.mubr.bf16.gmra.mrb[0].mxu0 %v456
    %v2326 = vpop.f32.mrb[0].mxu0
    %v2327 = vadd.f32 0.0, %v2326
    %v2328 = vpop.f32.mrb[0].mxu0
    %v2329 = vadd.f32 0.0, %v2328
    %v2330 = vpop.f32.mrb[0].mxu0
    %v2331 = vadd.f32 0.0, %v2330
    %v2332 = vpop.f32.mrb[0].mxu0
    %v2333 = vadd.f32 0.0, %v2332
    %2334 = vdwg.mxu0
    %2335 = vmatprep.subr.bf16.mxu0 %v1615
    %2336 = vmatpush1.bf16.msra.mxu0 %v1614
    %2337 = vmatprep.subr.bf16.mxu0 %v1623
    %2338 = vmatpush1.bf16.msra.mxu0 %v1622
    %2339 = vmatprep.subr.bf16.mxu0 %v1631
    %2340 = vmatpush1.bf16.msra.mxu0 %v1630
    %2341 = vmatprep.subr.bf16.mxu0 %v1639
    %2342 = vmatpush1.bf16.msra.mxu0 %v1638
    %2343 = vmatprep.subr.bf16.mxu0 %v1647
    %2344 = vmatpush1.bf16.msra.mxu0 %v1646
    %2345 = vmatprep.subr.bf16.mxu0 %v1655
    %2346 = vmatpush1.bf16.msra.mxu0 %v1654
    %2347 = vmatprep.subr.bf16.mxu0 %v1663
    %2348 = vmatpush1.bf16.msra.mxu0 %v1662
    %2349 = vmatprep.subr.bf16.mxu0 %v1671
    %2350 = vmatpush1.bf16.msra.mxu0 %v1670
    %2351 = vmatprep.subr.bf16.mxu0 %v1679
    %2352 = vmatpush1.bf16.msra.mxu0 %v1678
    %2353 = vmatprep.subr.bf16.mxu0 %v1687
    %2354 = vmatpush1.bf16.msra.mxu0 %v1686
    %2355 = vmatprep.subr.bf16.mxu0 %v1695
    %2356 = vmatpush1.bf16.msra.mxu0 %v1694
    %2357 = vmatprep.subr.bf16.mxu0 %v1703
    %2358 = vmatpush1.bf16.msra.mxu0 %v1702
    %2359 = vmatprep.subr.bf16.mxu0 %v1711
    %2360 = vmatpush1.bf16.msra.mxu0 %v1710
    %2361 = vmatprep.subr.bf16.mxu0 %v1719
    %2362 = vmatpush1.bf16.msra.mxu0 %v1718
    %2363 = vmatprep.subr.bf16.mxu0 %v1727
    %2364 = vmatpush1.bf16.msra.mxu0 %v1726
    %2365 = vmatprep.subr.bf16.mxu0 %v1735
    %2366 = vmatpush1.bf16.msra.mxu0 %v1734
    %2367 = vmatprep.mubr.bf16.mxu0 %v431
    %2368 = vmatmul.mubr.bf16.gmra.mrb[0].mxu0 %v430
    %v2369 = vpop.f32.mrb[0].mxu0
    %v2370 = vadd.f32 %v2257, %v2369
    %v2371 = vpop.f32.mrb[0].mxu0
    %v2372 = vadd.f32 %v2259, %v2371
    %v2373 = vpop.f32.mrb[0].mxu0
    %v2374 = vadd.f32 %v2261, %v2373
    %v2375 = vpop.f32.mrb[0].mxu0
    %v2376 = vadd.f32 %v2263, %v2375
    %2377 = vmatprep.mubr.bf16.mxu0 %v435
    %2378 = vmatmul.mubr.bf16.gmra.mrb[0].mxu0 %v434
    %v2379 = vpop.f32.mrb[0].mxu0
    %v2380 = vadd.f32 %v2267, %v2379
    %v2381 = vpop.f32.mrb[0].mxu0
    %v2382 = vadd.f32 %v2269, %v2381
    %v2383 = vpop.f32.mrb[0].mxu0
    %v2384 = vadd.f32 %v2271, %v2383
    %v2385 = vpop.f32.mrb[0].mxu0
    %v2386 = vadd.f32 %v2273, %v2385
    %2387 = vmatprep.mubr.bf16.mxu0 %v439
    %2388 = vmatmul.mubr.bf16.gmra.mrb[0].mxu0 %v438
    %v2389 = vpop.f32.mrb[0].mxu0
    %v2390 = vadd.f32 %v2277, %v2389
    %v2391 = vpop.f32.mrb[0].mxu0
    %v2392 = vadd.f32 %v2279, %v2391
    %v2393 = vpop.f32.mrb[0].mxu0
    %v2394 = vadd.f32 %v2281, %v2393
    %v2395 = vpop.f32.mrb[0].mxu0
    %v2396 = vadd.f32 %v2283, %v2395
    %2397 = vmatprep.mubr.bf16.mxu0 %v443
    %2398 = vmatmul.mubr.bf16.gmra.mrb[0].mxu0 %v442
    %v2399 = vpop.f32.mrb[0].mxu0
    %v2400 = vadd.f32 %v2287, %v2399
    %v2401 = vpop.f32.mrb[0].mxu0
    %v2402 = vadd.f32 %v2289, %v2401
    %v2403 = vpop.f32.mrb[0].mxu0
    %v2404 = vadd.f32 %v2291, %v2403
    %v2405 = vpop.f32.mrb[0].mxu0
    %v2406 = vadd.f32 %v2293, %v2405
    %2407 = vmatprep.mubr.bf16.mxu0 %v447
    %2408 = vmatmul.mubr.bf16.gmra.mrb[0].mxu0 %v446
    %v2409 = vpop.f32.mrb[0].mxu0
    %v2410 = vadd.f32 %v2297, %v2409
    %v2411 = vpop.f32.mrb[0].mxu0
    %v2412 = vadd.f32 %v2299, %v2411
    %v2413 = vpop.f32.mrb[0].mxu0
    %v2414 = vadd.f32 %v2301, %v2413
    %v2415 = vpop.f32.mrb[0].mxu0
    %v2416 = vadd.f32 %v2303, %v2415
    %2417 = vmatprep.mubr.bf16.mxu0 %v451
    %2418 = vmatmul.mubr.bf16.gmra.mrb[0].mxu0 %v450
    %v2419 = vpop.f32.mrb[0].mxu0
    %v2420 = vadd.f32 %v2307, %v2419
    %v2421 = vpop.f32.mrb[0].mxu0
    %v2422 = vadd.f32 %v2309, %v2421
    %v2423 = vpop.f32.mrb[0].mxu0
    %v2424 = vadd.f32 %v2311, %v2423
    %v2425 = vpop.f32.mrb[0].mxu0
    %v2426 = vadd.f32 %v2313, %v2425
    %2427 = vmatprep.mubr.bf16.mxu0 %v455
    %2428 = vmatmul.mubr.bf16.gmra.mrb[0].mxu0 %v454
    %v2429 = vpop.f32.mrb[0].mxu0
    %v2430 = vadd.f32 %v2317, %v2429
    %v2431 = vpop.f32.mrb[0].mxu0
    %v2432 = vadd.f32 %v2319, %v2431
    %v2433 = vpop.f32.mrb[0].mxu0
    %v2434 = vadd.f32 %v2321, %v2433
    %v2435 = vpop.f32.mrb[0].mxu0
    %v2436 = vadd.f32 %v2323, %v2435
    %2437 = vmatprep.mubr.bf16.mxu0 %v459
    %2438 = vmatmul.mubr.bf16.gmra.mrb[0].mxu0 %v458
    %v2439 = vpop.f32.mrb[0].mxu0
    %v2440 = vadd.f32 %v2327, %v2439
    %v2441 = vpop.f32.mrb[0].mxu0
    %v2442 = vadd.f32 %v2329, %v2441
    %v2443 = vpop.f32.mrb[0].mxu0
    %v2444 = vadd.f32 %v2331, %v2443
    %v2445 = vpop.f32.mrb[0].mxu0
    %v2446 = vadd.f32 %v2333, %v2445
    %2447 = vdwg.mxu0
    %2448 = vmatprep.subr.bf16.mxu0 %v1489
    %2449 = vmatpush1.bf16.msra.mxu0 %v1488
    %2450 = vmatprep.subr.bf16.mxu0 %v1497
    %2451 = vmatpush1.bf16.msra.mxu0 %v1496
    %2452 = vmatprep.subr.bf16.mxu0 %v1505
    %2453 = vmatpush1.bf16.msra.mxu0 %v1504
    %2454 = vmatprep.subr.bf16.mxu0 %v1513
    %2455 = vmatpush1.bf16.msra.mxu0 %v1512
    %2456 = vmatprep.subr.bf16.mxu0 %v1521
    %2457 = vmatpush1.bf16.msra.mxu0 %v1520
    %2458 = vmatprep.subr.bf16.mxu0 %v1529
    %2459 = vmatpush1.bf16.msra.mxu0 %v1528
    %2460 = vmatprep.subr.bf16.mxu0 %v1537
    %2461 = vmatpush1.bf16.msra.mxu0 %v1536
    %2462 = vmatprep.subr.bf16.mxu0 %v1545
    %2463 = vmatpush1.bf16.msra.mxu0 %v1544
    %2464 = vmatprep.subr.bf16.mxu0 %v1553
    %2465 = vmatpush1.bf16.msra.mxu0 %v1552
    %2466 = vmatprep.subr.bf16.mxu0 %v1561
    %2467 = vmatpush1.bf16.msra.mxu0 %v1560
    %2468 = vmatprep.subr.bf16.mxu0 %v1569
    %2469 = vmatpush1.bf16.msra.mxu0 %v1568
    %2470 = vmatprep.subr.bf16.mxu0 %v1577
    %2471 = vmatpush1.bf16.msra.mxu0 %v1576
    %2472 = vmatprep.subr.bf16.mxu0 %v1585
    %2473 = vmatpush1.bf16.msra.mxu0 %v1584
    %2474 = vmatprep.subr.bf16.mxu0 %v1593
    %2475 = vmatpush1.bf16.msra.mxu0 %v1592
    %2476 = vmatprep.subr.bf16.mxu0 %v1601
    %2477 = vmatpush1.bf16.msra.mxu0 %v1600
    %2478 = vmatprep.subr.bf16.mxu0 %v1609
    %2479 = vmatpush1.bf16.msra.mxu0 %v1608
    %2480 = vmatprep.mubr.bf16.mxu0 %v429
    %2481 = vmatmul.mubr.bf16.gmra.mrb[0].mxu0 %v428
    %v2482 = vpop.f32.mrb[0].mxu0
    %v2483 = vadd.f32 0.0, %v2482
    %v2484 = vpop.f32.mrb[0].mxu0
    %v2485 = vadd.f32 0.0, %v2484
    %v2486 = vpop.f32.mrb[0].mxu0
    %v2487 = vadd.f32 0.0, %v2486
    %v2488 = vpop.f32.mrb[0].mxu0
    %v2489 = vadd.f32 0.0, %v2488
    %2490 = vmatprep.mubr.bf16.mxu0 %v433
    %2491 = vmatmul.mubr.bf16.gmra.mrb[0].mxu0 %v432
    %v2492 = vpop.f32.mrb[0].mxu0
    %v2493 = vadd.f32 0.0, %v2492
    %v2494 = vpop.f32.mrb[0].mxu0
    %v2495 = vadd.f32 0.0, %v2494
    %v2496 = vpop.f32.mrb[0].mxu0
    %v2497 = vadd.f32 0.0, %v2496
    %v2498 = vpop.f32.mrb[0].mxu0
    %v2499 = vadd.f32 0.0, %v2498
    %2500 = vmatprep.mubr.bf16.mxu0 %v437
    %2501 = vmatmul.mubr.bf16.gmra.mrb[0].mxu0 %v436
    %v2502 = vpop.f32.mrb[0].mxu0
    %v2503 = vadd.f32 0.0, %v2502
    %v2504 = vpop.f32.mrb[0].mxu0
    %v2505 = vadd.f32 0.0, %v2504
    %v2506 = vpop.f32.mrb[0].mxu0
    %v2507 = vadd.f32 0.0, %v2506
    %v2508 = vpop.f32.mrb[0].mxu0
    %v2509 = vadd.f32 0.0, %v2508
    %2510 = vmatprep.mubr.bf16.mxu0 %v441
    %2511 = vmatmul.mubr.bf16.gmra.mrb[0].mxu0 %v440
    %v2512 = vpop.f32.mrb[0].mxu0
    %v2513 = vadd.f32 0.0, %v2512
    %v2514 = vpop.f32.mrb[0].mxu0
    %v2515 = vadd.f32 0.0, %v2514
    %v2516 = vpop.f32.mrb[0].mxu0
    %v2517 = vadd.f32 0.0, %v2516
    %v2518 = vpop.f32.mrb[0].mxu0
    %v2519 = vadd.f32 0.0, %v2518
    %2520 = vmatprep.mubr.bf16.mxu0 %v445
    %2521 = vmatmul.mubr.bf16.gmra.mrb[0].mxu0 %v444
    %v2522 = vpop.f32.mrb[0].mxu0
    %v2523 = vadd.f32 0.0, %v2522
    %v2524 = vpop.f32.mrb[0].mxu0
    %v2525 = vadd.f32 0.0, %v2524
    %v2526 = vpop.f32.mrb[0].mxu0
    %v2527 = vadd.f32 0.0, %v2526
    %v2528 = vpop.f32.mrb[0].mxu0
    %v2529 = vadd.f32 0.0, %v2528
    %2530 = vmatprep.mubr.bf16.mxu0 %v449
    %2531 = vmatmul.mubr.bf16.gmra.mrb[0].mxu0 %v448
    %v2532 = vpop.f32.mrb[0].mxu0
    %v2533 = vadd.f32 0.0, %v2532
    %v2534 = vpop.f32.mrb[0].mxu0
    %v2535 = vadd.f32 0.0, %v2534
    %v2536 = vpop.f32.mrb[0].mxu0
    %v2537 = vadd.f32 0.0, %v2536
    %v2538 = vpop.f32.mrb[0].mxu0
    %v2539 = vadd.f32 0.0, %v2538
    %2540 = vmatprep.mubr.bf16.mxu0 %v453
    %2541 = vmatmul.mubr.bf16.gmra.mrb[0].mxu0 %v452
    %v2542 = vpop.f32.mrb[0].mxu0
    %v2543 = vadd.f32 0.0, %v2542
    %v2544 = vpop.f32.mrb[0].mxu0
    %v2545 = vadd.f32 0.0, %v2544
    %v2546 = vpop.f32.mrb[0].mxu0
    %v2547 = vadd.f32 0.0, %v2546
    %v2548 = vpop.f32.mrb[0].mxu0
    %v2549 = vadd.f32 0.0, %v2548
    %2550 = vmatprep.mubr.bf16.mxu0 %v457
    %2551 = vmatmul.mubr.bf16.gmra.mrb[0].mxu0 %v456
    %v2552 = vpop.f32.mrb[0].mxu0
    %v2553 = vadd.f32 0.0, %v2552
    %v2554 = vpop.f32.mrb[0].mxu0
    %v2555 = vadd.f32 0.0, %v2554
    %v2556 = vpop.f32.mrb[0].mxu0
    %v2557 = vadd.f32 0.0, %v2556
    %v2558 = vpop.f32.mrb[0].mxu0
    %v2559 = vadd.f32 0.0, %v2558
    %2560 = vdwg.mxu0
    %2561 = vmatprep.subr.bf16.mxu0 %v1617
    %2562 = vmatpush1.bf16.msra.mxu0 %v1616
    %2563 = vmatprep.subr.bf16.mxu0 %v1625
    %2564 = vmatpush1.bf16.msra.mxu0 %v1624
    %2565 = vmatprep.subr.bf16.mxu0 %v1633
    %2566 = vmatpush1.bf16.msra.mxu0 %v1632
    %2567 = vmatprep.subr.bf16.mxu0 %v1641
    %2568 = vmatpush1.bf16.msra.mxu0 %v1640
    %2569 = vmatprep.subr.bf16.mxu0 %v1649
    %2570 = vmatpush1.bf16.msra.mxu0 %v1648
    %2571 = vmatprep.subr.bf16.mxu0 %v1657
    %2572 = vmatpush1.bf16.msra.mxu0 %v1656
    %2573 = vmatprep.subr.bf16.mxu0 %v1665
    %2574 = vmatpush1.bf16.msra.mxu0 %v1664
    %2575 = vmatprep.subr.bf16.mxu0 %v1673
    %2576 = vmatpush1.bf16.msra.mxu0 %v1672
    %2577 = vmatprep.subr.bf16.mxu0 %v1681
    %2578 = vmatpush1.bf16.msra.mxu0 %v1680
    %2579 = vmatprep.subr.bf16.mxu0 %v1689
    %2580 = vmatpush1.bf16.msra.mxu0 %v1688
    %2581 = vmatprep.subr.bf16.mxu0 %v1697
    %2582 = vmatpush1.bf16.msra.mxu0 %v1696
    %2583 = vmatprep.subr.bf16.mxu0 %v1705
    %2584 = vmatpush1.bf16.msra.mxu0 %v1704
    %2585 = vmatprep.subr.bf16.mxu0 %v1713
    %2586 = vmatpush1.bf16.msra.mxu0 %v1712
    %2587 = vmatprep.subr.bf16.mxu0 %v1721
    %2588 = vmatpush1.bf16.msra.mxu0 %v1720
    %2589 = vmatprep.subr.bf16.mxu0 %v1729
    %2590 = vmatpush1.bf16.msra.mxu0 %v1728
    %2591 = vmatprep.subr.bf16.mxu0 %v1737
    %2592 = vmatpush1.bf16.msra.mxu0 %v1736
    %2593 = vmatprep.mubr.bf16.mxu0 %v431
    %2594 = vmatmul.mubr.bf16.gmra.mrb[0].mxu0 %v430
    %v2595 = vpop.f32.mrb[0].mxu0
    %v2596 = vadd.f32 %v2483, %v2595
    %v2597 = vpop.f32.mrb[0].mxu0
    %v2598 = vadd.f32 %v2485, %v2597
    %v2599 = vpop.f32.mrb[0].mxu0
    %v2600 = vadd.f32 %v2487, %v2599
    %v2601 = vpop.f32.mrb[0].mxu0
    %v2602 = vadd.f32 %v2489, %v2601
    %2603 = vmatprep.mubr.bf16.mxu0 %v435
    %2604 = vmatmul.mubr.bf16.gmra.mrb[0].mxu0 %v434
    %v2605 = vpop.f32.mrb[0].mxu0
    %v2606 = vadd.f32 %v2493, %v2605
    %v2607 = vpop.f32.mrb[0].mxu0
    %v2608 = vadd.f32 %v2495, %v2607
    %v2609 = vpop.f32.mrb[0].mxu0
    %v2610 = vadd.f32 %v2497, %v2609
    %v2611 = vpop.f32.mrb[0].mxu0
    %v2612 = vadd.f32 %v2499, %v2611
    %2613 = vmatprep.mubr.bf16.mxu0 %v439
    %2614 = vmatmul.mubr.bf16.gmra.mrb[0].mxu0 %v438
    %v2615 = vpop.f32.mrb[0].mxu0
    %v2616 = vadd.f32 %v2503, %v2615
    %v2617 = vpop.f32.mrb[0].mxu0
    %v2618 = vadd.f32 %v2505, %v2617
    %v2619 = vpop.f32.mrb[0].mxu0
    %v2620 = vadd.f32 %v2507, %v2619
    %v2621 = vpop.f32.mrb[0].mxu0
    %v2622 = vadd.f32 %v2509, %v2621
    %2623 = vmatprep.mubr.bf16.mxu0 %v443
    %2624 = vmatmul.mubr.bf16.gmra.mrb[0].mxu0 %v442
    %v2625 = vpop.f32.mrb[0].mxu0
    %v2626 = vadd.f32 %v2513, %v2625
    %v2627 = vpop.f32.mrb[0].mxu0
    %v2628 = vadd.f32 %v2515, %v2627
    %v2629 = vpop.f32.mrb[0].mxu0
    %v2630 = vadd.f32 %v2517, %v2629
    %v2631 = vpop.f32.mrb[0].mxu0
    %v2632 = vadd.f32 %v2519, %v2631
    %2633 = vmatprep.mubr.bf16.mxu0 %v447
    %2634 = vmatmul.mubr.bf16.gmra.mrb[0].mxu0 %v446
    %v2635 = vpop.f32.mrb[0].mxu0
    %v2636 = vadd.f32 %v2523, %v2635
    %v2637 = vpop.f32.mrb[0].mxu0
    %v2638 = vadd.f32 %v2525, %v2637
    %v2639 = vpop.f32.mrb[0].mxu0
    %v2640 = vadd.f32 %v2527, %v2639
    %v2641 = vpop.f32.mrb[0].mxu0
    %v2642 = vadd.f32 %v2529, %v2641
    %2643 = vmatprep.mubr.bf16.mxu0 %v451
    %2644 = vmatmul.mubr.bf16.gmra.mrb[0].mxu0 %v450
    %v2645 = vpop.f32.mrb[0].mxu0
    %v2646 = vadd.f32 %v2533, %v2645
    %v2647 = vpop.f32.mrb[0].mxu0
    %v2648 = vadd.f32 %v2535, %v2647
    %v2649 = vpop.f32.mrb[0].mxu0
    %v2650 = vadd.f32 %v2537, %v2649
    %v2651 = vpop.f32.mrb[0].mxu0
    %v2652 = vadd.f32 %v2539, %v2651
    %2653 = vmatprep.mubr.bf16.mxu0 %v455
    %2654 = vmatmul.mubr.bf16.gmra.mrb[0].mxu0 %v454
    %v2655 = vpop.f32.mrb[0].mxu0
    %v2656 = vadd.f32 %v2543, %v2655
    %v2657 = vpop.f32.mrb[0].mxu0
    %v2658 = vadd.f32 %v2545, %v2657
    %v2659 = vpop.f32.mrb[0].mxu0
    %v2660 = vadd.f32 %v2547, %v2659
    %v2661 = vpop.f32.mrb[0].mxu0
    %v2662 = vadd.f32 %v2549, %v2661
    %2663 = vmatprep.mubr.bf16.mxu0 %v459
    %2664 = vmatmul.mubr.bf16.gmra.mrb[0].mxu0 %v458
    %v2665 = vpop.f32.mrb[0].mxu0
    %v2666 = vadd.f32 %v2553, %v2665
    %v2667 = vpop.f32.mrb[0].mxu0
    %v2668 = vadd.f32 %v2555, %v2667
    %v2669 = vpop.f32.mrb[0].mxu0
    %v2670 = vadd.f32 %v2557, %v2669
    %v2671 = vpop.f32.mrb[0].mxu0
    %v2672 = vadd.f32 %v2559, %v2671
    %2673 = vdwg.mxu0
    %2674 = vmatprep.subr.bf16.mxu0 %v1491
    %2675 = vmatpush1.bf16.msra.mxu0 %v1490
    %2676 = vmatprep.subr.bf16.mxu0 %v1499
    %2677 = vmatpush1.bf16.msra.mxu0 %v1498
    %2678 = vmatprep.subr.bf16.mxu0 %v1507
    %2679 = vmatpush1.bf16.msra.mxu0 %v1506
    %2680 = vmatprep.subr.bf16.mxu0 %v1515
    %2681 = vmatpush1.bf16.msra.mxu0 %v1514
    %2682 = vmatprep.subr.bf16.mxu0 %v1523
    %2683 = vmatpush1.bf16.msra.mxu0 %v1522
    %2684 = vmatprep.subr.bf16.mxu0 %v1531
    %2685 = vmatpush1.bf16.msra.mxu0 %v1530
    %2686 = vmatprep.subr.bf16.mxu0 %v1539
    %2687 = vmatpush1.bf16.msra.mxu0 %v1538
    %2688 = vmatprep.subr.bf16.mxu0 %v1547
    %2689 = vmatpush1.bf16.msra.mxu0 %v1546
    %2690 = vmatprep.subr.bf16.mxu0 %v1555
    %2691 = vmatpush1.bf16.msra.mxu0 %v1554
    %2692 = vmatprep.subr.bf16.mxu0 %v1563
    %2693 = vmatpush1.bf16.msra.mxu0 %v1562
    %2694 = vmatprep.subr.bf16.mxu0 %v1571
    %2695 = vmatpush1.bf16.msra.mxu0 %v1570
    %2696 = vmatprep.subr.bf16.mxu0 %v1579
    %2697 = vmatpush1.bf16.msra.mxu0 %v1578
    %2698 = vmatprep.subr.bf16.mxu0 %v1587
    %2699 = vmatpush1.bf16.msra.mxu0 %v1586
    %2700 = vmatprep.subr.bf16.mxu0 %v1595
    %2701 = vmatpush1.bf16.msra.mxu0 %v1594
    %2702 = vmatprep.subr.bf16.mxu0 %v1603
    %2703 = vmatpush1.bf16.msra.mxu0 %v1602
    %2704 = vmatprep.subr.bf16.mxu0 %v1611
    %2705 = vmatpush1.bf16.msra.mxu0 %v1610
    %2706 = vmatprep.mubr.bf16.mxu0 %v429
    %2707 = vmatmul.mubr.bf16.gmra.mrb[0].mxu0 %v428
    %v2708 = vpop.f32.mrb[0].mxu0
    %v2709 = vadd.f32 0.0, %v2708
    %v2710 = vpop.f32.mrb[0].mxu0
    %v2711 = vadd.f32 0.0, %v2710
    %v2712 = vpop.f32.mrb[0].mxu0
    %v2713 = vadd.f32 0.0, %v2712
    %v2714 = vpop.f32.mrb[0].mxu0
    %v2715 = vadd.f32 0.0, %v2714
    %2716 = vmatprep.mubr.bf16.mxu0 %v433
    %2717 = vmatmul.mubr.bf16.gmra.mrb[0].mxu0 %v432
    %v2718 = vpop.f32.mrb[0].mxu0
    %v2719 = vadd.f32 0.0, %v2718
    %v2720 = vpop.f32.mrb[0].mxu0
    %v2721 = vadd.f32 0.0, %v2720
    %v2722 = vpop.f32.mrb[0].mxu0
    %v2723 = vadd.f32 0.0, %v2722
    %v2724 = vpop.f32.mrb[0].mxu0
    %v2725 = vadd.f32 0.0, %v2724
    %2726 = vmatprep.mubr.bf16.mxu0 %v437
    %2727 = vmatmul.mubr.bf16.gmra.mrb[0].mxu0 %v436
    %v2728 = vpop.f32.mrb[0].mxu0
    %v2729 = vadd.f32 0.0, %v2728
    %v2730 = vpop.f32.mrb[0].mxu0
    %v2731 = vadd.f32 0.0, %v2730
    %v2732 = vpop.f32.mrb[0].mxu0
    %v2733 = vadd.f32 0.0, %v2732
    %v2734 = vpop.f32.mrb[0].mxu0
    %v2735 = vadd.f32 0.0, %v2734
    %2736 = vmatprep.mubr.bf16.mxu0 %v441
    %2737 = vmatmul.mubr.bf16.gmra.mrb[0].mxu0 %v440
    %v2738 = vpop.f32.mrb[0].mxu0
    %v2739 = vadd.f32 0.0, %v2738
    %v2740 = vpop.f32.mrb[0].mxu0
    %v2741 = vadd.f32 0.0, %v2740
    %v2742 = vpop.f32.mrb[0].mxu0
    %v2743 = vadd.f32 0.0, %v2742
    %v2744 = vpop.f32.mrb[0].mxu0
    %v2745 = vadd.f32 0.0, %v2744
    %2746 = vmatprep.mubr.bf16.mxu0 %v445
    %2747 = vmatmul.mubr.bf16.gmra.mrb[0].mxu0 %v444
    %v2748 = vpop.f32.mrb[0].mxu0
    %v2749 = vadd.f32 0.0, %v2748
    %v2750 = vpop.f32.mrb[0].mxu0
    %v2751 = vadd.f32 0.0, %v2750
    %v2752 = vpop.f32.mrb[0].mxu0
    %v2753 = vadd.f32 0.0, %v2752
    %v2754 = vpop.f32.mrb[0].mxu0
    %v2755 = vadd.f32 0.0, %v2754
    %2756 = vmatprep.mubr.bf16.mxu0 %v449
    %2757 = vmatmul.mubr.bf16.gmra.mrb[0].mxu0 %v448
    %v2758 = vpop.f32.mrb[0].mxu0
    %v2759 = vadd.f32 0.0, %v2758
    %v2760 = vpop.f32.mrb[0].mxu0
    %v2761 = vadd.f32 0.0, %v2760
    %v2762 = vpop.f32.mrb[0].mxu0
    %v2763 = vadd.f32 0.0, %v2762
    %v2764 = vpop.f32.mrb[0].mxu0
    %v2765 = vadd.f32 0.0, %v2764
    %2766 = vmatprep.mubr.bf16.mxu0 %v453
    %2767 = vmatmul.mubr.bf16.gmra.mrb[0].mxu0 %v452
    %v2768 = vpop.f32.mrb[0].mxu0
    %v2769 = vadd.f32 0.0, %v2768
    %v2770 = vpop.f32.mrb[0].mxu0
    %v2771 = vadd.f32 0.0, %v2770
    %v2772 = vpop.f32.mrb[0].mxu0
    %v2773 = vadd.f32 0.0, %v2772
    %v2774 = vpop.f32.mrb[0].mxu0
    %v2775 = vadd.f32 0.0, %v2774
    %2776 = vmatprep.mubr.bf16.mxu0 %v457
    %2777 = vmatmul.mubr.bf16.gmra.mrb[0].mxu0 %v456
    %v2778 = vpop.f32.mrb[0].mxu0
    %v2779 = vadd.f32 0.0, %v2778
    %v2780 = vpop.f32.mrb[0].mxu0
    %v2781 = vadd.f32 0.0, %v2780
    %v2782 = vpop.f32.mrb[0].mxu0
    %v2783 = vadd.f32 0.0, %v2782
    %v2784 = vpop.f32.mrb[0].mxu0
    %v2785 = vadd.f32 0.0, %v2784
    %2786 = vdwg.mxu0
    %2787 = vmatprep.subr.bf16.mxu0 %v1619
    %2788 = vmatpush1.bf16.msra.mxu0 %v1618
    %2789 = vmatprep.subr.bf16.mxu0 %v1627
    %2790 = vmatpush1.bf16.msra.mxu0 %v1626
    %2791 = vmatprep.subr.bf16.mxu0 %v1635
    %2792 = vmatpush1.bf16.msra.mxu0 %v1634
    %2793 = vmatprep.subr.bf16.mxu0 %v1643
    %2794 = vmatpush1.bf16.msra.mxu0 %v1642
    %2795 = vmatprep.subr.bf16.mxu0 %v1651
    %2796 = vmatpush1.bf16.msra.mxu0 %v1650
    %2797 = vmatprep.subr.bf16.mxu0 %v1659
    %2798 = vmatpush1.bf16.msra.mxu0 %v1658
    %2799 = vmatprep.subr.bf16.mxu0 %v1667
    %2800 = vmatpush1.bf16.msra.mxu0 %v1666
    %2801 = vmatprep.subr.bf16.mxu0 %v1675
    %2802 = vmatpush1.bf16.msra.mxu0 %v1674
    %2803 = vmatprep.subr.bf16.mxu0 %v1683
    %2804 = vmatpush1.bf16.msra.mxu0 %v1682
    %2805 = vmatprep.subr.bf16.mxu0 %v1691
    %2806 = vmatpush1.bf16.msra.mxu0 %v1690
    %2807 = vmatprep.subr.bf16.mxu0 %v1699
    %2808 = vmatpush1.bf16.msra.mxu0 %v1698
    %2809 = vmatprep.subr.bf16.mxu0 %v1707
    %2810 = vmatpush1.bf16.msra.mxu0 %v1706
    %2811 = vmatprep.subr.bf16.mxu0 %v1715
    %2812 = vmatpush1.bf16.msra.mxu0 %v1714
    %2813 = vmatprep.subr.bf16.mxu0 %v1723
    %2814 = vmatpush1.bf16.msra.mxu0 %v1722
    %2815 = vmatprep.subr.bf16.mxu0 %v1731
    %2816 = vmatpush1.bf16.msra.mxu0 %v1730
    %2817 = vmatprep.subr.bf16.mxu0 %v1739
    %2818 = vmatpush1.bf16.msra.mxu0 %v1738
    %2819 = vmatprep.mubr.bf16.mxu0 %v431
    %2820 = vmatmul.mubr.bf16.gmra.mrb[0].mxu0 %v430
    %v2821 = vpop.f32.mrb[0].mxu0
    %v2822 = vadd.f32 %v2709, %v2821
    %v2823 = vpop.f32.mrb[0].mxu0
    %v2824 = vadd.f32 %v2711, %v2823
    %v2825 = vpop.f32.mrb[0].mxu0
    %v2826 = vadd.f32 %v2713, %v2825
    %v2827 = vpop.f32.mrb[0].mxu0
    %v2828 = vadd.f32 %v2715, %v2827
    %2829 = vmatprep.mubr.bf16.mxu0 %v435
    %2830 = vmatmul.mubr.bf16.gmra.mrb[0].mxu0 %v434
    %v2831 = vpop.f32.mrb[0].mxu0
    %v2832 = vadd.f32 %v2719, %v2831
    %v2833 = vpop.f32.mrb[0].mxu0
    %v2834 = vadd.f32 %v2721, %v2833
    %v2835 = vpop.f32.mrb[0].mxu0
    %v2836 = vadd.f32 %v2723, %v2835
    %v2837 = vpop.f32.mrb[0].mxu0
    %v2838 = vadd.f32 %v2725, %v2837
    %2839 = vmatprep.mubr.bf16.mxu0 %v439
    %2840 = vmatmul.mubr.bf16.gmra.mrb[0].mxu0 %v438
    %v2841 = vpop.f32.mrb[0].mxu0
    %v2842 = vadd.f32 %v2729, %v2841
    %v2843 = vpop.f32.mrb[0].mxu0
    %v2844 = vadd.f32 %v2731, %v2843
    %v2845 = vpop.f32.mrb[0].mxu0
    %v2846 = vadd.f32 %v2733, %v2845
    %v2847 = vpop.f32.mrb[0].mxu0
    %v2848 = vadd.f32 %v2735, %v2847
    %2849 = vmatprep.mubr.bf16.mxu0 %v443
    %2850 = vmatmul.mubr.bf16.gmra.mrb[0].mxu0 %v442
    %v2851 = vpop.f32.mrb[0].mxu0
    %v2852 = vadd.f32 %v2739, %v2851
    %v2853 = vpop.f32.mrb[0].mxu0
    %v2854 = vadd.f32 %v2741, %v2853
    %v2855 = vpop.f32.mrb[0].mxu0
    %v2856 = vadd.f32 %v2743, %v2855
    %v2857 = vpop.f32.mrb[0].mxu0
    %v2858 = vadd.f32 %v2745, %v2857
    %2859 = vmatprep.mubr.bf16.mxu0 %v447
    %2860 = vmatmul.mubr.bf16.gmra.mrb[0].mxu0 %v446
    %v2861 = vpop.f32.mrb[0].mxu0
    %v2862 = vadd.f32 %v2749, %v2861
    %v2863 = vpop.f32.mrb[0].mxu0
    %v2864 = vadd.f32 %v2751, %v2863
    %v2865 = vpop.f32.mrb[0].mxu0
    %v2866 = vadd.f32 %v2753, %v2865
    %v2867 = vpop.f32.mrb[0].mxu0
    %v2868 = vadd.f32 %v2755, %v2867
    %2869 = vmatprep.mubr.bf16.mxu0 %v451
    %2870 = vmatmul.mubr.bf16.gmra.mrb[0].mxu0 %v450
    %v2871 = vpop.f32.mrb[0].mxu0
    %v2872 = vadd.f32 %v2759, %v2871
    %v2873 = vpop.f32.mrb[0].mxu0
    %v2874 = vadd.f32 %v2761, %v2873
    %v2875 = vpop.f32.mrb[0].mxu0
    %v2876 = vadd.f32 %v2763, %v2875
    %v2877 = vpop.f32.mrb[0].mxu0
    %v2878 = vadd.f32 %v2765, %v2877
    %2879 = vmatprep.mubr.bf16.mxu0 %v455
    %2880 = vmatmul.mubr.bf16.gmra.mrb[0].mxu0 %v454
    %v2881 = vpop.f32.mrb[0].mxu0
    %v2882 = vadd.f32 %v2769, %v2881
    %v2883 = vpop.f32.mrb[0].mxu0
    %v2884 = vadd.f32 %v2771, %v2883
    %v2885 = vpop.f32.mrb[0].mxu0
    %v2886 = vadd.f32 %v2773, %v2885
    %v2887 = vpop.f32.mrb[0].mxu0
    %v2888 = vadd.f32 %v2775, %v2887
    %2889 = vmatprep.mubr.bf16.mxu0 %v459
    %2890 = vmatmul.mubr.bf16.gmra.mrb[0].mxu0 %v458
    %v2891 = vpop.f32.mrb[0].mxu0
    %v2892 = vadd.f32 %v2779, %v2891
    %v2893 = vpop.f32.mrb[0].mxu0
    %v2894 = vadd.f32 %v2781, %v2893
    %v2895 = vpop.f32.mrb[0].mxu0
    %v2896 = vadd.f32 %v2783, %v2895
    %v2897 = vpop.f32.mrb[0].mxu0
    %v2898 = vadd.f32 %v2785, %v2897
    %2899 = vdwg.mxu0
    %v2900 = vadd.f32 %v236, %v2144
    %v2901 = vadd.f32 %v237, %v2146
    %v2902 = vadd.f32 %v238, %v2370
    %v2903 = vadd.f32 %v239, %v2372
    %v2904 = vadd.f32 %v240, %v2596
    %v2905 = vadd.f32 %v241, %v2598
    %v2906 = vadd.f32 %v242, %v2822
    %v2907 = vadd.f32 %v243, %v2824
    %v2908 = vadd.f32 %v244, %v2148
    %v2909 = vadd.f32 %v245, %v2150
    %v2910 = vadd.f32 %v246, %v2374
    %v2911 = vadd.f32 %v247, %v2376
    %v2912 = vadd.f32 %v248, %v2600
    %v2913 = vadd.f32 %v249, %v2602
    %v2914 = vadd.f32 %v250, %v2826
    %v2915 = vadd.f32 %v251, %v2828
    %v2916 = vadd.f32 %v252, %v2154
    %v2917 = vadd.f32 %v253, %v2156
    %v2918 = vadd.f32 %v254, %v2380
    %v2919 = vadd.f32 %v255, %v2382
    %v2920 = vadd.f32 %v256, %v2606
    %v2921 = vadd.f32 %v257, %v2608
    %v2922 = vadd.f32 %v258, %v2832
    %v2923 = vadd.f32 %v259, %v2834
    %v2924 = vadd.f32 %v260, %v2158
    %v2925 = vadd.f32 %v261, %v2160
    %v2926 = vadd.f32 %v262, %v2384
    %v2927 = vadd.f32 %v263, %v2386
    %v2928 = vadd.f32 %v264, %v2610
    %v2929 = vadd.f32 %v265, %v2612
    %v2930 = vadd.f32 %v266, %v2836
    %v2931 = vadd.f32 %v267, %v2838
    %v2932 = vadd.f32 %v268, %v2164
    %v2933 = vadd.f32 %v269, %v2166
    %v2934 = vadd.f32 %v270, %v2390
    %v2935 = vadd.f32 %v271, %v2392
    %v2936 = vadd.f32 %v272, %v2616
    %v2937 = vadd.f32 %v273, %v2618
    %v2938 = vadd.f32 %v274, %v2842
    %v2939 = vadd.f32 %v275, %v2844
    %v2940 = vadd.f32 %v276, %v2168
    %v2941 = vadd.f32 %v277, %v2170
    %v2942 = vadd.f32 %v278, %v2394
    %v2943 = vadd.f32 %v279, %v2396
    %v2944 = vadd.f32 %v280, %v2620
    %v2945 = vadd.f32 %v281, %v2622
    %v2946 = vadd.f32 %v282, %v2846
    %v2947 = vadd.f32 %v283, %v2848
    %v2948 = vadd.f32 %v284, %v2174
    %v2949 = vadd.f32 %v285, %v2176
    %v2950 = vadd.f32 %v286, %v2400
    %v2951 = vadd.f32 %v287, %v2402
    %v2952 = vadd.f32 %v288, %v2626
    %v2953 = vadd.f32 %v289, %v2628
    %v2954 = vadd.f32 %v290, %v2852
    %v2955 = vadd.f32 %v291, %v2854
    %v2956 = vadd.f32 %v292, %v2178
    %v2957 = vadd.f32 %v293, %v2180
    %v2958 = vadd.f32 %v294, %v2404
    %v2959 = vadd.f32 %v295, %v2406
    %v2960 = vadd.f32 %v296, %v2630
    %v2961 = vadd.f32 %v297, %v2632
    %v2962 = vadd.f32 %v298, %v2856
    %v2963 = vadd.f32 %v299, %v2858
    %v2964 = vadd.f32 %v300, %v2184
    %v2965 = vadd.f32 %v301, %v2186
    %v2966 = vadd.f32 %v302, %v2410
    %v2967 = vadd.f32 %v303, %v2412
    %v2968 = vadd.f32 %v304, %v2636
    %v2969 = vadd.f32 %v305, %v2638
    %v2970 = vadd.f32 %v306, %v2862
    %v2971 = vadd.f32 %v307, %v2864
    %v2972 = vadd.f32 %v308, %v2188
    %v2973 = vadd.f32 %v309, %v2190
    %v2974 = vadd.f32 %v310, %v2414
    %v2975 = vadd.f32 %v311, %v2416
    %v2976 = vadd.f32 %v312, %v2640
    %v2977 = vadd.f32 %v313, %v2642
    %v2978 = vadd.f32 %v314, %v2866
    %v2979 = vadd.f32 %v315, %v2868
    %v2980 = vadd.f32 %v316, %v2194
    %v2981 = vadd.f32 %v317, %v2196
    %v2982 = vadd.f32 %v318, %v2420
    %v2983 = vadd.f32 %v319, %v2422
    %v2984 = vadd.f32 %v320, %v2646
    %v2985 = vadd.f32 %v321, %v2648
    %v2986 = vadd.f32 %v322, %v2872
    %v2987 = vadd.f32 %v323, %v2874
    %v2988 = vadd.f32 %v324, %v2198
    %v2989 = vadd.f32 %v325, %v2200
    %v2990 = vadd.f32 %v326, %v2424
    %v2991 = vadd.f32 %v327, %v2426
    %v2992 = vadd.f32 %v328, %v2650
    %v2993 = vadd.f32 %v329, %v2652
    %v2994 = vadd.f32 %v330, %v2876
    %v2995 = vadd.f32 %v331, %v2878
    %v2996 = vadd.f32 %v332, %v2204
    %v2997 = vadd.f32 %v333, %v2206
    %v2998 = vadd.f32 %v334, %v2430
    %v2999 = vadd.f32 %v335, %v2432
    %v3000 = vadd.f32 %v336, %v2656
    %v3001 = vadd.f32 %v337, %v2658
    %v3002 = vadd.f32 %v338, %v2882
    %v3003 = vadd.f32 %v339, %v2884
    %v3004 = vadd.f32 %v340, %v2208
    %v3005 = vadd.f32 %v341, %v2210
    %v3006 = vadd.f32 %v342, %v2434
    %v3007 = vadd.f32 %v343, %v2436
    %v3008 = vadd.f32 %v344, %v2660
    %v3009 = vadd.f32 %v345, %v2662
    %v3010 = vadd.f32 %v346, %v2886
    %v3011 = vadd.f32 %v347, %v2888
    %v3012 = vadd.f32 %v348, %v2214
    %v3013 = vadd.f32 %v349, %v2216
    %v3014 = vadd.f32 %v350, %v2440
    %v3015 = vadd.f32 %v351, %v2442
    %v3016 = vadd.f32 %v352, %v2666
    %v3017 = vadd.f32 %v353, %v2668
    %v3018 = vadd.f32 %v354, %v2892
    %v3019 = vadd.f32 %v355, %v2894
    %v3020 = vadd.f32 %v356, %v2218
    %v3021 = vadd.f32 %v357, %v2220
    %v3022 = vadd.f32 %v358, %v2444
    %v3023 = vadd.f32 %v359, %v2446
    %v3024 = vadd.f32 %v360, %v2670
    %v3025 = vadd.f32 %v361, %v2672
    %v3026 = vadd.f32 %v362, %v2896
    %v3027 = vadd.f32 %v363, %v2898
    %3028 = vst [vmem:[#allocation2] sm:$0xff] %v2900
    %3029 = vst [vmem:[#allocation2 + $0x8] sm:$0xff] %v2901
    %3030 = vst [vmem:[#allocation2 + $0x10] sm:$0xff] %v2902
    %3031 = vst [vmem:[#allocation2 + $0x18] sm:$0xff] %v2903
    %3032 = vst [vmem:[#allocation2 + $0x20] sm:$0xff] %v2904
    %3033 = vst [vmem:[#allocation2 + $0x28] sm:$0xff] %v2905
    %3034 = vst [vmem:[#allocation2 + $0x30] sm:$0xff] %v2906
    %3035 = vst [vmem:[#allocation2 + $0x38] sm:$0xff] %v2907
    %3036 = vst [vmem:[#allocation2 + $0x40] sm:$0xff] %v2908
    %3037 = vst [vmem:[#allocation2 + $0x48] sm:$0xff] %v2909
    %3038 = vst [vmem:[#allocation2 + $0x50] sm:$0xff] %v2910
    %3039 = vst [vmem:[#allocation2 + $0x58] sm:$0xff] %v2911
    %3040 = vst [vmem:[#allocation2 + $0x60] sm:$0xff] %v2912
    %3041 = vst [vmem:[#allocation2 + $0x68] sm:$0xff] %v2913
    %3042 = vst [vmem:[#allocation2 + $0x70] sm:$0xff] %v2914
    %3043 = vst [vmem:[#allocation2 + $0x78] sm:$0xff] %v2915
    %3044 = vst [vmem:[#allocation2 + $0x80] sm:$0xff] %v2916
    %3045 = vst [vmem:[#allocation2 + $0x88] sm:$0xff] %v2917
    %3046 = vst [vmem:[#allocation2 + $0x90] sm:$0xff] %v2918
    %3047 = vst [vmem:[#allocation2 + $0x98] sm:$0xff] %v2919
    %3048 = vst [vmem:[#allocation2 + $0xa0] sm:$0xff] %v2920
    %3049 = vst [vmem:[#allocation2 + $0xa8] sm:$0xff] %v2921
    %3050 = vst [vmem:[#allocation2 + $0xb0] sm:$0xff] %v2922
    %3051 = vst [vmem:[#allocation2 + $0xb8] sm:$0xff] %v2923
    %3052 = vst [vmem:[#allocation2 + $0xc0] sm:$0xff] %v2924
    %3053 = vst [vmem:[#allocation2 + $0xc8] sm:$0xff] %v2925
    %3054 = vst [vmem:[#allocation2 + $0xd0] sm:$0xff] %v2926
    %3055 = vst [vmem:[#allocation2 + $0xd8] sm:$0xff] %v2927
    %3056 = vst [vmem:[#allocation2 + $0xe0] sm:$0xff] %v2928
    %3057 = vst [vmem:[#allocation2 + $0xe8] sm:$0xff] %v2929
    %3058 = vst [vmem:[#allocation2 + $0xf0] sm:$0xff] %v2930
    %3059 = vst [vmem:[#allocation2 + $0xf8] sm:$0xff] %v2931
    %3060 = vst [vmem:[#allocation2 + $0x100] sm:$0xff] %v2932
    %3061 = vst [vmem:[#allocation2 + $0x108] sm:$0xff] %v2933
    %3062 = vst [vmem:[#allocation2 + $0x110] sm:$0xff] %v2934
    %3063 = vst [vmem:[#allocation2 + $0x118] sm:$0xff] %v2935
    %3064 = vst [vmem:[#allocation2 + $0x120] sm:$0xff] %v2936
    %3065 = vst [vmem:[#allocation2 + $0x128] sm:$0xff] %v2937
    %3066 = vst [vmem:[#allocation2 + $0x130] sm:$0xff] %v2938
    %3067 = vst [vmem:[#allocation2 + $0x138] sm:$0xff] %v2939
    %3068 = vst [vmem:[#allocation2 + $0x140] sm:$0xff] %v2940
    %3069 = vst [vmem:[#allocation2 + $0x148] sm:$0xff] %v2941
    %3070 = vst [vmem:[#allocation2 + $0x150] sm:$0xff] %v2942
    %3071 = vst [vmem:[#allocation2 + $0x158] sm:$0xff] %v2943
    %3072 = vst [vmem:[#allocation2 + $0x160] sm:$0xff] %v2944
    %3073 = vst [vmem:[#allocation2 + $0x168] sm:$0xff] %v2945
    %3074 = vst [vmem:[#allocation2 + $0x170] sm:$0xff] %v2946
    %3075 = vst [vmem:[#allocation2 + $0x178] sm:$0xff] %v2947
    %3076 = vst [vmem:[#allocation2 + $0x180] sm:$0xff] %v2948
    %3077 = vst [vmem:[#allocation2 + $0x188] sm:$0xff] %v2949
    %3078 = vst [vmem:[#allocation2 + $0x190] sm:$0xff] %v2950
    %3079 = vst [vmem:[#allocation2 + $0x198] sm:$0xff] %v2951
    %3080 = vst [vmem:[#allocation2 + $0x1a0] sm:$0xff] %v2952
    %3081 = vst [vmem:[#allocation2 + $0x1a8] sm:$0xff] %v2953
    %3082 = vst [vmem:[#allocation2 + $0x1b0] sm:$0xff] %v2954
    %3083 = vst [vmem:[#allocation2 + $0x1b8] sm:$0xff] %v2955
    %3084 = vst [vmem:[#allocation2 + $0x1c0] sm:$0xff] %v2956
    %3085 = vst [vmem:[#allocation2 + $0x1c8] sm:$0xff] %v2957
    %3086 = vst [vmem:[#allocation2 + $0x1d0] sm:$0xff] %v2958
    %3087 = vst [vmem:[#allocation2 + $0x1d8] sm:$0xff] %v2959
    %3088 = vst [vmem:[#allocation2 + $0x1e0] sm:$0xff] %v2960
    %3089 = vst [vmem:[#allocation2 + $0x1e8] sm:$0xff] %v2961
    %3090 = vst [vmem:[#allocation2 + $0x1f0] sm:$0xff] %v2962
    %3091 = vst [vmem:[#allocation2 + $0x1f8] sm:$0xff] %v2963
    %3092 = vst [vmem:[#allocation2 + $0x200] sm:$0xff] %v2964
    %3093 = vst [vmem:[#allocation2 + $0x208] sm:$0xff] %v2965
    %3094 = vst [vmem:[#allocation2 + $0x210] sm:$0xff] %v2966
    %3095 = vst [vmem:[#allocation2 + $0x218] sm:$0xff] %v2967
    %3096 = vst [vmem:[#allocation2 + $0x220] sm:$0xff] %v2968
    %3097 = vst [vmem:[#allocation2 + $0x228] sm:$0xff] %v2969
    %3098 = vst [vmem:[#allocation2 + $0x230] sm:$0xff] %v2970
    %3099 = vst [vmem:[#allocation2 + $0x238] sm:$0xff] %v2971
    %3100 = vst [vmem:[#allocation2 + $0x240] sm:$0xff] %v2972
    %3101 = vst [vmem:[#allocation2 + $0x248] sm:$0xff] %v2973
    %3102 = vst [vmem:[#allocation2 + $0x250] sm:$0xff] %v2974
    %3103 = vst [vmem:[#allocation2 + $0x258] sm:$0xff] %v2975
    %3104 = vst [vmem:[#allocation2 + $0x260] sm:$0xff] %v2976
    %3105 = vst [vmem:[#allocation2 + $0x268] sm:$0xff] %v2977
    %3106 = vst [vmem:[#allocation2 + $0x270] sm:$0xff] %v2978
    %3107 = vst [vmem:[#allocation2 + $0x278] sm:$0xff] %v2979
    %3108 = vst [vmem:[#allocation2 + $0x280] sm:$0xff] %v2980
    %3109 = vst [vmem:[#allocation2 + $0x288] sm:$0xff] %v2981
    %3110 = vst [vmem:[#allocation2 + $0x290] sm:$0xff] %v2982
    %3111 = vst [vmem:[#allocation2 + $0x298] sm:$0xff] %v2983
    %3112 = vst [vmem:[#allocation2 + $0x2a0] sm:$0xff] %v2984
    %3113 = vst [vmem:[#allocation2 + $0x2a8] sm:$0xff] %v2985
    %3114 = vst [vmem:[#allocation2 + $0x2b0] sm:$0xff] %v2986
    %3115 = vst [vmem:[#allocation2 + $0x2b8] sm:$0xff] %v2987
    %3116 = vst [vmem:[#allocation2 + $0x2c0] sm:$0xff] %v2988
    %3117 = vst [vmem:[#allocation2 + $0x2c8] sm:$0xff] %v2989
    %3118 = vst [vmem:[#allocation2 + $0x2d0] sm:$0xff] %v2990
    %3119 = vst [vmem:[#allocation2 + $0x2d8] sm:$0xff] %v2991
    %3120 = vst [vmem:[#allocation2 + $0x2e0] sm:$0xff] %v2992
    %3121 = vst [vmem:[#allocation2 + $0x2e8] sm:$0xff] %v2993
    %3122 = vst [vmem:[#allocation2 + $0x2f0] sm:$0xff] %v2994
    %3123 = vst [vmem:[#allocation2 + $0x2f8] sm:$0xff] %v2995
    %3124 = vst [vmem:[#allocation2 + $0x300] sm:$0xff] %v2996
    %3125 = vst [vmem:[#allocation2 + $0x308] sm:$0xff] %v2997
    %3126 = vst [vmem:[#allocation2 + $0x310] sm:$0xff] %v2998
    %3127 = vst [vmem:[#allocation2 + $0x318] sm:$0xff] %v2999
    %3128 = vst [vmem:[#allocation2 + $0x320] sm:$0xff] %v3000
    %3129 = vst [vmem:[#allocation2 + $0x328] sm:$0xff] %v3001
    %3130 = vst [vmem:[#allocation2 + $0x330] sm:$0xff] %v3002
    %3131 = vst [vmem:[#allocation2 + $0x338] sm:$0xff] %v3003
    %3132 = vst [vmem:[#allocation2 + $0x340] sm:$0xff] %v3004
    %3133 = vst [vmem:[#allocation2 + $0x348] sm:$0xff] %v3005
    %3134 = vst [vmem:[#allocation2 + $0x350] sm:$0xff] %v3006
    %3135 = vst [vmem:[#allocation2 + $0x358] sm:$0xff] %v3007
    %3136 = vst [vmem:[#allocation2 + $0x360] sm:$0xff] %v3008
    %3137 = vst [vmem:[#allocation2 + $0x368] sm:$0xff] %v3009
    %3138 = vst [vmem:[#allocation2 + $0x370] sm:$0xff] %v3010
    %3139 = vst [vmem:[#allocation2 + $0x378] sm:$0xff] %v3011
    %3140 = vst [vmem:[#allocation2 + $0x380] sm:$0xff] %v3012
    %3141 = vst [vmem:[#allocation2 + $0x388] sm:$0xff] %v3013
    %3142 = vst [vmem:[#allocation2 + $0x390] sm:$0xff] %v3014
    %3143 = vst [vmem:[#allocation2 + $0x398] sm:$0xff] %v3015
    %3144 = vst [vmem:[#allocation2 + $0x3a0] sm:$0xff] %v3016
    %3145 = vst [vmem:[#allocation2 + $0x3a8] sm:$0xff] %v3017
    %3146 = vst [vmem:[#allocation2 + $0x3b0] sm:$0xff] %v3018
    %3147 = vst [vmem:[#allocation2 + $0x3b8] sm:$0xff] %v3019
    %3148 = vst [vmem:[#allocation2 + $0x3c0] sm:$0xff] %v3020
    %3149 = vst [vmem:[#allocation2 + $0x3c8] sm:$0xff] %v3021
    %3150 = vst [vmem:[#allocation2 + $0x3d0] sm:$0xff] %v3022
    %3151 = vst [vmem:[#allocation2 + $0x3d8] sm:$0xff] %v3023
    %3152 = vst [vmem:[#allocation2 + $0x3e0] sm:$0xff] %v3024
    %3153 = vst [vmem:[#allocation2 + $0x3e8] sm:$0xff] %v3025
    %3154 = vst [vmem:[#allocation2 + $0x3f0] sm:$0xff] %v3026
    %3155 = vst [vmem:[#allocation2 + $0x3f8] sm:$0xff] %v3027
    // Predicated region
    $region58: #{tpu_custom_call.1} parent=1 // pred_check
      %p3156 = pneg %p104
    $region59: #{tpu_custom_call.1} parent=1 // pred_check_branch
      %3158 = sbr.rel (%p3156) target = $region61
    $region60: #{tpu_custom_call.1} parent=1 // pred_region
      %v3159 = vld [vmem:[#allocation2] sm:$0xff]
      %v3160 = vld [vmem:[#allocation2 + $0x8] sm:$0xff]
      %v3161 = vld [vmem:[#allocation2 + $0x10] sm:$0xff]
      %v3162 = vld [vmem:[#allocation2 + $0x18] sm:$0xff]
      %v3163 = vld [vmem:[#allocation2 + $0x20] sm:$0xff]
      %v3164 = vld [vmem:[#allocation2 + $0x28] sm:$0xff]
      %v3165 = vld [vmem:[#allocation2 + $0x30] sm:$0xff]
      %v3166 = vld [vmem:[#allocation2 + $0x38] sm:$0xff]
      %v3167 = vld [vmem:[#allocation2 + $0x40] sm:$0xff]
      %v3168 = vld [vmem:[#allocation2 + $0x48] sm:$0xff]
      %v3169 = vld [vmem:[#allocation2 + $0x50] sm:$0xff]
      %v3170 = vld [vmem:[#allocation2 + $0x58] sm:$0xff]
      %v3171 = vld [vmem:[#allocation2 + $0x60] sm:$0xff]
      %v3172 = vld [vmem:[#allocation2 + $0x68] sm:$0xff]
      %v3173 = vld [vmem:[#allocation2 + $0x70] sm:$0xff]
      %v3174 = vld [vmem:[#allocation2 + $0x78] sm:$0xff]
      %v3175 = vld [vmem:[#allocation2 + $0x80] sm:$0xff]
      %v3176 = vld [vmem:[#allocation2 + $0x88] sm:$0xff]
      %v3177 = vld [vmem:[#allocation2 + $0x90] sm:$0xff]
      %v3178 = vld [vmem:[#allocation2 + $0x98] sm:$0xff]
      %v3179 = vld [vmem:[#allocation2 + $0xa0] sm:$0xff]
      %v3180 = vld [vmem:[#allocation2 + $0xa8] sm:$0xff]
      %v3181 = vld [vmem:[#allocation2 + $0xb0] sm:$0xff]
      %v3182 = vld [vmem:[#allocation2 + $0xb8] sm:$0xff]
      %v3183 = vld [vmem:[#allocation2 + $0xc0] sm:$0xff]
      %v3184 = vld [vmem:[#allocation2 + $0xc8] sm:$0xff]
      %v3185 = vld [vmem:[#allocation2 + $0xd0] sm:$0xff]
      %v3186 = vld [vmem:[#allocation2 + $0xd8] sm:$0xff]
      %v3187 = vld [vmem:[#allocation2 + $0xe0] sm:$0xff]
      %v3188 = vld [vmem:[#allocation2 + $0xe8] sm:$0xff]
      %v3189 = vld [vmem:[#allocation2 + $0xf0] sm:$0xff]
      %v3190 = vld [vmem:[#allocation2 + $0xf8] sm:$0xff]
      %v3191 = vld [vmem:[#allocation2 + $0x100] sm:$0xff]
      %v3192 = vld [vmem:[#allocation2 + $0x108] sm:$0xff]
      %v3193 = vld [vmem:[#allocation2 + $0x110] sm:$0xff]
      %v3194 = vld [vmem:[#allocation2 + $0x118] sm:$0xff]
      %v3195 = vld [vmem:[#allocation2 + $0x120] sm:$0xff]
      %v3196 = vld [vmem:[#allocation2 + $0x128] sm:$0xff]
      %v3197 = vld [vmem:[#allocation2 + $0x130] sm:$0xff]
      %v3198 = vld [vmem:[#allocation2 + $0x138] sm:$0xff]
      %v3199 = vld [vmem:[#allocation2 + $0x140] sm:$0xff]
      %v3200 = vld [vmem:[#allocation2 + $0x148] sm:$0xff]
      %v3201 = vld [vmem:[#allocation2 + $0x150] sm:$0xff]
      %v3202 = vld [vmem:[#allocation2 + $0x158] sm:$0xff]
      %v3203 = vld [vmem:[#allocation2 + $0x160] sm:$0xff]
      %v3204 = vld [vmem:[#allocation2 + $0x168] sm:$0xff]
      %v3205 = vld [vmem:[#allocation2 + $0x170] sm:$0xff]
      %v3206 = vld [vmem:[#allocation2 + $0x178] sm:$0xff]
      %v3207 = vld [vmem:[#allocation2 + $0x180] sm:$0xff]
      %v3208 = vld [vmem:[#allocation2 + $0x188] sm:$0xff]
      %v3209 = vld [vmem:[#allocation2 + $0x190] sm:$0xff]
      %v3210 = vld [vmem:[#allocation2 + $0x198] sm:$0xff]
      %v3211 = vld [vmem:[#allocation2 + $0x1a0] sm:$0xff]
      %v3212 = vld [vmem:[#allocation2 + $0x1a8] sm:$0xff]
      %v3213 = vld [vmem:[#allocation2 + $0x1b0] sm:$0xff]
      %v3214 = vld [vmem:[#allocation2 + $0x1b8] sm:$0xff]
      %v3215 = vld [vmem:[#allocation2 + $0x1c0] sm:$0xff]
      %v3216 = vld [vmem:[#allocation2 + $0x1c8] sm:$0xff]
      %v3217 = vld [vmem:[#allocation2 + $0x1d0] sm:$0xff]
      %v3218 = vld [vmem:[#allocation2 + $0x1d8] sm:$0xff]
      %v3219 = vld [vmem:[#allocation2 + $0x1e0] sm:$0xff]
      %v3220 = vld [vmem:[#allocation2 + $0x1e8] sm:$0xff]
      %v3221 = vld [vmem:[#allocation2 + $0x1f0] sm:$0xff]
      %v3222 = vld [vmem:[#allocation2 + $0x1f8] sm:$0xff]
      %v3223 = vld [vmem:[#allocation2 + $0x200] sm:$0xff]
      %v3224 = vld [vmem:[#allocation2 + $0x208] sm:$0xff]
      %v3225 = vld [vmem:[#allocation2 + $0x210] sm:$0xff]
      %v3226 = vld [vmem:[#allocation2 + $0x218] sm:$0xff]
      %v3227 = vld [vmem:[#allocation2 + $0x220] sm:$0xff]
      %v3228 = vld [vmem:[#allocation2 + $0x228] sm:$0xff]
      %v3229 = vld [vmem:[#allocation2 + $0x230] sm:$0xff]
      %v3230 = vld [vmem:[#allocation2 + $0x238] sm:$0xff]
      %v3231 = vld [vmem:[#allocation2 + $0x240] sm:$0xff]
      %v3232 = vld [vmem:[#allocation2 + $0x248] sm:$0xff]
      %v3233 = vld [vmem:[#allocation2 + $0x250] sm:$0xff]
      %v3234 = vld [vmem:[#allocation2 + $0x258] sm:$0xff]
      %v3235 = vld [vmem:[#allocation2 + $0x260] sm:$0xff]
      %v3236 = vld [vmem:[#allocation2 + $0x268] sm:$0xff]
      %v3237 = vld [vmem:[#allocation2 + $0x270] sm:$0xff]
      %v3238 = vld [vmem:[#allocation2 + $0x278] sm:$0xff]
      %v3239 = vld [vmem:[#allocation2 + $0x280] sm:$0xff]
      %v3240 = vld [vmem:[#allocation2 + $0x288] sm:$0xff]
      %v3241 = vld [vmem:[#allocation2 + $0x290] sm:$0xff]
      %v3242 = vld [vmem:[#allocation2 + $0x298] sm:$0xff]
      %v3243 = vld [vmem:[#allocation2 + $0x2a0] sm:$0xff]
      %v3244 = vld [vmem:[#allocation2 + $0x2a8] sm:$0xff]
      %v3245 = vld [vmem:[#allocation2 + $0x2b0] sm:$0xff]
      %v3246 = vld [vmem:[#allocation2 + $0x2b8] sm:$0xff]
      %v3247 = vld [vmem:[#allocation2 + $0x2c0] sm:$0xff]
      %v3248 = vld [vmem:[#allocation2 + $0x2c8] sm:$0xff]
      %v3249 = vld [vmem:[#allocation2 + $0x2d0] sm:$0xff]
      %v3250 = vld [vmem:[#allocation2 + $0x2d8] sm:$0xff]
      %v3251 = vld [vmem:[#allocation2 + $0x2e0] sm:$0xff]
      %v3252 = vld [vmem:[#allocation2 + $0x2e8] sm:$0xff]
      %v3253 = vld [vmem:[#allocation2 + $0x2f0] sm:$0xff]
      %v3254 = vld [vmem:[#allocation2 + $0x2f8] sm:$0xff]
      %v3255 = vld [vmem:[#allocation2 + $0x300] sm:$0xff]
      %v3256 = vld [vmem:[#allocation2 + $0x308] sm:$0xff]
      %v3257 = vld [vmem:[#allocation2 + $0x310] sm:$0xff]
      %v3258 = vld [vmem:[#allocation2 + $0x318] sm:$0xff]
      %v3259 = vld [vmem:[#allocation2 + $0x320] sm:$0xff]
      %v3260 = vld [vmem:[#allocation2 + $0x328] sm:$0xff]
      %v3261 = vld [vmem:[#allocation2 + $0x330] sm:$0xff]
      %v3262 = vld [vmem:[#allocation2 + $0x338] sm:$0xff]
      %v3263 = vld [vmem:[#allocation2 + $0x340] sm:$0xff]
      %v3264 = vld [vmem:[#allocation2 + $0x348] sm:$0xff]
      %v3265 = vld [vmem:[#allocation2 + $0x350] sm:$0xff]
      %v3266 = vld [vmem:[#allocation2 + $0x358] sm:$0xff]
      %v3267 = vld [vmem:[#allocation2 + $0x360] sm:$0xff]
      %v3268 = vld [vmem:[#allocation2 + $0x368] sm:$0xff]
      %v3269 = vld [vmem:[#allocation2 + $0x370] sm:$0xff]
      %v3270 = vld [vmem:[#allocation2 + $0x378] sm:$0xff]
      %v3271 = vld [vmem:[#allocation2 + $0x380] sm:$0xff]
      %v3272 = vld [vmem:[#allocation2 + $0x388] sm:$0xff]
      %v3273 = vld [vmem:[#allocation2 + $0x390] sm:$0xff]
      %v3274 = vld [vmem:[#allocation2 + $0x398] sm:$0xff]
      %v3275 = vld [vmem:[#allocation2 + $0x3a0] sm:$0xff]
      %v3276 = vld [vmem:[#allocation2 + $0x3a8] sm:$0xff]
      %v3277 = vld [vmem:[#allocation2 + $0x3b0] sm:$0xff]
      %v3278 = vld [vmem:[#allocation2 + $0x3b8] sm:$0xff]
      %v3279 = vld [vmem:[#allocation2 + $0x3c0] sm:$0xff]
      %v3280 = vld [vmem:[#allocation2 + $0x3c8] sm:$0xff]
      %v3281 = vld [vmem:[#allocation2 + $0x3d0] sm:$0xff]
      %v3282 = vld [vmem:[#allocation2 + $0x3d8] sm:$0xff]
      %v3283 = vld [vmem:[#allocation2 + $0x3e0] sm:$0xff]
      %v3284 = vld [vmem:[#allocation2 + $0x3e8] sm:$0xff]
      %v3285 = vld [vmem:[#allocation2 + $0x3f0] sm:$0xff]
      %v3286 = vld [vmem:[#allocation2 + $0x3f8] sm:$0xff]
      %v3287 = vld [vmem:[#allocation8] sm:$0xff]
      %v3289 = vlaneseq
      %v3290 = vshrl.u32 %v3289, 7
      %v3291 = vsub.s32 0, %v3290
      %v3292 = vrot.slane %v3287, %v3291
      %v3293 = vlaneseq
      %v3294 = vshrl.u32 %v3293, 7
      %v3295 = vsub.s32 1, %v3294
      %v3296 = vrot.slane %v3287, %v3295
      %v3297 = vlaneseq
      %v3298 = vshrl.u32 %v3297, 7
      %v3299 = vsub.s32 2, %v3298
      %v3300 = vrot.slane %v3287, %v3299
      %v3301 = vlaneseq
      %v3302 = vshrl.u32 %v3301, 7
      %v3303 = vsub.s32 3, %v3302
      %v3304 = vrot.slane %v3287, %v3303
      %v3305 = vlaneseq
      %v3306 = vshrl.u32 %v3305, 7
      %v3307 = vsub.s32 4, %v3306
      %v3308 = vrot.slane %v3287, %v3307
      %v3309 = vlaneseq
      %v3310 = vshrl.u32 %v3309, 7
      %v3311 = vsub.s32 5, %v3310
      %v3312 = vrot.slane %v3287, %v3311
      %v3313 = vlaneseq
      %v3314 = vshrl.u32 %v3313, 7
      %v3315 = vsub.s32 6, %v3314
      %v3316 = vrot.slane %v3287, %v3315
      %v3317 = vlaneseq
      %v3318 = vshrl.u32 %v3317, 7
      %v3319 = vsub.s32 7, %v3318
      %v3320 = vrot.slane %v3287, %v3319
      %v3329 = vadd.f32 %v3159, %v3292
      %v3330 = vadd.f32 %v3160, %v3296
      %v3331 = vadd.f32 %v3161, %v3300
      %v3332 = vadd.f32 %v3162, %v3304
      %v3333 = vadd.f32 %v3163, %v3308
      %v3334 = vadd.f32 %v3164, %v3312
      %v3335 = vadd.f32 %v3165, %v3316
      %v3336 = vadd.f32 %v3166, %v3320
      %v3337 = vadd.f32 %v3167, %v3292
      %v3338 = vadd.f32 %v3168, %v3296
      %v3339 = vadd.f32 %v3169, %v3300
      %v3340 = vadd.f32 %v3170, %v3304
      %v3341 = vadd.f32 %v3171, %v3308
      %v3342 = vadd.f32 %v3172, %v3312
      %v3343 = vadd.f32 %v3173, %v3316
      %v3344 = vadd.f32 %v3174, %v3320
      %v3345 = vadd.f32 %v3175, %v3292
      %v3346 = vadd.f32 %v3176, %v3296
      %v3347 = vadd.f32 %v3177, %v3300
      %v3348 = vadd.f32 %v3178, %v3304
      %v3349 = vadd.f32 %v3179, %v3308
      %v3350 = vadd.f32 %v3180, %v3312
      %v3351 = vadd.f32 %v3181, %v3316
      %v3352 = vadd.f32 %v3182, %v3320
      %v3353 = vadd.f32 %v3183, %v3292
      %v3354 = vadd.f32 %v3184, %v3296
      %v3355 = vadd.f32 %v3185, %v3300
      %v3356 = vadd.f32 %v3186, %v3304
      %v3357 = vadd.f32 %v3187, %v3308
      %v3358 = vadd.f32 %v3188, %v3312
      %v3359 = vadd.f32 %v3189, %v3316
      %v3360 = vadd.f32 %v3190, %v3320
      %v3361 = vadd.f32 %v3191, %v3292
      %v3362 = vadd.f32 %v3192, %v3296
      %v3363 = vadd.f32 %v3193, %v3300
      %v3364 = vadd.f32 %v3194, %v3304
      %v3365 = vadd.f32 %v3195, %v3308
      %v3366 = vadd.f32 %v3196, %v3312
      %v3367 = vadd.f32 %v3197, %v3316
      %v3368 = vadd.f32 %v3198, %v3320
      %v3369 = vadd.f32 %v3199, %v3292
      %v3370 = vadd.f32 %v3200, %v3296
      %v3371 = vadd.f32 %v3201, %v3300
      %v3372 = vadd.f32 %v3202, %v3304
      %v3373 = vadd.f32 %v3203, %v3308
      %v3374 = vadd.f32 %v3204, %v3312
      %v3375 = vadd.f32 %v3205, %v3316
      %v3376 = vadd.f32 %v3206, %v3320
      %v3377 = vadd.f32 %v3207, %v3292
      %v3378 = vadd.f32 %v3208, %v3296
      %v3379 = vadd.f32 %v3209, %v3300
      %v3380 = vadd.f32 %v3210, %v3304
      %v3381 = vadd.f32 %v3211, %v3308
      %v3382 = vadd.f32 %v3212, %v3312
      %v3383 = vadd.f32 %v3213, %v3316
      %v3384 = vadd.f32 %v3214, %v3320
      %v3385 = vadd.f32 %v3215, %v3292
      %v3386 = vadd.f32 %v3216, %v3296
      %v3387 = vadd.f32 %v3217, %v3300
      %v3388 = vadd.f32 %v3218, %v3304
      %v3389 = vadd.f32 %v3219, %v3308
      %v3390 = vadd.f32 %v3220, %v3312
      %v3391 = vadd.f32 %v3221, %v3316
      %v3392 = vadd.f32 %v3222, %v3320
      %v3393 = vadd.f32 %v3223, %v3292
      %v3394 = vadd.f32 %v3224, %v3296
      %v3395 = vadd.f32 %v3225, %v3300
      %v3396 = vadd.f32 %v3226, %v3304
      %v3397 = vadd.f32 %v3227, %v3308
      %v3398 = vadd.f32 %v3228, %v3312
      %v3399 = vadd.f32 %v3229, %v3316
      %v3400 = vadd.f32 %v3230, %v3320
      %v3401 = vadd.f32 %v3231, %v3292
      %v3402 = vadd.f32 %v3232, %v3296
      %v3403 = vadd.f32 %v3233, %v3300
      %v3404 = vadd.f32 %v3234, %v3304
      %v3405 = vadd.f32 %v3235, %v3308
      %v3406 = vadd.f32 %v3236, %v3312
      %v3407 = vadd.f32 %v3237, %v3316
      %v3408 = vadd.f32 %v3238, %v3320
      %v3409 = vadd.f32 %v3239, %v3292
      %v3410 = vadd.f32 %v3240, %v3296
      %v3411 = vadd.f32 %v3241, %v3300
      %v3412 = vadd.f32 %v3242, %v3304
      %v3413 = vadd.f32 %v3243, %v3308
      %v3414 = vadd.f32 %v3244, %v3312
      %v3415 = vadd.f32 %v3245, %v3316
      %v3416 = vadd.f32 %v3246, %v3320
      %v3417 = vadd.f32 %v3247, %v3292
      %v3418 = vadd.f32 %v3248, %v3296
      %v3419 = vadd.f32 %v3249, %v3300
      %v3420 = vadd.f32 %v3250, %v3304
      %v3421 = vadd.f32 %v3251, %v3308
      %v3422 = vadd.f32 %v3252, %v3312
      %v3423 = vadd.f32 %v3253, %v3316
      %v3424 = vadd.f32 %v3254, %v3320
      %v3425 = vadd.f32 %v3255, %v3292
      %v3426 = vadd.f32 %v3256, %v3296
      %v3427 = vadd.f32 %v3257, %v3300
      %v3428 = vadd.f32 %v3258, %v3304
      %v3429 = vadd.f32 %v3259, %v3308
      %v3430 = vadd.f32 %v3260, %v3312
      %v3431 = vadd.f32 %v3261, %v3316
      %v3432 = vadd.f32 %v3262, %v3320
      %v3433 = vadd.f32 %v3263, %v3292
      %v3434 = vadd.f32 %v3264, %v3296
      %v3435 = vadd.f32 %v3265, %v3300
      %v3436 = vadd.f32 %v3266, %v3304
      %v3437 = vadd.f32 %v3267, %v3308
      %v3438 = vadd.f32 %v3268, %v3312
      %v3439 = vadd.f32 %v3269, %v3316
      %v3440 = vadd.f32 %v3270, %v3320
      %v3441 = vadd.f32 %v3271, %v3292
      %v3442 = vadd.f32 %v3272, %v3296
      %v3443 = vadd.f32 %v3273, %v3300
      %v3444 = vadd.f32 %v3274, %v3304
      %v3445 = vadd.f32 %v3275, %v3308
      %v3446 = vadd.f32 %v3276, %v3312
      %v3447 = vadd.f32 %v3277, %v3316
      %v3448 = vadd.f32 %v3278, %v3320
      %v3449 = vadd.f32 %v3279, %v3292
      %v3450 = vadd.f32 %v3280, %v3296
      %v3451 = vadd.f32 %v3281, %v3300
      %v3452 = vadd.f32 %v3282, %v3304
      %v3453 = vadd.f32 %v3283, %v3308
      %v3454 = vadd.f32 %v3284, %v3312
      %v3455 = vadd.f32 %v3285, %v3316
      %v3456 = vadd.f32 %v3286, %v3320
      %v3457 = vmax.f32 %v3329, 0.0
      %v3458 = vmax.f32 %v3330, 0.0
      %v3459 = vmax.f32 %v3331, 0.0
      %v3460 = vmax.f32 %v3332, 0.0
      %v3461 = vmax.f32 %v3333, 0.0
      %v3462 = vmax.f32 %v3334, 0.0
      %v3463 = vmax.f32 %v3335, 0.0
      %v3464 = vmax.f32 %v3336, 0.0
      %v3465 = vmax.f32 %v3337, 0.0
      %v3466 = vmax.f32 %v3338, 0.0
      %v3467 = vmax.f32 %v3339, 0.0
      %v3468 = vmax.f32 %v3340, 0.0
      %v3469 = vmax.f32 %v3341, 0.0
      %v3470 = vmax.f32 %v3342, 0.0
      %v3471 = vmax.f32 %v3343, 0.0
      %v3472 = vmax.f32 %v3344, 0.0
      %v3473 = vmax.f32 %v3345, 0.0
      %v3474 = vmax.f32 %v3346, 0.0
      %v3475 = vmax.f32 %v3347, 0.0
      %v3476 = vmax.f32 %v3348, 0.0
      %v3477 = vmax.f32 %v3349, 0.0
      %v3478 = vmax.f32 %v3350, 0.0
      %v3479 = vmax.f32 %v3351, 0.0
      %v3480 = vmax.f32 %v3352, 0.0
      %v3481 = vmax.f32 %v3353, 0.0
      %v3482 = vmax.f32 %v3354, 0.0
      %v3483 = vmax.f32 %v3355, 0.0
      %v3484 = vmax.f32 %v3356, 0.0
      %v3485 = vmax.f32 %v3357, 0.0
      %v3486 = vmax.f32 %v3358, 0.0
      %v3487 = vmax.f32 %v3359, 0.0
      %v3488 = vmax.f32 %v3360, 0.0
      %v3489 = vmax.f32 %v3361, 0.0
      %v3490 = vmax.f32 %v3362, 0.0
      %v3491 = vmax.f32 %v3363, 0.0
      %v3492 = vmax.f32 %v3364, 0.0
      %v3493 = vmax.f32 %v3365, 0.0
      %v3494 = vmax.f32 %v3366, 0.0
      %v3495 = vmax.f32 %v3367, 0.0
      %v3496 = vmax.f32 %v3368, 0.0
      %v3497 = vmax.f32 %v3369, 0.0
      %v3498 = vmax.f32 %v3370, 0.0
      %v3499 = vmax.f32 %v3371, 0.0
      %v3500 = vmax.f32 %v3372, 0.0
      %v3501 = vmax.f32 %v3373, 0.0
      %v3502 = vmax.f32 %v3374, 0.0
      %v3503 = vmax.f32 %v3375, 0.0
      %v3504 = vmax.f32 %v3376, 0.0
      %v3505 = vmax.f32 %v3377, 0.0
      %v3506 = vmax.f32 %v3378, 0.0
      %v3507 = vmax.f32 %v3379, 0.0
      %v3508 = vmax.f32 %v3380, 0.0
      %v3509 = vmax.f32 %v3381, 0.0
      %v3510 = vmax.f32 %v3382, 0.0
      %v3511 = vmax.f32 %v3383, 0.0
      %v3512 = vmax.f32 %v3384, 0.0
      %v3513 = vmax.f32 %v3385, 0.0
      %v3514 = vmax.f32 %v3386, 0.0
      %v3515 = vmax.f32 %v3387, 0.0
      %v3516 = vmax.f32 %v3388, 0.0
      %v3517 = vmax.f32 %v3389, 0.0
      %v3518 = vmax.f32 %v3390, 0.0
      %v3519 = vmax.f32 %v3391, 0.0
      %v3520 = vmax.f32 %v3392, 0.0
      %v3521 = vmax.f32 %v3393, 0.0
      %v3522 = vmax.f32 %v3394, 0.0
      %v3523 = vmax.f32 %v3395, 0.0
      %v3524 = vmax.f32 %v3396, 0.0
      %v3525 = vmax.f32 %v3397, 0.0
      %v3526 = vmax.f32 %v3398, 0.0
      %v3527 = vmax.f32 %v3399, 0.0
      %v3528 = vmax.f32 %v3400, 0.0
      %v3529 = vmax.f32 %v3401, 0.0
      %v3530 = vmax.f32 %v3402, 0.0
      %v3531 = vmax.f32 %v3403, 0.0
      %v3532 = vmax.f32 %v3404, 0.0
      %v3533 = vmax.f32 %v3405, 0.0
      %v3534 = vmax.f32 %v3406, 0.0
      %v3535 = vmax.f32 %v3407, 0.0
      %v3536 = vmax.f32 %v3408, 0.0
      %v3537 = vmax.f32 %v3409, 0.0
      %v3538 = vmax.f32 %v3410, 0.0
      %v3539 = vmax.f32 %v3411, 0.0
      %v3540 = vmax.f32 %v3412, 0.0
      %v3541 = vmax.f32 %v3413, 0.0
      %v3542 = vmax.f32 %v3414, 0.0
      %v3543 = vmax.f32 %v3415, 0.0
      %v3544 = vmax.f32 %v3416, 0.0
      %v3545 = vmax.f32 %v3417, 0.0
      %v3546 = vmax.f32 %v3418, 0.0
      %v3547 = vmax.f32 %v3419, 0.0
      %v3548 = vmax.f32 %v3420, 0.0
      %v3549 = vmax.f32 %v3421, 0.0
      %v3550 = vmax.f32 %v3422, 0.0
      %v3551 = vmax.f32 %v3423, 0.0
      %v3552 = vmax.f32 %v3424, 0.0
      %v3553 = vmax.f32 %v3425, 0.0
      %v3554 = vmax.f32 %v3426, 0.0
      %v3555 = vmax.f32 %v3427, 0.0
      %v3556 = vmax.f32 %v3428, 0.0
      %v3557 = vmax.f32 %v3429, 0.0
      %v3558 = vmax.f32 %v3430, 0.0
      %v3559 = vmax.f32 %v3431, 0.0
      %v3560 = vmax.f32 %v3432, 0.0
      %v3561 = vmax.f32 %v3433, 0.0
      %v3562 = vmax.f32 %v3434, 0.0
      %v3563 = vmax.f32 %v3435, 0.0
      %v3564 = vmax.f32 %v3436, 0.0
      %v3565 = vmax.f32 %v3437, 0.0
      %v3566 = vmax.f32 %v3438, 0.0
      %v3567 = vmax.f32 %v3439, 0.0
      %v3568 = vmax.f32 %v3440, 0.0
      %v3569 = vmax.f32 %v3441, 0.0
      %v3570 = vmax.f32 %v3442, 0.0
      %v3571 = vmax.f32 %v3443, 0.0
      %v3572 = vmax.f32 %v3444, 0.0
      %v3573 = vmax.f32 %v3445, 0.0
      %v3574 = vmax.f32 %v3446, 0.0
      %v3575 = vmax.f32 %v3447, 0.0
      %v3576 = vmax.f32 %v3448, 0.0
      %v3577 = vmax.f32 %v3449, 0.0
      %v3578 = vmax.f32 %v3450, 0.0
      %v3579 = vmax.f32 %v3451, 0.0
      %v3580 = vmax.f32 %v3452, 0.0
      %v3581 = vmax.f32 %v3453, 0.0
      %v3582 = vmax.f32 %v3454, 0.0
      %v3583 = vmax.f32 %v3455, 0.0
      %v3584 = vmax.f32 %v3456, 0.0
      %v3585 = vpack.c.bf16 %v3465, %v3457
      %v3586 = vpack.c.bf16 %v3466, %v3458
      %v3587 = vpack.c.bf16 %v3467, %v3459
      %v3588 = vpack.c.bf16 %v3468, %v3460
      %v3589 = vpack.c.bf16 %v3469, %v3461
      %v3590 = vpack.c.bf16 %v3470, %v3462
      %v3591 = vpack.c.bf16 %v3471, %v3463
      %v3592 = vpack.c.bf16 %v3472, %v3464
      %v3593 = vpack.c.bf16 %v3481, %v3473
      %v3594 = vpack.c.bf16 %v3482, %v3474
      %v3595 = vpack.c.bf16 %v3483, %v3475
      %v3596 = vpack.c.bf16 %v3484, %v3476
      %v3597 = vpack.c.bf16 %v3485, %v3477
      %v3598 = vpack.c.bf16 %v3486, %v3478
      %v3599 = vpack.c.bf16 %v3487, %v3479
      %v3600 = vpack.c.bf16 %v3488, %v3480
      %v3601 = vpack.c.bf16 %v3497, %v3489
      %v3602 = vpack.c.bf16 %v3498, %v3490
      %v3603 = vpack.c.bf16 %v3499, %v3491
      %v3604 = vpack.c.bf16 %v3500, %v3492
      %v3605 = vpack.c.bf16 %v3501, %v3493
      %v3606 = vpack.c.bf16 %v3502, %v3494
      %v3607 = vpack.c.bf16 %v3503, %v3495
      %v3608 = vpack.c.bf16 %v3504, %v3496
      %v3609 = vpack.c.bf16 %v3513, %v3505
      %v3610 = vpack.c.bf16 %v3514, %v3506
      %v3611 = vpack.c.bf16 %v3515, %v3507
      %v3612 = vpack.c.bf16 %v3516, %v3508
      %v3613 = vpack.c.bf16 %v3517, %v3509
      %v3614 = vpack.c.bf16 %v3518, %v3510
      %v3615 = vpack.c.bf16 %v3519, %v3511
      %v3616 = vpack.c.bf16 %v3520, %v3512
      %v3617 = vpack.c.bf16 %v3529, %v3521
      %v3618 = vpack.c.bf16 %v3530, %v3522
      %v3619 = vpack.c.bf16 %v3531, %v3523
      %v3620 = vpack.c.bf16 %v3532, %v3524
      %v3621 = vpack.c.bf16 %v3533, %v3525
      %v3622 = vpack.c.bf16 %v3534, %v3526
      %v3623 = vpack.c.bf16 %v3535, %v3527
      %v3624 = vpack.c.bf16 %v3536, %v3528
      %v3625 = vpack.c.bf16 %v3545, %v3537
      %v3626 = vpack.c.bf16 %v3546, %v3538
      %v3627 = vpack.c.bf16 %v3547, %v3539
      %v3628 = vpack.c.bf16 %v3548, %v3540
      %v3629 = vpack.c.bf16 %v3549, %v3541
      %v3630 = vpack.c.bf16 %v3550, %v3542
      %v3631 = vpack.c.bf16 %v3551, %v3543
      %v3632 = vpack.c.bf16 %v3552, %v3544
      %v3633 = vpack.c.bf16 %v3561, %v3553
      %v3634 = vpack.c.bf16 %v3562, %v3554
      %v3635 = vpack.c.bf16 %v3563, %v3555
      %v3636 = vpack.c.bf16 %v3564, %v3556
      %v3637 = vpack.c.bf16 %v3565, %v3557
      %v3638 = vpack.c.bf16 %v3566, %v3558
      %v3639 = vpack.c.bf16 %v3567, %v3559
      %v3640 = vpack.c.bf16 %v3568, %v3560
      %v3641 = vpack.c.bf16 %v3577, %v3569
      %v3642 = vpack.c.bf16 %v3578, %v3570
      %v3643 = vpack.c.bf16 %v3579, %v3571
      %v3644 = vpack.c.bf16 %v3580, %v3572
      %v3645 = vpack.c.bf16 %v3581, %v3573
      %v3646 = vpack.c.bf16 %v3582, %v3574
      %v3647 = vpack.c.bf16 %v3583, %v3575
      %v3648 = vpack.c.bf16 %v3584, %v3576
      %v3649 = vld [vmem:[#allocation9] sm:$0xff]
      %v3650 = vld [vmem:[#allocation9 + $0x8] sm:$0xff]
      %v3651 = vld [vmem:[#allocation9 + $0x10] sm:$0xff]
      %v3652 = vld [vmem:[#allocation9 + $0x18] sm:$0xff]
      %v3653 = vld [vmem:[#allocation9 + $0x20] sm:$0xff]
      %v3654 = vld [vmem:[#allocation9 + $0x28] sm:$0xff]
      %v3655 = vld [vmem:[#allocation9 + $0x30] sm:$0xff]
      %v3656 = vld [vmem:[#allocation9 + $0x38] sm:$0xff]
      %v3657 = vld [vmem:[#allocation9 + $0x40] sm:$0xff]
      %v3658 = vld [vmem:[#allocation9 + $0x48] sm:$0xff]
      %v3659 = vld [vmem:[#allocation9 + $0x50] sm:$0xff]
      %v3660 = vld [vmem:[#allocation9 + $0x58] sm:$0xff]
      %v3661 = vld [vmem:[#allocation9 + $0x60] sm:$0xff]
      %v3662 = vld [vmem:[#allocation9 + $0x68] sm:$0xff]
      %v3663 = vld [vmem:[#allocation9 + $0x70] sm:$0xff]
      %v3664 = vld [vmem:[#allocation9 + $0x78] sm:$0xff]
      %v3665 = vld [vmem:[#allocation9 + $0x80] sm:$0xff]
      %v3666 = vld [vmem:[#allocation9 + $0x88] sm:$0xff]
      %v3667 = vld [vmem:[#allocation9 + $0x90] sm:$0xff]
      %v3668 = vld [vmem:[#allocation9 + $0x98] sm:$0xff]
      %v3669 = vld [vmem:[#allocation9 + $0xa0] sm:$0xff]
      %v3670 = vld [vmem:[#allocation9 + $0xa8] sm:$0xff]
      %v3671 = vld [vmem:[#allocation9 + $0xb0] sm:$0xff]
      %v3672 = vld [vmem:[#allocation9 + $0xb8] sm:$0xff]
      %v3673 = vld [vmem:[#allocation9 + $0xc0] sm:$0xff]
      %v3674 = vld [vmem:[#allocation9 + $0xc8] sm:$0xff]
      %v3675 = vld [vmem:[#allocation9 + $0xd0] sm:$0xff]
      %v3676 = vld [vmem:[#allocation9 + $0xd8] sm:$0xff]
      %v3677 = vld [vmem:[#allocation9 + $0xe0] sm:$0xff]
      %v3678 = vld [vmem:[#allocation9 + $0xe8] sm:$0xff]
      %v3679 = vld [vmem:[#allocation9 + $0xf0] sm:$0xff]
      %v3680 = vld [vmem:[#allocation9 + $0xf8] sm:$0xff]
      %v3681 = vld [vmem:[#allocation9 + $0x100] sm:$0xff]
      %v3682 = vld [vmem:[#allocation9 + $0x108] sm:$0xff]
      %v3683 = vld [vmem:[#allocation9 + $0x110] sm:$0xff]
      %v3684 = vld [vmem:[#allocation9 + $0x118] sm:$0xff]
      %v3685 = vld [vmem:[#allocation9 + $0x120] sm:$0xff]
      %v3686 = vld [vmem:[#allocation9 + $0x128] sm:$0xff]
      %v3687 = vld [vmem:[#allocation9 + $0x130] sm:$0xff]
      %v3688 = vld [vmem:[#allocation9 + $0x138] sm:$0xff]
      %v3689 = vld [vmem:[#allocation9 + $0x140] sm:$0xff]
      %v3690 = vld [vmem:[#allocation9 + $0x148] sm:$0xff]
      %v3691 = vld [vmem:[#allocation9 + $0x150] sm:$0xff]
      %v3692 = vld [vmem:[#allocation9 + $0x158] sm:$0xff]
      %v3693 = vld [vmem:[#allocation9 + $0x160] sm:$0xff]
      %v3694 = vld [vmem:[#allocation9 + $0x168] sm:$0xff]
      %v3695 = vld [vmem:[#allocation9 + $0x170] sm:$0xff]
      %v3696 = vld [vmem:[#allocation9 + $0x178] sm:$0xff]
      %v3697 = vld [vmem:[#allocation9 + $0x180] sm:$0xff]
      %v3698 = vld [vmem:[#allocation9 + $0x188] sm:$0xff]
      %v3699 = vld [vmem:[#allocation9 + $0x190] sm:$0xff]
      %v3700 = vld [vmem:[#allocation9 + $0x198] sm:$0xff]
      %v3701 = vld [vmem:[#allocation9 + $0x1a0] sm:$0xff]
      %v3702 = vld [vmem:[#allocation9 + $0x1a8] sm:$0xff]
      %v3703 = vld [vmem:[#allocation9 + $0x1b0] sm:$0xff]
      %v3704 = vld [vmem:[#allocation9 + $0x1b8] sm:$0xff]
      %v3705 = vld [vmem:[#allocation9 + $0x1c0] sm:$0xff]
      %v3706 = vld [vmem:[#allocation9 + $0x1c8] sm:$0xff]
      %v3707 = vld [vmem:[#allocation9 + $0x1d0] sm:$0xff]
      %v3708 = vld [vmem:[#allocation9 + $0x1d8] sm:$0xff]
      %v3709 = vld [vmem:[#allocation9 + $0x1e0] sm:$0xff]
      %v3710 = vld [vmem:[#allocation9 + $0x1e8] sm:$0xff]
      %v3711 = vld [vmem:[#allocation9 + $0x1f0] sm:$0xff]
      %v3712 = vld [vmem:[#allocation9 + $0x1f8] sm:$0xff]
      %v3713 = vld [vmem:[#allocation9 + $0x200] sm:$0xff]
      %v3714 = vld [vmem:[#allocation9 + $0x208] sm:$0xff]
      %v3715 = vld [vmem:[#allocation9 + $0x210] sm:$0xff]
      %v3716 = vld [vmem:[#allocation9 + $0x218] sm:$0xff]
      %v3717 = vld [vmem:[#allocation9 + $0x220] sm:$0xff]
      %v3718 = vld [vmem:[#allocation9 + $0x228] sm:$0xff]
      %v3719 = vld [vmem:[#allocation9 + $0x230] sm:$0xff]
      %v3720 = vld [vmem:[#allocation9 + $0x238] sm:$0xff]
      %v3721 = vld [vmem:[#allocation9 + $0x240] sm:$0xff]
      %v3722 = vld [vmem:[#allocation9 + $0x248] sm:$0xff]
      %v3723 = vld [vmem:[#allocation9 + $0x250] sm:$0xff]
      %v3724 = vld [vmem:[#allocation9 + $0x258] sm:$0xff]
      %v3725 = vld [vmem:[#allocation9 + $0x260] sm:$0xff]
      %v3726 = vld [vmem:[#allocation9 + $0x268] sm:$0xff]
      %v3727 = vld [vmem:[#allocation9 + $0x270] sm:$0xff]
      %v3728 = vld [vmem:[#allocation9 + $0x278] sm:$0xff]
      %v3729 = vld [vmem:[#allocation9 + $0x280] sm:$0xff]
      %v3730 = vld [vmem:[#allocation9 + $0x288] sm:$0xff]
      %v3731 = vld [vmem:[#allocation9 + $0x290] sm:$0xff]
      %v3732 = vld [vmem:[#allocation9 + $0x298] sm:$0xff]
      %v3733 = vld [vmem:[#allocation9 + $0x2a0] sm:$0xff]
      %v3734 = vld [vmem:[#allocation9 + $0x2a8] sm:$0xff]
      %v3735 = vld [vmem:[#allocation9 + $0x2b0] sm:$0xff]
      %v3736 = vld [vmem:[#allocation9 + $0x2b8] sm:$0xff]
      %v3737 = vld [vmem:[#allocation9 + $0x2c0] sm:$0xff]
      %v3738 = vld [vmem:[#allocation9 + $0x2c8] sm:$0xff]
      %v3739 = vld [vmem:[#allocation9 + $0x2d0] sm:$0xff]
      %v3740 = vld [vmem:[#allocation9 + $0x2d8] sm:$0xff]
      %v3741 = vld [vmem:[#allocation9 + $0x2e0] sm:$0xff]
      %v3742 = vld [vmem:[#allocation9 + $0x2e8] sm:$0xff]
      %v3743 = vld [vmem:[#allocation9 + $0x2f0] sm:$0xff]
      %v3744 = vld [vmem:[#allocation9 + $0x2f8] sm:$0xff]
      %v3745 = vld [vmem:[#allocation9 + $0x300] sm:$0xff]
      %v3746 = vld [vmem:[#allocation9 + $0x308] sm:$0xff]
      %v3747 = vld [vmem:[#allocation9 + $0x310] sm:$0xff]
      %v3748 = vld [vmem:[#allocation9 + $0x318] sm:$0xff]
      %v3749 = vld [vmem:[#allocation9 + $0x320] sm:$0xff]
      %v3750 = vld [vmem:[#allocation9 + $0x328] sm:$0xff]
      %v3751 = vld [vmem:[#allocation9 + $0x330] sm:$0xff]
      %v3752 = vld [vmem:[#allocation9 + $0x338] sm:$0xff]
      %v3753 = vld [vmem:[#allocation9 + $0x340] sm:$0xff]
      %v3754 = vld [vmem:[#allocation9 + $0x348] sm:$0xff]
      %v3755 = vld [vmem:[#allocation9 + $0x350] sm:$0xff]
      %v3756 = vld [vmem:[#allocation9 + $0x358] sm:$0xff]
      %v3757 = vld [vmem:[#allocation9 + $0x360] sm:$0xff]
      %v3758 = vld [vmem:[#allocation9 + $0x368] sm:$0xff]
      %v3759 = vld [vmem:[#allocation9 + $0x370] sm:$0xff]
      %v3760 = vld [vmem:[#allocation9 + $0x378] sm:$0xff]
      %v3761 = vld [vmem:[#allocation9 + $0x380] sm:$0xff]
      %v3762 = vld [vmem:[#allocation9 + $0x388] sm:$0xff]
      %v3763 = vld [vmem:[#allocation9 + $0x390] sm:$0xff]
      %v3764 = vld [vmem:[#allocation9 + $0x398] sm:$0xff]
      %v3765 = vld [vmem:[#allocation9 + $0x3a0] sm:$0xff]
      %v3766 = vld [vmem:[#allocation9 + $0x3a8] sm:$0xff]
      %v3767 = vld [vmem:[#allocation9 + $0x3b0] sm:$0xff]
      %v3768 = vld [vmem:[#allocation9 + $0x3b8] sm:$0xff]
      %v3769 = vld [vmem:[#allocation9 + $0x3c0] sm:$0xff]
      %v3770 = vld [vmem:[#allocation9 + $0x3c8] sm:$0xff]
      %v3771 = vld [vmem:[#allocation9 + $0x3d0] sm:$0xff]
      %v3772 = vld [vmem:[#allocation9 + $0x3d8] sm:$0xff]
      %v3773 = vld [vmem:[#allocation9 + $0x3e0] sm:$0xff]
      %v3774 = vld [vmem:[#allocation9 + $0x3e8] sm:$0xff]
      %v3775 = vld [vmem:[#allocation9 + $0x3f0] sm:$0xff]
      %v3776 = vld [vmem:[#allocation9 + $0x3f8] sm:$0xff]
      %v3777 = vld [vmem:[#allocation9 + $0x400] sm:$0xff]
      %v3778 = vld [vmem:[#allocation9 + $0x408] sm:$0xff]
      %v3779 = vld [vmem:[#allocation9 + $0x410] sm:$0xff]
      %v3780 = vld [vmem:[#allocation9 + $0x418] sm:$0xff]
      %v3781 = vld [vmem:[#allocation9 + $0x420] sm:$0xff]
      %v3782 = vld [vmem:[#allocation9 + $0x428] sm:$0xff]
      %v3783 = vld [vmem:[#allocation9 + $0x430] sm:$0xff]
      %v3784 = vld [vmem:[#allocation9 + $0x438] sm:$0xff]
      %v3785 = vld [vmem:[#allocation9 + $0x440] sm:$0xff]
      %v3786 = vld [vmem:[#allocation9 + $0x448] sm:$0xff]
      %v3787 = vld [vmem:[#allocation9 + $0x450] sm:$0xff]
      %v3788 = vld [vmem:[#allocation9 + $0x458] sm:$0xff]
      %v3789 = vld [vmem:[#allocation9 + $0x460] sm:$0xff]
      %v3790 = vld [vmem:[#allocation9 + $0x468] sm:$0xff]
      %v3791 = vld [vmem:[#allocation9 + $0x470] sm:$0xff]
      %v3792 = vld [vmem:[#allocation9 + $0x478] sm:$0xff]
      %v3793 = vld [vmem:[#allocation9 + $0x480] sm:$0xff]
      %v3794 = vld [vmem:[#allocation9 + $0x488] sm:$0xff]
      %v3795 = vld [vmem:[#allocation9 + $0x490] sm:$0xff]
      %v3796 = vld [vmem:[#allocation9 + $0x498] sm:$0xff]
      %v3797 = vld [vmem:[#allocation9 + $0x4a0] sm:$0xff]
      %v3798 = vld [vmem:[#allocation9 + $0x4a8] sm:$0xff]
      %v3799 = vld [vmem:[#allocation9 + $0x4b0] sm:$0xff]
      %v3800 = vld [vmem:[#allocation9 + $0x4b8] sm:$0xff]
      %v3801 = vld [vmem:[#allocation9 + $0x4c0] sm:$0xff]
      %v3802 = vld [vmem:[#allocation9 + $0x4c8] sm:$0xff]
      %v3803 = vld [vmem:[#allocation9 + $0x4d0] sm:$0xff]
      %v3804 = vld [vmem:[#allocation9 + $0x4d8] sm:$0xff]
      %v3805 = vld [vmem:[#allocation9 + $0x4e0] sm:$0xff]
      %v3806 = vld [vmem:[#allocation9 + $0x4e8] sm:$0xff]
      %v3807 = vld [vmem:[#allocation9 + $0x4f0] sm:$0xff]
      %v3808 = vld [vmem:[#allocation9 + $0x4f8] sm:$0xff]
      %v3809 = vld [vmem:[#allocation9 + $0x500] sm:$0xff]
      %v3810 = vld [vmem:[#allocation9 + $0x508] sm:$0xff]
      %v3811 = vld [vmem:[#allocation9 + $0x510] sm:$0xff]
      %v3812 = vld [vmem:[#allocation9 + $0x518] sm:$0xff]
      %v3813 = vld [vmem:[#allocation9 + $0x520] sm:$0xff]
      %v3814 = vld [vmem:[#allocation9 + $0x528] sm:$0xff]
      %v3815 = vld [vmem:[#allocation9 + $0x530] sm:$0xff]
      %v3816 = vld [vmem:[#allocation9 + $0x538] sm:$0xff]
      %v3817 = vld [vmem:[#allocation9 + $0x540] sm:$0xff]
      %v3818 = vld [vmem:[#allocation9 + $0x548] sm:$0xff]
      %v3819 = vld [vmem:[#allocation9 + $0x550] sm:$0xff]
      %v3820 = vld [vmem:[#allocation9 + $0x558] sm:$0xff]
      %v3821 = vld [vmem:[#allocation9 + $0x560] sm:$0xff]
      %v3822 = vld [vmem:[#allocation9 + $0x568] sm:$0xff]
      %v3823 = vld [vmem:[#allocation9 + $0x570] sm:$0xff]
      %v3824 = vld [vmem:[#allocation9 + $0x578] sm:$0xff]
      %v3825 = vld [vmem:[#allocation9 + $0x580] sm:$0xff]
      %v3826 = vld [vmem:[#allocation9 + $0x588] sm:$0xff]
      %v3827 = vld [vmem:[#allocation9 + $0x590] sm:$0xff]
      %v3828 = vld [vmem:[#allocation9 + $0x598] sm:$0xff]
      %v3829 = vld [vmem:[#allocation9 + $0x5a0] sm:$0xff]
      %v3830 = vld [vmem:[#allocation9 + $0x5a8] sm:$0xff]
      %v3831 = vld [vmem:[#allocation9 + $0x5b0] sm:$0xff]
      %v3832 = vld [vmem:[#allocation9 + $0x5b8] sm:$0xff]
      %v3833 = vld [vmem:[#allocation9 + $0x5c0] sm:$0xff]
      %v3834 = vld [vmem:[#allocation9 + $0x5c8] sm:$0xff]
      %v3835 = vld [vmem:[#allocation9 + $0x5d0] sm:$0xff]
      %v3836 = vld [vmem:[#allocation9 + $0x5d8] sm:$0xff]
      %v3837 = vld [vmem:[#allocation9 + $0x5e0] sm:$0xff]
      %v3838 = vld [vmem:[#allocation9 + $0x5e8] sm:$0xff]
      %v3839 = vld [vmem:[#allocation9 + $0x5f0] sm:$0xff]
      %v3840 = vld [vmem:[#allocation9 + $0x5f8] sm:$0xff]
      %v3841 = vld [vmem:[#allocation9 + $0x600] sm:$0xff]
      %v3842 = vld [vmem:[#allocation9 + $0x608] sm:$0xff]
      %v3843 = vld [vmem:[#allocation9 + $0x610] sm:$0xff]
      %v3844 = vld [vmem:[#allocation9 + $0x618] sm:$0xff]
      %v3845 = vld [vmem:[#allocation9 + $0x620] sm:$0xff]
      %v3846 = vld [vmem:[#allocation9 + $0x628] sm:$0xff]
      %v3847 = vld [vmem:[#allocation9 + $0x630] sm:$0xff]
      %v3848 = vld [vmem:[#allocation9 + $0x638] sm:$0xff]
      %v3849 = vld [vmem:[#allocation9 + $0x640] sm:$0xff]
      %v3850 = vld [vmem:[#allocation9 + $0x648] sm:$0xff]
      %v3851 = vld [vmem:[#allocation9 + $0x650] sm:$0xff]
      %v3852 = vld [vmem:[#allocation9 + $0x658] sm:$0xff]
      %v3853 = vld [vmem:[#allocation9 + $0x660] sm:$0xff]
      %v3854 = vld [vmem:[#allocation9 + $0x668] sm:$0xff]
      %v3855 = vld [vmem:[#allocation9 + $0x670] sm:$0xff]
      %v3856 = vld [vmem:[#allocation9 + $0x678] sm:$0xff]
      %v3857 = vld [vmem:[#allocation9 + $0x680] sm:$0xff]
      %v3858 = vld [vmem:[#allocation9 + $0x688] sm:$0xff]
      %v3859 = vld [vmem:[#allocation9 + $0x690] sm:$0xff]
      %v3860 = vld [vmem:[#allocation9 + $0x698] sm:$0xff]
      %v3861 = vld [vmem:[#allocation9 + $0x6a0] sm:$0xff]
      %v3862 = vld [vmem:[#allocation9 + $0x6a8] sm:$0xff]
      %v3863 = vld [vmem:[#allocation9 + $0x6b0] sm:$0xff]
      %v3864 = vld [vmem:[#allocation9 + $0x6b8] sm:$0xff]
      %v3865 = vld [vmem:[#allocation9 + $0x6c0] sm:$0xff]
      %v3866 = vld [vmem:[#allocation9 + $0x6c8] sm:$0xff]
      %v3867 = vld [vmem:[#allocation9 + $0x6d0] sm:$0xff]
      %v3868 = vld [vmem:[#allocation9 + $0x6d8] sm:$0xff]
      %v3869 = vld [vmem:[#allocation9 + $0x6e0] sm:$0xff]
      %v3870 = vld [vmem:[#allocation9 + $0x6e8] sm:$0xff]
      %v3871 = vld [vmem:[#allocation9 + $0x6f0] sm:$0xff]
      %v3872 = vld [vmem:[#allocation9 + $0x6f8] sm:$0xff]
      %v3873 = vld [vmem:[#allocation9 + $0x700] sm:$0xff]
      %v3874 = vld [vmem:[#allocation9 + $0x708] sm:$0xff]
      %v3875 = vld [vmem:[#allocation9 + $0x710] sm:$0xff]
      %v3876 = vld [vmem:[#allocation9 + $0x718] sm:$0xff]
      %v3877 = vld [vmem:[#allocation9 + $0x720] sm:$0xff]
      %v3878 = vld [vmem:[#allocation9 + $0x728] sm:$0xff]
      %v3879 = vld [vmem:[#allocation9 + $0x730] sm:$0xff]
      %v3880 = vld [vmem:[#allocation9 + $0x738] sm:$0xff]
      %v3881 = vld [vmem:[#allocation9 + $0x740] sm:$0xff]
      %v3882 = vld [vmem:[#allocation9 + $0x748] sm:$0xff]
      %v3883 = vld [vmem:[#allocation9 + $0x750] sm:$0xff]
      %v3884 = vld [vmem:[#allocation9 + $0x758] sm:$0xff]
      %v3885 = vld [vmem:[#allocation9 + $0x760] sm:$0xff]
      %v3886 = vld [vmem:[#allocation9 + $0x768] sm:$0xff]
      %v3887 = vld [vmem:[#allocation9 + $0x770] sm:$0xff]
      %v3888 = vld [vmem:[#allocation9 + $0x778] sm:$0xff]
      %v3889 = vld [vmem:[#allocation9 + $0x780] sm:$0xff]
      %v3890 = vld [vmem:[#allocation9 + $0x788] sm:$0xff]
      %v3891 = vld [vmem:[#allocation9 + $0x790] sm:$0xff]
      %v3892 = vld [vmem:[#allocation9 + $0x798] sm:$0xff]
      %v3893 = vld [vmem:[#allocation9 + $0x7a0] sm:$0xff]
      %v3894 = vld [vmem:[#allocation9 + $0x7a8] sm:$0xff]
      %v3895 = vld [vmem:[#allocation9 + $0x7b0] sm:$0xff]
      %v3896 = vld [vmem:[#allocation9 + $0x7b8] sm:$0xff]
      %v3897 = vld [vmem:[#allocation9 + $0x7c0] sm:$0xff]
      %v3898 = vld [vmem:[#allocation9 + $0x7c8] sm:$0xff]
      %v3899 = vld [vmem:[#allocation9 + $0x7d0] sm:$0xff]
      %v3900 = vld [vmem:[#allocation9 + $0x7d8] sm:$0xff]
      %v3901 = vld [vmem:[#allocation9 + $0x7e0] sm:$0xff]
      %v3902 = vld [vmem:[#allocation9 + $0x7e8] sm:$0xff]
      %v3903 = vld [vmem:[#allocation9 + $0x7f0] sm:$0xff]
      %v3904 = vld [vmem:[#allocation9 + $0x7f8] sm:$0xff]
      %v3905 = vld [vmem:[#allocation9 + $0x800] sm:$0xff]
      %v3906 = vld [vmem:[#allocation9 + $0x808] sm:$0xff]
      %v3907 = vld [vmem:[#allocation9 + $0x810] sm:$0xff]
      %v3908 = vld [vmem:[#allocation9 + $0x818] sm:$0xff]
      %v3909 = vld [vmem:[#allocation9 + $0x820] sm:$0xff]
      %v3910 = vld [vmem:[#allocation9 + $0x828] sm:$0xff]
      %v3911 = vld [vmem:[#allocation9 + $0x830] sm:$0xff]
      %v3912 = vld [vmem:[#allocation9 + $0x838] sm:$0xff]
      %v3913 = vld [vmem:[#allocation9 + $0x840] sm:$0xff]
      %v3914 = vld [vmem:[#allocation9 + $0x848] sm:$0xff]
      %v3915 = vld [vmem:[#allocation9 + $0x850] sm:$0xff]
      %v3916 = vld [vmem:[#allocation9 + $0x858] sm:$0xff]
      %v3917 = vld [vmem:[#allocation9 + $0x860] sm:$0xff]
      %v3918 = vld [vmem:[#allocation9 + $0x868] sm:$0xff]
      %v3919 = vld [vmem:[#allocation9 + $0x870] sm:$0xff]
      %v3920 = vld [vmem:[#allocation9 + $0x878] sm:$0xff]
      %v3921 = vld [vmem:[#allocation9 + $0x880] sm:$0xff]
      %v3922 = vld [vmem:[#allocation9 + $0x888] sm:$0xff]
      %v3923 = vld [vmem:[#allocation9 + $0x890] sm:$0xff]
      %v3924 = vld [vmem:[#allocation9 + $0x898] sm:$0xff]
      %v3925 = vld [vmem:[#allocation9 + $0x8a0] sm:$0xff]
      %v3926 = vld [vmem:[#allocation9 + $0x8a8] sm:$0xff]
      %v3927 = vld [vmem:[#allocation9 + $0x8b0] sm:$0xff]
      %v3928 = vld [vmem:[#allocation9 + $0x8b8] sm:$0xff]
      %v3929 = vld [vmem:[#allocation9 + $0x8c0] sm:$0xff]
      %v3930 = vld [vmem:[#allocation9 + $0x8c8] sm:$0xff]
      %v3931 = vld [vmem:[#allocation9 + $0x8d0] sm:$0xff]
      %v3932 = vld [vmem:[#allocation9 + $0x8d8] sm:$0xff]
      %v3933 = vld [vmem:[#allocation9 + $0x8e0] sm:$0xff]
      %v3934 = vld [vmem:[#allocation9 + $0x8e8] sm:$0xff]
      %v3935 = vld [vmem:[#allocation9 + $0x8f0] sm:$0xff]
      %v3936 = vld [vmem:[#allocation9 + $0x8f8] sm:$0xff]
      %v3937 = vld [vmem:[#allocation9 + $0x900] sm:$0xff]
      %v3938 = vld [vmem:[#allocation9 + $0x908] sm:$0xff]
      %v3939 = vld [vmem:[#allocation9 + $0x910] sm:$0xff]
      %v3940 = vld [vmem:[#allocation9 + $0x918] sm:$0xff]
      %v3941 = vld [vmem:[#allocation9 + $0x920] sm:$0xff]
      %v3942 = vld [vmem:[#allocation9 + $0x928] sm:$0xff]
      %v3943 = vld [vmem:[#allocation9 + $0x930] sm:$0xff]
      %v3944 = vld [vmem:[#allocation9 + $0x938] sm:$0xff]
      %v3945 = vld [vmem:[#allocation9 + $0x940] sm:$0xff]
      %v3946 = vld [vmem:[#allocation9 + $0x948] sm:$0xff]
      %v3947 = vld [vmem:[#allocation9 + $0x950] sm:$0xff]
      %v3948 = vld [vmem:[#allocation9 + $0x958] sm:$0xff]
      %v3949 = vld [vmem:[#allocation9 + $0x960] sm:$0xff]
      %v3950 = vld [vmem:[#allocation9 + $0x968] sm:$0xff]
      %v3951 = vld [vmem:[#allocation9 + $0x970] sm:$0xff]
      %v3952 = vld [vmem:[#allocation9 + $0x978] sm:$0xff]
      %v3953 = vld [vmem:[#allocation9 + $0x980] sm:$0xff]
      %v3954 = vld [vmem:[#allocation9 + $0x988] sm:$0xff]
      %v3955 = vld [vmem:[#allocation9 + $0x990] sm:$0xff]
      %v3956 = vld [vmem:[#allocation9 + $0x998] sm:$0xff]
      %v3957 = vld [vmem:[#allocation9 + $0x9a0] sm:$0xff]
      %v3958 = vld [vmem:[#allocation9 + $0x9a8] sm:$0xff]
      %v3959 = vld [vmem:[#allocation9 + $0x9b0] sm:$0xff]
      %v3960 = vld [vmem:[#allocation9 + $0x9b8] sm:$0xff]
      %v3961 = vld [vmem:[#allocation9 + $0x9c0] sm:$0xff]
      %v3962 = vld [vmem:[#allocation9 + $0x9c8] sm:$0xff]
      %v3963 = vld [vmem:[#allocation9 + $0x9d0] sm:$0xff]
      %v3964 = vld [vmem:[#allocation9 + $0x9d8] sm:$0xff]
      %v3965 = vld [vmem:[#allocation9 + $0x9e0] sm:$0xff]
      %v3966 = vld [vmem:[#allocation9 + $0x9e8] sm:$0xff]
      %v3967 = vld [vmem:[#allocation9 + $0x9f0] sm:$0xff]
      %v3968 = vld [vmem:[#allocation9 + $0x9f8] sm:$0xff]
      %v3969 = vld [vmem:[#allocation9 + $0xa00] sm:$0xff]
      %v3970 = vld [vmem:[#allocation9 + $0xa08] sm:$0xff]
      %v3971 = vld [vmem:[#allocation9 + $0xa10] sm:$0xff]
      %v3972 = vld [vmem:[#allocation9 + $0xa18] sm:$0xff]
      %v3973 = vld [vmem:[#allocation9 + $0xa20] sm:$0xff]
      %v3974 = vld [vmem:[#allocation9 + $0xa28] sm:$0xff]
      %v3975 = vld [vmem:[#allocation9 + $0xa30] sm:$0xff]
      %v3976 = vld [vmem:[#allocation9 + $0xa38] sm:$0xff]
      %v3977 = vld [vmem:[#allocation9 + $0xa40] sm:$0xff]
      %v3978 = vld [vmem:[#allocation9 + $0xa48] sm:$0xff]
      %v3979 = vld [vmem:[#allocation9 + $0xa50] sm:$0xff]
      %v3980 = vld [vmem:[#allocation9 + $0xa58] sm:$0xff]
      %v3981 = vld [vmem:[#allocation9 + $0xa60] sm:$0xff]
      %v3982 = vld [vmem:[#allocation9 + $0xa68] sm:$0xff]
      %v3983 = vld [vmem:[#allocation9 + $0xa70] sm:$0xff]
      %v3984 = vld [vmem:[#allocation9 + $0xa78] sm:$0xff]
      %v3985 = vld [vmem:[#allocation9 + $0xa80] sm:$0xff]
      %v3986 = vld [vmem:[#allocation9 + $0xa88] sm:$0xff]
      %v3987 = vld [vmem:[#allocation9 + $0xa90] sm:$0xff]
      %v3988 = vld [vmem:[#allocation9 + $0xa98] sm:$0xff]
      %v3989 = vld [vmem:[#allocation9 + $0xaa0] sm:$0xff]
      %v3990 = vld [vmem:[#allocation9 + $0xaa8] sm:$0xff]
      %v3991 = vld [vmem:[#allocation9 + $0xab0] sm:$0xff]
      %v3992 = vld [vmem:[#allocation9 + $0xab8] sm:$0xff]
      %v3993 = vld [vmem:[#allocation9 + $0xac0] sm:$0xff]
      %v3994 = vld [vmem:[#allocation9 + $0xac8] sm:$0xff]
      %v3995 = vld [vmem:[#allocation9 + $0xad0] sm:$0xff]
      %v3996 = vld [vmem:[#allocation9 + $0xad8] sm:$0xff]
      %v3997 = vld [vmem:[#allocation9 + $0xae0] sm:$0xff]
      %v3998 = vld [vmem:[#allocation9 + $0xae8] sm:$0xff]
      %v3999 = vld [vmem:[#allocation9 + $0xaf0] sm:$0xff]
      %v4000 = vld [vmem:[#allocation9 + $0xaf8] sm:$0xff]
      %v4001 = vld [vmem:[#allocation9 + $0xb00] sm:$0xff]
      %v4002 = vld [vmem:[#allocation9 + $0xb08] sm:$0xff]
      %v4003 = vld [vmem:[#allocation9 + $0xb10] sm:$0xff]
      %v4004 = vld [vmem:[#allocation9 + $0xb18] sm:$0xff]
      %v4005 = vld [vmem:[#allocation9 + $0xb20] sm:$0xff]
      %v4006 = vld [vmem:[#allocation9 + $0xb28] sm:$0xff]
      %v4007 = vld [vmem:[#allocation9 + $0xb30] sm:$0xff]
      %v4008 = vld [vmem:[#allocation9 + $0xb38] sm:$0xff]
      %v4009 = vld [vmem:[#allocation9 + $0xb40] sm:$0xff]
      %v4010 = vld [vmem:[#allocation9 + $0xb48] sm:$0xff]
      %v4011 = vld [vmem:[#allocation9 + $0xb50] sm:$0xff]
      %v4012 = vld [vmem:[#allocation9 + $0xb58] sm:$0xff]
      %v4013 = vld [vmem:[#allocation9 + $0xb60] sm:$0xff]
      %v4014 = vld [vmem:[#allocation9 + $0xb68] sm:$0xff]
      %v4015 = vld [vmem:[#allocation9 + $0xb70] sm:$0xff]
      %v4016 = vld [vmem:[#allocation9 + $0xb78] sm:$0xff]
      %v4017 = vld [vmem:[#allocation9 + $0xb80] sm:$0xff]
      %v4018 = vld [vmem:[#allocation9 + $0xb88] sm:$0xff]
      %v4019 = vld [vmem:[#allocation9 + $0xb90] sm:$0xff]
      %v4020 = vld [vmem:[#allocation9 + $0xb98] sm:$0xff]
      %v4021 = vld [vmem:[#allocation9 + $0xba0] sm:$0xff]
      %v4022 = vld [vmem:[#allocation9 + $0xba8] sm:$0xff]
      %v4023 = vld [vmem:[#allocation9 + $0xbb0] sm:$0xff]
      %v4024 = vld [vmem:[#allocation9 + $0xbb8] sm:$0xff]
      %v4025 = vld [vmem:[#allocation9 + $0xbc0] sm:$0xff]
      %v4026 = vld [vmem:[#allocation9 + $0xbc8] sm:$0xff]
      %v4027 = vld [vmem:[#allocation9 + $0xbd0] sm:$0xff]
      %v4028 = vld [vmem:[#allocation9 + $0xbd8] sm:$0xff]
      %v4029 = vld [vmem:[#allocation9 + $0xbe0] sm:$0xff]
      %v4030 = vld [vmem:[#allocation9 + $0xbe8] sm:$0xff]
      %v4031 = vld [vmem:[#allocation9 + $0xbf0] sm:$0xff]
      %v4032 = vld [vmem:[#allocation9 + $0xbf8] sm:$0xff]
      %v4033 = vld [vmem:[#allocation9 + $0xc00] sm:$0xff]
      %v4034 = vld [vmem:[#allocation9 + $0xc08] sm:$0xff]
      %v4035 = vld [vmem:[#allocation9 + $0xc10] sm:$0xff]
      %v4036 = vld [vmem:[#allocation9 + $0xc18] sm:$0xff]
      %v4037 = vld [vmem:[#allocation9 + $0xc20] sm:$0xff]
      %v4038 = vld [vmem:[#allocation9 + $0xc28] sm:$0xff]
      %v4039 = vld [vmem:[#allocation9 + $0xc30] sm:$0xff]
      %v4040 = vld [vmem:[#allocation9 + $0xc38] sm:$0xff]
      %v4041 = vld [vmem:[#allocation9 + $0xc40] sm:$0xff]
      %v4042 = vld [vmem:[#allocation9 + $0xc48] sm:$0xff]
      %v4043 = vld [vmem:[#allocation9 + $0xc50] sm:$0xff]
      %v4044 = vld [vmem:[#allocation9 + $0xc58] sm:$0xff]
      %v4045 = vld [vmem:[#allocation9 + $0xc60] sm:$0xff]
      %v4046 = vld [vmem:[#allocation9 + $0xc68] sm:$0xff]
      %v4047 = vld [vmem:[#allocation9 + $0xc70] sm:$0xff]
      %v4048 = vld [vmem:[#allocation9 + $0xc78] sm:$0xff]
      %v4049 = vld [vmem:[#allocation9 + $0xc80] sm:$0xff]
      %v4050 = vld [vmem:[#allocation9 + $0xc88] sm:$0xff]
      %v4051 = vld [vmem:[#allocation9 + $0xc90] sm:$0xff]
      %v4052 = vld [vmem:[#allocation9 + $0xc98] sm:$0xff]
      %v4053 = vld [vmem:[#allocation9 + $0xca0] sm:$0xff]
      %v4054 = vld [vmem:[#allocation9 + $0xca8] sm:$0xff]
      %v4055 = vld [vmem:[#allocation9 + $0xcb0] sm:$0xff]
      %v4056 = vld [vmem:[#allocation9 + $0xcb8] sm:$0xff]
      %v4057 = vld [vmem:[#allocation9 + $0xcc0] sm:$0xff]
      %v4058 = vld [vmem:[#allocation9 + $0xcc8] sm:$0xff]
      %v4059 = vld [vmem:[#allocation9 + $0xcd0] sm:$0xff]
      %v4060 = vld [vmem:[#allocation9 + $0xcd8] sm:$0xff]
      %v4061 = vld [vmem:[#allocation9 + $0xce0] sm:$0xff]
      %v4062 = vld [vmem:[#allocation9 + $0xce8] sm:$0xff]
      %v4063 = vld [vmem:[#allocation9 + $0xcf0] sm:$0xff]
      %v4064 = vld [vmem:[#allocation9 + $0xcf8] sm:$0xff]
      %v4065 = vld [vmem:[#allocation9 + $0xd00] sm:$0xff]
      %v4066 = vld [vmem:[#allocation9 + $0xd08] sm:$0xff]
      %v4067 = vld [vmem:[#allocation9 + $0xd10] sm:$0xff]
      %v4068 = vld [vmem:[#allocation9 + $0xd18] sm:$0xff]
      %v4069 = vld [vmem:[#allocation9 + $0xd20] sm:$0xff]
      %v4070 = vld [vmem:[#allocation9 + $0xd28] sm:$0xff]
      %v4071 = vld [vmem:[#allocation9 + $0xd30] sm:$0xff]
      %v4072 = vld [vmem:[#allocation9 + $0xd38] sm:$0xff]
      %v4073 = vld [vmem:[#allocation9 + $0xd40] sm:$0xff]
      %v4074 = vld [vmem:[#allocation9 + $0xd48] sm:$0xff]
      %v4075 = vld [vmem:[#allocation9 + $0xd50] sm:$0xff]
      %v4076 = vld [vmem:[#allocation9 + $0xd58] sm:$0xff]
      %v4077 = vld [vmem:[#allocation9 + $0xd60] sm:$0xff]
      %v4078 = vld [vmem:[#allocation9 + $0xd68] sm:$0xff]
      %v4079 = vld [vmem:[#allocation9 + $0xd70] sm:$0xff]
      %v4080 = vld [vmem:[#allocation9 + $0xd78] sm:$0xff]
      %v4081 = vld [vmem:[#allocation9 + $0xd80] sm:$0xff]
      %v4082 = vld [vmem:[#allocation9 + $0xd88] sm:$0xff]
      %v4083 = vld [vmem:[#allocation9 + $0xd90] sm:$0xff]
      %v4084 = vld [vmem:[#allocation9 + $0xd98] sm:$0xff]
      %v4085 = vld [vmem:[#allocation9 + $0xda0] sm:$0xff]
      %v4086 = vld [vmem:[#allocation9 + $0xda8] sm:$0xff]
      %v4087 = vld [vmem:[#allocation9 + $0xdb0] sm:$0xff]
      %v4088 = vld [vmem:[#allocation9 + $0xdb8] sm:$0xff]
      %v4089 = vld [vmem:[#allocation9 + $0xdc0] sm:$0xff]
      %v4090 = vld [vmem:[#allocation9 + $0xdc8] sm:$0xff]
      %v4091 = vld [vmem:[#allocation9 + $0xdd0] sm:$0xff]
      %v4092 = vld [vmem:[#allocation9 + $0xdd8] sm:$0xff]
      %v4093 = vld [vmem:[#allocation9 + $0xde0] sm:$0xff]
      %v4094 = vld [vmem:[#allocation9 + $0xde8] sm:$0xff]
      %v4095 = vld [vmem:[#allocation9 + $0xdf0] sm:$0xff]
      %v4096 = vld [vmem:[#allocation9 + $0xdf8] sm:$0xff]
      %v4097 = vld [vmem:[#allocation9 + $0xe00] sm:$0xff]
      %v4098 = vld [vmem:[#allocation9 + $0xe08] sm:$0xff]
      %v4099 = vld [vmem:[#allocation9 + $0xe10] sm:$0xff]
      %v4100 = vld [vmem:[#allocation9 + $0xe18] sm:$0xff]
      %v4101 = vld [vmem:[#allocation9 + $0xe20] sm:$0xff]
      %v4102 = vld [vmem:[#allocation9 + $0xe28] sm:$0xff]
      %v4103 = vld [vmem:[#allocation9 + $0xe30] sm:$0xff]
      %v4104 = vld [vmem:[#allocation9 + $0xe38] sm:$0xff]
      %v4105 = vld [vmem:[#allocation9 + $0xe40] sm:$0xff]
      %v4106 = vld [vmem:[#allocation9 + $0xe48] sm:$0xff]
      %v4107 = vld [vmem:[#allocation9 + $0xe50] sm:$0xff]
      %v4108 = vld [vmem:[#allocation9 + $0xe58] sm:$0xff]
      %v4109 = vld [vmem:[#allocation9 + $0xe60] sm:$0xff]
      %v4110 = vld [vmem:[#allocation9 + $0xe68] sm:$0xff]
      %v4111 = vld [vmem:[#allocation9 + $0xe70] sm:$0xff]
      %v4112 = vld [vmem:[#allocation9 + $0xe78] sm:$0xff]
      %v4113 = vld [vmem:[#allocation9 + $0xe80] sm:$0xff]
      %v4114 = vld [vmem:[#allocation9 + $0xe88] sm:$0xff]
      %v4115 = vld [vmem:[#allocation9 + $0xe90] sm:$0xff]
      %v4116 = vld [vmem:[#allocation9 + $0xe98] sm:$0xff]
      %v4117 = vld [vmem:[#allocation9 + $0xea0] sm:$0xff]
      %v4118 = vld [vmem:[#allocation9 + $0xea8] sm:$0xff]
      %v4119 = vld [vmem:[#allocation9 + $0xeb0] sm:$0xff]
      %v4120 = vld [vmem:[#allocation9 + $0xeb8] sm:$0xff]
      %v4121 = vld [vmem:[#allocation9 + $0xec0] sm:$0xff]
      %v4122 = vld [vmem:[#allocation9 + $0xec8] sm:$0xff]
      %v4123 = vld [vmem:[#allocation9 + $0xed0] sm:$0xff]
      %v4124 = vld [vmem:[#allocation9 + $0xed8] sm:$0xff]
      %v4125 = vld [vmem:[#allocation9 + $0xee0] sm:$0xff]
      %v4126 = vld [vmem:[#allocation9 + $0xee8] sm:$0xff]
      %v4127 = vld [vmem:[#allocation9 + $0xef0] sm:$0xff]
      %v4128 = vld [vmem:[#allocation9 + $0xef8] sm:$0xff]
      %v4129 = vld [vmem:[#allocation9 + $0xf00] sm:$0xff]
      %v4130 = vld [vmem:[#allocation9 + $0xf08] sm:$0xff]
      %v4131 = vld [vmem:[#allocation9 + $0xf10] sm:$0xff]
      %v4132 = vld [vmem:[#allocation9 + $0xf18] sm:$0xff]
      %v4133 = vld [vmem:[#allocation9 + $0xf20] sm:$0xff]
      %v4134 = vld [vmem:[#allocation9 + $0xf28] sm:$0xff]
      %v4135 = vld [vmem:[#allocation9 + $0xf30] sm:$0xff]
      %v4136 = vld [vmem:[#allocation9 + $0xf38] sm:$0xff]
      %v4137 = vld [vmem:[#allocation9 + $0xf40] sm:$0xff]
      %v4138 = vld [vmem:[#allocation9 + $0xf48] sm:$0xff]
      %v4139 = vld [vmem:[#allocation9 + $0xf50] sm:$0xff]
      %v4140 = vld [vmem:[#allocation9 + $0xf58] sm:$0xff]
      %v4141 = vld [vmem:[#allocation9 + $0xf60] sm:$0xff]
      %v4142 = vld [vmem:[#allocation9 + $0xf68] sm:$0xff]
      %v4143 = vld [vmem:[#allocation9 + $0xf70] sm:$0xff]
      %v4144 = vld [vmem:[#allocation9 + $0xf78] sm:$0xff]
      %v4145 = vld [vmem:[#allocation9 + $0xf80] sm:$0xff]
      %v4146 = vld [vmem:[#allocation9 + $0xf88] sm:$0xff]
      %v4147 = vld [vmem:[#allocation9 + $0xf90] sm:$0xff]
      %v4148 = vld [vmem:[#allocation9 + $0xf98] sm:$0xff]
      %v4149 = vld [vmem:[#allocation9 + $0xfa0] sm:$0xff]
      %v4150 = vld [vmem:[#allocation9 + $0xfa8] sm:$0xff]
      %v4151 = vld [vmem:[#allocation9 + $0xfb0] sm:$0xff]
      %v4152 = vld [vmem:[#allocation9 + $0xfb8] sm:$0xff]
      %v4153 = vld [vmem:[#allocation9 + $0xfc0] sm:$0xff]
      %v4154 = vld [vmem:[#allocation9 + $0xfc8] sm:$0xff]
      %v4155 = vld [vmem:[#allocation9 + $0xfd0] sm:$0xff]
      %v4156 = vld [vmem:[#allocation9 + $0xfd8] sm:$0xff]
      %v4157 = vld [vmem:[#allocation9 + $0xfe0] sm:$0xff]
      %v4158 = vld [vmem:[#allocation9 + $0xfe8] sm:$0xff]
      %v4159 = vld [vmem:[#allocation9 + $0xff0] sm:$0xff]
      %v4160 = vld [vmem:[#allocation9 + $0xff8] sm:$0xff]
      %v4161 = vld [vmem:[#allocation11] sm:$0xff]
      %v4163 = vlaneseq
      %v4164 = vshrl.u32 %v4163, 7
      %v4165 = vsub.s32 0, %v4164
      %v4166 = vrot.slane %v4161, %v4165
      %v4167 = vlaneseq
      %v4168 = vshrl.u32 %v4167, 7
      %v4169 = vsub.s32 1, %v4168
      %v4170 = vrot.slane %v4161, %v4169
      %v4171 = vlaneseq
      %v4172 = vshrl.u32 %v4171, 7
      %v4173 = vsub.s32 2, %v4172
      %v4174 = vrot.slane %v4161, %v4173
      %v4175 = vlaneseq
      %v4176 = vshrl.u32 %v4175, 7
      %v4177 = vsub.s32 3, %v4176
      %v4178 = vrot.slane %v4161, %v4177
      %v4179 = vlaneseq
      %v4180 = vshrl.u32 %v4179, 7
      %v4181 = vsub.s32 4, %v4180
      %v4182 = vrot.slane %v4161, %v4181
      %v4183 = vlaneseq
      %v4184 = vshrl.u32 %v4183, 7
      %v4185 = vsub.s32 5, %v4184
      %v4186 = vrot.slane %v4161, %v4185
      %v4187 = vlaneseq
      %v4188 = vshrl.u32 %v4187, 7
      %v4189 = vsub.s32 6, %v4188
      %v4190 = vrot.slane %v4161, %v4189
      %v4191 = vlaneseq
      %v4192 = vshrl.u32 %v4191, 7
      %v4193 = vsub.s32 7, %v4192
      %v4194 = vrot.slane %v4161, %v4193
      %v4715 = vunpack.c.l.b16 %v3649
      %v4716 = vunpack.c.h.b16 %v3649
      %v4717 = vunpack.c.l.b16 %v3650
      %v4718 = vunpack.c.h.b16 %v3650
      %v4719 = vunpack.c.l.b16 %v3651
      %v4720 = vunpack.c.h.b16 %v3651
      %v4721 = vunpack.c.l.b16 %v3652
      %v4722 = vunpack.c.h.b16 %v3652
      %v4723 = vunpack.c.l.b16 %v3653
      %v4724 = vunpack.c.h.b16 %v3653
      %v4725 = vunpack.c.l.b16 %v3654
      %v4726 = vunpack.c.h.b16 %v3654
      %v4727 = vunpack.c.l.b16 %v3655
      %v4728 = vunpack.c.h.b16 %v3655
      %v4729 = vunpack.c.l.b16 %v3656
      %v4730 = vunpack.c.h.b16 %v3656
      %v4731 = vunpack.c.l.b16 %v3657
      %v4732 = vunpack.c.h.b16 %v3657
      %v4733 = vunpack.c.l.b16 %v3658
      %v4734 = vunpack.c.h.b16 %v3658
      %v4735 = vunpack.c.l.b16 %v3659
      %v4736 = vunpack.c.h.b16 %v3659
      %v4737 = vunpack.c.l.b16 %v3660
      %v4738 = vunpack.c.h.b16 %v3660
      %v4739 = vunpack.c.l.b16 %v3661
      %v4740 = vunpack.c.h.b16 %v3661
      %v4741 = vunpack.c.l.b16 %v3662
      %v4742 = vunpack.c.h.b16 %v3662
      %v4743 = vunpack.c.l.b16 %v3663
      %v4744 = vunpack.c.h.b16 %v3663
      %v4745 = vunpack.c.l.b16 %v3664
      %v4746 = vunpack.c.h.b16 %v3664
      %v4747 = vunpack.c.l.b16 %v3665
      %v4748 = vunpack.c.h.b16 %v3665
      %v4749 = vunpack.c.l.b16 %v3666
      %v4750 = vunpack.c.h.b16 %v3666
      %v4751 = vunpack.c.l.b16 %v3667
      %v4752 = vunpack.c.h.b16 %v3667
      %v4753 = vunpack.c.l.b16 %v3668
      %v4754 = vunpack.c.h.b16 %v3668
      %v4755 = vunpack.c.l.b16 %v3669
      %v4756 = vunpack.c.h.b16 %v3669
      %v4757 = vunpack.c.l.b16 %v3670
      %v4758 = vunpack.c.h.b16 %v3670
      %v4759 = vunpack.c.l.b16 %v3671
      %v4760 = vunpack.c.h.b16 %v3671
      %v4761 = vunpack.c.l.b16 %v3672
      %v4762 = vunpack.c.h.b16 %v3672
      %v4763 = vunpack.c.l.b16 %v3673
      %v4764 = vunpack.c.h.b16 %v3673
      %v4765 = vunpack.c.l.b16 %v3674
      %v4766 = vunpack.c.h.b16 %v3674
      %v4767 = vunpack.c.l.b16 %v3675
      %v4768 = vunpack.c.h.b16 %v3675
      %v4769 = vunpack.c.l.b16 %v3676
      %v4770 = vunpack.c.h.b16 %v3676
      %v4771 = vunpack.c.l.b16 %v3677
      %v4772 = vunpack.c.h.b16 %v3677
      %v4773 = vunpack.c.l.b16 %v3678
      %v4774 = vunpack.c.h.b16 %v3678
      %v4775 = vunpack.c.l.b16 %v3679
      %v4776 = vunpack.c.h.b16 %v3679
      %v4777 = vunpack.c.l.b16 %v3680
      %v4778 = vunpack.c.h.b16 %v3680
      %v4779 = vunpack.c.l.b16 %v3681
      %v4780 = vunpack.c.h.b16 %v3681
      %v4781 = vunpack.c.l.b16 %v3682
      %v4782 = vunpack.c.h.b16 %v3682
      %v4783 = vunpack.c.l.b16 %v3683
      %v4784 = vunpack.c.h.b16 %v3683
      %v4785 = vunpack.c.l.b16 %v3684
      %v4786 = vunpack.c.h.b16 %v3684
      %v4787 = vunpack.c.l.b16 %v3685
      %v4788 = vunpack.c.h.b16 %v3685
      %v4789 = vunpack.c.l.b16 %v3686
      %v4790 = vunpack.c.h.b16 %v3686
      %v4791 = vunpack.c.l.b16 %v3687
      %v4792 = vunpack.c.h.b16 %v3687
      %v4793 = vunpack.c.l.b16 %v3688
      %v4794 = vunpack.c.h.b16 %v3688
      %v4795 = vunpack.c.l.b16 %v3689
      %v4796 = vunpack.c.h.b16 %v3689
      %v4797 = vunpack.c.l.b16 %v3690
      %v4798 = vunpack.c.h.b16 %v3690
      %v4799 = vunpack.c.l.b16 %v3691
      %v4800 = vunpack.c.h.b16 %v3691
      %v4801 = vunpack.c.l.b16 %v3692
      %v4802 = vunpack.c.h.b16 %v3692
      %v4803 = vunpack.c.l.b16 %v3693
      %v4804 = vunpack.c.h.b16 %v3693
      %v4805 = vunpack.c.l.b16 %v3694
      %v4806 = vunpack.c.h.b16 %v3694
      %v4807 = vunpack.c.l.b16 %v3695
      %v4808 = vunpack.c.h.b16 %v3695
      %v4809 = vunpack.c.l.b16 %v3696
      %v4810 = vunpack.c.h.b16 %v3696
      %v4811 = vunpack.c.l.b16 %v3697
      %v4812 = vunpack.c.h.b16 %v3697
      %v4813 = vunpack.c.l.b16 %v3698
      %v4814 = vunpack.c.h.b16 %v3698
      %v4815 = vunpack.c.l.b16 %v3699
      %v4816 = vunpack.c.h.b16 %v3699
      %v4817 = vunpack.c.l.b16 %v3700
      %v4818 = vunpack.c.h.b16 %v3700
      %v4819 = vunpack.c.l.b16 %v3701
      %v4820 = vunpack.c.h.b16 %v3701
      %v4821 = vunpack.c.l.b16 %v3702
      %v4822 = vunpack.c.h.b16 %v3702
      %v4823 = vunpack.c.l.b16 %v3703
      %v4824 = vunpack.c.h.b16 %v3703
      %v4825 = vunpack.c.l.b16 %v3704
      %v4826 = vunpack.c.h.b16 %v3704
      %v4827 = vunpack.c.l.b16 %v3705
      %v4828 = vunpack.c.h.b16 %v3705
      %v4829 = vunpack.c.l.b16 %v3706
      %v4830 = vunpack.c.h.b16 %v3706
      %v4831 = vunpack.c.l.b16 %v3707
      %v4832 = vunpack.c.h.b16 %v3707
      %v4833 = vunpack.c.l.b16 %v3708
      %v4834 = vunpack.c.h.b16 %v3708
      %v4835 = vunpack.c.l.b16 %v3709
      %v4836 = vunpack.c.h.b16 %v3709
      %v4837 = vunpack.c.l.b16 %v3710
      %v4838 = vunpack.c.h.b16 %v3710
      %v4839 = vunpack.c.l.b16 %v3711
      %v4840 = vunpack.c.h.b16 %v3711
      %v4841 = vunpack.c.l.b16 %v3712
      %v4842 = vunpack.c.h.b16 %v3712
      %v4843 = vunpack.c.l.b16 %v3713
      %v4844 = vunpack.c.h.b16 %v3713
      %v4845 = vunpack.c.l.b16 %v3714
      %v4846 = vunpack.c.h.b16 %v3714
      %v4847 = vunpack.c.l.b16 %v3715
      %v4848 = vunpack.c.h.b16 %v3715
      %v4849 = vunpack.c.l.b16 %v3716
      %v4850 = vunpack.c.h.b16 %v3716
      %v4851 = vunpack.c.l.b16 %v3717
      %v4852 = vunpack.c.h.b16 %v3717
      %v4853 = vunpack.c.l.b16 %v3718
      %v4854 = vunpack.c.h.b16 %v3718
      %v4855 = vunpack.c.l.b16 %v3719
      %v4856 = vunpack.c.h.b16 %v3719
      %v4857 = vunpack.c.l.b16 %v3720
      %v4858 = vunpack.c.h.b16 %v3720
      %v4859 = vunpack.c.l.b16 %v3721
      %v4860 = vunpack.c.h.b16 %v3721
      %v4861 = vunpack.c.l.b16 %v3722
      %v4862 = vunpack.c.h.b16 %v3722
      %v4863 = vunpack.c.l.b16 %v3723
      %v4864 = vunpack.c.h.b16 %v3723
      %v4865 = vunpack.c.l.b16 %v3724
      %v4866 = vunpack.c.h.b16 %v3724
      %v4867 = vunpack.c.l.b16 %v3725
      %v4868 = vunpack.c.h.b16 %v3725
      %v4869 = vunpack.c.l.b16 %v3726
      %v4870 = vunpack.c.h.b16 %v3726
      %v4871 = vunpack.c.l.b16 %v3727
      %v4872 = vunpack.c.h.b16 %v3727
      %v4873 = vunpack.c.l.b16 %v3728
      %v4874 = vunpack.c.h.b16 %v3728
      %v4875 = vunpack.c.l.b16 %v3729
      %v4876 = vunpack.c.h.b16 %v3729
      %v4877 = vunpack.c.l.b16 %v3730
      %v4878 = vunpack.c.h.b16 %v3730
      %v4879 = vunpack.c.l.b16 %v3731
      %v4880 = vunpack.c.h.b16 %v3731
      %v4881 = vunpack.c.l.b16 %v3732
      %v4882 = vunpack.c.h.b16 %v3732
      %v4883 = vunpack.c.l.b16 %v3733
      %v4884 = vunpack.c.h.b16 %v3733
      %v4885 = vunpack.c.l.b16 %v3734
      %v4886 = vunpack.c.h.b16 %v3734
      %v4887 = vunpack.c.l.b16 %v3735
      %v4888 = vunpack.c.h.b16 %v3735
      %v4889 = vunpack.c.l.b16 %v3736
      %v4890 = vunpack.c.h.b16 %v3736
      %v4891 = vunpack.c.l.b16 %v3737
      %v4892 = vunpack.c.h.b16 %v3737
      %v4893 = vunpack.c.l.b16 %v3738
      %v4894 = vunpack.c.h.b16 %v3738
      %v4895 = vunpack.c.l.b16 %v3739
      %v4896 = vunpack.c.h.b16 %v3739
      %v4897 = vunpack.c.l.b16 %v3740
      %v4898 = vunpack.c.h.b16 %v3740
      %v4899 = vunpack.c.l.b16 %v3741
      %v4900 = vunpack.c.h.b16 %v3741
      %v4901 = vunpack.c.l.b16 %v3742
      %v4902 = vunpack.c.h.b16 %v3742
      %v4903 = vunpack.c.l.b16 %v3743
      %v4904 = vunpack.c.h.b16 %v3743
      %v4905 = vunpack.c.l.b16 %v3744
      %v4906 = vunpack.c.h.b16 %v3744
      %v4907 = vunpack.c.l.b16 %v3745
      %v4908 = vunpack.c.h.b16 %v3745
      %v4909 = vunpack.c.l.b16 %v3746
      %v4910 = vunpack.c.h.b16 %v3746
      %v4911 = vunpack.c.l.b16 %v3747
      %v4912 = vunpack.c.h.b16 %v3747
      %v4913 = vunpack.c.l.b16 %v3748
      %v4914 = vunpack.c.h.b16 %v3748
      %v4915 = vunpack.c.l.b16 %v3749
      %v4916 = vunpack.c.h.b16 %v3749
      %v4917 = vunpack.c.l.b16 %v3750
      %v4918 = vunpack.c.h.b16 %v3750
      %v4919 = vunpack.c.l.b16 %v3751
      %v4920 = vunpack.c.h.b16 %v3751
      %v4921 = vunpack.c.l.b16 %v3752
      %v4922 = vunpack.c.h.b16 %v3752
      %v4923 = vunpack.c.l.b16 %v3753
      %v4924 = vunpack.c.h.b16 %v3753
      %v4925 = vunpack.c.l.b16 %v3754
      %v4926 = vunpack.c.h.b16 %v3754
      %v4927 = vunpack.c.l.b16 %v3755
      %v4928 = vunpack.c.h.b16 %v3755
      %v4929 = vunpack.c.l.b16 %v3756
      %v4930 = vunpack.c.h.b16 %v3756
      %v4931 = vunpack.c.l.b16 %v3757
      %v4932 = vunpack.c.h.b16 %v3757
      %v4933 = vunpack.c.l.b16 %v3758
      %v4934 = vunpack.c.h.b16 %v3758
      %v4935 = vunpack.c.l.b16 %v3759
      %v4936 = vunpack.c.h.b16 %v3759
      %v4937 = vunpack.c.l.b16 %v3760
      %v4938 = vunpack.c.h.b16 %v3760
      %v4939 = vunpack.c.l.b16 %v3761
      %v4940 = vunpack.c.h.b16 %v3761
      %v4941 = vunpack.c.l.b16 %v3762
      %v4942 = vunpack.c.h.b16 %v3762
      %v4943 = vunpack.c.l.b16 %v3763
      %v4944 = vunpack.c.h.b16 %v3763
      %v4945 = vunpack.c.l.b16 %v3764
      %v4946 = vunpack.c.h.b16 %v3764
      %v4947 = vunpack.c.l.b16 %v3765
      %v4948 = vunpack.c.h.b16 %v3765
      %v4949 = vunpack.c.l.b16 %v3766
      %v4950 = vunpack.c.h.b16 %v3766
      %v4951 = vunpack.c.l.b16 %v3767
      %v4952 = vunpack.c.h.b16 %v3767
      %v4953 = vunpack.c.l.b16 %v3768
      %v4954 = vunpack.c.h.b16 %v3768
      %v4955 = vunpack.c.l.b16 %v3769
      %v4956 = vunpack.c.h.b16 %v3769
      %v4957 = vunpack.c.l.b16 %v3770
      %v4958 = vunpack.c.h.b16 %v3770
      %v4959 = vunpack.c.l.b16 %v3771
      %v4960 = vunpack.c.h.b16 %v3771
      %v4961 = vunpack.c.l.b16 %v3772
      %v4962 = vunpack.c.h.b16 %v3772
      %v4963 = vunpack.c.l.b16 %v3773
      %v4964 = vunpack.c.h.b16 %v3773
      %v4965 = vunpack.c.l.b16 %v3774
      %v4966 = vunpack.c.h.b16 %v3774
      %v4967 = vunpack.c.l.b16 %v3775
      %v4968 = vunpack.c.h.b16 %v3775
      %v4969 = vunpack.c.l.b16 %v3776
      %v4970 = vunpack.c.h.b16 %v3776
      %v4971 = vunpack.c.l.b16 %v3777
      %v4972 = vunpack.c.h.b16 %v3777
      %v4973 = vunpack.c.l.b16 %v3778
      %v4974 = vunpack.c.h.b16 %v3778
      %v4975 = vunpack.c.l.b16 %v3779
      %v4976 = vunpack.c.h.b16 %v3779
      %v4977 = vunpack.c.l.b16 %v3780
      %v4978 = vunpack.c.h.b16 %v3780
      %v4979 = vunpack.c.l.b16 %v3781
      %v4980 = vunpack.c.h.b16 %v3781
      %v4981 = vunpack.c.l.b16 %v3782
      %v4982 = vunpack.c.h.b16 %v3782
      %v4983 = vunpack.c.l.b16 %v3783
      %v4984 = vunpack.c.h.b16 %v3783
      %v4985 = vunpack.c.l.b16 %v3784
      %v4986 = vunpack.c.h.b16 %v3784
      %v4987 = vunpack.c.l.b16 %v3785
      %v4988 = vunpack.c.h.b16 %v3785
      %v4989 = vunpack.c.l.b16 %v3786
      %v4990 = vunpack.c.h.b16 %v3786
      %v4991 = vunpack.c.l.b16 %v3787
      %v4992 = vunpack.c.h.b16 %v3787
      %v4993 = vunpack.c.l.b16 %v3788
      %v4994 = vunpack.c.h.b16 %v3788
      %v4995 = vunpack.c.l.b16 %v3789
      %v4996 = vunpack.c.h.b16 %v3789
      %v4997 = vunpack.c.l.b16 %v3790
      %v4998 = vunpack.c.h.b16 %v3790
      %v4999 = vunpack.c.l.b16 %v3791
      %v5000 = vunpack.c.h.b16 %v3791
      %v5001 = vunpack.c.l.b16 %v3792
      %v5002 = vunpack.c.h.b16 %v3792
      %v5003 = vunpack.c.l.b16 %v3793
      %v5004 = vunpack.c.h.b16 %v3793
      %v5005 = vunpack.c.l.b16 %v3794
      %v5006 = vunpack.c.h.b16 %v3794
      %v5007 = vunpack.c.l.b16 %v3795
      %v5008 = vunpack.c.h.b16 %v3795
      %v5009 = vunpack.c.l.b16 %v3796
      %v5010 = vunpack.c.h.b16 %v3796
      %v5011 = vunpack.c.l.b16 %v3797
      %v5012 = vunpack.c.h.b16 %v3797
      %v5013 = vunpack.c.l.b16 %v3798
      %v5014 = vunpack.c.h.b16 %v3798
      %v5015 = vunpack.c.l.b16 %v3799
      %v5016 = vunpack.c.h.b16 %v3799
      %v5017 = vunpack.c.l.b16 %v3800
      %v5018 = vunpack.c.h.b16 %v3800
      %v5019 = vunpack.c.l.b16 %v3801
      %v5020 = vunpack.c.h.b16 %v3801
      %v5021 = vunpack.c.l.b16 %v3802
      %v5022 = vunpack.c.h.b16 %v3802
      %v5023 = vunpack.c.l.b16 %v3803
      %v5024 = vunpack.c.h.b16 %v3803
      %v5025 = vunpack.c.l.b16 %v3804
      %v5026 = vunpack.c.h.b16 %v3804
      %v5027 = vunpack.c.l.b16 %v3805
      %v5028 = vunpack.c.h.b16 %v3805
      %v5029 = vunpack.c.l.b16 %v3806
      %v5030 = vunpack.c.h.b16 %v3806
      %v5031 = vunpack.c.l.b16 %v3807
      %v5032 = vunpack.c.h.b16 %v3807
      %v5033 = vunpack.c.l.b16 %v3808
      %v5034 = vunpack.c.h.b16 %v3808
      %v5035 = vunpack.c.l.b16 %v3809
      %v5036 = vunpack.c.h.b16 %v3809
      %v5037 = vunpack.c.l.b16 %v3810
      %v5038 = vunpack.c.h.b16 %v3810
      %v5039 = vunpack.c.l.b16 %v3811
      %v5040 = vunpack.c.h.b16 %v3811
      %v5041 = vunpack.c.l.b16 %v3812
      %v5042 = vunpack.c.h.b16 %v3812
      %v5043 = vunpack.c.l.b16 %v3813
      %v5044 = vunpack.c.h.b16 %v3813
      %v5045 = vunpack.c.l.b16 %v3814
      %v5046 = vunpack.c.h.b16 %v3814
      %v5047 = vunpack.c.l.b16 %v3815
      %v5048 = vunpack.c.h.b16 %v3815
      %v5049 = vunpack.c.l.b16 %v3816
      %v5050 = vunpack.c.h.b16 %v3816
      %v5051 = vunpack.c.l.b16 %v3817
      %v5052 = vunpack.c.h.b16 %v3817
      %v5053 = vunpack.c.l.b16 %v3818
      %v5054 = vunpack.c.h.b16 %v3818
      %v5055 = vunpack.c.l.b16 %v3819
      %v5056 = vunpack.c.h.b16 %v3819
      %v5057 = vunpack.c.l.b16 %v3820
      %v5058 = vunpack.c.h.b16 %v3820
      %v5059 = vunpack.c.l.b16 %v3821
      %v5060 = vunpack.c.h.b16 %v3821
      %v5061 = vunpack.c.l.b16 %v3822
      %v5062 = vunpack.c.h.b16 %v3822
      %v5063 = vunpack.c.l.b16 %v3823
      %v5064 = vunpack.c.h.b16 %v3823
      %v5065 = vunpack.c.l.b16 %v3824
      %v5066 = vunpack.c.h.b16 %v3824
      %v5067 = vunpack.c.l.b16 %v3825
      %v5068 = vunpack.c.h.b16 %v3825
      %v5069 = vunpack.c.l.b16 %v3826
      %v5070 = vunpack.c.h.b16 %v3826
      %v5071 = vunpack.c.l.b16 %v3827
      %v5072 = vunpack.c.h.b16 %v3827
      %v5073 = vunpack.c.l.b16 %v3828
      %v5074 = vunpack.c.h.b16 %v3828
      %v5075 = vunpack.c.l.b16 %v3829
      %v5076 = vunpack.c.h.b16 %v3829
      %v5077 = vunpack.c.l.b16 %v3830
      %v5078 = vunpack.c.h.b16 %v3830
      %v5079 = vunpack.c.l.b16 %v3831
      %v5080 = vunpack.c.h.b16 %v3831
      %v5081 = vunpack.c.l.b16 %v3832
      %v5082 = vunpack.c.h.b16 %v3832
      %v5083 = vunpack.c.l.b16 %v3833
      %v5084 = vunpack.c.h.b16 %v3833
      %v5085 = vunpack.c.l.b16 %v3834
      %v5086 = vunpack.c.h.b16 %v3834
      %v5087 = vunpack.c.l.b16 %v3835
      %v5088 = vunpack.c.h.b16 %v3835
      %v5089 = vunpack.c.l.b16 %v3836
      %v5090 = vunpack.c.h.b16 %v3836
      %v5091 = vunpack.c.l.b16 %v3837
      %v5092 = vunpack.c.h.b16 %v3837
      %v5093 = vunpack.c.l.b16 %v3838
      %v5094 = vunpack.c.h.b16 %v3838
      %v5095 = vunpack.c.l.b16 %v3839
      %v5096 = vunpack.c.h.b16 %v3839
      %v5097 = vunpack.c.l.b16 %v3840
      %v5098 = vunpack.c.h.b16 %v3840
      %v5099 = vunpack.c.l.b16 %v3841
      %v5100 = vunpack.c.h.b16 %v3841
      %v5101 = vunpack.c.l.b16 %v3842
      %v5102 = vunpack.c.h.b16 %v3842
      %v5103 = vunpack.c.l.b16 %v3843
      %v5104 = vunpack.c.h.b16 %v3843
      %v5105 = vunpack.c.l.b16 %v3844
      %v5106 = vunpack.c.h.b16 %v3844
      %v5107 = vunpack.c.l.b16 %v3845
      %v5108 = vunpack.c.h.b16 %v3845
      %v5109 = vunpack.c.l.b16 %v3846
      %v5110 = vunpack.c.h.b16 %v3846
      %v5111 = vunpack.c.l.b16 %v3847
      %v5112 = vunpack.c.h.b16 %v3847
      %v5113 = vunpack.c.l.b16 %v3848
      %v5114 = vunpack.c.h.b16 %v3848
      %v5115 = vunpack.c.l.b16 %v3849
      %v5116 = vunpack.c.h.b16 %v3849
      %v5117 = vunpack.c.l.b16 %v3850
      %v5118 = vunpack.c.h.b16 %v3850
      %v5119 = vunpack.c.l.b16 %v3851
      %v5120 = vunpack.c.h.b16 %v3851
      %v5121 = vunpack.c.l.b16 %v3852
      %v5122 = vunpack.c.h.b16 %v3852
      %v5123 = vunpack.c.l.b16 %v3853
      %v5124 = vunpack.c.h.b16 %v3853
      %v5125 = vunpack.c.l.b16 %v3854
      %v5126 = vunpack.c.h.b16 %v3854
      %v5127 = vunpack.c.l.b16 %v3855
      %v5128 = vunpack.c.h.b16 %v3855
      %v5129 = vunpack.c.l.b16 %v3856
      %v5130 = vunpack.c.h.b16 %v3856
      %v5131 = vunpack.c.l.b16 %v3857
      %v5132 = vunpack.c.h.b16 %v3857
      %v5133 = vunpack.c.l.b16 %v3858
      %v5134 = vunpack.c.h.b16 %v3858
      %v5135 = vunpack.c.l.b16 %v3859
      %v5136 = vunpack.c.h.b16 %v3859
      %v5137 = vunpack.c.l.b16 %v3860
      %v5138 = vunpack.c.h.b16 %v3860
      %v5139 = vunpack.c.l.b16 %v3861
      %v5140 = vunpack.c.h.b16 %v3861
      %v5141 = vunpack.c.l.b16 %v3862
      %v5142 = vunpack.c.h.b16 %v3862
      %v5143 = vunpack.c.l.b16 %v3863
      %v5144 = vunpack.c.h.b16 %v3863
      %v5145 = vunpack.c.l.b16 %v3864
      %v5146 = vunpack.c.h.b16 %v3864
      %v5147 = vunpack.c.l.b16 %v3865
      %v5148 = vunpack.c.h.b16 %v3865
      %v5149 = vunpack.c.l.b16 %v3866
      %v5150 = vunpack.c.h.b16 %v3866
      %v5151 = vunpack.c.l.b16 %v3867
      %v5152 = vunpack.c.h.b16 %v3867
      %v5153 = vunpack.c.l.b16 %v3868
      %v5154 = vunpack.c.h.b16 %v3868
      %v5155 = vunpack.c.l.b16 %v3869
      %v5156 = vunpack.c.h.b16 %v3869
      %v5157 = vunpack.c.l.b16 %v3870
      %v5158 = vunpack.c.h.b16 %v3870
      %v5159 = vunpack.c.l.b16 %v3871
      %v5160 = vunpack.c.h.b16 %v3871
      %v5161 = vunpack.c.l.b16 %v3872
      %v5162 = vunpack.c.h.b16 %v3872
      %v5163 = vunpack.c.l.b16 %v3873
      %v5164 = vunpack.c.h.b16 %v3873
      %v5165 = vunpack.c.l.b16 %v3874
      %v5166 = vunpack.c.h.b16 %v3874
      %v5167 = vunpack.c.l.b16 %v3875
      %v5168 = vunpack.c.h.b16 %v3875
      %v5169 = vunpack.c.l.b16 %v3876
      %v5170 = vunpack.c.h.b16 %v3876
      %v5171 = vunpack.c.l.b16 %v3877
      %v5172 = vunpack.c.h.b16 %v3877
      %v5173 = vunpack.c.l.b16 %v3878
      %v5174 = vunpack.c.h.b16 %v3878
      %v5175 = vunpack.c.l.b16 %v3879
      %v5176 = vunpack.c.h.b16 %v3879
      %v5177 = vunpack.c.l.b16 %v3880
      %v5178 = vunpack.c.h.b16 %v3880
      %v5179 = vunpack.c.l.b16 %v3881
      %v5180 = vunpack.c.h.b16 %v3881
      %v5181 = vunpack.c.l.b16 %v3882
      %v5182 = vunpack.c.h.b16 %v3882
      %v5183 = vunpack.c.l.b16 %v3883
      %v5184 = vunpack.c.h.b16 %v3883
      %v5185 = vunpack.c.l.b16 %v3884
      %v5186 = vunpack.c.h.b16 %v3884
      %v5187 = vunpack.c.l.b16 %v3885
      %v5188 = vunpack.c.h.b16 %v3885
      %v5189 = vunpack.c.l.b16 %v3886
      %v5190 = vunpack.c.h.b16 %v3886
      %v5191 = vunpack.c.l.b16 %v3887
      %v5192 = vunpack.c.h.b16 %v3887
      %v5193 = vunpack.c.l.b16 %v3888
      %v5194 = vunpack.c.h.b16 %v3888
      %v5195 = vunpack.c.l.b16 %v3889
      %v5196 = vunpack.c.h.b16 %v3889
      %v5197 = vunpack.c.l.b16 %v3890
      %v5198 = vunpack.c.h.b16 %v3890
      %v5199 = vunpack.c.l.b16 %v3891
      %v5200 = vunpack.c.h.b16 %v3891
      %v5201 = vunpack.c.l.b16 %v3892
      %v5202 = vunpack.c.h.b16 %v3892
      %v5203 = vunpack.c.l.b16 %v3893
      %v5204 = vunpack.c.h.b16 %v3893
      %v5205 = vunpack.c.l.b16 %v3894
      %v5206 = vunpack.c.h.b16 %v3894
      %v5207 = vunpack.c.l.b16 %v3895
      %v5208 = vunpack.c.h.b16 %v3895
      %v5209 = vunpack.c.l.b16 %v3896
      %v5210 = vunpack.c.h.b16 %v3896
      %v5211 = vunpack.c.l.b16 %v3897
      %v5212 = vunpack.c.h.b16 %v3897
      %v5213 = vunpack.c.l.b16 %v3898
      %v5214 = vunpack.c.h.b16 %v3898
      %v5215 = vunpack.c.l.b16 %v3899
      %v5216 = vunpack.c.h.b16 %v3899
      %v5217 = vunpack.c.l.b16 %v3900
      %v5218 = vunpack.c.h.b16 %v3900
      %v5219 = vunpack.c.l.b16 %v3901
      %v5220 = vunpack.c.h.b16 %v3901
      %v5221 = vunpack.c.l.b16 %v3902
      %v5222 = vunpack.c.h.b16 %v3902
      %v5223 = vunpack.c.l.b16 %v3903
      %v5224 = vunpack.c.h.b16 %v3903
      %v5225 = vunpack.c.l.b16 %v3904
      %v5226 = vunpack.c.h.b16 %v3904
      %v5227 = vunpack.c.l.b16 %v3905
      %v5228 = vunpack.c.h.b16 %v3905
      %v5229 = vunpack.c.l.b16 %v3906
      %v5230 = vunpack.c.h.b16 %v3906
      %v5231 = vunpack.c.l.b16 %v3907
      %v5232 = vunpack.c.h.b16 %v3907
      %v5233 = vunpack.c.l.b16 %v3908
      %v5234 = vunpack.c.h.b16 %v3908
      %v5235 = vunpack.c.l.b16 %v3909
      %v5236 = vunpack.c.h.b16 %v3909
      %v5237 = vunpack.c.l.b16 %v3910
      %v5238 = vunpack.c.h.b16 %v3910
      %v5239 = vunpack.c.l.b16 %v3911
      %v5240 = vunpack.c.h.b16 %v3911
      %v5241 = vunpack.c.l.b16 %v3912
      %v5242 = vunpack.c.h.b16 %v3912
      %v5243 = vunpack.c.l.b16 %v3913
      %v5244 = vunpack.c.h.b16 %v3913
      %v5245 = vunpack.c.l.b16 %v3914
      %v5246 = vunpack.c.h.b16 %v3914
      %v5247 = vunpack.c.l.b16 %v3915
      %v5248 = vunpack.c.h.b16 %v3915
      %v5249 = vunpack.c.l.b16 %v3916
      %v5250 = vunpack.c.h.b16 %v3916
      %v5251 = vunpack.c.l.b16 %v3917
      %v5252 = vunpack.c.h.b16 %v3917
      %v5253 = vunpack.c.l.b16 %v3918
      %v5254 = vunpack.c.h.b16 %v3918
      %v5255 = vunpack.c.l.b16 %v3919
      %v5256 = vunpack.c.h.b16 %v3919
      %v5257 = vunpack.c.l.b16 %v3920
      %v5258 = vunpack.c.h.b16 %v3920
      %v5259 = vunpack.c.l.b16 %v3921
      %v5260 = vunpack.c.h.b16 %v3921
      %v5261 = vunpack.c.l.b16 %v3922
      %v5262 = vunpack.c.h.b16 %v3922
      %v5263 = vunpack.c.l.b16 %v3923
      %v5264 = vunpack.c.h.b16 %v3923
      %v5265 = vunpack.c.l.b16 %v3924
      %v5266 = vunpack.c.h.b16 %v3924
      %v5267 = vunpack.c.l.b16 %v3925
      %v5268 = vunpack.c.h.b16 %v3925
      %v5269 = vunpack.c.l.b16 %v3926
      %v5270 = vunpack.c.h.b16 %v3926
      %v5271 = vunpack.c.l.b16 %v3927
      %v5272 = vunpack.c.h.b16 %v3927
      %v5273 = vunpack.c.l.b16 %v3928
      %v5274 = vunpack.c.h.b16 %v3928
      %v5275 = vunpack.c.l.b16 %v3929
      %v5276 = vunpack.c.h.b16 %v3929
      %v5277 = vunpack.c.l.b16 %v3930
      %v5278 = vunpack.c.h.b16 %v3930
      %v5279 = vunpack.c.l.b16 %v3931
      %v5280 = vunpack.c.h.b16 %v3931
      %v5281 = vunpack.c.l.b16 %v3932
      %v5282 = vunpack.c.h.b16 %v3932
      %v5283 = vunpack.c.l.b16 %v3933
      %v5284 = vunpack.c.h.b16 %v3933
      %v5285 = vunpack.c.l.b16 %v3934
      %v5286 = vunpack.c.h.b16 %v3934
      %v5287 = vunpack.c.l.b16 %v3935
      %v5288 = vunpack.c.h.b16 %v3935
      %v5289 = vunpack.c.l.b16 %v3936
      %v5290 = vunpack.c.h.b16 %v3936
      %v5291 = vunpack.c.l.b16 %v3937
      %v5292 = vunpack.c.h.b16 %v3937
      %v5293 = vunpack.c.l.b16 %v3938
      %v5294 = vunpack.c.h.b16 %v3938
      %v5295 = vunpack.c.l.b16 %v3939
      %v5296 = vunpack.c.h.b16 %v3939
      %v5297 = vunpack.c.l.b16 %v3940
      %v5298 = vunpack.c.h.b16 %v3940
      %v5299 = vunpack.c.l.b16 %v3941
      %v5300 = vunpack.c.h.b16 %v3941
      %v5301 = vunpack.c.l.b16 %v3942
      %v5302 = vunpack.c.h.b16 %v3942
      %v5303 = vunpack.c.l.b16 %v3943
      %v5304 = vunpack.c.h.b16 %v3943
      %v5305 = vunpack.c.l.b16 %v3944
      %v5306 = vunpack.c.h.b16 %v3944
      %v5307 = vunpack.c.l.b16 %v3945
      %v5308 = vunpack.c.h.b16 %v3945
      %v5309 = vunpack.c.l.b16 %v3946
      %v5310 = vunpack.c.h.b16 %v3946
      %v5311 = vunpack.c.l.b16 %v3947
      %v5312 = vunpack.c.h.b16 %v3947
      %v5313 = vunpack.c.l.b16 %v3948
      %v5314 = vunpack.c.h.b16 %v3948
      %v5315 = vunpack.c.l.b16 %v3949
      %v5316 = vunpack.c.h.b16 %v3949
      %v5317 = vunpack.c.l.b16 %v3950
      %v5318 = vunpack.c.h.b16 %v3950
      %v5319 = vunpack.c.l.b16 %v3951
      %v5320 = vunpack.c.h.b16 %v3951
      %v5321 = vunpack.c.l.b16 %v3952
      %v5322 = vunpack.c.h.b16 %v3952
      %v5323 = vunpack.c.l.b16 %v3953
      %v5324 = vunpack.c.h.b16 %v3953
      %v5325 = vunpack.c.l.b16 %v3954
      %v5326 = vunpack.c.h.b16 %v3954
      %v5327 = vunpack.c.l.b16 %v3955
      %v5328 = vunpack.c.h.b16 %v3955
      %v5329 = vunpack.c.l.b16 %v3956
      %v5330 = vunpack.c.h.b16 %v3956
      %v5331 = vunpack.c.l.b16 %v3957
      %v5332 = vunpack.c.h.b16 %v3957
      %v5333 = vunpack.c.l.b16 %v3958
      %v5334 = vunpack.c.h.b16 %v3958
      %v5335 = vunpack.c.l.b16 %v3959
      %v5336 = vunpack.c.h.b16 %v3959
      %v5337 = vunpack.c.l.b16 %v3960
      %v5338 = vunpack.c.h.b16 %v3960
      %v5339 = vunpack.c.l.b16 %v3961
      %v5340 = vunpack.c.h.b16 %v3961
      %v5341 = vunpack.c.l.b16 %v3962
      %v5342 = vunpack.c.h.b16 %v3962
      %v5343 = vunpack.c.l.b16 %v3963
      %v5344 = vunpack.c.h.b16 %v3963
      %v5345 = vunpack.c.l.b16 %v3964
      %v5346 = vunpack.c.h.b16 %v3964
      %v5347 = vunpack.c.l.b16 %v3965
      %v5348 = vunpack.c.h.b16 %v3965
      %v5349 = vunpack.c.l.b16 %v3966
      %v5350 = vunpack.c.h.b16 %v3966
      %v5351 = vunpack.c.l.b16 %v3967
      %v5352 = vunpack.c.h.b16 %v3967
      %v5353 = vunpack.c.l.b16 %v3968
      %v5354 = vunpack.c.h.b16 %v3968
      %v5355 = vunpack.c.l.b16 %v3969
      %v5356 = vunpack.c.h.b16 %v3969
      %v5357 = vunpack.c.l.b16 %v3970
      %v5358 = vunpack.c.h.b16 %v3970
      %v5359 = vunpack.c.l.b16 %v3971
      %v5360 = vunpack.c.h.b16 %v3971
      %v5361 = vunpack.c.l.b16 %v3972
      %v5362 = vunpack.c.h.b16 %v3972
      %v5363 = vunpack.c.l.b16 %v3973
      %v5364 = vunpack.c.h.b16 %v3973
      %v5365 = vunpack.c.l.b16 %v3974
      %v5366 = vunpack.c.h.b16 %v3974
      %v5367 = vunpack.c.l.b16 %v3975
      %v5368 = vunpack.c.h.b16 %v3975
      %v5369 = vunpack.c.l.b16 %v3976
      %v5370 = vunpack.c.h.b16 %v3976
      %v5371 = vunpack.c.l.b16 %v3977
      %v5372 = vunpack.c.h.b16 %v3977
      %v5373 = vunpack.c.l.b16 %v3978
      %v5374 = vunpack.c.h.b16 %v3978
      %v5375 = vunpack.c.l.b16 %v3979
      %v5376 = vunpack.c.h.b16 %v3979
      %v5377 = vunpack.c.l.b16 %v3980
      %v5378 = vunpack.c.h.b16 %v3980
      %v5379 = vunpack.c.l.b16 %v3981
      %v5380 = vunpack.c.h.b16 %v3981
      %v5381 = vunpack.c.l.b16 %v3982
      %v5382 = vunpack.c.h.b16 %v3982
      %v5383 = vunpack.c.l.b16 %v3983
      %v5384 = vunpack.c.h.b16 %v3983
      %v5385 = vunpack.c.l.b16 %v3984
      %v5386 = vunpack.c.h.b16 %v3984
      %v5387 = vunpack.c.l.b16 %v3985
      %v5388 = vunpack.c.h.b16 %v3985
      %v5389 = vunpack.c.l.b16 %v3986
      %v5390 = vunpack.c.h.b16 %v3986
      %v5391 = vunpack.c.l.b16 %v3987
      %v5392 = vunpack.c.h.b16 %v3987
      %v5393 = vunpack.c.l.b16 %v3988
      %v5394 = vunpack.c.h.b16 %v3988
      %v5395 = vunpack.c.l.b16 %v3989
      %v5396 = vunpack.c.h.b16 %v3989
      %v5397 = vunpack.c.l.b16 %v3990
      %v5398 = vunpack.c.h.b16 %v3990
      %v5399 = vunpack.c.l.b16 %v3991
      %v5400 = vunpack.c.h.b16 %v3991
      %v5401 = vunpack.c.l.b16 %v3992
      %v5402 = vunpack.c.h.b16 %v3992
      %v5403 = vunpack.c.l.b16 %v3993
      %v5404 = vunpack.c.h.b16 %v3993
      %v5405 = vunpack.c.l.b16 %v3994
      %v5406 = vunpack.c.h.b16 %v3994
      %v5407 = vunpack.c.l.b16 %v3995
      %v5408 = vunpack.c.h.b16 %v3995
      %v5409 = vunpack.c.l.b16 %v3996
      %v5410 = vunpack.c.h.b16 %v3996
      %v5411 = vunpack.c.l.b16 %v3997
      %v5412 = vunpack.c.h.b16 %v3997
      %v5413 = vunpack.c.l.b16 %v3998
      %v5414 = vunpack.c.h.b16 %v3998
      %v5415 = vunpack.c.l.b16 %v3999
      %v5416 = vunpack.c.h.b16 %v3999
      %v5417 = vunpack.c.l.b16 %v4000
      %v5418 = vunpack.c.h.b16 %v4000
      %v5419 = vunpack.c.l.b16 %v4001
      %v5420 = vunpack.c.h.b16 %v4001
      %v5421 = vunpack.c.l.b16 %v4002
      %v5422 = vunpack.c.h.b16 %v4002
      %v5423 = vunpack.c.l.b16 %v4003
      %v5424 = vunpack.c.h.b16 %v4003
      %v5425 = vunpack.c.l.b16 %v4004
      %v5426 = vunpack.c.h.b16 %v4004
      %v5427 = vunpack.c.l.b16 %v4005
      %v5428 = vunpack.c.h.b16 %v4005
      %v5429 = vunpack.c.l.b16 %v4006
      %v5430 = vunpack.c.h.b16 %v4006
      %v5431 = vunpack.c.l.b16 %v4007
      %v5432 = vunpack.c.h.b16 %v4007
      %v5433 = vunpack.c.l.b16 %v4008
      %v5434 = vunpack.c.h.b16 %v4008
      %v5435 = vunpack.c.l.b16 %v4009
      %v5436 = vunpack.c.h.b16 %v4009
      %v5437 = vunpack.c.l.b16 %v4010
      %v5438 = vunpack.c.h.b16 %v4010
      %v5439 = vunpack.c.l.b16 %v4011
      %v5440 = vunpack.c.h.b16 %v4011
      %v5441 = vunpack.c.l.b16 %v4012
      %v5442 = vunpack.c.h.b16 %v4012
      %v5443 = vunpack.c.l.b16 %v4013
      %v5444 = vunpack.c.h.b16 %v4013
      %v5445 = vunpack.c.l.b16 %v4014
      %v5446 = vunpack.c.h.b16 %v4014
      %v5447 = vunpack.c.l.b16 %v4015
      %v5448 = vunpack.c.h.b16 %v4015
      %v5449 = vunpack.c.l.b16 %v4016
      %v5450 = vunpack.c.h.b16 %v4016
      %v5451 = vunpack.c.l.b16 %v4017
      %v5452 = vunpack.c.h.b16 %v4017
      %v5453 = vunpack.c.l.b16 %v4018
      %v5454 = vunpack.c.h.b16 %v4018
      %v5455 = vunpack.c.l.b16 %v4019
      %v5456 = vunpack.c.h.b16 %v4019
      %v5457 = vunpack.c.l.b16 %v4020
      %v5458 = vunpack.c.h.b16 %v4020
      %v5459 = vunpack.c.l.b16 %v4021
      %v5460 = vunpack.c.h.b16 %v4021
      %v5461 = vunpack.c.l.b16 %v4022
      %v5462 = vunpack.c.h.b16 %v4022
      %v5463 = vunpack.c.l.b16 %v4023
      %v5464 = vunpack.c.h.b16 %v4023
      %v5465 = vunpack.c.l.b16 %v4024
      %v5466 = vunpack.c.h.b16 %v4024
      %v5467 = vunpack.c.l.b16 %v4025
      %v5468 = vunpack.c.h.b16 %v4025
      %v5469 = vunpack.c.l.b16 %v4026
      %v5470 = vunpack.c.h.b16 %v4026
      %v5471 = vunpack.c.l.b16 %v4027
      %v5472 = vunpack.c.h.b16 %v4027
      %v5473 = vunpack.c.l.b16 %v4028
      %v5474 = vunpack.c.h.b16 %v4028
      %v5475 = vunpack.c.l.b16 %v4029
      %v5476 = vunpack.c.h.b16 %v4029
      %v5477 = vunpack.c.l.b16 %v4030
      %v5478 = vunpack.c.h.b16 %v4030
      %v5479 = vunpack.c.l.b16 %v4031
      %v5480 = vunpack.c.h.b16 %v4031
      %v5481 = vunpack.c.l.b16 %v4032
      %v5482 = vunpack.c.h.b16 %v4032
      %v5483 = vunpack.c.l.b16 %v4033
      %v5484 = vunpack.c.h.b16 %v4033
      %v5485 = vunpack.c.l.b16 %v4034
      %v5486 = vunpack.c.h.b16 %v4034
      %v5487 = vunpack.c.l.b16 %v4035
      %v5488 = vunpack.c.h.b16 %v4035
      %v5489 = vunpack.c.l.b16 %v4036
      %v5490 = vunpack.c.h.b16 %v4036
      %v5491 = vunpack.c.l.b16 %v4037
      %v5492 = vunpack.c.h.b16 %v4037
      %v5493 = vunpack.c.l.b16 %v4038
      %v5494 = vunpack.c.h.b16 %v4038
      %v5495 = vunpack.c.l.b16 %v4039
      %v5496 = vunpack.c.h.b16 %v4039
      %v5497 = vunpack.c.l.b16 %v4040
      %v5498 = vunpack.c.h.b16 %v4040
      %v5499 = vunpack.c.l.b16 %v4041
      %v5500 = vunpack.c.h.b16 %v4041
      %v5501 = vunpack.c.l.b16 %v4042
      %v5502 = vunpack.c.h.b16 %v4042
      %v5503 = vunpack.c.l.b16 %v4043
      %v5504 = vunpack.c.h.b16 %v4043
      %v5505 = vunpack.c.l.b16 %v4044
      %v5506 = vunpack.c.h.b16 %v4044
      %v5507 = vunpack.c.l.b16 %v4045
      %v5508 = vunpack.c.h.b16 %v4045
      %v5509 = vunpack.c.l.b16 %v4046
      %v5510 = vunpack.c.h.b16 %v4046
      %v5511 = vunpack.c.l.b16 %v4047
      %v5512 = vunpack.c.h.b16 %v4047
      %v5513 = vunpack.c.l.b16 %v4048
      %v5514 = vunpack.c.h.b16 %v4048
      %v5515 = vunpack.c.l.b16 %v4049
      %v5516 = vunpack.c.h.b16 %v4049
      %v5517 = vunpack.c.l.b16 %v4050
      %v5518 = vunpack.c.h.b16 %v4050
      %v5519 = vunpack.c.l.b16 %v4051
      %v5520 = vunpack.c.h.b16 %v4051
      %v5521 = vunpack.c.l.b16 %v4052
      %v5522 = vunpack.c.h.b16 %v4052
      %v5523 = vunpack.c.l.b16 %v4053
      %v5524 = vunpack.c.h.b16 %v4053
      %v5525 = vunpack.c.l.b16 %v4054
      %v5526 = vunpack.c.h.b16 %v4054
      %v5527 = vunpack.c.l.b16 %v4055
      %v5528 = vunpack.c.h.b16 %v4055
      %v5529 = vunpack.c.l.b16 %v4056
      %v5530 = vunpack.c.h.b16 %v4056
      %v5531 = vunpack.c.l.b16 %v4057
      %v5532 = vunpack.c.h.b16 %v4057
      %v5533 = vunpack.c.l.b16 %v4058
      %v5534 = vunpack.c.h.b16 %v4058
      %v5535 = vunpack.c.l.b16 %v4059
      %v5536 = vunpack.c.h.b16 %v4059
      %v5537 = vunpack.c.l.b16 %v4060
      %v5538 = vunpack.c.h.b16 %v4060
      %v5539 = vunpack.c.l.b16 %v4061
      %v5540 = vunpack.c.h.b16 %v4061
      %v5541 = vunpack.c.l.b16 %v4062
      %v5542 = vunpack.c.h.b16 %v4062
      %v5543 = vunpack.c.l.b16 %v4063
      %v5544 = vunpack.c.h.b16 %v4063
      %v5545 = vunpack.c.l.b16 %v4064
      %v5546 = vunpack.c.h.b16 %v4064
      %v5547 = vunpack.c.l.b16 %v4065
      %v5548 = vunpack.c.h.b16 %v4065
      %v5549 = vunpack.c.l.b16 %v4066
      %v5550 = vunpack.c.h.b16 %v4066
      %v5551 = vunpack.c.l.b16 %v4067
      %v5552 = vunpack.c.h.b16 %v4067
      %v5553 = vunpack.c.l.b16 %v4068
      %v5554 = vunpack.c.h.b16 %v4068
      %v5555 = vunpack.c.l.b16 %v4069
      %v5556 = vunpack.c.h.b16 %v4069
      %v5557 = vunpack.c.l.b16 %v4070
      %v5558 = vunpack.c.h.b16 %v4070
      %v5559 = vunpack.c.l.b16 %v4071
      %v5560 = vunpack.c.h.b16 %v4071
      %v5561 = vunpack.c.l.b16 %v4072
      %v5562 = vunpack.c.h.b16 %v4072
      %v5563 = vunpack.c.l.b16 %v4073
      %v5564 = vunpack.c.h.b16 %v4073
      %v5565 = vunpack.c.l.b16 %v4074
      %v5566 = vunpack.c.h.b16 %v4074
      %v5567 = vunpack.c.l.b16 %v4075
      %v5568 = vunpack.c.h.b16 %v4075
      %v5569 = vunpack.c.l.b16 %v4076
      %v5570 = vunpack.c.h.b16 %v4076
      %v5571 = vunpack.c.l.b16 %v4077
      %v5572 = vunpack.c.h.b16 %v4077
      %v5573 = vunpack.c.l.b16 %v4078
      %v5574 = vunpack.c.h.b16 %v4078
      %v5575 = vunpack.c.l.b16 %v4079
      %v5576 = vunpack.c.h.b16 %v4079
      %v5577 = vunpack.c.l.b16 %v4080
      %v5578 = vunpack.c.h.b16 %v4080
      %v5579 = vunpack.c.l.b16 %v4081
      %v5580 = vunpack.c.h.b16 %v4081
      %v5581 = vunpack.c.l.b16 %v4082
      %v5582 = vunpack.c.h.b16 %v4082
      %v5583 = vunpack.c.l.b16 %v4083
      %v5584 = vunpack.c.h.b16 %v4083
      %v5585 = vunpack.c.l.b16 %v4084
      %v5586 = vunpack.c.h.b16 %v4084
      %v5587 = vunpack.c.l.b16 %v4085
      %v5588 = vunpack.c.h.b16 %v4085
      %v5589 = vunpack.c.l.b16 %v4086
      %v5590 = vunpack.c.h.b16 %v4086
      %v5591 = vunpack.c.l.b16 %v4087
      %v5592 = vunpack.c.h.b16 %v4087
      %v5593 = vunpack.c.l.b16 %v4088
      %v5594 = vunpack.c.h.b16 %v4088
      %v5595 = vunpack.c.l.b16 %v4089
      %v5596 = vunpack.c.h.b16 %v4089
      %v5597 = vunpack.c.l.b16 %v4090
      %v5598 = vunpack.c.h.b16 %v4090
      %v5599 = vunpack.c.l.b16 %v4091
      %v5600 = vunpack.c.h.b16 %v4091
      %v5601 = vunpack.c.l.b16 %v4092
      %v5602 = vunpack.c.h.b16 %v4092
      %v5603 = vunpack.c.l.b16 %v4093
      %v5604 = vunpack.c.h.b16 %v4093
      %v5605 = vunpack.c.l.b16 %v4094
      %v5606 = vunpack.c.h.b16 %v4094
      %v5607 = vunpack.c.l.b16 %v4095
      %v5608 = vunpack.c.h.b16 %v4095
      %v5609 = vunpack.c.l.b16 %v4096
      %v5610 = vunpack.c.h.b16 %v4096
      %v5611 = vunpack.c.l.b16 %v4097
      %v5612 = vunpack.c.h.b16 %v4097
      %v5613 = vunpack.c.l.b16 %v4098
      %v5614 = vunpack.c.h.b16 %v4098
      %v5615 = vunpack.c.l.b16 %v4099
      %v5616 = vunpack.c.h.b16 %v4099
      %v5617 = vunpack.c.l.b16 %v4100
      %v5618 = vunpack.c.h.b16 %v4100
      %v5619 = vunpack.c.l.b16 %v4101
      %v5620 = vunpack.c.h.b16 %v4101
      %v5621 = vunpack.c.l.b16 %v4102
      %v5622 = vunpack.c.h.b16 %v4102
      %v5623 = vunpack.c.l.b16 %v4103
      %v5624 = vunpack.c.h.b16 %v4103
      %v5625 = vunpack.c.l.b16 %v4104
      %v5626 = vunpack.c.h.b16 %v4104
      %v5627 = vunpack.c.l.b16 %v4105
      %v5628 = vunpack.c.h.b16 %v4105
      %v5629 = vunpack.c.l.b16 %v4106
      %v5630 = vunpack.c.h.b16 %v4106
      %v5631 = vunpack.c.l.b16 %v4107
      %v5632 = vunpack.c.h.b16 %v4107
      %v5633 = vunpack.c.l.b16 %v4108
      %v5634 = vunpack.c.h.b16 %v4108
      %v5635 = vunpack.c.l.b16 %v4109
      %v5636 = vunpack.c.h.b16 %v4109
      %v5637 = vunpack.c.l.b16 %v4110
      %v5638 = vunpack.c.h.b16 %v4110
      %v5639 = vunpack.c.l.b16 %v4111
      %v5640 = vunpack.c.h.b16 %v4111
      %v5641 = vunpack.c.l.b16 %v4112
      %v5642 = vunpack.c.h.b16 %v4112
      %v5643 = vunpack.c.l.b16 %v4113
      %v5644 = vunpack.c.h.b16 %v4113
      %v5645 = vunpack.c.l.b16 %v4114
      %v5646 = vunpack.c.h.b16 %v4114
      %v5647 = vunpack.c.l.b16 %v4115
      %v5648 = vunpack.c.h.b16 %v4115
      %v5649 = vunpack.c.l.b16 %v4116
      %v5650 = vunpack.c.h.b16 %v4116
      %v5651 = vunpack.c.l.b16 %v4117
      %v5652 = vunpack.c.h.b16 %v4117
      %v5653 = vunpack.c.l.b16 %v4118
      %v5654 = vunpack.c.h.b16 %v4118
      %v5655 = vunpack.c.l.b16 %v4119
      %v5656 = vunpack.c.h.b16 %v4119
      %v5657 = vunpack.c.l.b16 %v4120
      %v5658 = vunpack.c.h.b16 %v4120
      %v5659 = vunpack.c.l.b16 %v4121
      %v5660 = vunpack.c.h.b16 %v4121
      %v5661 = vunpack.c.l.b16 %v4122
      %v5662 = vunpack.c.h.b16 %v4122
      %v5663 = vunpack.c.l.b16 %v4123
      %v5664 = vunpack.c.h.b16 %v4123
      %v5665 = vunpack.c.l.b16 %v4124
      %v5666 = vunpack.c.h.b16 %v4124
      %v5667 = vunpack.c.l.b16 %v4125
      %v5668 = vunpack.c.h.b16 %v4125
      %v5669 = vunpack.c.l.b16 %v4126
      %v5670 = vunpack.c.h.b16 %v4126
      %v5671 = vunpack.c.l.b16 %v4127
      %v5672 = vunpack.c.h.b16 %v4127
      %v5673 = vunpack.c.l.b16 %v4128
      %v5674 = vunpack.c.h.b16 %v4128
      %v5675 = vunpack.c.l.b16 %v4129
      %v5676 = vunpack.c.h.b16 %v4129
      %v5677 = vunpack.c.l.b16 %v4130
      %v5678 = vunpack.c.h.b16 %v4130
      %v5679 = vunpack.c.l.b16 %v4131
      %v5680 = vunpack.c.h.b16 %v4131
      %v5681 = vunpack.c.l.b16 %v4132
      %v5682 = vunpack.c.h.b16 %v4132
      %v5683 = vunpack.c.l.b16 %v4133
      %v5684 = vunpack.c.h.b16 %v4133
      %v5685 = vunpack.c.l.b16 %v4134
      %v5686 = vunpack.c.h.b16 %v4134
      %v5687 = vunpack.c.l.b16 %v4135
      %v5688 = vunpack.c.h.b16 %v4135
      %v5689 = vunpack.c.l.b16 %v4136
      %v5690 = vunpack.c.h.b16 %v4136
      %v5691 = vunpack.c.l.b16 %v4137
      %v5692 = vunpack.c.h.b16 %v4137
      %v5693 = vunpack.c.l.b16 %v4138
      %v5694 = vunpack.c.h.b16 %v4138
      %v5695 = vunpack.c.l.b16 %v4139
      %v5696 = vunpack.c.h.b16 %v4139
      %v5697 = vunpack.c.l.b16 %v4140
      %v5698 = vunpack.c.h.b16 %v4140
      %v5699 = vunpack.c.l.b16 %v4141
      %v5700 = vunpack.c.h.b16 %v4141
      %v5701 = vunpack.c.l.b16 %v4142
      %v5702 = vunpack.c.h.b16 %v4142
      %v5703 = vunpack.c.l.b16 %v4143
      %v5704 = vunpack.c.h.b16 %v4143
      %v5705 = vunpack.c.l.b16 %v4144
      %v5706 = vunpack.c.h.b16 %v4144
      %v5707 = vunpack.c.l.b16 %v4145
      %v5708 = vunpack.c.h.b16 %v4145
      %v5709 = vunpack.c.l.b16 %v4146
      %v5710 = vunpack.c.h.b16 %v4146
      %v5711 = vunpack.c.l.b16 %v4147
      %v5712 = vunpack.c.h.b16 %v4147
      %v5713 = vunpack.c.l.b16 %v4148
      %v5714 = vunpack.c.h.b16 %v4148
      %v5715 = vunpack.c.l.b16 %v4149
      %v5716 = vunpack.c.h.b16 %v4149
      %v5717 = vunpack.c.l.b16 %v4150
      %v5718 = vunpack.c.h.b16 %v4150
      %v5719 = vunpack.c.l.b16 %v4151
      %v5720 = vunpack.c.h.b16 %v4151
      %v5721 = vunpack.c.l.b16 %v4152
      %v5722 = vunpack.c.h.b16 %v4152
      %v5723 = vunpack.c.l.b16 %v4153
      %v5724 = vunpack.c.h.b16 %v4153
      %v5725 = vunpack.c.l.b16 %v4154
      %v5726 = vunpack.c.h.b16 %v4154
      %v5727 = vunpack.c.l.b16 %v4155
      %v5728 = vunpack.c.h.b16 %v4155
      %v5729 = vunpack.c.l.b16 %v4156
      %v5730 = vunpack.c.h.b16 %v4156
      %v5731 = vunpack.c.l.b16 %v4157
      %v5732 = vunpack.c.h.b16 %v4157
      %v5733 = vunpack.c.l.b16 %v4158
      %v5734 = vunpack.c.h.b16 %v4158
      %v5735 = vunpack.c.l.b16 %v4159
      %v5736 = vunpack.c.h.b16 %v4159
      %v5737 = vunpack.c.l.b16 %v4160
      %v5738 = vunpack.c.h.b16 %v4160
      %v5739 = vpack.c.b16 %v4723, %v4715
      %v5740 = vpack.c.b16 %v4724, %v4716
      %v5741 = vpack.c.b16 %v4725, %v4717
      %v5742 = vpack.c.b16 %v4726, %v4718
      %v5743 = vpack.c.b16 %v4727, %v4719
      %v5744 = vpack.c.b16 %v4728, %v4720
      %v5745 = vpack.c.b16 %v4729, %v4721
      %v5746 = vpack.c.b16 %v4730, %v4722
      %v5747 = vpack.c.b16 %v4739, %v4731
      %v5748 = vpack.c.b16 %v4740, %v4732
      %v5749 = vpack.c.b16 %v4741, %v4733
      %v5750 = vpack.c.b16 %v4742, %v4734
      %v5751 = vpack.c.b16 %v4743, %v4735
      %v5752 = vpack.c.b16 %v4744, %v4736
      %v5753 = vpack.c.b16 %v4745, %v4737
      %v5754 = vpack.c.b16 %v4746, %v4738
      %v5755 = vpack.c.b16 %v4755, %v4747
      %v5756 = vpack.c.b16 %v4756, %v4748
      %v5757 = vpack.c.b16 %v4757, %v4749
      %v5758 = vpack.c.b16 %v4758, %v4750
      %v5759 = vpack.c.b16 %v4759, %v4751
      %v5760 = vpack.c.b16 %v4760, %v4752
      %v5761 = vpack.c.b16 %v4761, %v4753
      %v5762 = vpack.c.b16 %v4762, %v4754
      %v5763 = vpack.c.b16 %v4771, %v4763
      %v5764 = vpack.c.b16 %v4772, %v4764
      %v5765 = vpack.c.b16 %v4773, %v4765
      %v5766 = vpack.c.b16 %v4774, %v4766
      %v5767 = vpack.c.b16 %v4775, %v4767
      %v5768 = vpack.c.b16 %v4776, %v4768
      %v5769 = vpack.c.b16 %v4777, %v4769
      %v5770 = vpack.c.b16 %v4778, %v4770
      %v5771 = vpack.c.b16 %v4787, %v4779
      %v5772 = vpack.c.b16 %v4788, %v4780
      %v5773 = vpack.c.b16 %v4789, %v4781
      %v5774 = vpack.c.b16 %v4790, %v4782
      %v5775 = vpack.c.b16 %v4791, %v4783
      %v5776 = vpack.c.b16 %v4792, %v4784
      %v5777 = vpack.c.b16 %v4793, %v4785
      %v5778 = vpack.c.b16 %v4794, %v4786
      %v5779 = vpack.c.b16 %v4803, %v4795
      %v5780 = vpack.c.b16 %v4804, %v4796
      %v5781 = vpack.c.b16 %v4805, %v4797
      %v5782 = vpack.c.b16 %v4806, %v4798
      %v5783 = vpack.c.b16 %v4807, %v4799
      %v5784 = vpack.c.b16 %v4808, %v4800
      %v5785 = vpack.c.b16 %v4809, %v4801
      %v5786 = vpack.c.b16 %v4810, %v4802
      %v5787 = vpack.c.b16 %v4819, %v4811
      %v5788 = vpack.c.b16 %v4820, %v4812
      %v5789 = vpack.c.b16 %v4821, %v4813
      %v5790 = vpack.c.b16 %v4822, %v4814
      %v5791 = vpack.c.b16 %v4823, %v4815
      %v5792 = vpack.c.b16 %v4824, %v4816
      %v5793 = vpack.c.b16 %v4825, %v4817
      %v5794 = vpack.c.b16 %v4826, %v4818
      %v5795 = vpack.c.b16 %v4835, %v4827
      %v5796 = vpack.c.b16 %v4836, %v4828
      %v5797 = vpack.c.b16 %v4837, %v4829
      %v5798 = vpack.c.b16 %v4838, %v4830
      %v5799 = vpack.c.b16 %v4839, %v4831
      %v5800 = vpack.c.b16 %v4840, %v4832
      %v5801 = vpack.c.b16 %v4841, %v4833
      %v5802 = vpack.c.b16 %v4842, %v4834
      %v5803 = vpack.c.b16 %v4851, %v4843
      %v5804 = vpack.c.b16 %v4852, %v4844
      %v5805 = vpack.c.b16 %v4853, %v4845
      %v5806 = vpack.c.b16 %v4854, %v4846
      %v5807 = vpack.c.b16 %v4855, %v4847
      %v5808 = vpack.c.b16 %v4856, %v4848
      %v5809 = vpack.c.b16 %v4857, %v4849
      %v5810 = vpack.c.b16 %v4858, %v4850
      %v5811 = vpack.c.b16 %v4867, %v4859
      %v5812 = vpack.c.b16 %v4868, %v4860
      %v5813 = vpack.c.b16 %v4869, %v4861
      %v5814 = vpack.c.b16 %v4870, %v4862
      %v5815 = vpack.c.b16 %v4871, %v4863
      %v5816 = vpack.c.b16 %v4872, %v4864
      %v5817 = vpack.c.b16 %v4873, %v4865
      %v5818 = vpack.c.b16 %v4874, %v4866
      %v5819 = vpack.c.b16 %v4883, %v4875
      %v5820 = vpack.c.b16 %v4884, %v4876
      %v5821 = vpack.c.b16 %v4885, %v4877
      %v5822 = vpack.c.b16 %v4886, %v4878
      %v5823 = vpack.c.b16 %v4887, %v4879
      %v5824 = vpack.c.b16 %v4888, %v4880
      %v5825 = vpack.c.b16 %v4889, %v4881
      %v5826 = vpack.c.b16 %v4890, %v4882
      %v5827 = vpack.c.b16 %v4899, %v4891
      %v5828 = vpack.c.b16 %v4900, %v4892
      %v5829 = vpack.c.b16 %v4901, %v4893
      %v5830 = vpack.c.b16 %v4902, %v4894
      %v5831 = vpack.c.b16 %v4903, %v4895
      %v5832 = vpack.c.b16 %v4904, %v4896
      %v5833 = vpack.c.b16 %v4905, %v4897
      %v5834 = vpack.c.b16 %v4906, %v4898
      %v5835 = vpack.c.b16 %v4915, %v4907
      %v5836 = vpack.c.b16 %v4916, %v4908
      %v5837 = vpack.c.b16 %v4917, %v4909
      %v5838 = vpack.c.b16 %v4918, %v4910
      %v5839 = vpack.c.b16 %v4919, %v4911
      %v5840 = vpack.c.b16 %v4920, %v4912
      %v5841 = vpack.c.b16 %v4921, %v4913
      %v5842 = vpack.c.b16 %v4922, %v4914
      %v5843 = vpack.c.b16 %v4931, %v4923
      %v5844 = vpack.c.b16 %v4932, %v4924
      %v5845 = vpack.c.b16 %v4933, %v4925
      %v5846 = vpack.c.b16 %v4934, %v4926
      %v5847 = vpack.c.b16 %v4935, %v4927
      %v5848 = vpack.c.b16 %v4936, %v4928
      %v5849 = vpack.c.b16 %v4937, %v4929
      %v5850 = vpack.c.b16 %v4938, %v4930
      %v5851 = vpack.c.b16 %v4947, %v4939
      %v5852 = vpack.c.b16 %v4948, %v4940
      %v5853 = vpack.c.b16 %v4949, %v4941
      %v5854 = vpack.c.b16 %v4950, %v4942
      %v5855 = vpack.c.b16 %v4951, %v4943
      %v5856 = vpack.c.b16 %v4952, %v4944
      %v5857 = vpack.c.b16 %v4953, %v4945
      %v5858 = vpack.c.b16 %v4954, %v4946
      %v5859 = vpack.c.b16 %v4963, %v4955
      %v5860 = vpack.c.b16 %v4964, %v4956
      %v5861 = vpack.c.b16 %v4965, %v4957
      %v5862 = vpack.c.b16 %v4966, %v4958
      %v5863 = vpack.c.b16 %v4967, %v4959
      %v5864 = vpack.c.b16 %v4968, %v4960
      %v5865 = vpack.c.b16 %v4969, %v4961
      %v5866 = vpack.c.b16 %v4970, %v4962
      %v5867 = vpack.c.b16 %v4979, %v4971
      %v5868 = vpack.c.b16 %v4980, %v4972
      %v5869 = vpack.c.b16 %v4981, %v4973
      %v5870 = vpack.c.b16 %v4982, %v4974
      %v5871 = vpack.c.b16 %v4983, %v4975
      %v5872 = vpack.c.b16 %v4984, %v4976
      %v5873 = vpack.c.b16 %v4985, %v4977
      %v5874 = vpack.c.b16 %v4986, %v4978
      %v5875 = vpack.c.b16 %v4995, %v4987
      %v5876 = vpack.c.b16 %v4996, %v4988
      %v5877 = vpack.c.b16 %v4997, %v4989
      %v5878 = vpack.c.b16 %v4998, %v4990
      %v5879 = vpack.c.b16 %v4999, %v4991
      %v5880 = vpack.c.b16 %v5000, %v4992
      %v5881 = vpack.c.b16 %v5001, %v4993
      %v5882 = vpack.c.b16 %v5002, %v4994
      %v5883 = vpack.c.b16 %v5011, %v5003
      %v5884 = vpack.c.b16 %v5012, %v5004
      %v5885 = vpack.c.b16 %v5013, %v5005
      %v5886 = vpack.c.b16 %v5014, %v5006
      %v5887 = vpack.c.b16 %v5015, %v5007
      %v5888 = vpack.c.b16 %v5016, %v5008
      %v5889 = vpack.c.b16 %v5017, %v5009
      %v5890 = vpack.c.b16 %v5018, %v5010
      %v5891 = vpack.c.b16 %v5027, %v5019
      %v5892 = vpack.c.b16 %v5028, %v5020
      %v5893 = vpack.c.b16 %v5029, %v5021
      %v5894 = vpack.c.b16 %v5030, %v5022
      %v5895 = vpack.c.b16 %v5031, %v5023
      %v5896 = vpack.c.b16 %v5032, %v5024
      %v5897 = vpack.c.b16 %v5033, %v5025
      %v5898 = vpack.c.b16 %v5034, %v5026
      %v5899 = vpack.c.b16 %v5043, %v5035
      %v5900 = vpack.c.b16 %v5044, %v5036
      %v5901 = vpack.c.b16 %v5045, %v5037
      %v5902 = vpack.c.b16 %v5046, %v5038
      %v5903 = vpack.c.b16 %v5047, %v5039
      %v5904 = vpack.c.b16 %v5048, %v5040
      %v5905 = vpack.c.b16 %v5049, %v5041
      %v5906 = vpack.c.b16 %v5050, %v5042
      %v5907 = vpack.c.b16 %v5059, %v5051
      %v5908 = vpack.c.b16 %v5060, %v5052
      %v5909 = vpack.c.b16 %v5061, %v5053
      %v5910 = vpack.c.b16 %v5062, %v5054
      %v5911 = vpack.c.b16 %v5063, %v5055
      %v5912 = vpack.c.b16 %v5064, %v5056
      %v5913 = vpack.c.b16 %v5065, %v5057
      %v5914 = vpack.c.b16 %v5066, %v5058
      %v5915 = vpack.c.b16 %v5075, %v5067
      %v5916 = vpack.c.b16 %v5076, %v5068
      %v5917 = vpack.c.b16 %v5077, %v5069
      %v5918 = vpack.c.b16 %v5078, %v5070
      %v5919 = vpack.c.b16 %v5079, %v5071
      %v5920 = vpack.c.b16 %v5080, %v5072
      %v5921 = vpack.c.b16 %v5081, %v5073
      %v5922 = vpack.c.b16 %v5082, %v5074
      %v5923 = vpack.c.b16 %v5091, %v5083
      %v5924 = vpack.c.b16 %v5092, %v5084
      %v5925 = vpack.c.b16 %v5093, %v5085
      %v5926 = vpack.c.b16 %v5094, %v5086
      %v5927 = vpack.c.b16 %v5095, %v5087
      %v5928 = vpack.c.b16 %v5096, %v5088
      %v5929 = vpack.c.b16 %v5097, %v5089
      %v5930 = vpack.c.b16 %v5098, %v5090
      %v5931 = vpack.c.b16 %v5107, %v5099
      %v5932 = vpack.c.b16 %v5108, %v5100
      %v5933 = vpack.c.b16 %v5109, %v5101
      %v5934 = vpack.c.b16 %v5110, %v5102
      %v5935 = vpack.c.b16 %v5111, %v5103
      %v5936 = vpack.c.b16 %v5112, %v5104
      %v5937 = vpack.c.b16 %v5113, %v5105
      %v5938 = vpack.c.b16 %v5114, %v5106
      %v5939 = vpack.c.b16 %v5123, %v5115
      %v5940 = vpack.c.b16 %v5124, %v5116
      %v5941 = vpack.c.b16 %v5125, %v5117
      %v5942 = vpack.c.b16 %v5126, %v5118
      %v5943 = vpack.c.b16 %v5127, %v5119
      %v5944 = vpack.c.b16 %v5128, %v5120
      %v5945 = vpack.c.b16 %v5129, %v5121
      %v5946 = vpack.c.b16 %v5130, %v5122
      %v5947 = vpack.c.b16 %v5139, %v5131
      %v5948 = vpack.c.b16 %v5140, %v5132
      %v5949 = vpack.c.b16 %v5141, %v5133
      %v5950 = vpack.c.b16 %v5142, %v5134
      %v5951 = vpack.c.b16 %v5143, %v5135
      %v5952 = vpack.c.b16 %v5144, %v5136
      %v5953 = vpack.c.b16 %v5145, %v5137
      %v5954 = vpack.c.b16 %v5146, %v5138
      %v5955 = vpack.c.b16 %v5155, %v5147
      %v5956 = vpack.c.b16 %v5156, %v5148
      %v5957 = vpack.c.b16 %v5157, %v5149
      %v5958 = vpack.c.b16 %v5158, %v5150
      %v5959 = vpack.c.b16 %v5159, %v5151
      %v5960 = vpack.c.b16 %v5160, %v5152
      %v5961 = vpack.c.b16 %v5161, %v5153
      %v5962 = vpack.c.b16 %v5162, %v5154
      %v5963 = vpack.c.b16 %v5171, %v5163
      %v5964 = vpack.c.b16 %v5172, %v5164
      %v5965 = vpack.c.b16 %v5173, %v5165
      %v5966 = vpack.c.b16 %v5174, %v5166
      %v5967 = vpack.c.b16 %v5175, %v5167
      %v5968 = vpack.c.b16 %v5176, %v5168
      %v5969 = vpack.c.b16 %v5177, %v5169
      %v5970 = vpack.c.b16 %v5178, %v5170
      %v5971 = vpack.c.b16 %v5187, %v5179
      %v5972 = vpack.c.b16 %v5188, %v5180
      %v5973 = vpack.c.b16 %v5189, %v5181
      %v5974 = vpack.c.b16 %v5190, %v5182
      %v5975 = vpack.c.b16 %v5191, %v5183
      %v5976 = vpack.c.b16 %v5192, %v5184
      %v5977 = vpack.c.b16 %v5193, %v5185
      %v5978 = vpack.c.b16 %v5194, %v5186
      %v5979 = vpack.c.b16 %v5203, %v5195
      %v5980 = vpack.c.b16 %v5204, %v5196
      %v5981 = vpack.c.b16 %v5205, %v5197
      %v5982 = vpack.c.b16 %v5206, %v5198
      %v5983 = vpack.c.b16 %v5207, %v5199
      %v5984 = vpack.c.b16 %v5208, %v5200
      %v5985 = vpack.c.b16 %v5209, %v5201
      %v5986 = vpack.c.b16 %v5210, %v5202
      %v5987 = vpack.c.b16 %v5219, %v5211
      %v5988 = vpack.c.b16 %v5220, %v5212
      %v5989 = vpack.c.b16 %v5221, %v5213
      %v5990 = vpack.c.b16 %v5222, %v5214
      %v5991 = vpack.c.b16 %v5223, %v5215
      %v5992 = vpack.c.b16 %v5224, %v5216
      %v5993 = vpack.c.b16 %v5225, %v5217
      %v5994 = vpack.c.b16 %v5226, %v5218
      %v5995 = vpack.c.b16 %v5235, %v5227
      %v5996 = vpack.c.b16 %v5236, %v5228
      %v5997 = vpack.c.b16 %v5237, %v5229
      %v5998 = vpack.c.b16 %v5238, %v5230
      %v5999 = vpack.c.b16 %v5239, %v5231
      %v6000 = vpack.c.b16 %v5240, %v5232
      %v6001 = vpack.c.b16 %v5241, %v5233
      %v6002 = vpack.c.b16 %v5242, %v5234
      %v6003 = vpack.c.b16 %v5251, %v5243
      %v6004 = vpack.c.b16 %v5252, %v5244
      %v6005 = vpack.c.b16 %v5253, %v5245
      %v6006 = vpack.c.b16 %v5254, %v5246
      %v6007 = vpack.c.b16 %v5255, %v5247
      %v6008 = vpack.c.b16 %v5256, %v5248
      %v6009 = vpack.c.b16 %v5257, %v5249
      %v6010 = vpack.c.b16 %v5258, %v5250
      %v6011 = vpack.c.b16 %v5267, %v5259
      %v6012 = vpack.c.b16 %v5268, %v5260
      %v6013 = vpack.c.b16 %v5269, %v5261
      %v6014 = vpack.c.b16 %v5270, %v5262
      %v6015 = vpack.c.b16 %v5271, %v5263
      %v6016 = vpack.c.b16 %v5272, %v5264
      %v6017 = vpack.c.b16 %v5273, %v5265
      %v6018 = vpack.c.b16 %v5274, %v5266
      %v6019 = vpack.c.b16 %v5283, %v5275
      %v6020 = vpack.c.b16 %v5284, %v5276
      %v6021 = vpack.c.b16 %v5285, %v5277
      %v6022 = vpack.c.b16 %v5286, %v5278
      %v6023 = vpack.c.b16 %v5287, %v5279
      %v6024 = vpack.c.b16 %v5288, %v5280
      %v6025 = vpack.c.b16 %v5289, %v5281
      %v6026 = vpack.c.b16 %v5290, %v5282
      %v6027 = vpack.c.b16 %v5299, %v5291
      %v6028 = vpack.c.b16 %v5300, %v5292
      %v6029 = vpack.c.b16 %v5301, %v5293
      %v6030 = vpack.c.b16 %v5302, %v5294
      %v6031 = vpack.c.b16 %v5303, %v5295
      %v6032 = vpack.c.b16 %v5304, %v5296
      %v6033 = vpack.c.b16 %v5305, %v5297
      %v6034 = vpack.c.b16 %v5306, %v5298
      %v6035 = vpack.c.b16 %v5315, %v5307
      %v6036 = vpack.c.b16 %v5316, %v5308
      %v6037 = vpack.c.b16 %v5317, %v5309
      %v6038 = vpack.c.b16 %v5318, %v5310
      %v6039 = vpack.c.b16 %v5319, %v5311
      %v6040 = vpack.c.b16 %v5320, %v5312
      %v6041 = vpack.c.b16 %v5321, %v5313
      %v6042 = vpack.c.b16 %v5322, %v5314
      %v6043 = vpack.c.b16 %v5331, %v5323
      %v6044 = vpack.c.b16 %v5332, %v5324
      %v6045 = vpack.c.b16 %v5333, %v5325
      %v6046 = vpack.c.b16 %v5334, %v5326
      %v6047 = vpack.c.b16 %v5335, %v5327
      %v6048 = vpack.c.b16 %v5336, %v5328
      %v6049 = vpack.c.b16 %v5337, %v5329
      %v6050 = vpack.c.b16 %v5338, %v5330
      %v6051 = vpack.c.b16 %v5347, %v5339
      %v6052 = vpack.c.b16 %v5348, %v5340
      %v6053 = vpack.c.b16 %v5349, %v5341
      %v6054 = vpack.c.b16 %v5350, %v5342
      %v6055 = vpack.c.b16 %v5351, %v5343
      %v6056 = vpack.c.b16 %v5352, %v5344
      %v6057 = vpack.c.b16 %v5353, %v5345
      %v6058 = vpack.c.b16 %v5354, %v5346
      %v6059 = vpack.c.b16 %v5363, %v5355
      %v6060 = vpack.c.b16 %v5364, %v5356
      %v6061 = vpack.c.b16 %v5365, %v5357
      %v6062 = vpack.c.b16 %v5366, %v5358
      %v6063 = vpack.c.b16 %v5367, %v5359
      %v6064 = vpack.c.b16 %v5368, %v5360
      %v6065 = vpack.c.b16 %v5369, %v5361
      %v6066 = vpack.c.b16 %v5370, %v5362
      %v6067 = vpack.c.b16 %v5379, %v5371
      %v6068 = vpack.c.b16 %v5380, %v5372
      %v6069 = vpack.c.b16 %v5381, %v5373
      %v6070 = vpack.c.b16 %v5382, %v5374
      %v6071 = vpack.c.b16 %v5383, %v5375
      %v6072 = vpack.c.b16 %v5384, %v5376
      %v6073 = vpack.c.b16 %v5385, %v5377
      %v6074 = vpack.c.b16 %v5386, %v5378
      %v6075 = vpack.c.b16 %v5395, %v5387
      %v6076 = vpack.c.b16 %v5396, %v5388
      %v6077 = vpack.c.b16 %v5397, %v5389
      %v6078 = vpack.c.b16 %v5398, %v5390
      %v6079 = vpack.c.b16 %v5399, %v5391
      %v6080 = vpack.c.b16 %v5400, %v5392
      %v6081 = vpack.c.b16 %v5401, %v5393
      %v6082 = vpack.c.b16 %v5402, %v5394
      %v6083 = vpack.c.b16 %v5411, %v5403
      %v6084 = vpack.c.b16 %v5412, %v5404
      %v6085 = vpack.c.b16 %v5413, %v5405
      %v6086 = vpack.c.b16 %v5414, %v5406
      %v6087 = vpack.c.b16 %v5415, %v5407
      %v6088 = vpack.c.b16 %v5416, %v5408
      %v6089 = vpack.c.b16 %v5417, %v5409
      %v6090 = vpack.c.b16 %v5418, %v5410
      %v6091 = vpack.c.b16 %v5427, %v5419
      %v6092 = vpack.c.b16 %v5428, %v5420
      %v6093 = vpack.c.b16 %v5429, %v5421
      %v6094 = vpack.c.b16 %v5430, %v5422
      %v6095 = vpack.c.b16 %v5431, %v5423
      %v6096 = vpack.c.b16 %v5432, %v5424
      %v6097 = vpack.c.b16 %v5433, %v5425
      %v6098 = vpack.c.b16 %v5434, %v5426
      %v6099 = vpack.c.b16 %v5443, %v5435
      %v6100 = vpack.c.b16 %v5444, %v5436
      %v6101 = vpack.c.b16 %v5445, %v5437
      %v6102 = vpack.c.b16 %v5446, %v5438
      %v6103 = vpack.c.b16 %v5447, %v5439
      %v6104 = vpack.c.b16 %v5448, %v5440
      %v6105 = vpack.c.b16 %v5449, %v5441
      %v6106 = vpack.c.b16 %v5450, %v5442
      %v6107 = vpack.c.b16 %v5459, %v5451
      %v6108 = vpack.c.b16 %v5460, %v5452
      %v6109 = vpack.c.b16 %v5461, %v5453
      %v6110 = vpack.c.b16 %v5462, %v5454
      %v6111 = vpack.c.b16 %v5463, %v5455
      %v6112 = vpack.c.b16 %v5464, %v5456
      %v6113 = vpack.c.b16 %v5465, %v5457
      %v6114 = vpack.c.b16 %v5466, %v5458
      %v6115 = vpack.c.b16 %v5475, %v5467
      %v6116 = vpack.c.b16 %v5476, %v5468
      %v6117 = vpack.c.b16 %v5477, %v5469
      %v6118 = vpack.c.b16 %v5478, %v5470
      %v6119 = vpack.c.b16 %v5479, %v5471
      %v6120 = vpack.c.b16 %v5480, %v5472
      %v6121 = vpack.c.b16 %v5481, %v5473
      %v6122 = vpack.c.b16 %v5482, %v5474
      %v6123 = vpack.c.b16 %v5491, %v5483
      %v6124 = vpack.c.b16 %v5492, %v5484
      %v6125 = vpack.c.b16 %v5493, %v5485
      %v6126 = vpack.c.b16 %v5494, %v5486
      %v6127 = vpack.c.b16 %v5495, %v5487
      %v6128 = vpack.c.b16 %v5496, %v5488
      %v6129 = vpack.c.b16 %v5497, %v5489
      %v6130 = vpack.c.b16 %v5498, %v5490
      %v6131 = vpack.c.b16 %v5507, %v5499
      %v6132 = vpack.c.b16 %v5508, %v5500
      %v6133 = vpack.c.b16 %v5509, %v5501
      %v6134 = vpack.c.b16 %v5510, %v5502
      %v6135 = vpack.c.b16 %v5511, %v5503
      %v6136 = vpack.c.b16 %v5512, %v5504
      %v6137 = vpack.c.b16 %v5513, %v5505
      %v6138 = vpack.c.b16 %v5514, %v5506
      %v6139 = vpack.c.b16 %v5523, %v5515
      %v6140 = vpack.c.b16 %v5524, %v5516
      %v6141 = vpack.c.b16 %v5525, %v5517
      %v6142 = vpack.c.b16 %v5526, %v5518
      %v6143 = vpack.c.b16 %v5527, %v5519
      %v6144 = vpack.c.b16 %v5528, %v5520
      %v6145 = vpack.c.b16 %v5529, %v5521
      %v6146 = vpack.c.b16 %v5530, %v5522
      %v6147 = vpack.c.b16 %v5539, %v5531
      %v6148 = vpack.c.b16 %v5540, %v5532
      %v6149 = vpack.c.b16 %v5541, %v5533
      %v6150 = vpack.c.b16 %v5542, %v5534
      %v6151 = vpack.c.b16 %v5543, %v5535
      %v6152 = vpack.c.b16 %v5544, %v5536
      %v6153 = vpack.c.b16 %v5545, %v5537
      %v6154 = vpack.c.b16 %v5546, %v5538
      %v6155 = vpack.c.b16 %v5555, %v5547
      %v6156 = vpack.c.b16 %v5556, %v5548
      %v6157 = vpack.c.b16 %v5557, %v5549
      %v6158 = vpack.c.b16 %v5558, %v5550
      %v6159 = vpack.c.b16 %v5559, %v5551
      %v6160 = vpack.c.b16 %v5560, %v5552
      %v6161 = vpack.c.b16 %v5561, %v5553
      %v6162 = vpack.c.b16 %v5562, %v5554
      %v6163 = vpack.c.b16 %v5571, %v5563
      %v6164 = vpack.c.b16 %v5572, %v5564
      %v6165 = vpack.c.b16 %v5573, %v5565
      %v6166 = vpack.c.b16 %v5574, %v5566
      %v6167 = vpack.c.b16 %v5575, %v5567
      %v6168 = vpack.c.b16 %v5576, %v5568
      %v6169 = vpack.c.b16 %v5577, %v5569
      %v6170 = vpack.c.b16 %v5578, %v5570
      %v6171 = vpack.c.b16 %v5587, %v5579
      %v6172 = vpack.c.b16 %v5588, %v5580
      %v6173 = vpack.c.b16 %v5589, %v5581
      %v6174 = vpack.c.b16 %v5590, %v5582
      %v6175 = vpack.c.b16 %v5591, %v5583
      %v6176 = vpack.c.b16 %v5592, %v5584
      %v6177 = vpack.c.b16 %v5593, %v5585
      %v6178 = vpack.c.b16 %v5594, %v5586
      %v6179 = vpack.c.b16 %v5603, %v5595
      %v6180 = vpack.c.b16 %v5604, %v5596
      %v6181 = vpack.c.b16 %v5605, %v5597
      %v6182 = vpack.c.b16 %v5606, %v5598
      %v6183 = vpack.c.b16 %v5607, %v5599
      %v6184 = vpack.c.b16 %v5608, %v5600
      %v6185 = vpack.c.b16 %v5609, %v5601
      %v6186 = vpack.c.b16 %v5610, %v5602
      %v6187 = vpack.c.b16 %v5619, %v5611
      %v6188 = vpack.c.b16 %v5620, %v5612
      %v6189 = vpack.c.b16 %v5621, %v5613
      %v6190 = vpack.c.b16 %v5622, %v5614
      %v6191 = vpack.c.b16 %v5623, %v5615
      %v6192 = vpack.c.b16 %v5624, %v5616
      %v6193 = vpack.c.b16 %v5625, %v5617
      %v6194 = vpack.c.b16 %v5626, %v5618
      %v6195 = vpack.c.b16 %v5635, %v5627
      %v6196 = vpack.c.b16 %v5636, %v5628
      %v6197 = vpack.c.b16 %v5637, %v5629
      %v6198 = vpack.c.b16 %v5638, %v5630
      %v6199 = vpack.c.b16 %v5639, %v5631
      %v6200 = vpack.c.b16 %v5640, %v5632
      %v6201 = vpack.c.b16 %v5641, %v5633
      %v6202 = vpack.c.b16 %v5642, %v5634
      %v6203 = vpack.c.b16 %v5651, %v5643
      %v6204 = vpack.c.b16 %v5652, %v5644
      %v6205 = vpack.c.b16 %v5653, %v5645
      %v6206 = vpack.c.b16 %v5654, %v5646
      %v6207 = vpack.c.b16 %v5655, %v5647
      %v6208 = vpack.c.b16 %v5656, %v5648
      %v6209 = vpack.c.b16 %v5657, %v5649
      %v6210 = vpack.c.b16 %v5658, %v5650
      %v6211 = vpack.c.b16 %v5667, %v5659
      %v6212 = vpack.c.b16 %v5668, %v5660
      %v6213 = vpack.c.b16 %v5669, %v5661
      %v6214 = vpack.c.b16 %v5670, %v5662
      %v6215 = vpack.c.b16 %v5671, %v5663
      %v6216 = vpack.c.b16 %v5672, %v5664
      %v6217 = vpack.c.b16 %v5673, %v5665
      %v6218 = vpack.c.b16 %v5674, %v5666
      %v6219 = vpack.c.b16 %v5683, %v5675
      %v6220 = vpack.c.b16 %v5684, %v5676
      %v6221 = vpack.c.b16 %v5685, %v5677
      %v6222 = vpack.c.b16 %v5686, %v5678
      %v6223 = vpack.c.b16 %v5687, %v5679
      %v6224 = vpack.c.b16 %v5688, %v5680
      %v6225 = vpack.c.b16 %v5689, %v5681
      %v6226 = vpack.c.b16 %v5690, %v5682
      %v6227 = vpack.c.b16 %v5699, %v5691
      %v6228 = vpack.c.b16 %v5700, %v5692
      %v6229 = vpack.c.b16 %v5701, %v5693
      %v6230 = vpack.c.b16 %v5702, %v5694
      %v6231 = vpack.c.b16 %v5703, %v5695
      %v6232 = vpack.c.b16 %v5704, %v5696
      %v6233 = vpack.c.b16 %v5705, %v5697
      %v6234 = vpack.c.b16 %v5706, %v5698
      %v6235 = vpack.c.b16 %v5715, %v5707
      %v6236 = vpack.c.b16 %v5716, %v5708
      %v6237 = vpack.c.b16 %v5717, %v5709
      %v6238 = vpack.c.b16 %v5718, %v5710
      %v6239 = vpack.c.b16 %v5719, %v5711
      %v6240 = vpack.c.b16 %v5720, %v5712
      %v6241 = vpack.c.b16 %v5721, %v5713
      %v6242 = vpack.c.b16 %v5722, %v5714
      %v6243 = vpack.c.b16 %v5731, %v5723
      %v6244 = vpack.c.b16 %v5732, %v5724
      %v6245 = vpack.c.b16 %v5733, %v5725
      %v6246 = vpack.c.b16 %v5734, %v5726
      %v6247 = vpack.c.b16 %v5735, %v5727
      %v6248 = vpack.c.b16 %v5736, %v5728
      %v6249 = vpack.c.b16 %v5737, %v5729
      %v6250 = vpack.c.b16 %v5738, %v5730
      %6763 = vmatprep.subr.bf16.mxu0 %v5740
      %6764 = vmatpush1.bf16.msra.mxu0 %v5739
      %6765 = vmatprep.subr.bf16.mxu0 %v5748
      %6766 = vmatpush1.bf16.msra.mxu0 %v5747
      %6767 = vmatprep.subr.bf16.mxu0 %v5756
      %6768 = vmatpush1.bf16.msra.mxu0 %v5755
      %6769 = vmatprep.subr.bf16.mxu0 %v5764
      %6770 = vmatpush1.bf16.msra.mxu0 %v5763
      %6771 = vmatprep.subr.bf16.mxu0 %v5772
      %6772 = vmatpush1.bf16.msra.mxu0 %v5771
      %6773 = vmatprep.subr.bf16.mxu0 %v5780
      %6774 = vmatpush1.bf16.msra.mxu0 %v5779
      %6775 = vmatprep.subr.bf16.mxu0 %v5788
      %6776 = vmatpush1.bf16.msra.mxu0 %v5787
      %6777 = vmatprep.subr.bf16.mxu0 %v5796
      %6778 = vmatpush1.bf16.msra.mxu0 %v5795
      %6779 = vmatprep.subr.bf16.mxu0 %v5804
      %6780 = vmatpush1.bf16.msra.mxu0 %v5803
      %6781 = vmatprep.subr.bf16.mxu0 %v5812
      %6782 = vmatpush1.bf16.msra.mxu0 %v5811
      %6783 = vmatprep.subr.bf16.mxu0 %v5820
      %6784 = vmatpush1.bf16.msra.mxu0 %v5819
      %6785 = vmatprep.subr.bf16.mxu0 %v5828
      %6786 = vmatpush1.bf16.msra.mxu0 %v5827
      %6787 = vmatprep.subr.bf16.mxu0 %v5836
      %6788 = vmatpush1.bf16.msra.mxu0 %v5835
      %6789 = vmatprep.subr.bf16.mxu0 %v5844
      %6790 = vmatpush1.bf16.msra.mxu0 %v5843
      %6791 = vmatprep.subr.bf16.mxu0 %v5852
      %6792 = vmatpush1.bf16.msra.mxu0 %v5851
      %6793 = vmatprep.subr.bf16.mxu0 %v5860
      %6794 = vmatpush1.bf16.msra.mxu0 %v5859
      %6795 = vmatprep.mubr.bf16.mxu0 %v3586
      %6796 = vmatmul.mubr.bf16.gmra.mrb[0].mxu0 %v3585
      %v6797 = vpop.f32.mrb[0].mxu0
      %v6798 = vadd.f32 %v4166, %v6797
      %v6799 = vpop.f32.mrb[0].mxu0
      %v6800 = vadd.f32 %v4170, %v6799
      %v6801 = vpop.f32.mrb[0].mxu0
      %v6802 = vadd.f32 %v4166, %v6801
      %v6803 = vpop.f32.mrb[0].mxu0
      %v6804 = vadd.f32 %v4170, %v6803
      %6805 = vmatprep.mubr.bf16.mxu0 %v3594
      %6806 = vmatmul.mubr.bf16.gmra.mrb[0].mxu0 %v3593
      %v6807 = vpop.f32.mrb[0].mxu0
      %v6808 = vadd.f32 %v4166, %v6807
      %v6809 = vpop.f32.mrb[0].mxu0
      %v6810 = vadd.f32 %v4170, %v6809
      %v6811 = vpop.f32.mrb[0].mxu0
      %v6812 = vadd.f32 %v4166, %v6811
      %v6813 = vpop.f32.mrb[0].mxu0
      %v6814 = vadd.f32 %v4170, %v6813
      %6815 = vmatprep.mubr.bf16.mxu0 %v3602
      %6816 = vmatmul.mubr.bf16.gmra.mrb[0].mxu0 %v3601
      %v6817 = vpop.f32.mrb[0].mxu0
      %v6818 = vadd.f32 %v4166, %v6817
      %v6819 = vpop.f32.mrb[0].mxu0
      %v6820 = vadd.f32 %v4170, %v6819
      %v6821 = vpop.f32.mrb[0].mxu0
      %v6822 = vadd.f32 %v4166, %v6821
      %v6823 = vpop.f32.mrb[0].mxu0
      %v6824 = vadd.f32 %v4170, %v6823
      %6825 = vmatprep.mubr.bf16.mxu0 %v3610
      %6826 = vmatmul.mubr.bf16.gmra.mrb[0].mxu0 %v3609
      %v6827 = vpop.f32.mrb[0].mxu0
      %v6828 = vadd.f32 %v4166, %v6827
      %v6829 = vpop.f32.mrb[0].mxu0
      %v6830 = vadd.f32 %v4170, %v6829
      %v6831 = vpop.f32.mrb[0].mxu0
      %v6832 = vadd.f32 %v4166, %v6831
      %v6833 = vpop.f32.mrb[0].mxu0
      %v6834 = vadd.f32 %v4170, %v6833
      %6835 = vmatprep.mubr.bf16.mxu0 %v3618
      %6836 = vmatmul.mubr.bf16.gmra.mrb[0].mxu0 %v3617
      %v6837 = vpop.f32.mrb[0].mxu0
      %v6838 = vadd.f32 %v4166, %v6837
      %v6839 = vpop.f32.mrb[0].mxu0
      %v6840 = vadd.f32 %v4170, %v6839
      %v6841 = vpop.f32.mrb[0].mxu0
      %v6842 = vadd.f32 %v4166, %v6841
      %v6843 = vpop.f32.mrb[0].mxu0
      %v6844 = vadd.f32 %v4170, %v6843
      %6845 = vmatprep.mubr.bf16.mxu0 %v3626
      %6846 = vmatmul.mubr.bf16.gmra.mrb[0].mxu0 %v3625
      %v6847 = vpop.f32.mrb[0].mxu0
      %v6848 = vadd.f32 %v4166, %v6847
      %v6849 = vpop.f32.mrb[0].mxu0
      %v6850 = vadd.f32 %v4170, %v6849
      %v6851 = vpop.f32.mrb[0].mxu0
      %v6852 = vadd.f32 %v4166, %v6851
      %v6853 = vpop.f32.mrb[0].mxu0
      %v6854 = vadd.f32 %v4170, %v6853
      %6855 = vmatprep.mubr.bf16.mxu0 %v3634
      %6856 = vmatmul.mubr.bf16.gmra.mrb[0].mxu0 %v3633
      %v6857 = vpop.f32.mrb[0].mxu0
      %v6858 = vadd.f32 %v4166, %v6857
      %v6859 = vpop.f32.mrb[0].mxu0
      %v6860 = vadd.f32 %v4170, %v6859
      %v6861 = vpop.f32.mrb[0].mxu0
      %v6862 = vadd.f32 %v4166, %v6861
      %v6863 = vpop.f32.mrb[0].mxu0
      %v6864 = vadd.f32 %v4170, %v6863
      %6865 = vmatprep.mubr.bf16.mxu0 %v3642
      %6866 = vmatmul.mubr.bf16.gmra.mrb[0].mxu0 %v3641
      %v6867 = vpop.f32.mrb[0].mxu0
      %v6868 = vadd.f32 %v4166, %v6867
      %v6869 = vpop.f32.mrb[0].mxu0
      %v6870 = vadd.f32 %v4170, %v6869
      %v6871 = vpop.f32.mrb[0].mxu0
      %v6872 = vadd.f32 %v4166, %v6871
      %v6873 = vpop.f32.mrb[0].mxu0
      %v6874 = vadd.f32 %v4170, %v6873
      %6875 = vdwg.mxu0
      %6876 = vmatprep.subr.bf16.mxu0 %v5868
      %6877 = vmatpush1.bf16.msra.mxu0 %v5867
      %6878 = vmatprep.subr.bf16.mxu0 %v5876
      %6879 = vmatpush1.bf16.msra.mxu0 %v5875
      %6880 = vmatprep.subr.bf16.mxu0 %v5884
      %6881 = vmatpush1.bf16.msra.mxu0 %v5883
      %6882 = vmatprep.subr.bf16.mxu0 %v5892
      %6883 = vmatpush1.bf16.msra.mxu0 %v5891
      %6884 = vmatprep.subr.bf16.mxu0 %v5900
      %6885 = vmatpush1.bf16.msra.mxu0 %v5899
      %6886 = vmatprep.subr.bf16.mxu0 %v5908
      %6887 = vmatpush1.bf16.msra.mxu0 %v5907
      %6888 = vmatprep.subr.bf16.mxu0 %v5916
      %6889 = vmatpush1.bf16.msra.mxu0 %v5915
      %6890 = vmatprep.subr.bf16.mxu0 %v5924
      %6891 = vmatpush1.bf16.msra.mxu0 %v5923
      %6892 = vmatprep.subr.bf16.mxu0 %v5932
      %6893 = vmatpush1.bf16.msra.mxu0 %v5931
      %6894 = vmatprep.subr.bf16.mxu0 %v5940
      %6895 = vmatpush1.bf16.msra.mxu0 %v5939
      %6896 = vmatprep.subr.bf16.mxu0 %v5948
      %6897 = vmatpush1.bf16.msra.mxu0 %v5947
      %6898 = vmatprep.subr.bf16.mxu0 %v5956
      %6899 = vmatpush1.bf16.msra.mxu0 %v5955
      %6900 = vmatprep.subr.bf16.mxu0 %v5964
      %6901 = vmatpush1.bf16.msra.mxu0 %v5963
      %6902 = vmatprep.subr.bf16.mxu0 %v5972
      %6903 = vmatpush1.bf16.msra.mxu0 %v5971
      %6904 = vmatprep.subr.bf16.mxu0 %v5980
      %6905 = vmatpush1.bf16.msra.mxu0 %v5979
      %6906 = vmatprep.subr.bf16.mxu0 %v5988
      %6907 = vmatpush1.bf16.msra.mxu0 %v5987
      %6908 = vmatprep.mubr.bf16.mxu0 %v3588
      %6909 = vmatmul.mubr.bf16.gmra.mrb[0].mxu0 %v3587
      %v6910 = vpop.f32.mrb[0].mxu0
      %v6911 = vadd.f32 %v6798, %v6910
      %v6912 = vpop.f32.mrb[0].mxu0
      %v6913 = vadd.f32 %v6800, %v6912
      %v6914 = vpop.f32.mrb[0].mxu0
      %v6915 = vadd.f32 %v6802, %v6914
      %v6916 = vpop.f32.mrb[0].mxu0
      %v6917 = vadd.f32 %v6804, %v6916
      %6918 = vmatprep.mubr.bf16.mxu0 %v3596
      %6919 = vmatmul.mubr.bf16.gmra.mrb[0].mxu0 %v3595
      %v6920 = vpop.f32.mrb[0].mxu0
      %v6921 = vadd.f32 %v6808, %v6920
      %v6922 = vpop.f32.mrb[0].mxu0
      %v6923 = vadd.f32 %v6810, %v6922
      %v6924 = vpop.f32.mrb[0].mxu0
      %v6925 = vadd.f32 %v6812, %v6924
      %v6926 = vpop.f32.mrb[0].mxu0
      %v6927 = vadd.f32 %v6814, %v6926
      %6928 = vmatprep.mubr.bf16.mxu0 %v3604
      %6929 = vmatmul.mubr.bf16.gmra.mrb[0].mxu0 %v3603
      %v6930 = vpop.f32.mrb[0].mxu0
      %v6931 = vadd.f32 %v6818, %v6930
      %v6932 = vpop.f32.mrb[0].mxu0
      %v6933 = vadd.f32 %v6820, %v6932
      %v6934 = vpop.f32.mrb[0].mxu0
      %v6935 = vadd.f32 %v6822, %v6934
      %v6936 = vpop.f32.mrb[0].mxu0
      %v6937 = vadd.f32 %v6824, %v6936
      %6938 = vmatprep.mubr.bf16.mxu0 %v3612
      %6939 = vmatmul.mubr.bf16.gmra.mrb[0].mxu0 %v3611
      %v6940 = vpop.f32.mrb[0].mxu0
      %v6941 = vadd.f32 %v6828, %v6940
      %v6942 = vpop.f32.mrb[0].mxu0
      %v6943 = vadd.f32 %v6830, %v6942
      %v6944 = vpop.f32.mrb[0].mxu0
      %v6945 = vadd.f32 %v6832, %v6944
      %v6946 = vpop.f32.mrb[0].mxu0
      %v6947 = vadd.f32 %v6834, %v6946
      %6948 = vmatprep.mubr.bf16.mxu0 %v3620
      %6949 = vmatmul.mubr.bf16.gmra.mrb[0].mxu0 %v3619
      %v6950 = vpop.f32.mrb[0].mxu0
      %v6951 = vadd.f32 %v6838, %v6950
      %v6952 = vpop.f32.mrb[0].mxu0
      %v6953 = vadd.f32 %v6840, %v6952
      %v6954 = vpop.f32.mrb[0].mxu0
      %v6955 = vadd.f32 %v6842, %v6954
      %v6956 = vpop.f32.mrb[0].mxu0
      %v6957 = vadd.f32 %v6844, %v6956
      %6958 = vmatprep.mubr.bf16.mxu0 %v3628
      %6959 = vmatmul.mubr.bf16.gmra.mrb[0].mxu0 %v3627
      %v6960 = vpop.f32.mrb[0].mxu0
      %v6961 = vadd.f32 %v6848, %v6960
      %v6962 = vpop.f32.mrb[0].mxu0
      %v6963 = vadd.f32 %v6850, %v6962
      %v6964 = vpop.f32.mrb[0].mxu0
      %v6965 = vadd.f32 %v6852, %v6964
      %v6966 = vpop.f32.mrb[0].mxu0
      %v6967 = vadd.f32 %v6854, %v6966
      %6968 = vmatprep.mubr.bf16.mxu0 %v3636
      %6969 = vmatmul.mubr.bf16.gmra.mrb[0].mxu0 %v3635
      %v6970 = vpop.f32.mrb[0].mxu0
      %v6971 = vadd.f32 %v6858, %v6970
      %v6972 = vpop.f32.mrb[0].mxu0
      %v6973 = vadd.f32 %v6860, %v6972
      %v6974 = vpop.f32.mrb[0].mxu0
      %v6975 = vadd.f32 %v6862, %v6974
      %v6976 = vpop.f32.mrb[0].mxu0
      %v6977 = vadd.f32 %v6864, %v6976
      %6978 = vmatprep.mubr.bf16.mxu0 %v3644
      %6979 = vmatmul.mubr.bf16.gmra.mrb[0].mxu0 %v3643
      %v6980 = vpop.f32.mrb[0].mxu0
      %v6981 = vadd.f32 %v6868, %v6980
      %v6982 = vpop.f32.mrb[0].mxu0
      %v6983 = vadd.f32 %v6870, %v6982
      %v6984 = vpop.f32.mrb[0].mxu0
      %v6985 = vadd.f32 %v6872, %v6984
      %v6986 = vpop.f32.mrb[0].mxu0
      %v6987 = vadd.f32 %v6874, %v6986
      %6988 = vdwg.mxu0
      %6989 = vmatprep.subr.bf16.mxu0 %v5996
      %6990 = vmatpush1.bf16.msra.mxu0 %v5995
      %6991 = vmatprep.subr.bf16.mxu0 %v6004
      %6992 = vmatpush1.bf16.msra.mxu0 %v6003
      %6993 = vmatprep.subr.bf16.mxu0 %v6012
      %6994 = vmatpush1.bf16.msra.mxu0 %v6011
      %6995 = vmatprep.subr.bf16.mxu0 %v6020
      %6996 = vmatpush1.bf16.msra.mxu0 %v6019
      %6997 = vmatprep.subr.bf16.mxu0 %v6028
      %6998 = vmatpush1.bf16.msra.mxu0 %v6027
      %6999 = vmatprep.subr.bf16.mxu0 %v6036
      %7000 = vmatpush1.bf16.msra.mxu0 %v6035
      %7001 = vmatprep.subr.bf16.mxu0 %v6044
      %7002 = vmatpush1.bf16.msra.mxu0 %v6043
      %7003 = vmatprep.subr.bf16.mxu0 %v6052
      %7004 = vmatpush1.bf16.msra.mxu0 %v6051
      %7005 = vmatprep.subr.bf16.mxu0 %v6060
      %7006 = vmatpush1.bf16.msra.mxu0 %v6059
      %7007 = vmatprep.subr.bf16.mxu0 %v6068
      %7008 = vmatpush1.bf16.msra.mxu0 %v6067
      %7009 = vmatprep.subr.bf16.mxu0 %v6076
      %7010 = vmatpush1.bf16.msra.mxu0 %v6075
      %7011 = vmatprep.subr.bf16.mxu0 %v6084
      %7012 = vmatpush1.bf16.msra.mxu0 %v6083
      %7013 = vmatprep.subr.bf16.mxu0 %v6092
      %7014 = vmatpush1.bf16.msra.mxu0 %v6091
      %7015 = vmatprep.subr.bf16.mxu0 %v6100
      %7016 = vmatpush1.bf16.msra.mxu0 %v6099
      %7017 = vmatprep.subr.bf16.mxu0 %v6108
      %7018 = vmatpush1.bf16.msra.mxu0 %v6107
      %7019 = vmatprep.subr.bf16.mxu0 %v6116
      %7020 = vmatpush1.bf16.msra.mxu0 %v6115
      %7021 = vmatprep.mubr.bf16.mxu0 %v3590
      %7022 = vmatmul.mubr.bf16.gmra.mrb[0].mxu0 %v3589
      %v7023 = vpop.f32.mrb[0].mxu0
      %v7024 = vadd.f32 %v6911, %v7023
      %v7025 = vpop.f32.mrb[0].mxu0
      %v7026 = vadd.f32 %v6913, %v7025
      %v7027 = vpop.f32.mrb[0].mxu0
      %v7028 = vadd.f32 %v6915, %v7027
      %v7029 = vpop.f32.mrb[0].mxu0
      %v7030 = vadd.f32 %v6917, %v7029
      %7031 = vmatprep.mubr.bf16.mxu0 %v3598
      %7032 = vmatmul.mubr.bf16.gmra.mrb[0].mxu0 %v3597
      %v7033 = vpop.f32.mrb[0].mxu0
      %v7034 = vadd.f32 %v6921, %v7033
      %v7035 = vpop.f32.mrb[0].mxu0
      %v7036 = vadd.f32 %v6923, %v7035
      %v7037 = vpop.f32.mrb[0].mxu0
      %v7038 = vadd.f32 %v6925, %v7037
      %v7039 = vpop.f32.mrb[0].mxu0
      %v7040 = vadd.f32 %v6927, %v7039
      %7041 = vmatprep.mubr.bf16.mxu0 %v3606
      %7042 = vmatmul.mubr.bf16.gmra.mrb[0].mxu0 %v3605
      %v7043 = vpop.f32.mrb[0].mxu0
      %v7044 = vadd.f32 %v6931, %v7043
      %v7045 = vpop.f32.mrb[0].mxu0
      %v7046 = vadd.f32 %v6933, %v7045
      %v7047 = vpop.f32.mrb[0].mxu0
      %v7048 = vadd.f32 %v6935, %v7047
      %v7049 = vpop.f32.mrb[0].mxu0
      %v7050 = vadd.f32 %v6937, %v7049
      %7051 = vmatprep.mubr.bf16.mxu0 %v3614
      %7052 = vmatmul.mubr.bf16.gmra.mrb[0].mxu0 %v3613
      %v7053 = vpop.f32.mrb[0].mxu0
      %v7054 = vadd.f32 %v6941, %v7053
      %v7055 = vpop.f32.mrb[0].mxu0
      %v7056 = vadd.f32 %v6943, %v7055
      %v7057 = vpop.f32.mrb[0].mxu0
      %v7058 = vadd.f32 %v6945, %v7057
      %v7059 = vpop.f32.mrb[0].mxu0
      %v7060 = vadd.f32 %v6947, %v7059
      %7061 = vmatprep.mubr.bf16.mxu0 %v3622
      %7062 = vmatmul.mubr.bf16.gmra.mrb[0].mxu0 %v3621
      %v7063 = vpop.f32.mrb[0].mxu0
      %v7064 = vadd.f32 %v6951, %v7063
      %v7065 = vpop.f32.mrb[0].mxu0
      %v7066 = vadd.f32 %v6953, %v7065
      %v7067 = vpop.f32.mrb[0].mxu0
      %v7068 = vadd.f32 %v6955, %v7067
      %v7069 = vpop.f32.mrb[0].mxu0
      %v7070 = vadd.f32 %v6957, %v7069
      %7071 = vmatprep.mubr.bf16.mxu0 %v3630
      %7072 = vmatmul.mubr.bf16.gmra.mrb[0].mxu0 %v3629
      %v7073 = vpop.f32.mrb[0].mxu0
      %v7074 = vadd.f32 %v6961, %v7073
      %v7075 = vpop.f32.mrb[0].mxu0
      %v7076 = vadd.f32 %v6963, %v7075
      %v7077 = vpop.f32.mrb[0].mxu0
      %v7078 = vadd.f32 %v6965, %v7077
      %v7079 = vpop.f32.mrb[0].mxu0
      %v7080 = vadd.f32 %v6967, %v7079
      %7081 = vmatprep.mubr.bf16.mxu0 %v3638
      %7082 = vmatmul.mubr.bf16.gmra.mrb[0].mxu0 %v3637
      %v7083 = vpop.f32.mrb[0].mxu0
      %v7084 = vadd.f32 %v6971, %v7083
      %v7085 = vpop.f32.mrb[0].mxu0
      %v7086 = vadd.f32 %v6973, %v7085
      %v7087 = vpop.f32.mrb[0].mxu0
      %v7088 = vadd.f32 %v6975, %v7087
      %v7089 = vpop.f32.mrb[0].mxu0
      %v7090 = vadd.f32 %v6977, %v7089
      %7091 = vmatprep.mubr.bf16.mxu0 %v3646
      %7092 = vmatmul.mubr.bf16.gmra.mrb[0].mxu0 %v3645
      %v7093 = vpop.f32.mrb[0].mxu0
      %v7094 = vadd.f32 %v6981, %v7093
      %v7095 = vpop.f32.mrb[0].mxu0
      %v7096 = vadd.f32 %v6983, %v7095
      %v7097 = vpop.f32.mrb[0].mxu0
      %v7098 = vadd.f32 %v6985, %v7097
      %v7099 = vpop.f32.mrb[0].mxu0
      %v7100 = vadd.f32 %v6987, %v7099
      %7101 = vdwg.mxu0
      %7102 = vmatprep.subr.bf16.mxu0 %v6124
      %7103 = vmatpush1.bf16.msra.mxu0 %v6123
      %7104 = vmatprep.subr.bf16.mxu0 %v6132
      %7105 = vmatpush1.bf16.msra.mxu0 %v6131
      %7106 = vmatprep.subr.bf16.mxu0 %v6140
      %7107 = vmatpush1.bf16.msra.mxu0 %v6139
      %7108 = vmatprep.subr.bf16.mxu0 %v6148
      %7109 = vmatpush1.bf16.msra.mxu0 %v6147
      %7110 = vmatprep.subr.bf16.mxu0 %v6156
      %7111 = vmatpush1.bf16.msra.mxu0 %v6155
      %7112 = vmatprep.subr.bf16.mxu0 %v6164
      %7113 = vmatpush1.bf16.msra.mxu0 %v6163
      %7114 = vmatprep.subr.bf16.mxu0 %v6172
      %7115 = vmatpush1.bf16.msra.mxu0 %v6171
      %7116 = vmatprep.subr.bf16.mxu0 %v6180
      %7117 = vmatpush1.bf16.msra.mxu0 %v6179
      %7118 = vmatprep.subr.bf16.mxu0 %v6188
      %7119 = vmatpush1.bf16.msra.mxu0 %v6187
      %7120 = vmatprep.subr.bf16.mxu0 %v6196
      %7121 = vmatpush1.bf16.msra.mxu0 %v6195
      %7122 = vmatprep.subr.bf16.mxu0 %v6204
      %7123 = vmatpush1.bf16.msra.mxu0 %v6203
      %7124 = vmatprep.subr.bf16.mxu0 %v6212
      %7125 = vmatpush1.bf16.msra.mxu0 %v6211
      %7126 = vmatprep.subr.bf16.mxu0 %v6220
      %7127 = vmatpush1.bf16.msra.mxu0 %v6219
      %7128 = vmatprep.subr.bf16.mxu0 %v6228
      %7129 = vmatpush1.bf16.msra.mxu0 %v6227
      %7130 = vmatprep.subr.bf16.mxu0 %v6236
      %7131 = vmatpush1.bf16.msra.mxu0 %v6235
      %7132 = vmatprep.subr.bf16.mxu0 %v6244
      %7133 = vmatpush1.bf16.msra.mxu0 %v6243
      %7134 = vmatprep.mubr.bf16.mxu0 %v3592
      %7135 = vmatmul.mubr.bf16.gmra.mrb[0].mxu0 %v3591
      %v7136 = vpop.f32.mrb[0].mxu0
      %v7137 = vadd.f32 %v7024, %v7136
      %v7138 = vpop.f32.mrb[0].mxu0
      %v7139 = vadd.f32 %v7026, %v7138
      %v7140 = vpop.f32.mrb[0].mxu0
      %v7141 = vadd.f32 %v7028, %v7140
      %v7142 = vpop.f32.mrb[0].mxu0
      %v7143 = vadd.f32 %v7030, %v7142
      %7144 = vmatprep.mubr.bf16.mxu0 %v3600
      %7145 = vmatmul.mubr.bf16.gmra.mrb[0].mxu0 %v3599
      %v7146 = vpop.f32.mrb[0].mxu0
      %v7147 = vadd.f32 %v7034, %v7146
      %v7148 = vpop.f32.mrb[0].mxu0
      %v7149 = vadd.f32 %v7036, %v7148
      %v7150 = vpop.f32.mrb[0].mxu0
      %v7151 = vadd.f32 %v7038, %v7150
      %v7152 = vpop.f32.mrb[0].mxu0
      %v7153 = vadd.f32 %v7040, %v7152
      %7154 = vmatprep.mubr.bf16.mxu0 %v3608
      %7155 = vmatmul.mubr.bf16.gmra.mrb[0].mxu0 %v3607
      %v7156 = vpop.f32.mrb[0].mxu0
      %v7157 = vadd.f32 %v7044, %v7156
      %v7158 = vpop.f32.mrb[0].mxu0
      %v7159 = vadd.f32 %v7046, %v7158
      %v7160 = vpop.f32.mrb[0].mxu0
      %v7161 = vadd.f32 %v7048, %v7160
      %v7162 = vpop.f32.mrb[0].mxu0
      %v7163 = vadd.f32 %v7050, %v7162
      %7164 = vmatprep.mubr.bf16.mxu0 %v3616
      %7165 = vmatmul.mubr.bf16.gmra.mrb[0].mxu0 %v3615
      %v7166 = vpop.f32.mrb[0].mxu0
      %v7167 = vadd.f32 %v7054, %v7166
      %v7168 = vpop.f32.mrb[0].mxu0
      %v7169 = vadd.f32 %v7056, %v7168
      %v7170 = vpop.f32.mrb[0].mxu0
      %v7171 = vadd.f32 %v7058, %v7170
      %v7172 = vpop.f32.mrb[0].mxu0
      %v7173 = vadd.f32 %v7060, %v7172
      %7174 = vmatprep.mubr.bf16.mxu0 %v3624
      %7175 = vmatmul.mubr.bf16.gmra.mrb[0].mxu0 %v3623
      %v7176 = vpop.f32.mrb[0].mxu0
      %v7177 = vadd.f32 %v7064, %v7176
      %v7178 = vpop.f32.mrb[0].mxu0
      %v7179 = vadd.f32 %v7066, %v7178
      %v7180 = vpop.f32.mrb[0].mxu0
      %v7181 = vadd.f32 %v7068, %v7180
      %v7182 = vpop.f32.mrb[0].mxu0
      %v7183 = vadd.f32 %v7070, %v7182
      %7184 = vmatprep.mubr.bf16.mxu0 %v3632
      %7185 = vmatmul.mubr.bf16.gmra.mrb[0].mxu0 %v3631
      %v7186 = vpop.f32.mrb[0].mxu0
      %v7187 = vadd.f32 %v7074, %v7186
      %v7188 = vpop.f32.mrb[0].mxu0
      %v7189 = vadd.f32 %v7076, %v7188
      %v7190 = vpop.f32.mrb[0].mxu0
      %v7191 = vadd.f32 %v7078, %v7190
      %v7192 = vpop.f32.mrb[0].mxu0
      %v7193 = vadd.f32 %v7080, %v7192
      %7194 = vmatprep.mubr.bf16.mxu0 %v3640
      %7195 = vmatmul.mubr.bf16.gmra.mrb[0].mxu0 %v3639
      %v7196 = vpop.f32.mrb[0].mxu0
      %v7197 = vadd.f32 %v7084, %v7196
      %v7198 = vpop.f32.mrb[0].mxu0
      %v7199 = vadd.f32 %v7086, %v7198
      %v7200 = vpop.f32.mrb[0].mxu0
      %v7201 = vadd.f32 %v7088, %v7200
      %v7202 = vpop.f32.mrb[0].mxu0
      %v7203 = vadd.f32 %v7090, %v7202
      %7204 = vmatprep.mubr.bf16.mxu0 %v3648
      %7205 = vmatmul.mubr.bf16.gmra.mrb[0].mxu0 %v3647
      %v7206 = vpop.f32.mrb[0].mxu0
      %v7207 = vadd.f32 %v7094, %v7206
      %v7208 = vpop.f32.mrb[0].mxu0
      %v7209 = vadd.f32 %v7096, %v7208
      %v7210 = vpop.f32.mrb[0].mxu0
      %v7211 = vadd.f32 %v7098, %v7210
      %v7212 = vpop.f32.mrb[0].mxu0
      %v7213 = vadd.f32 %v7100, %v7212
      %7214 = vdwg.mxu0
      %7215 = vmatprep.subr.bf16.mxu0 %v5742
      %7216 = vmatpush1.bf16.msra.mxu0 %v5741
      %7217 = vmatprep.subr.bf16.mxu0 %v5750
      %7218 = vmatpush1.bf16.msra.mxu0 %v5749
      %7219 = vmatprep.subr.bf16.mxu0 %v5758
      %7220 = vmatpush1.bf16.msra.mxu0 %v5757
      %7221 = vmatprep.subr.bf16.mxu0 %v5766
      %7222 = vmatpush1.bf16.msra.mxu0 %v5765
      %7223 = vmatprep.subr.bf16.mxu0 %v5774
      %7224 = vmatpush1.bf16.msra.mxu0 %v5773
      %7225 = vmatprep.subr.bf16.mxu0 %v5782
      %7226 = vmatpush1.bf16.msra.mxu0 %v5781
      %7227 = vmatprep.subr.bf16.mxu0 %v5790
      %7228 = vmatpush1.bf16.msra.mxu0 %v5789
      %7229 = vmatprep.subr.bf16.mxu0 %v5798
      %7230 = vmatpush1.bf16.msra.mxu0 %v5797
      %7231 = vmatprep.subr.bf16.mxu0 %v5806
      %7232 = vmatpush1.bf16.msra.mxu0 %v5805
      %7233 = vmatprep.subr.bf16.mxu0 %v5814
      %7234 = vmatpush1.bf16.msra.mxu0 %v5813
      %7235 = vmatprep.subr.bf16.mxu0 %v5822
      %7236 = vmatpush1.bf16.msra.mxu0 %v5821
      %7237 = vmatprep.subr.bf16.mxu0 %v5830
      %7238 = vmatpush1.bf16.msra.mxu0 %v5829
      %7239 = vmatprep.subr.bf16.mxu0 %v5838
      %7240 = vmatpush1.bf16.msra.mxu0 %v5837
      %7241 = vmatprep.subr.bf16.mxu0 %v5846
      %7242 = vmatpush1.bf16.msra.mxu0 %v5845
      %7243 = vmatprep.subr.bf16.mxu0 %v5854
      %7244 = vmatpush1.bf16.msra.mxu0 %v5853
      %7245 = vmatprep.subr.bf16.mxu0 %v5862
      %7246 = vmatpush1.bf16.msra.mxu0 %v5861
      %7247 = vmatprep.mubr.bf16.mxu0 %v3586
      %7248 = vmatmul.mubr.bf16.gmra.mrb[0].mxu0 %v3585
      %v7249 = vpop.f32.mrb[0].mxu0
      %v7250 = vadd.f32 %v4174, %v7249
      %v7251 = vpop.f32.mrb[0].mxu0
      %v7252 = vadd.f32 %v4178, %v7251
      %v7253 = vpop.f32.mrb[0].mxu0
      %v7254 = vadd.f32 %v4174, %v7253
      %v7255 = vpop.f32.mrb[0].mxu0
      %v7256 = vadd.f32 %v4178, %v7255
      %7257 = vmatprep.mubr.bf16.mxu0 %v3594
      %7258 = vmatmul.mubr.bf16.gmra.mrb[0].mxu0 %v3593
      %v7259 = vpop.f32.mrb[0].mxu0
      %v7260 = vadd.f32 %v4174, %v7259
      %v7261 = vpop.f32.mrb[0].mxu0
      %v7262 = vadd.f32 %v4178, %v7261
      %v7263 = vpop.f32.mrb[0].mxu0
      %v7264 = vadd.f32 %v4174, %v7263
      %v7265 = vpop.f32.mrb[0].mxu0
      %v7266 = vadd.f32 %v4178, %v7265
      %7267 = vmatprep.mubr.bf16.mxu0 %v3602
      %7268 = vmatmul.mubr.bf16.gmra.mrb[0].mxu0 %v3601
      %v7269 = vpop.f32.mrb[0].mxu0
      %v7270 = vadd.f32 %v4174, %v7269
      %v7271 = vpop.f32.mrb[0].mxu0
      %v7272 = vadd.f32 %v4178, %v7271
      %v7273 = vpop.f32.mrb[0].mxu0
      %v7274 = vadd.f32 %v4174, %v7273
      %v7275 = vpop.f32.mrb[0].mxu0
      %v7276 = vadd.f32 %v4178, %v7275
      %7277 = vmatprep.mubr.bf16.mxu0 %v3610
      %7278 = vmatmul.mubr.bf16.gmra.mrb[0].mxu0 %v3609
      %v7279 = vpop.f32.mrb[0].mxu0
      %v7280 = vadd.f32 %v4174, %v7279
      %v7281 = vpop.f32.mrb[0].mxu0
      %v7282 = vadd.f32 %v4178, %v7281
      %v7283 = vpop.f32.mrb[0].mxu0
      %v7284 = vadd.f32 %v4174, %v7283
      %v7285 = vpop.f32.mrb[0].mxu0
      %v7286 = vadd.f32 %v4178, %v7285
      %7287 = vmatprep.mubr.bf16.mxu0 %v3618
      %7288 = vmatmul.mubr.bf16.gmra.mrb[0].mxu0 %v3617
      %v7289 = vpop.f32.mrb[0].mxu0
      %v7290 = vadd.f32 %v4174, %v7289
      %v7291 = vpop.f32.mrb[0].mxu0
      %v7292 = vadd.f32 %v4178, %v7291
      %v7293 = vpop.f32.mrb[0].mxu0
      %v7294 = vadd.f32 %v4174, %v7293
      %v7295 = vpop.f32.mrb[0].mxu0
      %v7296 = vadd.f32 %v4178, %v7295
      %7297 = vmatprep.mubr.bf16.mxu0 %v3626
      %7298 = vmatmul.mubr.bf16.gmra.mrb[0].mxu0 %v3625
      %v7299 = vpop.f32.mrb[0].mxu0
      %v7300 = vadd.f32 %v4174, %v7299
      %v7301 = vpop.f32.mrb[0].mxu0
      %v7302 = vadd.f32 %v4178, %v7301
      %v7303 = vpop.f32.mrb[0].mxu0
      %v7304 = vadd.f32 %v4174, %v7303
      %v7305 = vpop.f32.mrb[0].mxu0
      %v7306 = vadd.f32 %v4178, %v7305
      %7307 = vmatprep.mubr.bf16.mxu0 %v3634
      %7308 = vmatmul.mubr.bf16.gmra.mrb[0].mxu0 %v3633
      %v7309 = vpop.f32.mrb[0].mxu0
      %v7310 = vadd.f32 %v4174, %v7309
      %v7311 = vpop.f32.mrb[0].mxu0
      %v7312 = vadd.f32 %v4178, %v7311
      %v7313 = vpop.f32.mrb[0].mxu0
      %v7314 = vadd.f32 %v4174, %v7313
      %v7315 = vpop.f32.mrb[0].mxu0
      %v7316 = vadd.f32 %v4178, %v7315
      %7317 = vmatprep.mubr.bf16.mxu0 %v3642
      %7318 = vmatmul.mubr.bf16.gmra.mrb[0].mxu0 %v3641
      %v7319 = vpop.f32.mrb[0].mxu0
      %v7320 = vadd.f32 %v4174, %v7319
      %v7321 = vpop.f32.mrb[0].mxu0
      %v7322 = vadd.f32 %v4178, %v7321
      %v7323 = vpop.f32.mrb[0].mxu0
      %v7324 = vadd.f32 %v4174, %v7323
      %v7325 = vpop.f32.mrb[0].mxu0
      %v7326 = vadd.f32 %v4178, %v7325
      %7327 = vdwg.mxu0
      %7328 = vmatprep.subr.bf16.mxu0 %v5870
      %7329 = vmatpush1.bf16.msra.mxu0 %v5869
      %7330 = vmatprep.subr.bf16.mxu0 %v5878
      %7331 = vmatpush1.bf16.msra.mxu0 %v5877
      %7332 = vmatprep.subr.bf16.mxu0 %v5886
      %7333 = vmatpush1.bf16.msra.mxu0 %v5885
      %7334 = vmatprep.subr.bf16.mxu0 %v5894
      %7335 = vmatpush1.bf16.msra.mxu0 %v5893
      %7336 = vmatprep.subr.bf16.mxu0 %v5902
      %7337 = vmatpush1.bf16.msra.mxu0 %v5901
      %7338 = vmatprep.subr.bf16.mxu0 %v5910
      %7339 = vmatpush1.bf16.msra.mxu0 %v5909
      %7340 = vmatprep.subr.bf16.mxu0 %v5918
      %7341 = vmatpush1.bf16.msra.mxu0 %v5917
      %7342 = vmatprep.subr.bf16.mxu0 %v5926
      %7343 = vmatpush1.bf16.msra.mxu0 %v5925
      %7344 = vmatprep.subr.bf16.mxu0 %v5934
      %7345 = vmatpush1.bf16.msra.mxu0 %v5933
      %7346 = vmatprep.subr.bf16.mxu0 %v5942
      %7347 = vmatpush1.bf16.msra.mxu0 %v5941
      %7348 = vmatprep.subr.bf16.mxu0 %v5950
      %7349 = vmatpush1.bf16.msra.mxu0 %v5949
      %7350 = vmatprep.subr.bf16.mxu0 %v5958
      %7351 = vmatpush1.bf16.msra.mxu0 %v5957
      %7352 = vmatprep.subr.bf16.mxu0 %v5966
      %7353 = vmatpush1.bf16.msra.mxu0 %v5965
      %7354 = vmatprep.subr.bf16.mxu0 %v5974
      %7355 = vmatpush1.bf16.msra.mxu0 %v5973
      %7356 = vmatprep.subr.bf16.mxu0 %v5982
      %7357 = vmatpush1.bf16.msra.mxu0 %v5981
      %7358 = vmatprep.subr.bf16.mxu0 %v5990
      %7359 = vmatpush1.bf16.msra.mxu0 %v5989
      %7360 = vmatprep.mubr.bf16.mxu0 %v3588
      %7361 = vmatmul.mubr.bf16.gmra.mrb[0].mxu0 %v3587
      %v7362 = vpop.f32.mrb[0].mxu0
      %v7363 = vadd.f32 %v7250, %v7362
      %v7364 = vpop.f32.mrb[0].mxu0
      %v7365 = vadd.f32 %v7252, %v7364
      %v7366 = vpop.f32.mrb[0].mxu0
      %v7367 = vadd.f32 %v7254, %v7366
      %v7368 = vpop.f32.mrb[0].mxu0
      %v7369 = vadd.f32 %v7256, %v7368
      %7370 = vmatprep.mubr.bf16.mxu0 %v3596
      %7371 = vmatmul.mubr.bf16.gmra.mrb[0].mxu0 %v3595
      %v7372 = vpop.f32.mrb[0].mxu0
      %v7373 = vadd.f32 %v7260, %v7372
      %v7374 = vpop.f32.mrb[0].mxu0
      %v7375 = vadd.f32 %v7262, %v7374
      %v7376 = vpop.f32.mrb[0].mxu0
      %v7377 = vadd.f32 %v7264, %v7376
      %v7378 = vpop.f32.mrb[0].mxu0
      %v7379 = vadd.f32 %v7266, %v7378
      %7380 = vmatprep.mubr.bf16.mxu0 %v3604
      %7381 = vmatmul.mubr.bf16.gmra.mrb[0].mxu0 %v3603
      %v7382 = vpop.f32.mrb[0].mxu0
      %v7383 = vadd.f32 %v7270, %v7382
      %v7384 = vpop.f32.mrb[0].mxu0
      %v7385 = vadd.f32 %v7272, %v7384
      %v7386 = vpop.f32.mrb[0].mxu0
      %v7387 = vadd.f32 %v7274, %v7386
      %v7388 = vpop.f32.mrb[0].mxu0
      %v7389 = vadd.f32 %v7276, %v7388
      %7390 = vmatprep.mubr.bf16.mxu0 %v3612
      %7391 = vmatmul.mubr.bf16.gmra.mrb[0].mxu0 %v3611
      %v7392 = vpop.f32.mrb[0].mxu0
      %v7393 = vadd.f32 %v7280, %v7392
      %v7394 = vpop.f32.mrb[0].mxu0
      %v7395 = vadd.f32 %v7282, %v7394
      %v7396 = vpop.f32.mrb[0].mxu0
      %v7397 = vadd.f32 %v7284, %v7396
      %v7398 = vpop.f32.mrb[0].mxu0
      %v7399 = vadd.f32 %v7286, %v7398
      %7400 = vmatprep.mubr.bf16.mxu0 %v3620
      %7401 = vmatmul.mubr.bf16.gmra.mrb[0].mxu0 %v3619
      %v7402 = vpop.f32.mrb[0].mxu0
      %v7403 = vadd.f32 %v7290, %v7402
      %v7404 = vpop.f32.mrb[0].mxu0
      %v7405 = vadd.f32 %v7292, %v7404
      %v7406 = vpop.f32.mrb[0].mxu0
      %v7407 = vadd.f32 %v7294, %v7406
      %v7408 = vpop.f32.mrb[0].mxu0
      %v7409 = vadd.f32 %v7296, %v7408
      %7410 = vmatprep.mubr.bf16.mxu0 %v3628
      %7411 = vmatmul.mubr.bf16.gmra.mrb[0].mxu0 %v3627
      %v7412 = vpop.f32.mrb[0].mxu0
      %v7413 = vadd.f32 %v7300, %v7412
      %v7414 = vpop.f32.mrb[0].mxu0
      %v7415 = vadd.f32 %v7302, %v7414
      %v7416 = vpop.f32.mrb[0].mxu0
      %v7417 = vadd.f32 %v7304, %v7416
      %v7418 = vpop.f32.mrb[0].mxu0
      %v7419 = vadd.f32 %v7306, %v7418
      %7420 = vmatprep.mubr.bf16.mxu0 %v3636
      %7421 = vmatmul.mubr.bf16.gmra.mrb[0].mxu0 %v3635
      %v7422 = vpop.f32.mrb[0].mxu0
      %v7423 = vadd.f32 %v7310, %v7422
      %v7424 = vpop.f32.mrb[0].mxu0
      %v7425 = vadd.f32 %v7312, %v7424
      %v7426 = vpop.f32.mrb[0].mxu0
      %v7427 = vadd.f32 %v7314, %v7426
      %v7428 = vpop.f32.mrb[0].mxu0
      %v7429 = vadd.f32 %v7316, %v7428
      %7430 = vmatprep.mubr.bf16.mxu0 %v3644
      %7431 = vmatmul.mubr.bf16.gmra.mrb[0].mxu0 %v3643
      %v7432 = vpop.f32.mrb[0].mxu0
      %v7433 = vadd.f32 %v7320, %v7432
      %v7434 = vpop.f32.mrb[0].mxu0
      %v7435 = vadd.f32 %v7322, %v7434
      %v7436 = vpop.f32.mrb[0].mxu0
      %v7437 = vadd.f32 %v7324, %v7436
      %v7438 = vpop.f32.mrb[0].mxu0
      %v7439 = vadd.f32 %v7326, %v7438
      %7440 = vdwg.mxu0
      %7441 = vmatprep.subr.bf16.mxu0 %v5998
      %7442 = vmatpush1.bf16.msra.mxu0 %v5997
      %7443 = vmatprep.subr.bf16.mxu0 %v6006
      %7444 = vmatpush1.bf16.msra.mxu0 %v6005
      %7445 = vmatprep.subr.bf16.mxu0 %v6014
      %7446 = vmatpush1.bf16.msra.mxu0 %v6013
      %7447 = vmatprep.subr.bf16.mxu0 %v6022
      %7448 = vmatpush1.bf16.msra.mxu0 %v6021
      %7449 = vmatprep.subr.bf16.mxu0 %v6030
      %7450 = vmatpush1.bf16.msra.mxu0 %v6029
      %7451 = vmatprep.subr.bf16.mxu0 %v6038
      %7452 = vmatpush1.bf16.msra.mxu0 %v6037
      %7453 = vmatprep.subr.bf16.mxu0 %v6046
      %7454 = vmatpush1.bf16.msra.mxu0 %v6045
      %7455 = vmatprep.subr.bf16.mxu0 %v6054
      %7456 = vmatpush1.bf16.msra.mxu0 %v6053
      %7457 = vmatprep.subr.bf16.mxu0 %v6062
      %7458 = vmatpush1.bf16.msra.mxu0 %v6061
      %7459 = vmatprep.subr.bf16.mxu0 %v6070
      %7460 = vmatpush1.bf16.msra.mxu0 %v6069
      %7461 = vmatprep.subr.bf16.mxu0 %v6078
      %7462 = vmatpush1.bf16.msra.mxu0 %v6077
      %7463 = vmatprep.subr.bf16.mxu0 %v6086
      %7464 = vmatpush1.bf16.msra.mxu0 %v6085
      %7465 = vmatprep.subr.bf16.mxu0 %v6094
      %7466 = vmatpush1.bf16.msra.mxu0 %v6093
      %7467 = vmatprep.subr.bf16.mxu0 %v6102
      %7468 = vmatpush1.bf16.msra.mxu0 %v6101
      %7469 = vmatprep.subr.bf16.mxu0 %v6110
      %7470 = vmatpush1.bf16.msra.mxu0 %v6109
      %7471 = vmatprep.subr.bf16.mxu0 %v6118
      %7472 = vmatpush1.bf16.msra.mxu0 %v6117
      %7473 = vmatprep.mubr.bf16.mxu0 %v3590
      %7474 = vmatmul.mubr.bf16.gmra.mrb[0].mxu0 %v3589
      %v7475 = vpop.f32.mrb[0].mxu0
      %v7476 = vadd.f32 %v7363, %v7475
      %v7477 = vpop.f32.mrb[0].mxu0
      %v7478 = vadd.f32 %v7365, %v7477
      %v7479 = vpop.f32.mrb[0].mxu0
      %v7480 = vadd.f32 %v7367, %v7479
      %v7481 = vpop.f32.mrb[0].mxu0
      %v7482 = vadd.f32 %v7369, %v7481
      %7483 = vmatprep.mubr.bf16.mxu0 %v3598
      %7484 = vmatmul.mubr.bf16.gmra.mrb[0].mxu0 %v3597
      %v7485 = vpop.f32.mrb[0].mxu0
      %v7486 = vadd.f32 %v7373, %v7485
      %v7487 = vpop.f32.mrb[0].mxu0
      %v7488 = vadd.f32 %v7375, %v7487
      %v7489 = vpop.f32.mrb[0].mxu0
      %v7490 = vadd.f32 %v7377, %v7489
      %v7491 = vpop.f32.mrb[0].mxu0
      %v7492 = vadd.f32 %v7379, %v7491
      %7493 = vmatprep.mubr.bf16.mxu0 %v3606
      %7494 = vmatmul.mubr.bf16.gmra.mrb[0].mxu0 %v3605
      %v7495 = vpop.f32.mrb[0].mxu0
      %v7496 = vadd.f32 %v7383, %v7495
      %v7497 = vpop.f32.mrb[0].mxu0
      %v7498 = vadd.f32 %v7385, %v7497
      %v7499 = vpop.f32.mrb[0].mxu0
      %v7500 = vadd.f32 %v7387, %v7499
      %v7501 = vpop.f32.mrb[0].mxu0
      %v7502 = vadd.f32 %v7389, %v7501
      %7503 = vmatprep.mubr.bf16.mxu0 %v3614
      %7504 = vmatmul.mubr.bf16.gmra.mrb[0].mxu0 %v3613
      %v7505 = vpop.f32.mrb[0].mxu0
      %v7506 = vadd.f32 %v7393, %v7505
      %v7507 = vpop.f32.mrb[0].mxu0
      %v7508 = vadd.f32 %v7395, %v7507
      %v7509 = vpop.f32.mrb[0].mxu0
      %v7510 = vadd.f32 %v7397, %v7509
      %v7511 = vpop.f32.mrb[0].mxu0
      %v7512 = vadd.f32 %v7399, %v7511
      %7513 = vmatprep.mubr.bf16.mxu0 %v3622
      %7514 = vmatmul.mubr.bf16.gmra.mrb[0].mxu0 %v3621
      %v7515 = vpop.f32.mrb[0].mxu0
      %v7516 = vadd.f32 %v7403, %v7515
      %v7517 = vpop.f32.mrb[0].mxu0
      %v7518 = vadd.f32 %v7405, %v7517
      %v7519 = vpop.f32.mrb[0].mxu0
      %v7520 = vadd.f32 %v7407, %v7519
      %v7521 = vpop.f32.mrb[0].mxu0
      %v7522 = vadd.f32 %v7409, %v7521
      %7523 = vmatprep.mubr.bf16.mxu0 %v3630
      %7524 = vmatmul.mubr.bf16.gmra.mrb[0].mxu0 %v3629
      %v7525 = vpop.f32.mrb[0].mxu0
      %v7526 = vadd.f32 %v7413, %v7525
      %v7527 = vpop.f32.mrb[0].mxu0
      %v7528 = vadd.f32 %v7415, %v7527
      %v7529 = vpop.f32.mrb[0].mxu0
      %v7530 = vadd.f32 %v7417, %v7529
      %v7531 = vpop.f32.mrb[0].mxu0
      %v7532 = vadd.f32 %v7419, %v7531
      %7533 = vmatprep.mubr.bf16.mxu0 %v3638
      %7534 = vmatmul.mubr.bf16.gmra.mrb[0].mxu0 %v3637
      %v7535 = vpop.f32.mrb[0].mxu0
      %v7536 = vadd.f32 %v7423, %v7535
      %v7537 = vpop.f32.mrb[0].mxu0
      %v7538 = vadd.f32 %v7425, %v7537
      %v7539 = vpop.f32.mrb[0].mxu0
      %v7540 = vadd.f32 %v7427, %v7539
      %v7541 = vpop.f32.mrb[0].mxu0
      %v7542 = vadd.f32 %v7429, %v7541
      %7543 = vmatprep.mubr.bf16.mxu0 %v3646
      %7544 = vmatmul.mubr.bf16.gmra.mrb[0].mxu0 %v3645
      %v7545 = vpop.f32.mrb[0].mxu0
      %v7546 = vadd.f32 %v7433, %v7545
      %v7547 = vpop.f32.mrb[0].mxu0
      %v7548 = vadd.f32 %v7435, %v7547
      %v7549 = vpop.f32.mrb[0].mxu0
      %v7550 = vadd.f32 %v7437, %v7549
      %v7551 = vpop.f32.mrb[0].mxu0
      %v7552 = vadd.f32 %v7439, %v7551
      %7553 = vdwg.mxu0
      %7554 = vmatprep.subr.bf16.mxu0 %v6126
      %7555 = vmatpush1.bf16.msra.mxu0 %v6125
      %7556 = vmatprep.subr.bf16.mxu0 %v6134
      %7557 = vmatpush1.bf16.msra.mxu0 %v6133
      %7558 = vmatprep.subr.bf16.mxu0 %v6142
      %7559 = vmatpush1.bf16.msra.mxu0 %v6141
      %7560 = vmatprep.subr.bf16.mxu0 %v6150
      %7561 = vmatpush1.bf16.msra.mxu0 %v6149
      %7562 = vmatprep.subr.bf16.mxu0 %v6158
      %7563 = vmatpush1.bf16.msra.mxu0 %v6157
      %7564 = vmatprep.subr.bf16.mxu0 %v6166
      %7565 = vmatpush1.bf16.msra.mxu0 %v6165
      %7566 = vmatprep.subr.bf16.mxu0 %v6174
      %7567 = vmatpush1.bf16.msra.mxu0 %v6173
      %7568 = vmatprep.subr.bf16.mxu0 %v6182
      %7569 = vmatpush1.bf16.msra.mxu0 %v6181
      %7570 = vmatprep.subr.bf16.mxu0 %v6190
      %7571 = vmatpush1.bf16.msra.mxu0 %v6189
      %7572 = vmatprep.subr.bf16.mxu0 %v6198
      %7573 = vmatpush1.bf16.msra.mxu0 %v6197
      %7574 = vmatprep.subr.bf16.mxu0 %v6206
      %7575 = vmatpush1.bf16.msra.mxu0 %v6205
      %7576 = vmatprep.subr.bf16.mxu0 %v6214
      %7577 = vmatpush1.bf16.msra.mxu0 %v6213
      %7578 = vmatprep.subr.bf16.mxu0 %v6222
      %7579 = vmatpush1.bf16.msra.mxu0 %v6221
      %7580 = vmatprep.subr.bf16.mxu0 %v6230
      %7581 = vmatpush1.bf16.msra.mxu0 %v6229
      %7582 = vmatprep.subr.bf16.mxu0 %v6238
      %7583 = vmatpush1.bf16.msra.mxu0 %v6237
      %7584 = vmatprep.subr.bf16.mxu0 %v6246
      %7585 = vmatpush1.bf16.msra.mxu0 %v6245
      %7586 = vmatprep.mubr.bf16.mxu0 %v3592
      %7587 = vmatmul.mubr.bf16.gmra.mrb[0].mxu0 %v3591
      %v7588 = vpop.f32.mrb[0].mxu0
      %v7589 = vadd.f32 %v7476, %v7588
      %v7590 = vpop.f32.mrb[0].mxu0
      %v7591 = vadd.f32 %v7478, %v7590
      %v7592 = vpop.f32.mrb[0].mxu0
      %v7593 = vadd.f32 %v7480, %v7592
      %v7594 = vpop.f32.mrb[0].mxu0
      %v7595 = vadd.f32 %v7482, %v7594
      %7596 = vmatprep.mubr.bf16.mxu0 %v3600
      %7597 = vmatmul.mubr.bf16.gmra.mrb[0].mxu0 %v3599
      %v7598 = vpop.f32.mrb[0].mxu0
      %v7599 = vadd.f32 %v7486, %v7598
      %v7600 = vpop.f32.mrb[0].mxu0
      %v7601 = vadd.f32 %v7488, %v7600
      %v7602 = vpop.f32.mrb[0].mxu0
      %v7603 = vadd.f32 %v7490, %v7602
      %v7604 = vpop.f32.mrb[0].mxu0
      %v7605 = vadd.f32 %v7492, %v7604
      %7606 = vmatprep.mubr.bf16.mxu0 %v3608
      %7607 = vmatmul.mubr.bf16.gmra.mrb[0].mxu0 %v3607
      %v7608 = vpop.f32.mrb[0].mxu0
      %v7609 = vadd.f32 %v7496, %v7608
      %v7610 = vpop.f32.mrb[0].mxu0
      %v7611 = vadd.f32 %v7498, %v7610
      %v7612 = vpop.f32.mrb[0].mxu0
      %v7613 = vadd.f32 %v7500, %v7612
      %v7614 = vpop.f32.mrb[0].mxu0
      %v7615 = vadd.f32 %v7502, %v7614
      %7616 = vmatprep.mubr.bf16.mxu0 %v3616
      %7617 = vmatmul.mubr.bf16.gmra.mrb[0].mxu0 %v3615
      %v7618 = vpop.f32.mrb[0].mxu0
      %v7619 = vadd.f32 %v7506, %v7618
      %v7620 = vpop.f32.mrb[0].mxu0
      %v7621 = vadd.f32 %v7508, %v7620
      %v7622 = vpop.f32.mrb[0].mxu0
      %v7623 = vadd.f32 %v7510, %v7622
      %v7624 = vpop.f32.mrb[0].mxu0
      %v7625 = vadd.f32 %v7512, %v7624
      %7626 = vmatprep.mubr.bf16.mxu0 %v3624
      %7627 = vmatmul.mubr.bf16.gmra.mrb[0].mxu0 %v3623
      %v7628 = vpop.f32.mrb[0].mxu0
      %v7629 = vadd.f32 %v7516, %v7628
      %v7630 = vpop.f32.mrb[0].mxu0
      %v7631 = vadd.f32 %v7518, %v7630
      %v7632 = vpop.f32.mrb[0].mxu0
      %v7633 = vadd.f32 %v7520, %v7632
      %v7634 = vpop.f32.mrb[0].mxu0
      %v7635 = vadd.f32 %v7522, %v7634
      %7636 = vmatprep.mubr.bf16.mxu0 %v3632
      %7637 = vmatmul.mubr.bf16.gmra.mrb[0].mxu0 %v3631
      %v7638 = vpop.f32.mrb[0].mxu0
      %v7639 = vadd.f32 %v7526, %v7638
      %v7640 = vpop.f32.mrb[0].mxu0
      %v7641 = vadd.f32 %v7528, %v7640
      %v7642 = vpop.f32.mrb[0].mxu0
      %v7643 = vadd.f32 %v7530, %v7642
      %v7644 = vpop.f32.mrb[0].mxu0
      %v7645 = vadd.f32 %v7532, %v7644
      %7646 = vmatprep.mubr.bf16.mxu0 %v3640
      %7647 = vmatmul.mubr.bf16.gmra.mrb[0].mxu0 %v3639
      %v7648 = vpop.f32.mrb[0].mxu0
      %v7649 = vadd.f32 %v7536, %v7648
      %v7650 = vpop.f32.mrb[0].mxu0
      %v7651 = vadd.f32 %v7538, %v7650
      %v7652 = vpop.f32.mrb[0].mxu0
      %v7653 = vadd.f32 %v7540, %v7652
      %v7654 = vpop.f32.mrb[0].mxu0
      %v7655 = vadd.f32 %v7542, %v7654
      %7656 = vmatprep.mubr.bf16.mxu0 %v3648
      %7657 = vmatmul.mubr.bf16.gmra.mrb[0].mxu0 %v3647
      %v7658 = vpop.f32.mrb[0].mxu0
      %v7659 = vadd.f32 %v7546, %v7658
      %v7660 = vpop.f32.mrb[0].mxu0
      %v7661 = vadd.f32 %v7548, %v7660
      %v7662 = vpop.f32.mrb[0].mxu0
      %v7663 = vadd.f32 %v7550, %v7662
      %v7664 = vpop.f32.mrb[0].mxu0
      %v7665 = vadd.f32 %v7552, %v7664
      %7666 = vdwg.mxu0
      %7667 = vmatprep.subr.bf16.mxu0 %v5744
      %7668 = vmatpush1.bf16.msra.mxu0 %v5743
      %7669 = vmatprep.subr.bf16.mxu0 %v5752
      %7670 = vmatpush1.bf16.msra.mxu0 %v5751
      %7671 = vmatprep.subr.bf16.mxu0 %v5760
      %7672 = vmatpush1.bf16.msra.mxu0 %v5759
      %7673 = vmatprep.subr.bf16.mxu0 %v5768
      %7674 = vmatpush1.bf16.msra.mxu0 %v5767
      %7675 = vmatprep.subr.bf16.mxu0 %v5776
      %7676 = vmatpush1.bf16.msra.mxu0 %v5775
      %7677 = vmatprep.subr.bf16.mxu0 %v5784
      %7678 = vmatpush1.bf16.msra.mxu0 %v5783
      %7679 = vmatprep.subr.bf16.mxu0 %v5792
      %7680 = vmatpush1.bf16.msra.mxu0 %v5791
      %7681 = vmatprep.subr.bf16.mxu0 %v5800
      %7682 = vmatpush1.bf16.msra.mxu0 %v5799
      %7683 = vmatprep.subr.bf16.mxu0 %v5808
      %7684 = vmatpush1.bf16.msra.mxu0 %v5807
      %7685 = vmatprep.subr.bf16.mxu0 %v5816
      %7686 = vmatpush1.bf16.msra.mxu0 %v5815
      %7687 = vmatprep.subr.bf16.mxu0 %v5824
      %7688 = vmatpush1.bf16.msra.mxu0 %v5823
      %7689 = vmatprep.subr.bf16.mxu0 %v5832
      %7690 = vmatpush1.bf16.msra.mxu0 %v5831
      %7691 = vmatprep.subr.bf16.mxu0 %v5840
      %7692 = vmatpush1.bf16.msra.mxu0 %v5839
      %7693 = vmatprep.subr.bf16.mxu0 %v5848
      %7694 = vmatpush1.bf16.msra.mxu0 %v5847
      %7695 = vmatprep.subr.bf16.mxu0 %v5856
      %7696 = vmatpush1.bf16.msra.mxu0 %v5855
      %7697 = vmatprep.subr.bf16.mxu0 %v5864
      %7698 = vmatpush1.bf16.msra.mxu0 %v5863
      %7699 = vmatprep.mubr.bf16.mxu0 %v3586
      %7700 = vmatmul.mubr.bf16.gmra.mrb[0].mxu0 %v3585
      %v7701 = vpop.f32.mrb[0].mxu0
      %v7702 = vadd.f32 %v4182, %v7701
      %v7703 = vpop.f32.mrb[0].mxu0
      %v7704 = vadd.f32 %v4186, %v7703
      %v7705 = vpop.f32.mrb[0].mxu0
      %v7706 = vadd.f32 %v4182, %v7705
      %v7707 = vpop.f32.mrb[0].mxu0
      %v7708 = vadd.f32 %v4186, %v7707
      %7709 = vmatprep.mubr.bf16.mxu0 %v3594
      %7710 = vmatmul.mubr.bf16.gmra.mrb[0].mxu0 %v3593
      %v7711 = vpop.f32.mrb[0].mxu0
      %v7712 = vadd.f32 %v4182, %v7711
      %v7713 = vpop.f32.mrb[0].mxu0
      %v7714 = vadd.f32 %v4186, %v7713
      %v7715 = vpop.f32.mrb[0].mxu0
      %v7716 = vadd.f32 %v4182, %v7715
      %v7717 = vpop.f32.mrb[0].mxu0
      %v7718 = vadd.f32 %v4186, %v7717
      %7719 = vmatprep.mubr.bf16.mxu0 %v3602
      %7720 = vmatmul.mubr.bf16.gmra.mrb[0].mxu0 %v3601
      %v7721 = vpop.f32.mrb[0].mxu0
      %v7722 = vadd.f32 %v4182, %v7721
      %v7723 = vpop.f32.mrb[0].mxu0
      %v7724 = vadd.f32 %v4186, %v7723
      %v7725 = vpop.f32.mrb[0].mxu0
      %v7726 = vadd.f32 %v4182, %v7725
      %v7727 = vpop.f32.mrb[0].mxu0
      %v7728 = vadd.f32 %v4186, %v7727
      %7729 = vmatprep.mubr.bf16.mxu0 %v3610
      %7730 = vmatmul.mubr.bf16.gmra.mrb[0].mxu0 %v3609
      %v7731 = vpop.f32.mrb[0].mxu0
      %v7732 = vadd.f32 %v4182, %v7731
      %v7733 = vpop.f32.mrb[0].mxu0
      %v7734 = vadd.f32 %v4186, %v7733
      %v7735 = vpop.f32.mrb[0].mxu0
      %v7736 = vadd.f32 %v4182, %v7735
      %v7737 = vpop.f32.mrb[0].mxu0
      %v7738 = vadd.f32 %v4186, %v7737
      %7739 = vmatprep.mubr.bf16.mxu0 %v3618
      %7740 = vmatmul.mubr.bf16.gmra.mrb[0].mxu0 %v3617
      %v7741 = vpop.f32.mrb[0].mxu0
      %v7742 = vadd.f32 %v4182, %v7741
      %v7743 = vpop.f32.mrb[0].mxu0
      %v7744 = vadd.f32 %v4186, %v7743
      %v7745 = vpop.f32.mrb[0].mxu0
      %v7746 = vadd.f32 %v4182, %v7745
      %v7747 = vpop.f32.mrb[0].mxu0
      %v7748 = vadd.f32 %v4186, %v7747
      %7749 = vmatprep.mubr.bf16.mxu0 %v3626
      %7750 = vmatmul.mubr.bf16.gmra.mrb[0].mxu0 %v3625
      %v7751 = vpop.f32.mrb[0].mxu0
      %v7752 = vadd.f32 %v4182, %v7751
      %v7753 = vpop.f32.mrb[0].mxu0
      %v7754 = vadd.f32 %v4186, %v7753
      %v7755 = vpop.f32.mrb[0].mxu0
      %v7756 = vadd.f32 %v4182, %v7755
      %v7757 = vpop.f32.mrb[0].mxu0
      %v7758 = vadd.f32 %v4186, %v7757
      %7759 = vmatprep.mubr.bf16.mxu0 %v3634
      %7760 = vmatmul.mubr.bf16.gmra.mrb[0].mxu0 %v3633
      %v7761 = vpop.f32.mrb[0].mxu0
      %v7762 = vadd.f32 %v4182, %v7761
      %v7763 = vpop.f32.mrb[0].mxu0
      %v7764 = vadd.f32 %v4186, %v7763
      %v7765 = vpop.f32.mrb[0].mxu0
      %v7766 = vadd.f32 %v4182, %v7765
      %v7767 = vpop.f32.mrb[0].mxu0
      %v7768 = vadd.f32 %v4186, %v7767
      %7769 = vmatprep.mubr.bf16.mxu0 %v3642
      %7770 = vmatmul.mubr.bf16.gmra.mrb[0].mxu0 %v3641
      %v7771 = vpop.f32.mrb[0].mxu0
      %v7772 = vadd.f32 %v4182, %v7771
      %v7773 = vpop.f32.mrb[0].mxu0
      %v7774 = vadd.f32 %v4186, %v7773
      %v7775 = vpop.f32.mrb[0].mxu0
      %v7776 = vadd.f32 %v4182, %v7775
      %v7777 = vpop.f32.mrb[0].mxu0
      %v7778 = vadd.f32 %v4186, %v7777
      %7779 = vdwg.mxu0
      %7780 = vmatprep.subr.bf16.mxu0 %v5872
      %7781 = vmatpush1.bf16.msra.mxu0 %v5871
      %7782 = vmatprep.subr.bf16.mxu0 %v5880
      %7783 = vmatpush1.bf16.msra.mxu0 %v5879
      %7784 = vmatprep.subr.bf16.mxu0 %v5888
      %7785 = vmatpush1.bf16.msra.mxu0 %v5887
      %7786 = vmatprep.subr.bf16.mxu0 %v5896
      %7787 = vmatpush1.bf16.msra.mxu0 %v5895
      %7788 = vmatprep.subr.bf16.mxu0 %v5904
      %7789 = vmatpush1.bf16.msra.mxu0 %v5903
      %7790 = vmatprep.subr.bf16.mxu0 %v5912
      %7791 = vmatpush1.bf16.msra.mxu0 %v5911
      %7792 = vmatprep.subr.bf16.mxu0 %v5920
      %7793 = vmatpush1.bf16.msra.mxu0 %v5919
      %7794 = vmatprep.subr.bf16.mxu0 %v5928
      %7795 = vmatpush1.bf16.msra.mxu0 %v5927
      %7796 = vmatprep.subr.bf16.mxu0 %v5936
      %7797 = vmatpush1.bf16.msra.mxu0 %v5935
      %7798 = vmatprep.subr.bf16.mxu0 %v5944
      %7799 = vmatpush1.bf16.msra.mxu0 %v5943
      %7800 = vmatprep.subr.bf16.mxu0 %v5952
      %7801 = vmatpush1.bf16.msra.mxu0 %v5951
      %7802 = vmatprep.subr.bf16.mxu0 %v5960
      %7803 = vmatpush1.bf16.msra.mxu0 %v5959
      %7804 = vmatprep.subr.bf16.mxu0 %v5968
      %7805 = vmatpush1.bf16.msra.mxu0 %v5967
      %7806 = vmatprep.subr.bf16.mxu0 %v5976
      %7807 = vmatpush1.bf16.msra.mxu0 %v5975
      %7808 = vmatprep.subr.bf16.mxu0 %v5984
      %7809 = vmatpush1.bf16.msra.mxu0 %v5983
      %7810 = vmatprep.subr.bf16.mxu0 %v5992
      %7811 = vmatpush1.bf16.msra.mxu0 %v5991
      %7812 = vmatprep.mubr.bf16.mxu0 %v3588
      %7813 = vmatmul.mubr.bf16.gmra.mrb[0].mxu0 %v3587
      %v7814 = vpop.f32.mrb[0].mxu0
      %v7815 = vadd.f32 %v7702, %v7814
      %v7816 = vpop.f32.mrb[0].mxu0
      %v7817 = vadd.f32 %v7704, %v7816
      %v7818 = vpop.f32.mrb[0].mxu0
      %v7819 = vadd.f32 %v7706, %v7818
      %v7820 = vpop.f32.mrb[0].mxu0
      %v7821 = vadd.f32 %v7708, %v7820
      %7822 = vmatprep.mubr.bf16.mxu0 %v3596
      %7823 = vmatmul.mubr.bf16.gmra.mrb[0].mxu0 %v3595
      %v7824 = vpop.f32.mrb[0].mxu0
      %v7825 = vadd.f32 %v7712, %v7824
      %v7826 = vpop.f32.mrb[0].mxu0
      %v7827 = vadd.f32 %v7714, %v7826
      %v7828 = vpop.f32.mrb[0].mxu0
      %v7829 = vadd.f32 %v7716, %v7828
      %v7830 = vpop.f32.mrb[0].mxu0
      %v7831 = vadd.f32 %v7718, %v7830
      %7832 = vmatprep.mubr.bf16.mxu0 %v3604
      %7833 = vmatmul.mubr.bf16.gmra.mrb[0].mxu0 %v3603
      %v7834 = vpop.f32.mrb[0].mxu0
      %v7835 = vadd.f32 %v7722, %v7834
      %v7836 = vpop.f32.mrb[0].mxu0
      %v7837 = vadd.f32 %v7724, %v7836
      %v7838 = vpop.f32.mrb[0].mxu0
      %v7839 = vadd.f32 %v7726, %v7838
      %v7840 = vpop.f32.mrb[0].mxu0
      %v7841 = vadd.f32 %v7728, %v7840
      %7842 = vmatprep.mubr.bf16.mxu0 %v3612
      %7843 = vmatmul.mubr.bf16.gmra.mrb[0].mxu0 %v3611
      %v7844 = vpop.f32.mrb[0].mxu0
      %v7845 = vadd.f32 %v7732, %v7844
      %v7846 = vpop.f32.mrb[0].mxu0
      %v7847 = vadd.f32 %v7734, %v7846
      %v7848 = vpop.f32.mrb[0].mxu0
      %v7849 = vadd.f32 %v7736, %v7848
      %v7850 = vpop.f32.mrb[0].mxu0
      %v7851 = vadd.f32 %v7738, %v7850
      %7852 = vmatprep.mubr.bf16.mxu0 %v3620
      %7853 = vmatmul.mubr.bf16.gmra.mrb[0].mxu0 %v3619
      %v7854 = vpop.f32.mrb[0].mxu0
      %v7855 = vadd.f32 %v7742, %v7854
      %v7856 = vpop.f32.mrb[0].mxu0
      %v7857 = vadd.f32 %v7744, %v7856
      %v7858 = vpop.f32.mrb[0].mxu0
      %v7859 = vadd.f32 %v7746, %v7858
      %v7860 = vpop.f32.mrb[0].mxu0
      %v7861 = vadd.f32 %v7748, %v7860
      %7862 = vmatprep.mubr.bf16.mxu0 %v3628
      %7863 = vmatmul.mubr.bf16.gmra.mrb[0].mxu0 %v3627
      %v7864 = vpop.f32.mrb[0].mxu0
      %v7865 = vadd.f32 %v7752, %v7864
      %v7866 = vpop.f32.mrb[0].mxu0
      %v7867 = vadd.f32 %v7754, %v7866
      %v7868 = vpop.f32.mrb[0].mxu0
      %v7869 = vadd.f32 %v7756, %v7868
      %v7870 = vpop.f32.mrb[0].mxu0
      %v7871 = vadd.f32 %v7758, %v7870
      %7872 = vmatprep.mubr.bf16.mxu0 %v3636
      %7873 = vmatmul.mubr.bf16.gmra.mrb[0].mxu0 %v3635
      %v7874 = vpop.f32.mrb[0].mxu0
      %v7875 = vadd.f32 %v7762, %v7874
      %v7876 = vpop.f32.mrb[0].mxu0
      %v7877 = vadd.f32 %v7764, %v7876
      %v7878 = vpop.f32.mrb[0].mxu0
      %v7879 = vadd.f32 %v7766, %v7878
      %v7880 = vpop.f32.mrb[0].mxu0
      %v7881 = vadd.f32 %v7768, %v7880
      %7882 = vmatprep.mubr.bf16.mxu0 %v3644
      %7883 = vmatmul.mubr.bf16.gmra.mrb[0].mxu0 %v3643
      %v7884 = vpop.f32.mrb[0].mxu0
      %v7885 = vadd.f32 %v7772, %v7884
      %v7886 = vpop.f32.mrb[0].mxu0
      %v7887 = vadd.f32 %v7774, %v7886
      %v7888 = vpop.f32.mrb[0].mxu0
      %v7889 = vadd.f32 %v7776, %v7888
      %v7890 = vpop.f32.mrb[0].mxu0
      %v7891 = vadd.f32 %v7778, %v7890
      %7892 = vdwg.mxu0
      %7893 = vmatprep.subr.bf16.mxu0 %v6000
      %7894 = vmatpush1.bf16.msra.mxu0 %v5999
      %7895 = vmatprep.subr.bf16.mxu0 %v6008
      %7896 = vmatpush1.bf16.msra.mxu0 %v6007
      %7897 = vmatprep.subr.bf16.mxu0 %v6016
      %7898 = vmatpush1.bf16.msra.mxu0 %v6015
      %7899 = vmatprep.subr.bf16.mxu0 %v6024
      %7900 = vmatpush1.bf16.msra.mxu0 %v6023
      %7901 = vmatprep.subr.bf16.mxu0 %v6032
      %7902 = vmatpush1.bf16.msra.mxu0 %v6031
      %7903 = vmatprep.subr.bf16.mxu0 %v6040
      %7904 = vmatpush1.bf16.msra.mxu0 %v6039
      %7905 = vmatprep.subr.bf16.mxu0 %v6048
      %7906 = vmatpush1.bf16.msra.mxu0 %v6047
      %7907 = vmatprep.subr.bf16.mxu0 %v6056
      %7908 = vmatpush1.bf16.msra.mxu0 %v6055
      %7909 = vmatprep.subr.bf16.mxu0 %v6064
      %7910 = vmatpush1.bf16.msra.mxu0 %v6063
      %7911 = vmatprep.subr.bf16.mxu0 %v6072
      %7912 = vmatpush1.bf16.msra.mxu0 %v6071
      %7913 = vmatprep.subr.bf16.mxu0 %v6080
      %7914 = vmatpush1.bf16.msra.mxu0 %v6079
      %7915 = vmatprep.subr.bf16.mxu0 %v6088
      %7916 = vmatpush1.bf16.msra.mxu0 %v6087
      %7917 = vmatprep.subr.bf16.mxu0 %v6096
      %7918 = vmatpush1.bf16.msra.mxu0 %v6095
      %7919 = vmatprep.subr.bf16.mxu0 %v6104
      %7920 = vmatpush1.bf16.msra.mxu0 %v6103
      %7921 = vmatprep.subr.bf16.mxu0 %v6112
      %7922 = vmatpush1.bf16.msra.mxu0 %v6111
      %7923 = vmatprep.subr.bf16.mxu0 %v6120
      %7924 = vmatpush1.bf16.msra.mxu0 %v6119
      %7925 = vmatprep.mubr.bf16.mxu0 %v3590
      %7926 = vmatmul.mubr.bf16.gmra.mrb[0].mxu0 %v3589
      %v7927 = vpop.f32.mrb[0].mxu0
      %v7928 = vadd.f32 %v7815, %v7927
      %v7929 = vpop.f32.mrb[0].mxu0
      %v7930 = vadd.f32 %v7817, %v7929
      %v7931 = vpop.f32.mrb[0].mxu0
      %v7932 = vadd.f32 %v7819, %v7931
      %v7933 = vpop.f32.mrb[0].mxu0
      %v7934 = vadd.f32 %v7821, %v7933
      %7935 = vmatprep.mubr.bf16.mxu0 %v3598
      %7936 = vmatmul.mubr.bf16.gmra.mrb[0].mxu0 %v3597
      %v7937 = vpop.f32.mrb[0].mxu0
      %v7938 = vadd.f32 %v7825, %v7937
      %v7939 = vpop.f32.mrb[0].mxu0
      %v7940 = vadd.f32 %v7827, %v7939
      %v7941 = vpop.f32.mrb[0].mxu0
      %v7942 = vadd.f32 %v7829, %v7941
      %v7943 = vpop.f32.mrb[0].mxu0
      %v7944 = vadd.f32 %v7831, %v7943
      %7945 = vmatprep.mubr.bf16.mxu0 %v3606
      %7946 = vmatmul.mubr.bf16.gmra.mrb[0].mxu0 %v3605
      %v7947 = vpop.f32.mrb[0].mxu0
      %v7948 = vadd.f32 %v7835, %v7947
      %v7949 = vpop.f32.mrb[0].mxu0
      %v7950 = vadd.f32 %v7837, %v7949
      %v7951 = vpop.f32.mrb[0].mxu0
      %v7952 = vadd.f32 %v7839, %v7951
      %v7953 = vpop.f32.mrb[0].mxu0
      %v7954 = vadd.f32 %v7841, %v7953
      %7955 = vmatprep.mubr.bf16.mxu0 %v3614
      %7956 = vmatmul.mubr.bf16.gmra.mrb[0].mxu0 %v3613
      %v7957 = vpop.f32.mrb[0].mxu0
      %v7958 = vadd.f32 %v7845, %v7957
      %v7959 = vpop.f32.mrb[0].mxu0
      %v7960 = vadd.f32 %v7847, %v7959
      %v7961 = vpop.f32.mrb[0].mxu0
      %v7962 = vadd.f32 %v7849, %v7961
      %v7963 = vpop.f32.mrb[0].mxu0
      %v7964 = vadd.f32 %v7851, %v7963
      %7965 = vmatprep.mubr.bf16.mxu0 %v3622
      %7966 = vmatmul.mubr.bf16.gmra.mrb[0].mxu0 %v3621
      %v7967 = vpop.f32.mrb[0].mxu0
      %v7968 = vadd.f32 %v7855, %v7967
      %v7969 = vpop.f32.mrb[0].mxu0
      %v7970 = vadd.f32 %v7857, %v7969
      %v7971 = vpop.f32.mrb[0].mxu0
      %v7972 = vadd.f32 %v7859, %v7971
      %v7973 = vpop.f32.mrb[0].mxu0
      %v7974 = vadd.f32 %v7861, %v7973
      %7975 = vmatprep.mubr.bf16.mxu0 %v3630
      %7976 = vmatmul.mubr.bf16.gmra.mrb[0].mxu0 %v3629
      %v7977 = vpop.f32.mrb[0].mxu0
      %v7978 = vadd.f32 %v7865, %v7977
      %v7979 = vpop.f32.mrb[0].mxu0
      %v7980 = vadd.f32 %v7867, %v7979
      %v7981 = vpop.f32.mrb[0].mxu0
      %v7982 = vadd.f32 %v7869, %v7981
      %v7983 = vpop.f32.mrb[0].mxu0
      %v7984 = vadd.f32 %v7871, %v7983
      %7985 = vmatprep.mubr.bf16.mxu0 %v3638
      %7986 = vmatmul.mubr.bf16.gmra.mrb[0].mxu0 %v3637
      %v7987 = vpop.f32.mrb[0].mxu0
      %v7988 = vadd.f32 %v7875, %v7987
      %v7989 = vpop.f32.mrb[0].mxu0
      %v7990 = vadd.f32 %v7877, %v7989
      %v7991 = vpop.f32.mrb[0].mxu0
      %v7992 = vadd.f32 %v7879, %v7991
      %v7993 = vpop.f32.mrb[0].mxu0
      %v7994 = vadd.f32 %v7881, %v7993
      %7995 = vmatprep.mubr.bf16.mxu0 %v3646
      %7996 = vmatmul.mubr.bf16.gmra.mrb[0].mxu0 %v3645
      %v7997 = vpop.f32.mrb[0].mxu0
      %v7998 = vadd.f32 %v7885, %v7997
      %v7999 = vpop.f32.mrb[0].mxu0
      %v8000 = vadd.f32 %v7887, %v7999
      %v8001 = vpop.f32.mrb[0].mxu0
      %v8002 = vadd.f32 %v7889, %v8001
      %v8003 = vpop.f32.mrb[0].mxu0
      %v8004 = vadd.f32 %v7891, %v8003
      %8005 = vdwg.mxu0
      %8006 = vmatprep.subr.bf16.mxu0 %v6128
      %8007 = vmatpush1.bf16.msra.mxu0 %v6127
      %8008 = vmatprep.subr.bf16.mxu0 %v6136
      %8009 = vmatpush1.bf16.msra.mxu0 %v6135
      %8010 = vmatprep.subr.bf16.mxu0 %v6144
      %8011 = vmatpush1.bf16.msra.mxu0 %v6143
      %8012 = vmatprep.subr.bf16.mxu0 %v6152
      %8013 = vmatpush1.bf16.msra.mxu0 %v6151
      %8014 = vmatprep.subr.bf16.mxu0 %v6160
      %8015 = vmatpush1.bf16.msra.mxu0 %v6159
      %8016 = vmatprep.subr.bf16.mxu0 %v6168
      %8017 = vmatpush1.bf16.msra.mxu0 %v6167
      %8018 = vmatprep.subr.bf16.mxu0 %v6176
      %8019 = vmatpush1.bf16.msra.mxu0 %v6175
      %8020 = vmatprep.subr.bf16.mxu0 %v6184
      %8021 = vmatpush1.bf16.msra.mxu0 %v6183
      %8022 = vmatprep.subr.bf16.mxu0 %v6192
      %8023 = vmatpush1.bf16.msra.mxu0 %v6191
      %8024 = vmatprep.subr.bf16.mxu0 %v6200
      %8025 = vmatpush1.bf16.msra.mxu0 %v6199
      %8026 = vmatprep.subr.bf16.mxu0 %v6208
      %8027 = vmatpush1.bf16.msra.mxu0 %v6207
      %8028 = vmatprep.subr.bf16.mxu0 %v6216
      %8029 = vmatpush1.bf16.msra.mxu0 %v6215
      %8030 = vmatprep.subr.bf16.mxu0 %v6224
      %8031 = vmatpush1.bf16.msra.mxu0 %v6223
      %8032 = vmatprep.subr.bf16.mxu0 %v6232
      %8033 = vmatpush1.bf16.msra.mxu0 %v6231
      %8034 = vmatprep.subr.bf16.mxu0 %v6240
      %8035 = vmatpush1.bf16.msra.mxu0 %v6239
      %8036 = vmatprep.subr.bf16.mxu0 %v6248
      %8037 = vmatpush1.bf16.msra.mxu0 %v6247
      %8038 = vmatprep.mubr.bf16.mxu0 %v3592
      %8039 = vmatmul.mubr.bf16.gmra.mrb[0].mxu0 %v3591
      %v8040 = vpop.f32.mrb[0].mxu0
      %v8041 = vadd.f32 %v7928, %v8040
      %v8042 = vpop.f32.mrb[0].mxu0
      %v8043 = vadd.f32 %v7930, %v8042
      %v8044 = vpop.f32.mrb[0].mxu0
      %v8045 = vadd.f32 %v7932, %v8044
      %v8046 = vpop.f32.mrb[0].mxu0
      %v8047 = vadd.f32 %v7934, %v8046
      %8048 = vmatprep.mubr.bf16.mxu0 %v3600
      %8049 = vmatmul.mubr.bf16.gmra.mrb[0].mxu0 %v3599
      %v8050 = vpop.f32.mrb[0].mxu0
      %v8051 = vadd.f32 %v7938, %v8050
      %v8052 = vpop.f32.mrb[0].mxu0
      %v8053 = vadd.f32 %v7940, %v8052
      %v8054 = vpop.f32.mrb[0].mxu0
      %v8055 = vadd.f32 %v7942, %v8054
      %v8056 = vpop.f32.mrb[0].mxu0
      %v8057 = vadd.f32 %v7944, %v8056
      %8058 = vmatprep.mubr.bf16.mxu0 %v3608
      %8059 = vmatmul.mubr.bf16.gmra.mrb[0].mxu0 %v3607
      %v8060 = vpop.f32.mrb[0].mxu0
      %v8061 = vadd.f32 %v7948, %v8060
      %v8062 = vpop.f32.mrb[0].mxu0
      %v8063 = vadd.f32 %v7950, %v8062
      %v8064 = vpop.f32.mrb[0].mxu0
      %v8065 = vadd.f32 %v7952, %v8064
      %v8066 = vpop.f32.mrb[0].mxu0
      %v8067 = vadd.f32 %v7954, %v8066
      %8068 = vmatprep.mubr.bf16.mxu0 %v3616
      %8069 = vmatmul.mubr.bf16.gmra.mrb[0].mxu0 %v3615
      %v8070 = vpop.f32.mrb[0].mxu0
      %v8071 = vadd.f32 %v7958, %v8070
      %v8072 = vpop.f32.mrb[0].mxu0
      %v8073 = vadd.f32 %v7960, %v8072
      %v8074 = vpop.f32.mrb[0].mxu0
      %v8075 = vadd.f32 %v7962, %v8074
      %v8076 = vpop.f32.mrb[0].mxu0
      %v8077 = vadd.f32 %v7964, %v8076
      %8078 = vmatprep.mubr.bf16.mxu0 %v3624
      %8079 = vmatmul.mubr.bf16.gmra.mrb[0].mxu0 %v3623
      %v8080 = vpop.f32.mrb[0].mxu0
      %v8081 = vadd.f32 %v7968, %v8080
      %v8082 = vpop.f32.mrb[0].mxu0
      %v8083 = vadd.f32 %v7970, %v8082
      %v8084 = vpop.f32.mrb[0].mxu0
      %v8085 = vadd.f32 %v7972, %v8084
      %v8086 = vpop.f32.mrb[0].mxu0
      %v8087 = vadd.f32 %v7974, %v8086
      %8088 = vmatprep.mubr.bf16.mxu0 %v3632
      %8089 = vmatmul.mubr.bf16.gmra.mrb[0].mxu0 %v3631
      %v8090 = vpop.f32.mrb[0].mxu0
      %v8091 = vadd.f32 %v7978, %v8090
      %v8092 = vpop.f32.mrb[0].mxu0
      %v8093 = vadd.f32 %v7980, %v8092
      %v8094 = vpop.f32.mrb[0].mxu0
      %v8095 = vadd.f32 %v7982, %v8094
      %v8096 = vpop.f32.mrb[0].mxu0
      %v8097 = vadd.f32 %v7984, %v8096
      %8098 = vmatprep.mubr.bf16.mxu0 %v3640
      %8099 = vmatmul.mubr.bf16.gmra.mrb[0].mxu0 %v3639
      %v8100 = vpop.f32.mrb[0].mxu0
      %v8101 = vadd.f32 %v7988, %v8100
      %v8102 = vpop.f32.mrb[0].mxu0
      %v8103 = vadd.f32 %v7990, %v8102
      %v8104 = vpop.f32.mrb[0].mxu0
      %v8105 = vadd.f32 %v7992, %v8104
      %v8106 = vpop.f32.mrb[0].mxu0
      %v8107 = vadd.f32 %v7994, %v8106
      %8108 = vmatprep.mubr.bf16.mxu0 %v3648
      %8109 = vmatmul.mubr.bf16.gmra.mrb[0].mxu0 %v3647
      %v8110 = vpop.f32.mrb[0].mxu0
      %v8111 = vadd.f32 %v7998, %v8110
      %v8112 = vpop.f32.mrb[0].mxu0
      %v8113 = vadd.f32 %v8000, %v8112
      %v8114 = vpop.f32.mrb[0].mxu0
      %v8115 = vadd.f32 %v8002, %v8114
      %v8116 = vpop.f32.mrb[0].mxu0
      %v8117 = vadd.f32 %v8004, %v8116
      %8118 = vdwg.mxu0
      %8119 = vmatprep.subr.bf16.mxu0 %v5746
      %8120 = vmatpush1.bf16.msra.mxu0 %v5745
      %8121 = vmatprep.subr.bf16.mxu0 %v5754
      %8122 = vmatpush1.bf16.msra.mxu0 %v5753
      %8123 = vmatprep.subr.bf16.mxu0 %v5762
      %8124 = vmatpush1.bf16.msra.mxu0 %v5761
      %8125 = vmatprep.subr.bf16.mxu0 %v5770
      %8126 = vmatpush1.bf16.msra.mxu0 %v5769
      %8127 = vmatprep.subr.bf16.mxu0 %v5778
      %8128 = vmatpush1.bf16.msra.mxu0 %v5777
      %8129 = vmatprep.subr.bf16.mxu0 %v5786
      %8130 = vmatpush1.bf16.msra.mxu0 %v5785
      %8131 = vmatprep.subr.bf16.mxu0 %v5794
      %8132 = vmatpush1.bf16.msra.mxu0 %v5793
      %8133 = vmatprep.subr.bf16.mxu0 %v5802
      %8134 = vmatpush1.bf16.msra.mxu0 %v5801
      %8135 = vmatprep.subr.bf16.mxu0 %v5810
      %8136 = vmatpush1.bf16.msra.mxu0 %v5809
      %8137 = vmatprep.subr.bf16.mxu0 %v5818
      %8138 = vmatpush1.bf16.msra.mxu0 %v5817
      %8139 = vmatprep.subr.bf16.mxu0 %v5826
      %8140 = vmatpush1.bf16.msra.mxu0 %v5825
      %8141 = vmatprep.subr.bf16.mxu0 %v5834
      %8142 = vmatpush1.bf16.msra.mxu0 %v5833
      %8143 = vmatprep.subr.bf16.mxu0 %v5842
      %8144 = vmatpush1.bf16.msra.mxu0 %v5841
      %8145 = vmatprep.subr.bf16.mxu0 %v5850
      %8146 = vmatpush1.bf16.msra.mxu0 %v5849
      %8147 = vmatprep.subr.bf16.mxu0 %v5858
      %8148 = vmatpush1.bf16.msra.mxu0 %v5857
      %8149 = vmatprep.subr.bf16.mxu0 %v5866
      %8150 = vmatpush1.bf16.msra.mxu0 %v5865
      %8151 = vmatprep.mubr.bf16.mxu0 %v3586
      %8152 = vmatmul.mubr.bf16.gmra.mrb[0].mxu0 %v3585
      %v8153 = vpop.f32.mrb[0].mxu0
      %v8154 = vadd.f32 %v4190, %v8153
      %v8155 = vpop.f32.mrb[0].mxu0
      %v8156 = vadd.f32 %v4194, %v8155
      %v8157 = vpop.f32.mrb[0].mxu0
      %v8158 = vadd.f32 %v4190, %v8157
      %v8159 = vpop.f32.mrb[0].mxu0
      %v8160 = vadd.f32 %v4194, %v8159
      %8161 = vmatprep.mubr.bf16.mxu0 %v3594
      %8162 = vmatmul.mubr.bf16.gmra.mrb[0].mxu0 %v3593
      %v8163 = vpop.f32.mrb[0].mxu0
      %v8164 = vadd.f32 %v4190, %v8163
      %v8165 = vpop.f32.mrb[0].mxu0
      %v8166 = vadd.f32 %v4194, %v8165
      %v8167 = vpop.f32.mrb[0].mxu0
      %v8168 = vadd.f32 %v4190, %v8167
      %v8169 = vpop.f32.mrb[0].mxu0
      %v8170 = vadd.f32 %v4194, %v8169
      %8171 = vmatprep.mubr.bf16.mxu0 %v3602
      %8172 = vmatmul.mubr.bf16.gmra.mrb[0].mxu0 %v3601
      %v8173 = vpop.f32.mrb[0].mxu0
      %v8174 = vadd.f32 %v4190, %v8173
      %v8175 = vpop.f32.mrb[0].mxu0
      %v8176 = vadd.f32 %v4194, %v8175
      %v8177 = vpop.f32.mrb[0].mxu0
      %v8178 = vadd.f32 %v4190, %v8177
      %v8179 = vpop.f32.mrb[0].mxu0
      %v8180 = vadd.f32 %v4194, %v8179
      %8181 = vmatprep.mubr.bf16.mxu0 %v3610
      %8182 = vmatmul.mubr.bf16.gmra.mrb[0].mxu0 %v3609
      %v8183 = vpop.f32.mrb[0].mxu0
      %v8184 = vadd.f32 %v4190, %v8183
      %v8185 = vpop.f32.mrb[0].mxu0
      %v8186 = vadd.f32 %v4194, %v8185
      %v8187 = vpop.f32.mrb[0].mxu0
      %v8188 = vadd.f32 %v4190, %v8187
      %v8189 = vpop.f32.mrb[0].mxu0
      %v8190 = vadd.f32 %v4194, %v8189
      %8191 = vmatprep.mubr.bf16.mxu0 %v3618
      %8192 = vmatmul.mubr.bf16.gmra.mrb[0].mxu0 %v3617
      %v8193 = vpop.f32.mrb[0].mxu0
      %v8194 = vadd.f32 %v4190, %v8193
      %v8195 = vpop.f32.mrb[0].mxu0
      %v8196 = vadd.f32 %v4194, %v8195
      %v8197 = vpop.f32.mrb[0].mxu0
      %v8198 = vadd.f32 %v4190, %v8197
      %v8199 = vpop.f32.mrb[0].mxu0
      %v8200 = vadd.f32 %v4194, %v8199
      %8201 = vmatprep.mubr.bf16.mxu0 %v3626
      %8202 = vmatmul.mubr.bf16.gmra.mrb[0].mxu0 %v3625
      %v8203 = vpop.f32.mrb[0].mxu0
      %v8204 = vadd.f32 %v4190, %v8203
      %v8205 = vpop.f32.mrb[0].mxu0
      %v8206 = vadd.f32 %v4194, %v8205
      %v8207 = vpop.f32.mrb[0].mxu0
      %v8208 = vadd.f32 %v4190, %v8207
      %v8209 = vpop.f32.mrb[0].mxu0
      %v8210 = vadd.f32 %v4194, %v8209
      %8211 = vmatprep.mubr.bf16.mxu0 %v3634
      %8212 = vmatmul.mubr.bf16.gmra.mrb[0].mxu0 %v3633
      %v8213 = vpop.f32.mrb[0].mxu0
      %v8214 = vadd.f32 %v4190, %v8213
      %v8215 = vpop.f32.mrb[0].mxu0
      %v8216 = vadd.f32 %v4194, %v8215
      %v8217 = vpop.f32.mrb[0].mxu0
      %v8218 = vadd.f32 %v4190, %v8217
      %v8219 = vpop.f32.mrb[0].mxu0
      %v8220 = vadd.f32 %v4194, %v8219
      %8221 = vmatprep.mubr.bf16.mxu0 %v3642
      %8222 = vmatmul.mubr.bf16.gmra.mrb[0].mxu0 %v3641
      %v8223 = vpop.f32.mrb[0].mxu0
      %v8224 = vadd.f32 %v4190, %v8223
      %v8225 = vpop.f32.mrb[0].mxu0
      %v8226 = vadd.f32 %v4194, %v8225
      %v8227 = vpop.f32.mrb[0].mxu0
      %v8228 = vadd.f32 %v4190, %v8227
      %v8229 = vpop.f32.mrb[0].mxu0
      %v8230 = vadd.f32 %v4194, %v8229
      %8231 = vdwg.mxu0
      %8232 = vmatprep.subr.bf16.mxu0 %v5874
      %8233 = vmatpush1.bf16.msra.mxu0 %v5873
      %8234 = vmatprep.subr.bf16.mxu0 %v5882
      %8235 = vmatpush1.bf16.msra.mxu0 %v5881
      %8236 = vmatprep.subr.bf16.mxu0 %v5890
      %8237 = vmatpush1.bf16.msra.mxu0 %v5889
      %8238 = vmatprep.subr.bf16.mxu0 %v5898
      %8239 = vmatpush1.bf16.msra.mxu0 %v5897
      %8240 = vmatprep.subr.bf16.mxu0 %v5906
      %8241 = vmatpush1.bf16.msra.mxu0 %v5905
      %8242 = vmatprep.subr.bf16.mxu0 %v5914
      %8243 = vmatpush1.bf16.msra.mxu0 %v5913
      %8244 = vmatprep.subr.bf16.mxu0 %v5922
      %8245 = vmatpush1.bf16.msra.mxu0 %v5921
      %8246 = vmatprep.subr.bf16.mxu0 %v5930
      %8247 = vmatpush1.bf16.msra.mxu0 %v5929
      %8248 = vmatprep.subr.bf16.mxu0 %v5938
      %8249 = vmatpush1.bf16.msra.mxu0 %v5937
      %8250 = vmatprep.subr.bf16.mxu0 %v5946
      %8251 = vmatpush1.bf16.msra.mxu0 %v5945
      %8252 = vmatprep.subr.bf16.mxu0 %v5954
      %8253 = vmatpush1.bf16.msra.mxu0 %v5953
      %8254 = vmatprep.subr.bf16.mxu0 %v5962
      %8255 = vmatpush1.bf16.msra.mxu0 %v5961
      %8256 = vmatprep.subr.bf16.mxu0 %v5970
      %8257 = vmatpush1.bf16.msra.mxu0 %v5969
      %8258 = vmatprep.subr.bf16.mxu0 %v5978
      %8259 = vmatpush1.bf16.msra.mxu0 %v5977
      %8260 = vmatprep.subr.bf16.mxu0 %v5986
      %8261 = vmatpush1.bf16.msra.mxu0 %v5985
      %8262 = vmatprep.subr.bf16.mxu0 %v5994
      %8263 = vmatpush1.bf16.msra.mxu0 %v5993
      %8264 = vmatprep.mubr.bf16.mxu0 %v3588
      %8265 = vmatmul.mubr.bf16.gmra.mrb[0].mxu0 %v3587
      %v8266 = vpop.f32.mrb[0].mxu0
      %v8267 = vadd.f32 %v8154, %v8266
      %v8268 = vpop.f32.mrb[0].mxu0
      %v8269 = vadd.f32 %v8156, %v8268
      %v8270 = vpop.f32.mrb[0].mxu0
      %v8271 = vadd.f32 %v8158, %v8270
      %v8272 = vpop.f32.mrb[0].mxu0
      %v8273 = vadd.f32 %v8160, %v8272
      %8274 = vmatprep.mubr.bf16.mxu0 %v3596
      %8275 = vmatmul.mubr.bf16.gmra.mrb[0].mxu0 %v3595
      %v8276 = vpop.f32.mrb[0].mxu0
      %v8277 = vadd.f32 %v8164, %v8276
      %v8278 = vpop.f32.mrb[0].mxu0
      %v8279 = vadd.f32 %v8166, %v8278
      %v8280 = vpop.f32.mrb[0].mxu0
      %v8281 = vadd.f32 %v8168, %v8280
      %v8282 = vpop.f32.mrb[0].mxu0
      %v8283 = vadd.f32 %v8170, %v8282
      %8284 = vmatprep.mubr.bf16.mxu0 %v3604
      %8285 = vmatmul.mubr.bf16.gmra.mrb[0].mxu0 %v3603
      %v8286 = vpop.f32.mrb[0].mxu0
      %v8287 = vadd.f32 %v8174, %v8286
      %v8288 = vpop.f32.mrb[0].mxu0
      %v8289 = vadd.f32 %v8176, %v8288
      %v8290 = vpop.f32.mrb[0].mxu0
      %v8291 = vadd.f32 %v8178, %v8290
      %v8292 = vpop.f32.mrb[0].mxu0
      %v8293 = vadd.f32 %v8180, %v8292
      %8294 = vmatprep.mubr.bf16.mxu0 %v3612
      %8295 = vmatmul.mubr.bf16.gmra.mrb[0].mxu0 %v3611
      %v8296 = vpop.f32.mrb[0].mxu0
      %v8297 = vadd.f32 %v8184, %v8296
      %v8298 = vpop.f32.mrb[0].mxu0
      %v8299 = vadd.f32 %v8186, %v8298
      %v8300 = vpop.f32.mrb[0].mxu0
      %v8301 = vadd.f32 %v8188, %v8300
      %v8302 = vpop.f32.mrb[0].mxu0
      %v8303 = vadd.f32 %v8190, %v8302
      %8304 = vmatprep.mubr.bf16.mxu0 %v3620
      %8305 = vmatmul.mubr.bf16.gmra.mrb[0].mxu0 %v3619
      %v8306 = vpop.f32.mrb[0].mxu0
      %v8307 = vadd.f32 %v8194, %v8306
      %v8308 = vpop.f32.mrb[0].mxu0
      %v8309 = vadd.f32 %v8196, %v8308
      %v8310 = vpop.f32.mrb[0].mxu0
      %v8311 = vadd.f32 %v8198, %v8310
      %v8312 = vpop.f32.mrb[0].mxu0
      %v8313 = vadd.f32 %v8200, %v8312
      %8314 = vmatprep.mubr.bf16.mxu0 %v3628
      %8315 = vmatmul.mubr.bf16.gmra.mrb[0].mxu0 %v3627
      %v8316 = vpop.f32.mrb[0].mxu0
      %v8317 = vadd.f32 %v8204, %v8316
      %v8318 = vpop.f32.mrb[0].mxu0
      %v8319 = vadd.f32 %v8206, %v8318
      %v8320 = vpop.f32.mrb[0].mxu0
      %v8321 = vadd.f32 %v8208, %v8320
      %v8322 = vpop.f32.mrb[0].mxu0
      %v8323 = vadd.f32 %v8210, %v8322
      %8324 = vmatprep.mubr.bf16.mxu0 %v3636
      %8325 = vmatmul.mubr.bf16.gmra.mrb[0].mxu0 %v3635
      %v8326 = vpop.f32.mrb[0].mxu0
      %v8327 = vadd.f32 %v8214, %v8326
      %v8328 = vpop.f32.mrb[0].mxu0
      %v8329 = vadd.f32 %v8216, %v8328
      %v8330 = vpop.f32.mrb[0].mxu0
      %v8331 = vadd.f32 %v8218, %v8330
      %v8332 = vpop.f32.mrb[0].mxu0
      %v8333 = vadd.f32 %v8220, %v8332
      %8334 = vmatprep.mubr.bf16.mxu0 %v3644
      %8335 = vmatmul.mubr.bf16.gmra.mrb[0].mxu0 %v3643
      %v8336 = vpop.f32.mrb[0].mxu0
      %v8337 = vadd.f32 %v8224, %v8336
      %v8338 = vpop.f32.mrb[0].mxu0
      %v8339 = vadd.f32 %v8226, %v8338
      %v8340 = vpop.f32.mrb[0].mxu0
      %v8341 = vadd.f32 %v8228, %v8340
      %v8342 = vpop.f32.mrb[0].mxu0
      %v8343 = vadd.f32 %v8230, %v8342
      %8344 = vdwg.mxu0
      %8345 = vmatprep.subr.bf16.mxu0 %v6002
      %8346 = vmatpush1.bf16.msra.mxu0 %v6001
      %8347 = vmatprep.subr.bf16.mxu0 %v6010
      %8348 = vmatpush1.bf16.msra.mxu0 %v6009
      %8349 = vmatprep.subr.bf16.mxu0 %v6018
      %8350 = vmatpush1.bf16.msra.mxu0 %v6017
      %8351 = vmatprep.subr.bf16.mxu0 %v6026
      %8352 = vmatpush1.bf16.msra.mxu0 %v6025
      %8353 = vmatprep.subr.bf16.mxu0 %v6034
      %8354 = vmatpush1.bf16.msra.mxu0 %v6033
      %8355 = vmatprep.subr.bf16.mxu0 %v6042
      %8356 = vmatpush1.bf16.msra.mxu0 %v6041
      %8357 = vmatprep.subr.bf16.mxu0 %v6050
      %8358 = vmatpush1.bf16.msra.mxu0 %v6049
      %8359 = vmatprep.subr.bf16.mxu0 %v6058
      %8360 = vmatpush1.bf16.msra.mxu0 %v6057
      %8361 = vmatprep.subr.bf16.mxu0 %v6066
      %8362 = vmatpush1.bf16.msra.mxu0 %v6065
      %8363 = vmatprep.subr.bf16.mxu0 %v6074
      %8364 = vmatpush1.bf16.msra.mxu0 %v6073
      %8365 = vmatprep.subr.bf16.mxu0 %v6082
      %8366 = vmatpush1.bf16.msra.mxu0 %v6081
      %8367 = vmatprep.subr.bf16.mxu0 %v6090
      %8368 = vmatpush1.bf16.msra.mxu0 %v6089
      %8369 = vmatprep.subr.bf16.mxu0 %v6098
      %8370 = vmatpush1.bf16.msra.mxu0 %v6097
      %8371 = vmatprep.subr.bf16.mxu0 %v6106
      %8372 = vmatpush1.bf16.msra.mxu0 %v6105
      %8373 = vmatprep.subr.bf16.mxu0 %v6114
      %8374 = vmatpush1.bf16.msra.mxu0 %v6113
      %8375 = vmatprep.subr.bf16.mxu0 %v6122
      %8376 = vmatpush1.bf16.msra.mxu0 %v6121
      %8377 = vmatprep.mubr.bf16.mxu0 %v3590
      %8378 = vmatmul.mubr.bf16.gmra.mrb[0].mxu0 %v3589
      %v8379 = vpop.f32.mrb[0].mxu0
      %v8380 = vadd.f32 %v8267, %v8379
      %v8381 = vpop.f32.mrb[0].mxu0
      %v8382 = vadd.f32 %v8269, %v8381
      %v8383 = vpop.f32.mrb[0].mxu0
      %v8384 = vadd.f32 %v8271, %v8383
      %v8385 = vpop.f32.mrb[0].mxu0
      %v8386 = vadd.f32 %v8273, %v8385
      %8387 = vmatprep.mubr.bf16.mxu0 %v3598
      %8388 = vmatmul.mubr.bf16.gmra.mrb[0].mxu0 %v3597
      %v8389 = vpop.f32.mrb[0].mxu0
      %v8390 = vadd.f32 %v8277, %v8389
      %v8391 = vpop.f32.mrb[0].mxu0
      %v8392 = vadd.f32 %v8279, %v8391
      %v8393 = vpop.f32.mrb[0].mxu0
      %v8394 = vadd.f32 %v8281, %v8393
      %v8395 = vpop.f32.mrb[0].mxu0
      %v8396 = vadd.f32 %v8283, %v8395
      %8397 = vmatprep.mubr.bf16.mxu0 %v3606
      %8398 = vmatmul.mubr.bf16.gmra.mrb[0].mxu0 %v3605
      %v8399 = vpop.f32.mrb[0].mxu0
      %v8400 = vadd.f32 %v8287, %v8399
      %v8401 = vpop.f32.mrb[0].mxu0
      %v8402 = vadd.f32 %v8289, %v8401
      %v8403 = vpop.f32.mrb[0].mxu0
      %v8404 = vadd.f32 %v8291, %v8403
      %v8405 = vpop.f32.mrb[0].mxu0
      %v8406 = vadd.f32 %v8293, %v8405
      %8407 = vmatprep.mubr.bf16.mxu0 %v3614
      %8408 = vmatmul.mubr.bf16.gmra.mrb[0].mxu0 %v3613
      %v8409 = vpop.f32.mrb[0].mxu0
      %v8410 = vadd.f32 %v8297, %v8409
      %v8411 = vpop.f32.mrb[0].mxu0
      %v8412 = vadd.f32 %v8299, %v8411
      %v8413 = vpop.f32.mrb[0].mxu0
      %v8414 = vadd.f32 %v8301, %v8413
      %v8415 = vpop.f32.mrb[0].mxu0
      %v8416 = vadd.f32 %v8303, %v8415
      %8417 = vmatprep.mubr.bf16.mxu0 %v3622
      %8418 = vmatmul.mubr.bf16.gmra.mrb[0].mxu0 %v3621
      %v8419 = vpop.f32.mrb[0].mxu0
      %v8420 = vadd.f32 %v8307, %v8419
      %v8421 = vpop.f32.mrb[0].mxu0
      %v8422 = vadd.f32 %v8309, %v8421
      %v8423 = vpop.f32.mrb[0].mxu0
      %v8424 = vadd.f32 %v8311, %v8423
      %v8425 = vpop.f32.mrb[0].mxu0
      %v8426 = vadd.f32 %v8313, %v8425
      %8427 = vmatprep.mubr.bf16.mxu0 %v3630
      %8428 = vmatmul.mubr.bf16.gmra.mrb[0].mxu0 %v3629
      %v8429 = vpop.f32.mrb[0].mxu0
      %v8430 = vadd.f32 %v8317, %v8429
      %v8431 = vpop.f32.mrb[0].mxu0
      %v8432 = vadd.f32 %v8319, %v8431
      %v8433 = vpop.f32.mrb[0].mxu0
      %v8434 = vadd.f32 %v8321, %v8433
      %v8435 = vpop.f32.mrb[0].mxu0
      %v8436 = vadd.f32 %v8323, %v8435
      %8437 = vmatprep.mubr.bf16.mxu0 %v3638
      %8438 = vmatmul.mubr.bf16.gmra.mrb[0].mxu0 %v3637
      %v8439 = vpop.f32.mrb[0].mxu0
      %v8440 = vadd.f32 %v8327, %v8439
      %v8441 = vpop.f32.mrb[0].mxu0
      %v8442 = vadd.f32 %v8329, %v8441
      %v8443 = vpop.f32.mrb[0].mxu0
      %v8444 = vadd.f32 %v8331, %v8443
      %v8445 = vpop.f32.mrb[0].mxu0
      %v8446 = vadd.f32 %v8333, %v8445
      %8447 = vmatprep.mubr.bf16.mxu0 %v3646
      %8448 = vmatmul.mubr.bf16.gmra.mrb[0].mxu0 %v3645
      %v8449 = vpop.f32.mrb[0].mxu0
      %v8450 = vadd.f32 %v8337, %v8449
      %v8451 = vpop.f32.mrb[0].mxu0
      %v8452 = vadd.f32 %v8339, %v8451
      %v8453 = vpop.f32.mrb[0].mxu0
      %v8454 = vadd.f32 %v8341, %v8453
      %v8455 = vpop.f32.mrb[0].mxu0
      %v8456 = vadd.f32 %v8343, %v8455
      %8457 = vdwg.mxu0
      %8458 = vmatprep.subr.bf16.mxu0 %v6130
      %8459 = vmatpush1.bf16.msra.mxu0 %v6129
      %8460 = vmatprep.subr.bf16.mxu0 %v6138
      %8461 = vmatpush1.bf16.msra.mxu0 %v6137
      %8462 = vmatprep.subr.bf16.mxu0 %v6146
      %8463 = vmatpush1.bf16.msra.mxu0 %v6145
      %8464 = vmatprep.subr.bf16.mxu0 %v6154
      %8465 = vmatpush1.bf16.msra.mxu0 %v6153
      %8466 = vmatprep.subr.bf16.mxu0 %v6162
      %8467 = vmatpush1.bf16.msra.mxu0 %v6161
      %8468 = vmatprep.subr.bf16.mxu0 %v6170
      %8469 = vmatpush1.bf16.msra.mxu0 %v6169
      %8470 = vmatprep.subr.bf16.mxu0 %v6178
      %8471 = vmatpush1.bf16.msra.mxu0 %v6177
      %8472 = vmatprep.subr.bf16.mxu0 %v6186
      %8473 = vmatpush1.bf16.msra.mxu0 %v6185
      %8474 = vmatprep.subr.bf16.mxu0 %v6194
      %8475 = vmatpush1.bf16.msra.mxu0 %v6193
      %8476 = vmatprep.subr.bf16.mxu0 %v6202
      %8477 = vmatpush1.bf16.msra.mxu0 %v6201
      %8478 = vmatprep.subr.bf16.mxu0 %v6210
      %8479 = vmatpush1.bf16.msra.mxu0 %v6209
      %8480 = vmatprep.subr.bf16.mxu0 %v6218
      %8481 = vmatpush1.bf16.msra.mxu0 %v6217
      %8482 = vmatprep.subr.bf16.mxu0 %v6226
      %8483 = vmatpush1.bf16.msra.mxu0 %v6225
      %8484 = vmatprep.subr.bf16.mxu0 %v6234
      %8485 = vmatpush1.bf16.msra.mxu0 %v6233
      %8486 = vmatprep.subr.bf16.mxu0 %v6242
      %8487 = vmatpush1.bf16.msra.mxu0 %v6241
      %8488 = vmatprep.subr.bf16.mxu0 %v6250
      %8489 = vmatpush1.bf16.msra.mxu0 %v6249
      %8490 = vmatprep.mubr.bf16.mxu0 %v3592
      %8491 = vmatmul.mubr.bf16.gmra.mrb[0].mxu0 %v3591
      %v8492 = vpop.f32.mrb[0].mxu0
      %v8493 = vadd.f32 %v8380, %v8492
      %v8494 = vpop.f32.mrb[0].mxu0
      %v8495 = vadd.f32 %v8382, %v8494
      %v8496 = vpop.f32.mrb[0].mxu0
      %v8497 = vadd.f32 %v8384, %v8496
      %v8498 = vpop.f32.mrb[0].mxu0
      %v8499 = vadd.f32 %v8386, %v8498
      %8500 = vmatprep.mubr.bf16.mxu0 %v3600
      %8501 = vmatmul.mubr.bf16.gmra.mrb[0].mxu0 %v3599
      %v8502 = vpop.f32.mrb[0].mxu0
      %v8503 = vadd.f32 %v8390, %v8502
      %v8504 = vpop.f32.mrb[0].mxu0
      %v8505 = vadd.f32 %v8392, %v8504
      %v8506 = vpop.f32.mrb[0].mxu0
      %v8507 = vadd.f32 %v8394, %v8506
      %v8508 = vpop.f32.mrb[0].mxu0
      %v8509 = vadd.f32 %v8396, %v8508
      %8510 = vmatprep.mubr.bf16.mxu0 %v3608
      %8511 = vmatmul.mubr.bf16.gmra.mrb[0].mxu0 %v3607
      %v8512 = vpop.f32.mrb[0].mxu0
      %v8513 = vadd.f32 %v8400, %v8512
      %v8514 = vpop.f32.mrb[0].mxu0
      %v8515 = vadd.f32 %v8402, %v8514
      %v8516 = vpop.f32.mrb[0].mxu0
      %v8517 = vadd.f32 %v8404, %v8516
      %v8518 = vpop.f32.mrb[0].mxu0
      %v8519 = vadd.f32 %v8406, %v8518
      %8520 = vmatprep.mubr.bf16.mxu0 %v3616
      %8521 = vmatmul.mubr.bf16.gmra.mrb[0].mxu0 %v3615
      %v8522 = vpop.f32.mrb[0].mxu0
      %v8523 = vadd.f32 %v8410, %v8522
      %v8524 = vpop.f32.mrb[0].mxu0
      %v8525 = vadd.f32 %v8412, %v8524
      %v8526 = vpop.f32.mrb[0].mxu0
      %v8527 = vadd.f32 %v8414, %v8526
      %v8528 = vpop.f32.mrb[0].mxu0
      %v8529 = vadd.f32 %v8416, %v8528
      %8530 = vmatprep.mubr.bf16.mxu0 %v3624
      %8531 = vmatmul.mubr.bf16.gmra.mrb[0].mxu0 %v3623
      %v8532 = vpop.f32.mrb[0].mxu0
      %v8533 = vadd.f32 %v8420, %v8532
      %v8534 = vpop.f32.mrb[0].mxu0
      %v8535 = vadd.f32 %v8422, %v8534
      %v8536 = vpop.f32.mrb[0].mxu0
      %v8537 = vadd.f32 %v8424, %v8536
      %v8538 = vpop.f32.mrb[0].mxu0
      %v8539 = vadd.f32 %v8426, %v8538
      %8540 = vmatprep.mubr.bf16.mxu0 %v3632
      %8541 = vmatmul.mubr.bf16.gmra.mrb[0].mxu0 %v3631
      %v8542 = vpop.f32.mrb[0].mxu0
      %v8543 = vadd.f32 %v8430, %v8542
      %v8544 = vpop.f32.mrb[0].mxu0
      %v8545 = vadd.f32 %v8432, %v8544
      %v8546 = vpop.f32.mrb[0].mxu0
      %v8547 = vadd.f32 %v8434, %v8546
      %v8548 = vpop.f32.mrb[0].mxu0
      %v8549 = vadd.f32 %v8436, %v8548
      %8550 = vmatprep.mubr.bf16.mxu0 %v3640
      %8551 = vmatmul.mubr.bf16.gmra.mrb[0].mxu0 %v3639
      %v8552 = vpop.f32.mrb[0].mxu0
      %v8553 = vadd.f32 %v8440, %v8552
      %v8554 = vpop.f32.mrb[0].mxu0
      %v8555 = vadd.f32 %v8442, %v8554
      %v8556 = vpop.f32.mrb[0].mxu0
      %v8557 = vadd.f32 %v8444, %v8556
      %v8558 = vpop.f32.mrb[0].mxu0
      %v8559 = vadd.f32 %v8446, %v8558
      %8560 = vmatprep.mubr.bf16.mxu0 %v3648
      %8561 = vmatmul.mubr.bf16.gmra.mrb[0].mxu0 %v3647
      %v8562 = vpop.f32.mrb[0].mxu0
      %v8563 = vadd.f32 %v8450, %v8562
      %v8564 = vpop.f32.mrb[0].mxu0
      %v8565 = vadd.f32 %v8452, %v8564
      %v8566 = vpop.f32.mrb[0].mxu0
      %v8567 = vadd.f32 %v8454, %v8566
      %v8568 = vpop.f32.mrb[0].mxu0
      %v8569 = vadd.f32 %v8456, %v8568
      %8570 = vdwg.mxu0
      %v8571 = vmax.f32 %v7137, 0.0
      %v8572 = vmax.f32 %v7139, 0.0
      %v8573 = vmax.f32 %v7589, 0.0
      %v8574 = vmax.f32 %v7591, 0.0
      %v8575 = vmax.f32 %v8041, 0.0
      %v8576 = vmax.f32 %v8043, 0.0
      %v8577 = vmax.f32 %v8493, 0.0
      %v8578 = vmax.f32 %v8495, 0.0
      %v8579 = vmax.f32 %v7141, 0.0
      %v8580 = vmax.f32 %v7143, 0.0
      %v8581 = vmax.f32 %v7593, 0.0
      %v8582 = vmax.f32 %v7595, 0.0
      %v8583 = vmax.f32 %v8045, 0.0
      %v8584 = vmax.f32 %v8047, 0.0
      %v8585 = vmax.f32 %v8497, 0.0
      %v8586 = vmax.f32 %v8499, 0.0
      %v8587 = vmax.f32 %v7147, 0.0
      %v8588 = vmax.f32 %v7149, 0.0
      %v8589 = vmax.f32 %v7599, 0.0
      %v8590 = vmax.f32 %v7601, 0.0
      %v8591 = vmax.f32 %v8051, 0.0
      %v8592 = vmax.f32 %v8053, 0.0
      %v8593 = vmax.f32 %v8503, 0.0
      %v8594 = vmax.f32 %v8505, 0.0
      %v8595 = vmax.f32 %v7151, 0.0
      %v8596 = vmax.f32 %v7153, 0.0
      %v8597 = vmax.f32 %v7603, 0.0
      %v8598 = vmax.f32 %v7605, 0.0
      %v8599 = vmax.f32 %v8055, 0.0
      %v8600 = vmax.f32 %v8057, 0.0
      %v8601 = vmax.f32 %v8507, 0.0
      %v8602 = vmax.f32 %v8509, 0.0
      %v8603 = vmax.f32 %v7157, 0.0
      %v8604 = vmax.f32 %v7159, 0.0
      %v8605 = vmax.f32 %v7609, 0.0
      %v8606 = vmax.f32 %v7611, 0.0
      %v8607 = vmax.f32 %v8061, 0.0
      %v8608 = vmax.f32 %v8063, 0.0
      %v8609 = vmax.f32 %v8513, 0.0
      %v8610 = vmax.f32 %v8515, 0.0
      %v8611 = vmax.f32 %v7161, 0.0
      %v8612 = vmax.f32 %v7163, 0.0
      %v8613 = vmax.f32 %v7613, 0.0
      %v8614 = vmax.f32 %v7615, 0.0
      %v8615 = vmax.f32 %v8065, 0.0
      %v8616 = vmax.f32 %v8067, 0.0
      %v8617 = vmax.f32 %v8517, 0.0
      %v8618 = vmax.f32 %v8519, 0.0
      %v8619 = vmax.f32 %v7167, 0.0
      %v8620 = vmax.f32 %v7169, 0.0
      %v8621 = vmax.f32 %v7619, 0.0
      %v8622 = vmax.f32 %v7621, 0.0
      %v8623 = vmax.f32 %v8071, 0.0
      %v8624 = vmax.f32 %v8073, 0.0
      %v8625 = vmax.f32 %v8523, 0.0
      %v8626 = vmax.f32 %v8525, 0.0
      %v8627 = vmax.f32 %v7171, 0.0
      %v8628 = vmax.f32 %v7173, 0.0
      %v8629 = vmax.f32 %v7623, 0.0
      %v8630 = vmax.f32 %v7625, 0.0
      %v8631 = vmax.f32 %v8075, 0.0
      %v8632 = vmax.f32 %v8077, 0.0
      %v8633 = vmax.f32 %v8527, 0.0
      %v8634 = vmax.f32 %v8529, 0.0
      %v8635 = vmax.f32 %v7177, 0.0
      %v8636 = vmax.f32 %v7179, 0.0
      %v8637 = vmax.f32 %v7629, 0.0
      %v8638 = vmax.f32 %v7631, 0.0
      %v8639 = vmax.f32 %v8081, 0.0
      %v8640 = vmax.f32 %v8083, 0.0
      %v8641 = vmax.f32 %v8533, 0.0
      %v8642 = vmax.f32 %v8535, 0.0
      %v8643 = vmax.f32 %v7181, 0.0
      %v8644 = vmax.f32 %v7183, 0.0
      %v8645 = vmax.f32 %v7633, 0.0
      %v8646 = vmax.f32 %v7635, 0.0
      %v8647 = vmax.f32 %v8085, 0.0
      %v8648 = vmax.f32 %v8087, 0.0
      %v8649 = vmax.f32 %v8537, 0.0
      %v8650 = vmax.f32 %v8539, 0.0
      %v8651 = vmax.f32 %v7187, 0.0
      %v8652 = vmax.f32 %v7189, 0.0
      %v8653 = vmax.f32 %v7639, 0.0
      %v8654 = vmax.f32 %v7641, 0.0
      %v8655 = vmax.f32 %v8091, 0.0
      %v8656 = vmax.f32 %v8093, 0.0
      %v8657 = vmax.f32 %v8543, 0.0
      %v8658 = vmax.f32 %v8545, 0.0
      %v8659 = vmax.f32 %v7191, 0.0
      %v8660 = vmax.f32 %v7193, 0.0
      %v8661 = vmax.f32 %v7643, 0.0
      %v8662 = vmax.f32 %v7645, 0.0
      %v8663 = vmax.f32 %v8095, 0.0
      %v8664 = vmax.f32 %v8097, 0.0
      %v8665 = vmax.f32 %v8547, 0.0
      %v8666 = vmax.f32 %v8549, 0.0
      %v8667 = vmax.f32 %v7197, 0.0
      %v8668 = vmax.f32 %v7199, 0.0
      %v8669 = vmax.f32 %v7649, 0.0
      %v8670 = vmax.f32 %v7651, 0.0
      %v8671 = vmax.f32 %v8101, 0.0
      %v8672 = vmax.f32 %v8103, 0.0
      %v8673 = vmax.f32 %v8553, 0.0
      %v8674 = vmax.f32 %v8555, 0.0
      %v8675 = vmax.f32 %v7201, 0.0
      %v8676 = vmax.f32 %v7203, 0.0
      %v8677 = vmax.f32 %v7653, 0.0
      %v8678 = vmax.f32 %v7655, 0.0
      %v8679 = vmax.f32 %v8105, 0.0
      %v8680 = vmax.f32 %v8107, 0.0
      %v8681 = vmax.f32 %v8557, 0.0
      %v8682 = vmax.f32 %v8559, 0.0
      %v8683 = vmax.f32 %v7207, 0.0
      %v8684 = vmax.f32 %v7209, 0.0
      %v8685 = vmax.f32 %v7659, 0.0
      %v8686 = vmax.f32 %v7661, 0.0
      %v8687 = vmax.f32 %v8111, 0.0
      %v8688 = vmax.f32 %v8113, 0.0
      %v8689 = vmax.f32 %v8563, 0.0
      %v8690 = vmax.f32 %v8565, 0.0
      %v8691 = vmax.f32 %v7211, 0.0
      %v8692 = vmax.f32 %v7213, 0.0
      %v8693 = vmax.f32 %v7663, 0.0
      %v8694 = vmax.f32 %v7665, 0.0
      %v8695 = vmax.f32 %v8115, 0.0
      %v8696 = vmax.f32 %v8117, 0.0
      %v8697 = vmax.f32 %v8567, 0.0
      %v8698 = vmax.f32 %v8569, 0.0
      %v8699 = vld [vmem:[#allocation12] sm:$0xff]
      %v8700 = vunpack.c.l.bf16 %v8699
      %v8701 = vunpack.c.h.bf16 %v8699
      %v8704 = vlaneseq
      %v8705 = vshrl.u32 %v8704, 7
      %v8706 = vsub.s32 0, %v8705
      %v8707 = vrot.slane %v8700, %v8706
      %v8708 = vlaneseq
      %v8709 = vshrl.u32 %v8708, 7
      %v8710 = vsub.s32 2, %v8709
      %v8711 = vrot.slane %v8700, %v8710
      %v8712 = vlaneseq
      %v8713 = vshrl.u32 %v8712, 7
      %v8714 = vsub.s32 4, %v8713
      %v8715 = vrot.slane %v8700, %v8714
      %v8716 = vlaneseq
      %v8717 = vshrl.u32 %v8716, 7
      %v8718 = vsub.s32 6, %v8717
      %v8719 = vrot.slane %v8700, %v8718
      %v8720 = vlaneseq
      %v8721 = vshrl.u32 %v8720, 7
      %v8722 = vsub.s32 0, %v8721
      %v8723 = vrot.slane %v8701, %v8722
      %v8724 = vlaneseq
      %v8725 = vshrl.u32 %v8724, 7
      %v8726 = vsub.s32 2, %v8725
      %v8727 = vrot.slane %v8701, %v8726
      %v8728 = vlaneseq
      %v8729 = vshrl.u32 %v8728, 7
      %v8730 = vsub.s32 4, %v8729
      %v8731 = vrot.slane %v8701, %v8730
      %v8732 = vlaneseq
      %v8733 = vshrl.u32 %v8732, 7
      %v8734 = vsub.s32 6, %v8733
      %v8735 = vrot.slane %v8701, %v8734
      %v8744 = vlaneseq
      %v8745 = vshrl.u32 %v8744, 7
      %v8746 = vsub.s32 0, %v8745
      %v8747 = vrot.slane %v8707, %v8746
      %v8748 = vlaneseq
      %v8749 = vshrl.u32 %v8748, 7
      %v8750 = vsub.s32 0, %v8749
      %v8751 = vrot.slane %v8711, %v8750
      %v8752 = vlaneseq
      %v8753 = vshrl.u32 %v8752, 7
      %v8754 = vsub.s32 0, %v8753
      %v8755 = vrot.slane %v8715, %v8754
      %v8756 = vlaneseq
      %v8757 = vshrl.u32 %v8756, 7
      %v8758 = vsub.s32 0, %v8757
      %v8759 = vrot.slane %v8719, %v8758
      %v8760 = vlaneseq
      %v8761 = vshrl.u32 %v8760, 7
      %v8762 = vsub.s32 0, %v8761
      %v8763 = vrot.slane %v8723, %v8762
      %v8764 = vlaneseq
      %v8765 = vshrl.u32 %v8764, 7
      %v8766 = vsub.s32 0, %v8765
      %v8767 = vrot.slane %v8727, %v8766
      %v8768 = vlaneseq
      %v8769 = vshrl.u32 %v8768, 7
      %v8770 = vsub.s32 0, %v8769
      %v8771 = vrot.slane %v8731, %v8770
      %v8772 = vlaneseq
      %v8773 = vshrl.u32 %v8772, 7
      %v8774 = vsub.s32 0, %v8773
      %v8775 = vrot.slane %v8735, %v8774
      %v8776 = vmul.f32 %v8571, %v8747
      %v8777 = vmul.f32 %v8572, %v8751
      %v8778 = vmul.f32 %v8573, %v8755
      %v8779 = vmul.f32 %v8574, %v8759
      %v8780 = vmul.f32 %v8575, %v8763
      %v8781 = vmul.f32 %v8576, %v8767
      %v8782 = vmul.f32 %v8577, %v8771
      %v8783 = vmul.f32 %v8578, %v8775
      %v8784 = vmul.f32 %v8579, %v8747
      %v8785 = vmul.f32 %v8580, %v8751
      %v8786 = vmul.f32 %v8581, %v8755
      %v8787 = vmul.f32 %v8582, %v8759
      %v8788 = vmul.f32 %v8583, %v8763
      %v8789 = vmul.f32 %v8584, %v8767
      %v8790 = vmul.f32 %v8585, %v8771
      %v8791 = vmul.f32 %v8586, %v8775
      %v8792 = vmul.f32 %v8587, %v8747
      %v8793 = vmul.f32 %v8588, %v8751
      %v8794 = vmul.f32 %v8589, %v8755
      %v8795 = vmul.f32 %v8590, %v8759
      %v8796 = vmul.f32 %v8591, %v8763
      %v8797 = vmul.f32 %v8592, %v8767
      %v8798 = vmul.f32 %v8593, %v8771
      %v8799 = vmul.f32 %v8594, %v8775
      %v8800 = vmul.f32 %v8595, %v8747
      %v8801 = vmul.f32 %v8596, %v8751
      %v8802 = vmul.f32 %v8597, %v8755
      %v8803 = vmul.f32 %v8598, %v8759
      %v8804 = vmul.f32 %v8599, %v8763
      %v8805 = vmul.f32 %v8600, %v8767
      %v8806 = vmul.f32 %v8601, %v8771
      %v8807 = vmul.f32 %v8602, %v8775
      %v8808 = vmul.f32 %v8603, %v8747
      %v8809 = vmul.f32 %v8604, %v8751
      %v8810 = vmul.f32 %v8605, %v8755
      %v8811 = vmul.f32 %v8606, %v8759
      %v8812 = vmul.f32 %v8607, %v8763
      %v8813 = vmul.f32 %v8608, %v8767
      %v8814 = vmul.f32 %v8609, %v8771
      %v8815 = vmul.f32 %v8610, %v8775
      %v8816 = vmul.f32 %v8611, %v8747
      %v8817 = vmul.f32 %v8612, %v8751
      %v8818 = vmul.f32 %v8613, %v8755
      %v8819 = vmul.f32 %v8614, %v8759
      %v8820 = vmul.f32 %v8615, %v8763
      %v8821 = vmul.f32 %v8616, %v8767
      %v8822 = vmul.f32 %v8617, %v8771
      %v8823 = vmul.f32 %v8618, %v8775
      %v8824 = vmul.f32 %v8619, %v8747
      %v8825 = vmul.f32 %v8620, %v8751
      %v8826 = vmul.f32 %v8621, %v8755
      %v8827 = vmul.f32 %v8622, %v8759
      %v8828 = vmul.f32 %v8623, %v8763
      %v8829 = vmul.f32 %v8624, %v8767
      %v8830 = vmul.f32 %v8625, %v8771
      %v8831 = vmul.f32 %v8626, %v8775
      %v8832 = vmul.f32 %v8627, %v8747
      %v8833 = vmul.f32 %v8628, %v8751
      %v8834 = vmul.f32 %v8629, %v8755
      %v8835 = vmul.f32 %v8630, %v8759
      %v8836 = vmul.f32 %v8631, %v8763
      %v8837 = vmul.f32 %v8632, %v8767
      %v8838 = vmul.f32 %v8633, %v8771
      %v8839 = vmul.f32 %v8634, %v8775
      %v8840 = vmul.f32 %v8635, %v8747
      %v8841 = vmul.f32 %v8636, %v8751
      %v8842 = vmul.f32 %v8637, %v8755
      %v8843 = vmul.f32 %v8638, %v8759
      %v8844 = vmul.f32 %v8639, %v8763
      %v8845 = vmul.f32 %v8640, %v8767
      %v8846 = vmul.f32 %v8641, %v8771
      %v8847 = vmul.f32 %v8642, %v8775
      %v8848 = vmul.f32 %v8643, %v8747
      %v8849 = vmul.f32 %v8644, %v8751
      %v8850 = vmul.f32 %v8645, %v8755
      %v8851 = vmul.f32 %v8646, %v8759
      %v8852 = vmul.f32 %v8647, %v8763
      %v8853 = vmul.f32 %v8648, %v8767
      %v8854 = vmul.f32 %v8649, %v8771
      %v8855 = vmul.f32 %v8650, %v8775
      %v8856 = vmul.f32 %v8651, %v8747
      %v8857 = vmul.f32 %v8652, %v8751
      %v8858 = vmul.f32 %v8653, %v8755
      %v8859 = vmul.f32 %v8654, %v8759
      %v8860 = vmul.f32 %v8655, %v8763
      %v8861 = vmul.f32 %v8656, %v8767
      %v8862 = vmul.f32 %v8657, %v8771
      %v8863 = vmul.f32 %v8658, %v8775
      %v8864 = vmul.f32 %v8659, %v8747
      %v8865 = vmul.f32 %v8660, %v8751
      %v8866 = vmul.f32 %v8661, %v8755
      %v8867 = vmul.f32 %v8662, %v8759
      %v8868 = vmul.f32 %v8663, %v8763
      %v8869 = vmul.f32 %v8664, %v8767
      %v8870 = vmul.f32 %v8665, %v8771
      %v8871 = vmul.f32 %v8666, %v8775
      %v8872 = vmul.f32 %v8667, %v8747
      %v8873 = vmul.f32 %v8668, %v8751
      %v8874 = vmul.f32 %v8669, %v8755
      %v8875 = vmul.f32 %v8670, %v8759
      %v8876 = vmul.f32 %v8671, %v8763
      %v8877 = vmul.f32 %v8672, %v8767
      %v8878 = vmul.f32 %v8673, %v8771
      %v8879 = vmul.f32 %v8674, %v8775
      %v8880 = vmul.f32 %v8675, %v8747
      %v8881 = vmul.f32 %v8676, %v8751
      %v8882 = vmul.f32 %v8677, %v8755
      %v8883 = vmul.f32 %v8678, %v8759
      %v8884 = vmul.f32 %v8679, %v8763
      %v8885 = vmul.f32 %v8680, %v8767
      %v8886 = vmul.f32 %v8681, %v8771
      %v8887 = vmul.f32 %v8682, %v8775
      %v8888 = vmul.f32 %v8683, %v8747
      %v8889 = vmul.f32 %v8684, %v8751
      %v8890 = vmul.f32 %v8685, %v8755
      %v8891 = vmul.f32 %v8686, %v8759
      %v8892 = vmul.f32 %v8687, %v8763
      %v8893 = vmul.f32 %v8688, %v8767
      %v8894 = vmul.f32 %v8689, %v8771
      %v8895 = vmul.f32 %v8690, %v8775
      %v8896 = vmul.f32 %v8691, %v8747
      %v8897 = vmul.f32 %v8692, %v8751
      %v8898 = vmul.f32 %v8693, %v8755
      %v8899 = vmul.f32 %v8694, %v8759
      %v8900 = vmul.f32 %v8695, %v8763
      %v8901 = vmul.f32 %v8696, %v8767
      %v8902 = vmul.f32 %v8697, %v8771
      %v8903 = vmul.f32 %v8698, %v8775
      %v8904 = vadd.f32 %v8776, %v8777
      %v8905 = vadd.f32 %v8904, %v8778
      %v8906 = vadd.f32 %v8905, %v8779
      %v8907 = vadd.f32 %v8906, %v8780
      %v8908 = vadd.f32 %v8907, %v8781
      %v8909 = vadd.f32 %v8908, %v8782
      %v8910 = vadd.f32 %v8909, %v8783
      %8911 = vadd.xlane.f32.xlu0 %v8910
      %v8912 = vpop.xlane.xlu0 %8911
      %v8913 = vadd.f32 %v8784, %v8785
      %v8914 = vadd.f32 %v8913, %v8786
      %v8915 = vadd.f32 %v8914, %v8787
      %v8916 = vadd.f32 %v8915, %v8788
      %v8917 = vadd.f32 %v8916, %v8789
      %v8918 = vadd.f32 %v8917, %v8790
      %v8919 = vadd.f32 %v8918, %v8791
      %8920 = vadd.xlane.f32.xlu0 %v8919
      %v8921 = vpop.xlane.xlu0 %8920
      %v8922 = vadd.f32 %v8792, %v8793
      %v8923 = vadd.f32 %v8922, %v8794
      %v8924 = vadd.f32 %v8923, %v8795
      %v8925 = vadd.f32 %v8924, %v8796
      %v8926 = vadd.f32 %v8925, %v8797
      %v8927 = vadd.f32 %v8926, %v8798
      %v8928 = vadd.f32 %v8927, %v8799
      %8929 = vadd.xlane.f32.xlu0 %v8928
      %v8930 = vpop.xlane.xlu0 %8929
      %v8931 = vadd.f32 %v8800, %v8801
      %v8932 = vadd.f32 %v8931, %v8802
      %v8933 = vadd.f32 %v8932, %v8803
      %v8934 = vadd.f32 %v8933, %v8804
      %v8935 = vadd.f32 %v8934, %v8805
      %v8936 = vadd.f32 %v8935, %v8806
      %v8937 = vadd.f32 %v8936, %v8807
      %8938 = vadd.xlane.f32.xlu0 %v8937
      %v8939 = vpop.xlane.xlu0 %8938
      %v8940 = vadd.f32 %v8808, %v8809
      %v8941 = vadd.f32 %v8940, %v8810
      %v8942 = vadd.f32 %v8941, %v8811
      %v8943 = vadd.f32 %v8942, %v8812
      %v8944 = vadd.f32 %v8943, %v8813
      %v8945 = vadd.f32 %v8944, %v8814
      %v8946 = vadd.f32 %v8945, %v8815
      %8947 = vadd.xlane.f32.xlu0 %v8946
      %v8948 = vpop.xlane.xlu0 %8947
      %v8949 = vadd.f32 %v8816, %v8817
      %v8950 = vadd.f32 %v8949, %v8818
      %v8951 = vadd.f32 %v8950, %v8819
      %v8952 = vadd.f32 %v8951, %v8820
      %v8953 = vadd.f32 %v8952, %v8821
      %v8954 = vadd.f32 %v8953, %v8822
      %v8955 = vadd.f32 %v8954, %v8823
      %8956 = vadd.xlane.f32.xlu0 %v8955
      %v8957 = vpop.xlane.xlu0 %8956
      %v8958 = vadd.f32 %v8824, %v8825
      %v8959 = vadd.f32 %v8958, %v8826
      %v8960 = vadd.f32 %v8959, %v8827
      %v8961 = vadd.f32 %v8960, %v8828
      %v8962 = vadd.f32 %v8961, %v8829
      %v8963 = vadd.f32 %v8962, %v8830
      %v8964 = vadd.f32 %v8963, %v8831
      %8965 = vadd.xlane.f32.xlu0 %v8964
      %v8966 = vpop.xlane.xlu0 %8965
      %v8967 = vadd.f32 %v8832, %v8833
      %v8968 = vadd.f32 %v8967, %v8834
      %v8969 = vadd.f32 %v8968, %v8835
      %v8970 = vadd.f32 %v8969, %v8836
      %v8971 = vadd.f32 %v8970, %v8837
      %v8972 = vadd.f32 %v8971, %v8838
      %v8973 = vadd.f32 %v8972, %v8839
      %8974 = vadd.xlane.f32.xlu0 %v8973
      %v8975 = vpop.xlane.xlu0 %8974
      %v8976 = vadd.f32 %v8840, %v8841
      %v8977 = vadd.f32 %v8976, %v8842
      %v8978 = vadd.f32 %v8977, %v8843
      %v8979 = vadd.f32 %v8978, %v8844
      %v8980 = vadd.f32 %v8979, %v8845
      %v8981 = vadd.f32 %v8980, %v8846
      %v8982 = vadd.f32 %v8981, %v8847
      %8983 = vadd.xlane.f32.xlu0 %v8982
      %v8984 = vpop.xlane.xlu0 %8983
      %v8985 = vadd.f32 %v8848, %v8849
      %v8986 = vadd.f32 %v8985, %v8850
      %v8987 = vadd.f32 %v8986, %v8851
      %v8988 = vadd.f32 %v8987, %v8852
      %v8989 = vadd.f32 %v8988, %v8853
      %v8990 = vadd.f32 %v8989, %v8854
      %v8991 = vadd.f32 %v8990, %v8855
      %8992 = vadd.xlane.f32.xlu0 %v8991
      %v8993 = vpop.xlane.xlu0 %8992
      %v8994 = vadd.f32 %v8856, %v8857
      %v8995 = vadd.f32 %v8994, %v8858
      %v8996 = vadd.f32 %v8995, %v8859
      %v8997 = vadd.f32 %v8996, %v8860
      %v8998 = vadd.f32 %v8997, %v8861
      %v8999 = vadd.f32 %v8998, %v8862
      %v9000 = vadd.f32 %v8999, %v8863
      %9001 = vadd.xlane.f32.xlu0 %v9000
      %v9002 = vpop.xlane.xlu0 %9001
      %v9003 = vadd.f32 %v8864, %v8865
      %v9004 = vadd.f32 %v9003, %v8866
      %v9005 = vadd.f32 %v9004, %v8867
      %v9006 = vadd.f32 %v9005, %v8868
      %v9007 = vadd.f32 %v9006, %v8869
      %v9008 = vadd.f32 %v9007, %v8870
      %v9009 = vadd.f32 %v9008, %v8871
      %9010 = vadd.xlane.f32.xlu0 %v9009
      %v9011 = vpop.xlane.xlu0 %9010
      %v9012 = vadd.f32 %v8872, %v8873
      %v9013 = vadd.f32 %v9012, %v8874
      %v9014 = vadd.f32 %v9013, %v8875
      %v9015 = vadd.f32 %v9014, %v8876
      %v9016 = vadd.f32 %v9015, %v8877
      %v9017 = vadd.f32 %v9016, %v8878
      %v9018 = vadd.f32 %v9017, %v8879
      %9019 = vadd.xlane.f32.xlu0 %v9018
      %v9020 = vpop.xlane.xlu0 %9019
      %v9021 = vadd.f32 %v8880, %v8881
      %v9022 = vadd.f32 %v9021, %v8882
      %v9023 = vadd.f32 %v9022, %v8883
      %v9024 = vadd.f32 %v9023, %v8884
      %v9025 = vadd.f32 %v9024, %v8885
      %v9026 = vadd.f32 %v9025, %v8886
      %v9027 = vadd.f32 %v9026, %v8887
      %9028 = vadd.xlane.f32.xlu0 %v9027
      %v9029 = vpop.xlane.xlu0 %9028
      %v9030 = vadd.f32 %v8888, %v8889
      %v9031 = vadd.f32 %v9030, %v8890
      %v9032 = vadd.f32 %v9031, %v8891
      %v9033 = vadd.f32 %v9032, %v8892
      %v9034 = vadd.f32 %v9033, %v8893
      %v9035 = vadd.f32 %v9034, %v8894
      %v9036 = vadd.f32 %v9035, %v8895
      %9037 = vadd.xlane.f32.xlu0 %v9036
      %v9038 = vpop.xlane.xlu0 %9037
      %v9039 = vadd.f32 %v8896, %v8897
      %v9040 = vadd.f32 %v9039, %v8898
      %v9041 = vadd.f32 %v9040, %v8899
      %v9042 = vadd.f32 %v9041, %v8900
      %v9043 = vadd.f32 %v9042, %v8901
      %v9044 = vadd.f32 %v9043, %v8902
      %v9045 = vadd.f32 %v9044, %v8903
      %9046 = vadd.xlane.f32.xlu0 %v9045
      %v9047 = vpop.xlane.xlu0 %9046
      %v9048 = vld [vmem:[#allocation3] sm:$0x1]
      %v9050 = vlaneseq
      %v9051 = vshrl.u32 %v9050, 7
      %v9052 = vsub.s32 0, %v9051
      %v9053 = vrot.slane %v9048, %v9052
      %v9055 = vadd.f32 %v8912, %v9053
      %v9056 = vadd.f32 %v8921, %v9053
      %v9057 = vadd.f32 %v8930, %v9053
      %v9058 = vadd.f32 %v8939, %v9053
      %v9059 = vadd.f32 %v8948, %v9053
      %v9060 = vadd.f32 %v8957, %v9053
      %v9061 = vadd.f32 %v8966, %v9053
      %v9062 = vadd.f32 %v8975, %v9053
      %v9063 = vadd.f32 %v8984, %v9053
      %v9064 = vadd.f32 %v8993, %v9053
      %v9065 = vadd.f32 %v9002, %v9053
      %v9066 = vadd.f32 %v9011, %v9053
      %v9067 = vadd.f32 %v9020, %v9053
      %v9068 = vadd.f32 %v9029, %v9053
      %v9069 = vadd.f32 %v9038, %v9053
      %v9070 = vadd.f32 %v9047, %v9053
      %v9071 = vxor.u32 %v9055, 2147483648
      %v9072 = vxor.u32 %v9056, 2147483648
      %v9073 = vxor.u32 %v9057, 2147483648
      %v9074 = vxor.u32 %v9058, 2147483648
      %v9075 = vxor.u32 %v9059, 2147483648
      %v9076 = vxor.u32 %v9060, 2147483648
      %v9077 = vxor.u32 %v9061, 2147483648
      %v9078 = vxor.u32 %v9062, 2147483648
      %v9079 = vxor.u32 %v9063, 2147483648
      %v9080 = vxor.u32 %v9064, 2147483648
      %v9081 = vxor.u32 %v9065, 2147483648
      %v9082 = vxor.u32 %v9066, 2147483648
      %v9083 = vxor.u32 %v9067, 2147483648
      %v9084 = vxor.u32 %v9068, 2147483648
      %v9085 = vxor.u32 %v9069, 2147483648
      %v9086 = vxor.u32 %v9070, 2147483648
      %v9087 = vmul.f32 %v9071, 1.442695
      %v9088 = vpow.pop %v9087
      %v9089 = vmul.f32 %v9072, 1.442695
      %v9090 = vpow.pop %v9089
      %v9091 = vmul.f32 %v9073, 1.442695
      %v9092 = vpow.pop %v9091
      %v9093 = vmul.f32 %v9074, 1.442695
      %v9094 = vpow.pop %v9093
      %v9095 = vmul.f32 %v9075, 1.442695
      %v9096 = vpow.pop %v9095
      %v9097 = vmul.f32 %v9076, 1.442695
      %v9098 = vpow.pop %v9097
      %v9099 = vmul.f32 %v9077, 1.442695
      %v9100 = vpow.pop %v9099
      %v9101 = vmul.f32 %v9078, 1.442695
      %v9102 = vpow.pop %v9101
      %v9103 = vmul.f32 %v9079, 1.442695
      %v9104 = vpow.pop %v9103
      %v9105 = vmul.f32 %v9080, 1.442695
      %v9106 = vpow.pop %v9105
      %v9107 = vmul.f32 %v9081, 1.442695
      %v9108 = vpow.pop %v9107
      %v9109 = vmul.f32 %v9082, 1.442695
      %v9110 = vpow.pop %v9109
      %v9111 = vmul.f32 %v9083, 1.442695
      %v9112 = vpow.pop %v9111
      %v9113 = vmul.f32 %v9084, 1.442695
      %v9114 = vpow.pop %v9113
      %v9115 = vmul.f32 %v9085, 1.442695
      %v9116 = vpow.pop %v9115
      %v9117 = vmul.f32 %v9086, 1.442695
      %v9118 = vpow.pop %v9117
      %v9119 = vadd.f32 %v9088, 1.0
      %v9120 = vadd.f32 %v9090, 1.0
      %v9121 = vadd.f32 %v9092, 1.0
      %v9122 = vadd.f32 %v9094, 1.0
      %v9123 = vadd.f32 %v9096, 1.0
      %v9124 = vadd.f32 %v9098, 1.0
      %v9125 = vadd.f32 %v9100, 1.0
      %v9126 = vadd.f32 %v9102, 1.0
      %v9127 = vadd.f32 %v9104, 1.0
      %v9128 = vadd.f32 %v9106, 1.0
      %v9129 = vadd.f32 %v9108, 1.0
      %v9130 = vadd.f32 %v9110, 1.0
      %v9131 = vadd.f32 %v9112, 1.0
      %v9132 = vadd.f32 %v9114, 1.0
      %v9133 = vadd.f32 %v9116, 1.0
      %v9134 = vadd.f32 %v9118, 1.0
      %v9135 = vrcp.pop %v9119
      %v9136 = vmul.f32 1.0, %v9135
      %v9137 = vrcp.pop %v9120
      %v9138 = vmul.f32 1.0, %v9137
      %v9139 = vrcp.pop %v9121
      %v9140 = vmul.f32 1.0, %v9139
      %v9141 = vrcp.pop %v9122
      %v9142 = vmul.f32 1.0, %v9141
      %v9143 = vrcp.pop %v9123
      %v9144 = vmul.f32 1.0, %v9143
      %v9145 = vrcp.pop %v9124
      %v9146 = vmul.f32 1.0, %v9145
      %v9147 = vrcp.pop %v9125
      %v9148 = vmul.f32 1.0, %v9147
      %v9149 = vrcp.pop %v9126
      %v9150 = vmul.f32 1.0, %v9149
      %v9151 = vrcp.pop %v9127
      %v9152 = vmul.f32 1.0, %v9151
      %v9153 = vrcp.pop %v9128
      %v9154 = vmul.f32 1.0, %v9153
      %v9155 = vrcp.pop %v9129
      %v9156 = vmul.f32 1.0, %v9155
      %v9157 = vrcp.pop %v9130
      %v9158 = vmul.f32 1.0, %v9157
      %v9159 = vrcp.pop %v9131
      %v9160 = vmul.f32 1.0, %v9159
      %v9161 = vrcp.pop %v9132
      %v9162 = vmul.f32 1.0, %v9161
      %v9163 = vrcp.pop %v9133
      %v9164 = vmul.f32 1.0, %v9163
      %v9165 = vrcp.pop %v9134
      %v9166 = vmul.f32 1.0, %v9165
      %vm9167 = vcmask 7168
      %9168 = vst.msk [vmem:[%s7] sm:$0xff] %vm9167, %v9136
      %9169 = vst.msk [vmem:[%s7 + $0x8] sm:$0xff] %vm9167, %v9138
      %9170 = vst.msk [vmem:[%s7 + $0x10] sm:$0xff] %vm9167, %v9140
      %9171 = vst.msk [vmem:[%s7 + $0x18] sm:$0xff] %vm9167, %v9142
      %9172 = vst.msk [vmem:[%s7 + $0x20] sm:$0xff] %vm9167, %v9144
      %9173 = vst.msk [vmem:[%s7 + $0x28] sm:$0xff] %vm9167, %v9146
      %9174 = vst.msk [vmem:[%s7 + $0x30] sm:$0xff] %vm9167, %v9148
      %9175 = vst.msk [vmem:[%s7 + $0x38] sm:$0xff] %vm9167, %v9150
      %9176 = vst.msk [vmem:[%s7 + $0x40] sm:$0xff] %vm9167, %v9152
      %9177 = vst.msk [vmem:[%s7 + $0x48] sm:$0xff] %vm9167, %v9154
      %9178 = vst.msk [vmem:[%s7 + $0x50] sm:$0xff] %vm9167, %v9156
      %9179 = vst.msk [vmem:[%s7 + $0x58] sm:$0xff] %vm9167, %v9158
      %9180 = vst.msk [vmem:[%s7 + $0x60] sm:$0xff] %vm9167, %v9160
      %9181 = vst.msk [vmem:[%s7 + $0x68] sm:$0xff] %vm9167, %v9162
      %9182 = vst.msk [vmem:[%s7 + $0x70] sm:$0xff] %vm9167, %v9164
      %9183 = vst.msk [vmem:[%s7 + $0x78] sm:$0xff] %vm9167, %v9166
    $region61: #{tpu_custom_call.1} parent=1 // pred_fallthru
      _
    // Predicated region
    $region62: #{tpu_custom_call.1} parent=1 // pred_check
      _
    $region63: #{tpu_custom_call.1} parent=1 // pred_check_branch
      %9185 = sbr.rel (0) target = $region65
    $region64: #{tpu_custom_call.1} parent=1 // pred_region
      _
    $region65: #{tpu_custom_call.1} parent=1 // pred_fallthru
      _
    // Predicated region
    $region66: #{tpu_custom_call.1} parent=1 // pred_check
      _
    $region67: #{tpu_custom_call.1} parent=1 // pred_check_branch
      %9187 = sbr.rel (0) target = $region69
    $region68: #{tpu_custom_call.1} parent=1 // pred_region
      _
    $region69: #{tpu_custom_call.1} parent=1 // pred_fallthru
      _
    %9188 = vsyncpa [#allocation5], 1
    %9189 = vsyncpa [#allocation7], 1
    %9190 = vsyncpa [#allocation10], 1
    %9191 = vsyncpa [#allocation13], 1

</llo_original>
